<compile_context>
chip_gen: v5e
topology: v5e:2x2
jax: 0.10.0
libtpu: 0.0.40
codegen_flags: <defaults>
</compile_context>

<pallas_src>
import functools

import jax
import jax.numpy as jnp
from jax import lax
from jax.experimental import pallas as pl
from jax.experimental.pallas import tpu as pltpu

LANE = 128


def _round_up(x, m):
    return (x + m - 1) // m * m


# ---------------------------------------------------------------------------
# Fused Pallas kernel: nb_layers x [3x3 conv + folded BN + ReLU] (+ 2x2 maxpool)
# ---------------------------------------------------------------------------
def _encode_block_kernel(*refs, H, W, cp_ins, cp_outs, nb_layers, pool):
    """refs = (x, [w, scale, bias] * nb_layers, [sel], out, pad, col).

    x_ref   : (1, H, W, cp_ins[0])        bf16  one image, NHWC, channel-padded
    w_ref_l : (9*cp_ins[l], cp_outs[l])   bf16  tap-major im2col conv weights
    s_ref_l : (1, cp_outs[l])             f32   folded BN scale (0 on pad chans)
    b_ref_l : (1, cp_outs[l])             f32   folded BN bias  (0 on pad chans)
    sel_ref : (n_out, n_in)               f32   0/1 even-column selection (pool only)
    o_ref   : (1, npos, cp_outs[-1])      f32   lane-dense output slab
    pad_ref : VMEM (H+2, W+2, CPA)        bf16  shared padded-activation scratch
    col_ref : VMEM (H, W, 9*CPA)          bf16  shared im2col slab
    """
    n_in_refs = 1 + 3 * nb_layers + (1 if pool else 0)
    x_ref = refs[0]
    layer_refs = refs[1:1 + 3 * nb_layers]
    sel_ref = refs[1 + 3 * nb_layers] if pool else None
    o_ref = refs[n_in_refs]
    pad_ref = refs[n_in_refs + 1]
    col_ref = refs[n_in_refs + 2]

    CPA = max(cp_ins)

    # Zero ONLY the 1-pixel border, once per grid step.  Invariant (guarded by
    # construction): the interior store below never touches the border, and
    # every layer reads only the channel range it just wrote.
    zrow = jnp.zeros((1, W + 2, CPA), jnp.bfloat16)
    zcol = jnp.zeros((H + 2, 1, CPA), jnp.bfloat16)
    pad_ref[0:1, :, :] = zrow
    pad_ref[H + 1:H + 2, :, :] = zrow
    pad_ref[:, 0:1, :] = zcol
    pad_ref[:, W + 1:W + 2, :] = zcol

    act_bf16 = x_ref[0]                                  # (H, W, cp_ins[0]) bf16
    y = None
    for l in range(nb_layers):                           # statically unrolled
        cpi = cp_ins[l]
        cpo = cp_outs[l]
        w_ref = layer_refs[3 * l + 0]
        s_ref = layer_refs[3 * l + 1]
        b_ref = layer_refs[3 * l + 2]

        # 'same' zero padding: interior write only (border stays zero).
        pad_ref[1:H + 1, 1:W + 1, :cpi] = act_bf16

        # im2col slab: 9 statically-unrolled shifted windows, lane-aligned
        # destinations (cpi is a multiple of 128), bf16 -> bf16 (no casts).
        for dy in range(3):
            for dx in range(3):
                t = dy * 3 + dx
                col_ref[:, :, t * cpi:(t + 1) * cpi] = (
                    pad_ref[dy:dy + H, dx:dx + W, :cpi])

        # Single MXU matmul per layer: (H*W, 9*cpi) x (9*cpi, cpo), f32 accum.
        # TODO(synk): tile over M (e.g. 256-row chunks) for large H*W.
        slab = col_ref[:, :, :9 * cpi].reshape(H * W, 9 * cpi)
        y = jnp.dot(slab, w_ref[...], preferred_element_type=jnp.float32)
        y = jnp.maximum(y * s_ref[...] + b_ref[...], 0.0)   # folded BN + ReLU
        if l + 1 < nb_layers:
            act_bf16 = y.reshape(H, W, cpo).astype(jnp.bfloat16)

    cpo = cp_outs[-1]
    if pool:
        # --- fused 2x2 / stride-2 max-pool epilogue ---
        act = y.reshape(H, W, cpo)
        # Row pairs: free major-axis split + elementwise max (VPU).
        rr = act.reshape(H // 2, 2, W, cpo)
        r = jnp.maximum(rr[:, 0, :, :], rr[:, 1, :, :])      # (H//2, W, cpo)
        r2 = r.reshape((H // 2) * W, cpo)                    # row index = i*W + w
        n_in = (H // 2) * W
        # Column pairs: pm[p] = max(r2[p], r2[p+1]) via one XLU roll + max,
        # then ONE exact 0/1 selection matmul (precomputed in the wrapper)
        # picks the even-w rows.  Wrapped last row is never selected.
        pm = jnp.maximum(r2, pltpu.roll(r2, shift=n_in - 1, axis=0))
        out = jnp.dot(sel_ref[...], pm, preferred_element_type=jnp.float32)
    else:
        out = y                                              # (H*W, cpo)

    o_ref[...] = out[None].astype(o_ref.dtype)               # lane-dense store


# ---------------------------------------------------------------------------
# Wrapper: one pallas_call for the whole EncodeBlock
# ---------------------------------------------------------------------------
def encode_block_forward(x_nchw, params, layer_i):
    """EncodeBlock.forward.  x_nchw: (B, Cin, H, W) f32 -> (B, Cout, H', W') f32."""
    B, Cin, H, W = x_nchw.shape
    nb_layers = len(params)
    cins = tuple(w.shape[1] for (w, _, _) in params)
    couts = tuple(w.shape[2] for (w, _, _) in params)
    assert cins[0] == Cin
    pool = (layer_i != 1)
    if pool:
        assert H % 2 == 0 and W % 2 == 0, "2x2 max-pool requires even H and W"
    Hout, Wout = (H // 2, W // 2) if pool else (H, W)
    npos = Hout * Wout
    cout = couts[-1]

    # Channel widths padded to lane (128) multiples -> lane-dense stores/copies.
    cp_ins = tuple(_round_up(c, LANE) for c in cins)
    cp_outs = tuple(_round_up(c, LANE) for c in couts)
    CPA = max(cp_ins)
    cp_last = cp_outs[-1]

    # NCHW -> NHWC + bf16 + channel pad (single small pre-pass; keep the model
    # NHWC end-to-end to remove it entirely).
    x_nhwc = jnp.transpose(x_nchw, (0, 2, 3, 1)).astype(jnp.bfloat16)
    x_nhwc = jnp.pad(x_nhwc, ((0, 0), (0, 0), (0, 0), (0, cp_ins[0] - Cin)))

    inputs = [x_nhwc]
    in_specs = [pl.BlockSpec((1, H, W, cp_ins[0]), lambda b: (b, 0, 0, 0))]
    for l, (w, scale, bias) in enumerate(params):
        cpi, cpo = cp_ins[l], cp_outs[l]
        wp = jnp.zeros((9, cpi, cpo), jnp.float32).at[:, :cins[l], :couts[l]].set(w)
        sp = jnp.zeros((1, cpo), jnp.float32).at[0, :couts[l]].set(scale)
        bp = jnp.zeros((1, cpo), jnp.float32).at[0, :couts[l]].set(bias)
        inputs += [wp.reshape(9 * cpi, cpo).astype(jnp.bfloat16), sp, bp]
        in_specs += [
            pl.BlockSpec((9 * cpi, cpo), lambda b: (0, 0)),
            pl.BlockSpec((1, cpo), lambda b: (0, 0)),
            pl.BlockSpec((1, cpo), lambda b: (0, 0)),
        ]

    flops = sum(2 * B * H * W * 9 * cp_ins[l] * cp_outs[l] for l in range(nb_layers))
    if pool:
        # Precomputed 0/1 selection matrix: output row q = i*(W/2)+j picks
        # pooled-pair-max row p = i*W + 2j.  (Quadratic in spatial size; fine
        # for encoder-scale H, W.)
        n_in = (H // 2) * W
        n_out = (H // 2) * (W // 2)
        q = jnp.arange(n_out)
        p_even = (q // (W // 2)) * W + 2 * (q % (W // 2))
        sel = jnp.zeros((n_out, n_in), jnp.float32).at[q, p_even].set(1.0)
        inputs.append(sel)
        in_specs.append(pl.BlockSpec((n_out, n_in), lambda b: (0, 0)))
        flops += 2 * B * n_out * n_in * cp_last

    kernel = functools.partial(_encode_block_kernel, H=H, W=W, cp_ins=cp_ins,
                               cp_outs=cp_outs, nb_layers=nb_layers, pool=pool)

    bytes_accessed = int(sum(int(a.size) * a.dtype.itemsize for a in inputs)
                         + B * npos * cp_last * 4)
    cost = pl.CostEstimate(flops=int(flops), transcendentals=0,
                           bytes_accessed=bytes_accessed)

    out = pl.pallas_call(
        kernel,
        out_shape=jax.ShapeDtypeStruct((B, npos, cp_last), jnp.float32),
        grid=(B,),
        in_specs=in_specs,
        out_specs=pl.BlockSpec((1, npos, cp_last), lambda b: (b, 0, 0)),
        scratch_shapes=[
            pltpu.VMEM((H + 2, W + 2, CPA), jnp.bfloat16),   # shared padded act
            pltpu.VMEM((H, W, 9 * CPA), jnp.bfloat16),       # shared im2col slab
        ],
        compiler_params=pltpu.CompilerParams(
            dimension_semantics=("parallel",),
            vmem_limit_bytes=32 * 1024 * 1024),
        cost_estimate=cost,
    )(*inputs)

    out = out[:, :, :cout].reshape(B, Hout, Wout, cout)      # drop pad channels
    return jnp.transpose(out, (0, 3, 1, 2))                  # NHWC -> NCHW


# ---------------------------------------------------------------------------
# Pure-JAX f32 reference for verification
# ---------------------------------------------------------------------------
def reference_forward(x_nchw, params, layer_i):
    x = x_nchw
    for (w, scale, bias) in params:
        w4 = w.reshape(3, 3, w.shape[1], w.shape[2])             # HWIO
        x = jax.lax.conv_general_dilated(
            x, w4, window_strides=(1, 1), padding="SAME",
            dimension_numbers=("NCHW", "HWIO", "NCHW"))
        x = x * scale[None, :, None, None] + bias[None, :, None, None]
        x = jnp.maximum(x, 0.0)
    if layer_i != 1:
        x = jax.lax.reduce_window(x, -jnp.inf, jax.lax.max,
                                  (1, 1, 2, 2), (1, 1, 2, 2), "VALID")
    return x


# ---------------------------------------------------------------------------
# Deterministic synthetic parameters (no checkpoint)
# ---------------------------------------------------------------------------
def make_params(key, in_channels, num_filters, nb_layers):
    params = []
    cin = in_channels
    eps = 1e-5
    for _ in range(nb_layers):
        key, k1, k2, k3, k4, k5 = jax.random.split(key, 6)
        w = 0.1 * jax.random.normal(k1, (9, cin, num_filters), jnp.float32)
        gamma = 1.0 + 0.1 * jax.random.normal(k2, (num_filters,), jnp.float32)
        beta = 0.1 * jax.random.normal(k3, (num_filters,), jnp.float32)
        mean = 0.1 * jax.random.normal(k4, (num_filters,), jnp.float32)
        var = jnp.abs(jax.random.normal(k5, (num_filters,), jnp.float32)) + 0.5
        scale = gamma / jnp.sqrt(var + eps)
        bias = beta - mean * scale
        params.append((w, scale, bias))
        cin = num_filters
    return params


if __name__ == "__main__":
    B, Cin, H, W = 2, 4, 16, 16
    num_filters = 8
    nb_layers = 2
    layer_i = 2                     # != 1 -> 2x2 max pool applied at the end

    key = jax.random.PRNGKey(0)
    key, kx = jax.random.split(key)
    x = jax.random.normal(kx, (B, Cin, H, W), jnp.float32)
    params = make_params(key, Cin, num_filters, nb_layers)

    # Pooling branch (layer_i != 1)
    out = jax.block_until_ready(encode_block_forward(x, params, layer_i))
    ref = jax.block_until_ready(reference_forward(x, params, layer_i))
    assert out.shape == (B, num_filters, H // 2, W // 2), out.shape
    # bf16 activations/weights with f32 accumulation vs. pure-f32 reference.
    assert jnp.allclose(out, ref, atol=5e-2, rtol=5e-2), float(
        jnp.max(jnp.abs(out - ref)))

    # No-pool branch (layer_i == 1)
    out1 = jax.block_until_ready(encode_block_forward(x, params, 1))
    ref1 = jax.block_until_ready(reference_forward(x, params, 1))
    assert out1.shape == (B, num_filters, H, W), out1.shape
    assert jnp.allclose(out1, ref1, atol=5e-2, rtol=5e-2), float(
        jnp.max(jnp.abs(out1 - ref1)))

    print("KERNEL_OK")
</pallas_src>

<mosaic_0001>
module attributes {stable_mosaic.version = 11 : i64} {
  func.func @_encode_block_kernel(%arg0: i32, %arg1: memref<1x16x16x128xbf16, #tpu.memory_space<vmem>>, %arg2: memref<1152x128xbf16, #tpu.memory_space<vmem>>, %arg3: memref<1x128xf32, #tpu.memory_space<vmem>>, %arg4: memref<1x128xf32, #tpu.memory_space<vmem>>, %arg5: memref<1152x128xbf16, #tpu.memory_space<vmem>>, %arg6: memref<1x128xf32, #tpu.memory_space<vmem>>, %arg7: memref<1x128xf32, #tpu.memory_space<vmem>>, %arg8: memref<64x128xf32, #tpu.memory_space<vmem>>, %arg9: memref<1x64x128xf32, #tpu.memory_space<vmem>>, %arg10: memref<18x18x128xbf16, #tpu.memory_space<vmem>>, %arg11: memref<16x16x1152xbf16, #tpu.memory_space<vmem>>) attributes {dimension_semantics = [#tpu.dimension_semantics<parallel>], iteration_bounds = array<i64: 2>, scalar_prefetch = 0 : i64, scratch_operands = 2 : i64, tpu.core_type = #tpu.core_type<tc>, window_params = [{transform_indices = @transform_0, window_bounds = array<i64: 1, 16, 16, 128>}, {pipeline_mode = #tpu.pipeline_mode<synchronous>, transform_indices = @transform_1, window_bounds = array<i64: 1152, 128>}, {pipeline_mode = #tpu.pipeline_mode<synchronous>, transform_indices = @transform_2, window_bounds = array<i64: 1, 128>}, {pipeline_mode = #tpu.pipeline_mode<synchronous>, transform_indices = @transform_3, window_bounds = array<i64: 1, 128>}, {pipeline_mode = #tpu.pipeline_mode<synchronous>, transform_indices = @transform_4, window_bounds = array<i64: 1152, 128>}, {pipeline_mode = #tpu.pipeline_mode<synchronous>, transform_indices = @transform_5, window_bounds = array<i64: 1, 128>}, {pipeline_mode = #tpu.pipeline_mode<synchronous>, transform_indices = @transform_6, window_bounds = array<i64: 1, 128>}, {pipeline_mode = #tpu.pipeline_mode<synchronous>, transform_indices = @transform_7, window_bounds = array<i64: 64, 128>}, {transform_indices = @transform_8, window_bounds = array<i64: 1, 64, 128>}]} {
    %cst = arith.constant 0.000000e+00 : bf16
    %0 = vector.broadcast %cst : bf16 to vector<1x18x128xbf16>
    %cst_0 = arith.constant 0.000000e+00 : bf16
    %1 = vector.broadcast %cst_0 : bf16 to vector<18x1x128xbf16>
    %c0 = arith.constant 0 : index
    %c0_1 = arith.constant 0 : index
    %c0_2 = arith.constant 0 : index
    %2 = vector.load %arg10[%c0, %c0_1, %c0_2] : memref<18x18x128xbf16, #tpu.memory_space<vmem>>, vector<1x18x128xbf16>
    tpu.vector_store %arg10[%c0, %c0_1, %c0_2], %0 {strides = array<i32>} : memref<18x18x128xbf16, #tpu.memory_space<vmem>>, vector<1x18x128xbf16>,
    %c17 = arith.constant 17 : index
    %c0_3 = arith.constant 0 : index
    %c0_4 = arith.constant 0 : index
    %3 = vector.load %arg10[%c17, %c0_3, %c0_4] : memref<18x18x128xbf16, #tpu.memory_space<vmem>>, vector<1x18x128xbf16>
    tpu.vector_store %arg10[%c17, %c0_3, %c0_4], %0 {strides = array<i32>} : memref<18x18x128xbf16, #tpu.memory_space<vmem>>, vector<1x18x128xbf16>,
    %c0_5 = arith.constant 0 : index
    %c0_6 = arith.constant 0 : index
    %c0_7 = arith.constant 0 : index
    %4 = vector.load %arg10[%c0_5, %c0_6, %c0_7] : memref<18x18x128xbf16, #tpu.memory_space<vmem>>, vector<18x1x128xbf16>
    tpu.vector_store %arg10[%c0_5, %c0_6, %c0_7], %1 {strides = array<i32>} : memref<18x18x128xbf16, #tpu.memory_space<vmem>>, vector<18x1x128xbf16>,
    %c0_8 = arith.constant 0 : index
    %c17_9 = arith.constant 17 : index
    %c0_10 = arith.constant 0 : index
    %5 = vector.load %arg10[%c0_8, %c17_9, %c0_10] : memref<18x18x128xbf16, #tpu.memory_space<vmem>>, vector<18x1x128xbf16>
    tpu.vector_store %arg10[%c0_8, %c17_9, %c0_10], %1 {strides = array<i32>} : memref<18x18x128xbf16, #tpu.memory_space<vmem>>, vector<18x1x128xbf16>,
    %c0_11 = arith.constant 0 : index
    %c0_12 = arith.constant 0 : index
    %c0_13 = arith.constant 0 : index
    %c0_14 = arith.constant 0 : index
    %6 = vector.load %arg1[%c0_11, %c0_12, %c0_13, %c0_14] : memref<1x16x16x128xbf16, #tpu.memory_space<vmem>>, vector<1x16x16x128xbf16>
    %7 = vector.shape_cast %6 : vector<1x16x16x128xbf16> to vector<16x16x128xbf16>
    %c1 = arith.constant 1 : index
    %c1_15 = arith.constant 1 : index
    %c0_16 = arith.constant 0 : index
    %8 = vector.load %arg10[%c1, %c1_15, %c0_16] : memref<18x18x128xbf16, #tpu.memory_space<vmem>>, vector<16x16x128xbf16>
    tpu.vector_store %arg10[%c1, %c1_15, %c0_16], %7 {strides = array<i32>} : memref<18x18x128xbf16, #tpu.memory_space<vmem>>, vector<16x16x128xbf16>,
    %c0_17 = arith.constant 0 : index
    %c0_18 = arith.constant 0 : index
    %c0_19 = arith.constant 0 : index
    %9 = vector.load %arg10[%c0_17, %c0_18, %c0_19] : memref<18x18x128xbf16, #tpu.memory_space<vmem>>, vector<16x16x128xbf16>
    %c0_20 = arith.constant 0 : index
    %c0_21 = arith.constant 0 : index
    %c0_22 = arith.constant 0 : index
    %10 = vector.load %arg11[%c0_20, %c0_21, %c0_22] : memref<16x16x1152xbf16, #tpu.memory_space<vmem>>, vector<16x16x128xbf16>
    tpu.vector_store %arg11[%c0_20, %c0_21, %c0_22], %9 {strides = array<i32>} : memref<16x16x1152xbf16, #tpu.memory_space<vmem>>, vector<16x16x128xbf16>,
    %c0_23 = arith.constant 0 : index
    %c1_24 = arith.constant 1 : index
    %c0_25 = arith.constant 0 : index
    %11 = vector.load %arg10[%c0_23, %c1_24, %c0_25] : memref<18x18x128xbf16, #tpu.memory_space<vmem>>, vector<16x16x128xbf16>
    %c0_26 = arith.constant 0 : index
    %c0_27 = arith.constant 0 : index
    %c128 = arith.constant 128 : index
    %12 = vector.load %arg11[%c0_26, %c0_27, %c128] : memref<16x16x1152xbf16, #tpu.memory_space<vmem>>, vector<16x16x128xbf16>
    tpu.vector_store %arg11[%c0_26, %c0_27, %c128], %11 {strides = array<i32>} : memref<16x16x1152xbf16, #tpu.memory_space<vmem>>, vector<16x16x128xbf16>,
    %c0_28 = arith.constant 0 : index
    %c2 = arith.constant 2 : index
    %c0_29 = arith.constant 0 : index
    %13 = vector.load %arg10[%c0_28, %c2, %c0_29] : memref<18x18x128xbf16, #tpu.memory_space<vmem>>, vector<16x16x128xbf16>
    %c0_30 = arith.constant 0 : index
    %c0_31 = arith.constant 0 : index
    %c256 = arith.constant 256 : index
    %14 = vector.load %arg11[%c0_30, %c0_31, %c256] : memref<16x16x1152xbf16, #tpu.memory_space<vmem>>, vector<16x16x128xbf16>
    tpu.vector_store %arg11[%c0_30, %c0_31, %c256], %13 {strides = array<i32>} : memref<16x16x1152xbf16, #tpu.memory_space<vmem>>, vector<16x16x128xbf16>,
    %c1_32 = arith.constant 1 : index
    %c0_33 = arith.constant 0 : index
    %c0_34 = arith.constant 0 : index
    %15 = vector.load %arg10[%c1_32, %c0_33, %c0_34] : memref<18x18x128xbf16, #tpu.memory_space<vmem>>, vector<16x16x128xbf16>
    %c0_35 = arith.constant 0 : index
    %c0_36 = arith.constant 0 : index
    %c384 = arith.constant 384 : index
    %16 = vector.load %arg11[%c0_35, %c0_36, %c384] : memref<16x16x1152xbf16, #tpu.memory_space<vmem>>, vector<16x16x128xbf16>
    tpu.vector_store %arg11[%c0_35, %c0_36, %c384], %15 {strides = array<i32>} : memref<16x16x1152xbf16, #tpu.memory_space<vmem>>, vector<16x16x128xbf16>,
    %c1_37 = arith.constant 1 : index
    %c1_38 = arith.constant 1 : index
    %c0_39 = arith.constant 0 : index
    %17 = vector.load %arg10[%c1_37, %c1_38, %c0_39] : memref<18x18x128xbf16, #tpu.memory_space<vmem>>, vector<16x16x128xbf16>
    %c0_40 = arith.constant 0 : index
    %c0_41 = arith.constant 0 : index
    %c512 = arith.constant 512 : index
    %18 = vector.load %arg11[%c0_40, %c0_41, %c512] : memref<16x16x1152xbf16, #tpu.memory_space<vmem>>, vector<16x16x128xbf16>
    tpu.vector_store %arg11[%c0_40, %c0_41, %c512], %17 {strides = array<i32>} : memref<16x16x1152xbf16, #tpu.memory_space<vmem>>, vector<16x16x128xbf16>,
    %c1_42 = arith.constant 1 : index
    %c2_43 = arith.constant 2 : index
    %c0_44 = arith.constant 0 : index
    %19 = vector.load %arg10[%c1_42, %c2_43, %c0_44] : memref<18x18x128xbf16, #tpu.memory_space<vmem>>, vector<16x16x128xbf16>
    %c0_45 = arith.constant 0 : index
    %c0_46 = arith.constant 0 : index
    %c640 = arith.constant 640 : index
    %20 = vector.load %arg11[%c0_45, %c0_46, %c640] : memref<16x16x1152xbf16, #tpu.memory_space<vmem>>, vector<16x16x128xbf16>
    tpu.vector_store %arg11[%c0_45, %c0_46, %c640], %19 {strides = array<i32>} : memref<16x16x1152xbf16, #tpu.memory_space<vmem>>, vector<16x16x128xbf16>,
    %c2_47 = arith.constant 2 : index
    %c0_48 = arith.constant 0 : index
    %c0_49 = arith.constant 0 : index
    %21 = vector.load %arg10[%c2_47, %c0_48, %c0_49] : memref<18x18x128xbf16, #tpu.memory_space<vmem>>, vector<16x16x128xbf16>
    %c0_50 = arith.constant 0 : index
    %c0_51 = arith.constant 0 : index
    %c768 = arith.constant 768 : index
    %22 = vector.load %arg11[%c0_50, %c0_51, %c768] : memref<16x16x1152xbf16, #tpu.memory_space<vmem>>, vector<16x16x128xbf16>
    tpu.vector_store %arg11[%c0_50, %c0_51, %c768], %21 {strides = array<i32>} : memref<16x16x1152xbf16, #tpu.memory_space<vmem>>, vector<16x16x128xbf16>,
    %c2_52 = arith.constant 2 : index
    %c1_53 = arith.constant 1 : index
    %c0_54 = arith.constant 0 : index
    %23 = vector.load %arg10[%c2_52, %c1_53, %c0_54] : memref<18x18x128xbf16, #tpu.memory_space<vmem>>, vector<16x16x128xbf16>
    %c0_55 = arith.constant 0 : index
    %c0_56 = arith.constant 0 : index
    %c896 = arith.constant 896 : index
    %24 = vector.load %arg11[%c0_55, %c0_56, %c896] : memref<16x16x1152xbf16, #tpu.memory_space<vmem>>, vector<16x16x128xbf16>
    tpu.vector_store %arg11[%c0_55, %c0_56, %c896], %23 {strides = array<i32>} : memref<16x16x1152xbf16, #tpu.memory_space<vmem>>, vector<16x16x128xbf16>,
    %c2_57 = arith.constant 2 : index
    %c2_58 = arith.constant 2 : index
    %c0_59 = arith.constant 0 : index
    %25 = vector.load %arg10[%c2_57, %c2_58, %c0_59] : memref<18x18x128xbf16, #tpu.memory_space<vmem>>, vector<16x16x128xbf16>
    %c0_60 = arith.constant 0 : index
    %c0_61 = arith.constant 0 : index
    %c1024 = arith.constant 1024 : index
    %26 = vector.load %arg11[%c0_60, %c0_61, %c1024] : memref<16x16x1152xbf16, #tpu.memory_space<vmem>>, vector<16x16x128xbf16>
    tpu.vector_store %arg11[%c0_60, %c0_61, %c1024], %25 {strides = array<i32>} : memref<16x16x1152xbf16, #tpu.memory_space<vmem>>, vector<16x16x128xbf16>,
    %c0_62 = arith.constant 0 : index
    %c0_63 = arith.constant 0 : index
    %c0_64 = arith.constant 0 : index
    %27 = vector.load %arg11[%c0_62, %c0_63, %c0_64] : memref<16x16x1152xbf16, #tpu.memory_space<vmem>>, vector<16x16x1152xbf16>
    %28 = vector.shape_cast %27 : vector<16x16x1152xbf16> to vector<256x1152xbf16>
    %c0_65 = arith.constant 0 : index
    %c0_66 = arith.constant 0 : index
    %29 = vector.load %arg2[%c0_65, %c0_66] : memref<1152x128xbf16, #tpu.memory_space<vmem>>, vector<1152x128xbf16>
    %cst_67 = arith.constant dense<0.000000e+00> : vector<256x128xf32>
    %30 = tpu.matmul %28, %29, %cst_67 {dimension_numbers = #tpu.dot_dimension_numbers<[1], [0], [0], [1], [0, 0, 1, 1], [], []>} : vector<256x1152xbf16>, vector<1152x128xbf16>, vector<256x128xf32> -> vector<256x128xf32>
    %c0_68 = arith.constant 0 : index
    %c0_69 = arith.constant 0 : index
    %31 = vector.load %arg3[%c0_68, %c0_69] : memref<1x128xf32, #tpu.memory_space<vmem>>, vector<1x128xf32>
    %32 = vector.broadcast %31 : vector<1x128xf32> to vector<256x128xf32>
    %33 = arith.mulf %30, %32 : vector<256x128xf32>
    %c0_70 = arith.constant 0 : index
    %c0_71 = arith.constant 0 : index
    %34 = vector.load %arg4[%c0_70, %c0_71] : memref<1x128xf32, #tpu.memory_space<vmem>>, vector<1x128xf32>
    %35 = vector.broadcast %34 : vector<1x128xf32> to vector<256x128xf32>
    %36 = arith.addf %33, %35 : vector<256x128xf32>
    %cst_72 = arith.constant 0.000000e+00 : f32
    %37 = vector.broadcast %cst_72 : f32 to vector<256x128xf32>
    %38 = arith.maximumf %36, %37 : vector<256x128xf32>
    %39 = vector.shape_cast %38 : vector<256x128xf32> to vector<16x16x128xf32>
    %40 = arith.truncf %39 : vector<16x16x128xf32> to vector<16x16x128xbf16>
    %c1_73 = arith.constant 1 : index
    %c1_74 = arith.constant 1 : index
    %c0_75 = arith.constant 0 : index
    %41 = vector.load %arg10[%c1_73, %c1_74, %c0_75] : memref<18x18x128xbf16, #tpu.memory_space<vmem>>, vector<16x16x128xbf16>
    tpu.vector_store %arg10[%c1_73, %c1_74, %c0_75], %40 {strides = array<i32>} : memref<18x18x128xbf16, #tpu.memory_space<vmem>>, vector<16x16x128xbf16>,
    %c0_76 = arith.constant 0 : index
    %c0_77 = arith.constant 0 : index
    %c0_78 = arith.constant 0 : index
    %42 = vector.load %arg10[%c0_76, %c0_77, %c0_78] : memref<18x18x128xbf16, #tpu.memory_space<vmem>>, vector<16x16x128xbf16>
    %c0_79 = arith.constant 0 : index
    %c0_80 = arith.constant 0 : index
    %c0_81 = arith.constant 0 : index
    %43 = vector.load %arg11[%c0_79, %c0_80, %c0_81] : memref<16x16x1152xbf16, #tpu.memory_space<vmem>>, vector<16x16x128xbf16>
    tpu.vector_store %arg11[%c0_79, %c0_80, %c0_81], %42 {strides = array<i32>} : memref<16x16x1152xbf16, #tpu.memory_space<vmem>>, vector<16x16x128xbf16>,
    %c0_82 = arith.constant 0 : index
    %c1_83 = arith.constant 1 : index
    %c0_84 = arith.constant 0 : index
    %44 = vector.load %arg10[%c0_82, %c1_83, %c0_84] : memref<18x18x128xbf16, #tpu.memory_space<vmem>>, vector<16x16x128xbf16>
    %c0_85 = arith.constant 0 : index
    %c0_86 = arith.constant 0 : index
    %c128_87 = arith.constant 128 : index
    %45 = vector.load %arg11[%c0_85, %c0_86, %c128_87] : memref<16x16x1152xbf16, #tpu.memory_space<vmem>>, vector<16x16x128xbf16>
    tpu.vector_store %arg11[%c0_85, %c0_86, %c128_87], %44 {strides = array<i32>} : memref<16x16x1152xbf16, #tpu.memory_space<vmem>>, vector<16x16x128xbf16>,
    %c0_88 = arith.constant 0 : index
    %c2_89 = arith.constant 2 : index
    %c0_90 = arith.constant 0 : index
    %46 = vector.load %arg10[%c0_88, %c2_89, %c0_90] : memref<18x18x128xbf16, #tpu.memory_space<vmem>>, vector<16x16x128xbf16>
    %c0_91 = arith.constant 0 : index
    %c0_92 = arith.constant 0 : index
    %c256_93 = arith.constant 256 : index
    %47 = vector.load %arg11[%c0_91, %c0_92, %c256_93] : memref<16x16x1152xbf16, #tpu.memory_space<vmem>>, vector<16x16x128xbf16>
    tpu.vector_store %arg11[%c0_91, %c0_92, %c256_93], %46 {strides = array<i32>} : memref<16x16x1152xbf16, #tpu.memory_space<vmem>>, vector<16x16x128xbf16>,
    %c1_94 = arith.constant 1 : index
    %c0_95 = arith.constant 0 : index
    %c0_96 = arith.constant 0 : index
    %48 = vector.load %arg10[%c1_94, %c0_95, %c0_96] : memref<18x18x128xbf16, #tpu.memory_space<vmem>>, vector<16x16x128xbf16>
    %c0_97 = arith.constant 0 : index
    %c0_98 = arith.constant 0 : index
    %c384_99 = arith.constant 384 : index
    %49 = vector.load %arg11[%c0_97, %c0_98, %c384_99] : memref<16x16x1152xbf16, #tpu.memory_space<vmem>>, vector<16x16x128xbf16>
    tpu.vector_store %arg11[%c0_97, %c0_98, %c384_99], %48 {strides = array<i32>} : memref<16x16x1152xbf16, #tpu.memory_space<vmem>>, vector<16x16x128xbf16>,
    %c1_100 = arith.constant 1 : index
    %c1_101 = arith.constant 1 : index
    %c0_102 = arith.constant 0 : index
    %50 = vector.load %arg10[%c1_100, %c1_101, %c0_102] : memref<18x18x128xbf16, #tpu.memory_space<vmem>>, vector<16x16x128xbf16>
    %c0_103 = arith.constant 0 : index
    %c0_104 = arith.constant 0 : index
    %c512_105 = arith.constant 512 : index
    %51 = vector.load %arg11[%c0_103, %c0_104, %c512_105] : memref<16x16x1152xbf16, #tpu.memory_space<vmem>>, vector<16x16x128xbf16>
    tpu.vector_store %arg11[%c0_103, %c0_104, %c512_105], %50 {strides = array<i32>} : memref<16x16x1152xbf16, #tpu.memory_space<vmem>>, vector<16x16x128xbf16>,
    %c1_106 = arith.constant 1 : index
    %c2_107 = arith.constant 2 : index
    %c0_108 = arith.constant 0 : index
    %52 = vector.load %arg10[%c1_106, %c2_107, %c0_108] : memref<18x18x128xbf16, #tpu.memory_space<vmem>>, vector<16x16x128xbf16>
    %c0_109 = arith.constant 0 : index
    %c0_110 = arith.constant 0 : index
    %c640_111 = arith.constant 640 : index
    %53 = vector.load %arg11[%c0_109, %c0_110, %c640_111] : memref<16x16x1152xbf16, #tpu.memory_space<vmem>>, vector<16x16x128xbf16>
    tpu.vector_store %arg11[%c0_109, %c0_110, %c640_111], %52 {strides = array<i32>} : memref<16x16x1152xbf16, #tpu.memory_space<vmem>>, vector<16x16x128xbf16>,
    %c2_112 = arith.constant 2 : index
    %c0_113 = arith.constant 0 : index
    %c0_114 = arith.constant 0 : index
    %54 = vector.load %arg10[%c2_112, %c0_113, %c0_114] : memref<18x18x128xbf16, #tpu.memory_space<vmem>>, vector<16x16x128xbf16>
    %c0_115 = arith.constant 0 : index
    %c0_116 = arith.constant 0 : index
    %c768_117 = arith.constant 768 : index
    %55 = vector.load %arg11[%c0_115, %c0_116, %c768_117] : memref<16x16x1152xbf16, #tpu.memory_space<vmem>>, vector<16x16x128xbf16>
    tpu.vector_store %arg11[%c0_115, %c0_116, %c768_117], %54 {strides = array<i32>} : memref<16x16x1152xbf16, #tpu.memory_space<vmem>>, vector<16x16x128xbf16>,
    %c2_118 = arith.constant 2 : index
    %c1_119 = arith.constant 1 : index
    %c0_120 = arith.constant 0 : index
    %56 = vector.load %arg10[%c2_118, %c1_119, %c0_120] : memref<18x18x128xbf16, #tpu.memory_space<vmem>>, vector<16x16x128xbf16>
    %c0_121 = arith.constant 0 : index
    %c0_122 = arith.constant 0 : index
    %c896_123 = arith.constant 896 : index
    %57 = vector.load %arg11[%c0_121, %c0_122, %c896_123] : memref<16x16x1152xbf16, #tpu.memory_space<vmem>>, vector<16x16x128xbf16>
    tpu.vector_store %arg11[%c0_121, %c0_122, %c896_123], %56 {strides = array<i32>} : memref<16x16x1152xbf16, #tpu.memory_space<vmem>>, vector<16x16x128xbf16>,
    %c2_124 = arith.constant 2 : index
    %c2_125 = arith.constant 2 : index
    %c0_126 = arith.constant 0 : index
    %58 = vector.load %arg10[%c2_124, %c2_125, %c0_126] : memref<18x18x128xbf16, #tpu.memory_space<vmem>>, vector<16x16x128xbf16>
    %c0_127 = arith.constant 0 : index
    %c0_128 = arith.constant 0 : index
    %c1024_129 = arith.constant 1024 : index
    %59 = vector.load %arg11[%c0_127, %c0_128, %c1024_129] : memref<16x16x1152xbf16, #tpu.memory_space<vmem>>, vector<16x16x128xbf16>
    tpu.vector_store %arg11[%c0_127, %c0_128, %c1024_129], %58 {strides = array<i32>} : memref<16x16x1152xbf16, #tpu.memory_space<vmem>>, vector<16x16x128xbf16>,
    %c0_130 = arith.constant 0 : index
    %c0_131 = arith.constant 0 : index
    %c0_132 = arith.constant 0 : index
    %60 = vector.load %arg11[%c0_130, %c0_131, %c0_132] : memref<16x16x1152xbf16, #tpu.memory_space<vmem>>, vector<16x16x1152xbf16>
    %61 = vector.shape_cast %60 : vector<16x16x1152xbf16> to vector<256x1152xbf16>
    %c0_133 = arith.constant 0 : index
    %c0_134 = arith.constant 0 : index
    %62 = vector.load %arg5[%c0_133, %c0_134] : memref<1152x128xbf16, #tpu.memory_space<vmem>>, vector<1152x128xbf16>
    %cst_135 = arith.constant dense<0.000000e+00> : vector<256x128xf32>
    %63 = tpu.matmul %61, %62, %cst_135 {dimension_numbers = #tpu.dot_dimension_numbers<[1], [0], [0], [1], [0, 0, 1, 1], [], []>} : vector<256x1152xbf16>, vector<1152x128xbf16>, vector<256x128xf32> -> vector<256x128xf32>
    %c0_136 = arith.constant 0 : index
    %c0_137 = arith.constant 0 : index
    %64 = vector.load %arg6[%c0_136, %c0_137] : memref<1x128xf32, #tpu.memory_space<vmem>>, vector<1x128xf32>
    %65 = vector.broadcast %64 : vector<1x128xf32> to vector<256x128xf32>
    %66 = arith.mulf %63, %65 : vector<256x128xf32>
    %c0_138 = arith.constant 0 : index
    %c0_139 = arith.constant 0 : index
    %67 = vector.load %arg7[%c0_138, %c0_139] : memref<1x128xf32, #tpu.memory_space<vmem>>, vector<1x128xf32>
    %68 = vector.broadcast %67 : vector<1x128xf32> to vector<256x128xf32>
    %69 = arith.addf %66, %68 : vector<256x128xf32>
    %cst_140 = arith.constant 0.000000e+00 : f32
    %70 = vector.broadcast %cst_140 : f32 to vector<256x128xf32>
    %71 = arith.maximumf %69, %70 : vector<256x128xf32>
    %72 = vector.shape_cast %71 : vector<256x128xf32> to vector<16x16x128xf32>
    %73 = vector.shape_cast %72 : vector<16x16x128xf32> to vector<8x2x16x128xf32>
    %74 = vector.extract_strided_slice %73 {offsets = [0, 0, 0, 0], sizes = [8, 1, 16, 128], strides = [1, 1, 1, 1]} : vector<8x2x16x128xf32> to vector<8x1x16x128xf32>
    %75 = vector.shape_cast %74 : vector<8x1x16x128xf32> to vector<8x16x128xf32>
    %76 = vector.extract_strided_slice %73 {offsets = [0, 1, 0, 0], sizes = [8, 1, 16, 128], strides = [1, 1, 1, 1]} : vector<8x2x16x128xf32> to vector<8x1x16x128xf32>
    %77 = vector.shape_cast %76 : vector<8x1x16x128xf32> to vector<8x16x128xf32>
    %78 = arith.maximumf %75, %77 : vector<8x16x128xf32>
    %79 = vector.shape_cast %78 : vector<8x16x128xf32> to vector<128x128xf32>
    %c127_i32 = arith.constant 127 : i32
    %80 = tpu.dynamic_rotate %79 by %c127_i32 dim 0 : vector<128x128xf32>, i32 -> vector<128x128xf32>
    %81 = arith.maximumf %79, %80 : vector<128x128xf32>
    %c0_141 = arith.constant 0 : index
    %c0_142 = arith.constant 0 : index
    %82 = vector.load %arg8[%c0_141, %c0_142] : memref<64x128xf32, #tpu.memory_space<vmem>>, vector<64x128xf32>
    %cst_143 = arith.constant dense<0.000000e+00> : vector<64x128xf32>
    %83 = tpu.matmul %82, %81, %cst_143 {dimension_numbers = #tpu.dot_dimension_numbers<[1], [0], [0], [1], [0, 0, 1, 1], [], []>} : vector<64x128xf32>, vector<128x128xf32>, vector<64x128xf32> -> vector<64x128xf32>
    %84 = vector.shape_cast %83 : vector<64x128xf32> to vector<1x64x128xf32>
    %c0_144 = arith.constant 0 : index
    %c0_145 = arith.constant 0 : index
    %c0_146 = arith.constant 0 : index
    %85 = vector.load %arg9[%c0_144, %c0_145, %c0_146] : memref<1x64x128xf32, #tpu.memory_space<vmem>>, vector<1x64x128xf32>
    tpu.vector_store %arg9[%c0_144, %c0_145, %c0_146], %84 {strides = array<i32>} : memref<1x64x128xf32, #tpu.memory_space<vmem>>, vector<1x64x128xf32>,
    return
  }
  func.func @transform_0(%arg0: i32) -> (i32, i32, i32, i32) {
    %c0_i32 = arith.constant 0 : i32
    %c0_i32_0 = arith.constant 0 : i32
    %c0_i32_1 = arith.constant 0 : i32
    %c0_i32_2 = arith.constant 0 : i32
    return %arg0, %c0_i32, %c0_i32_0, %c0_i32_1 : i32, i32, i32, i32
  }
  func.func @transform_1(%arg0: i32) -> (i32, i32) {
    %c0_i32 = arith.constant 0 : i32
    %c0_i32_0 = arith.constant 0 : i32
    %c0_i32_1 = arith.constant 0 : i32
    return %c0_i32, %c0_i32_0 : i32, i32
  }
  func.func @transform_2(%arg0: i32) -> (i32, i32) {
    %c0_i32 = arith.constant 0 : i32
    %c0_i32_0 = arith.constant 0 : i32
    %c0_i32_1 = arith.constant 0 : i32
    return %c0_i32, %c0_i32_0 : i32, i32
  }
  func.func @transform_3(%arg0: i32) -> (i32, i32) {
    %c0_i32 = arith.constant 0 : i32
    %c0_i32_0 = arith.constant 0 : i32
    %c0_i32_1 = arith.constant 0 : i32
    return %c0_i32, %c0_i32_0 : i32, i32
  }
  func.func @transform_4(%arg0: i32) -> (i32, i32) {
    %c0_i32 = arith.constant 0 : i32
    %c0_i32_0 = arith.constant 0 : i32
    %c0_i32_1 = arith.constant 0 : i32
    return %c0_i32, %c0_i32_0 : i32, i32
  }
  func.func @transform_5(%arg0: i32) -> (i32, i32) {
    %c0_i32 = arith.constant 0 : i32
    %c0_i32_0 = arith.constant 0 : i32
    %c0_i32_1 = arith.constant 0 : i32
    return %c0_i32, %c0_i32_0 : i32, i32
  }
  func.func @transform_6(%arg0: i32) -> (i32, i32) {
    %c0_i32 = arith.constant 0 : i32
    %c0_i32_0 = arith.constant 0 : i32
    %c0_i32_1 = arith.constant 0 : i32
    return %c0_i32, %c0_i32_0 : i32, i32
  }
  func.func @transform_7(%arg0: i32) -> (i32, i32) {
    %c0_i32 = arith.constant 0 : i32
    %c0_i32_0 = arith.constant 0 : i32
    %c0_i32_1 = arith.constant 0 : i32
    return %c0_i32, %c0_i32_0 : i32, i32
  }
  func.func @transform_8(%arg0: i32) -> (i32, i32, i32) {
    %c0_i32 = arith.constant 0 : i32
    %c0_i32_0 = arith.constant 0 : i32
    %c0_i32_1 = arith.constant 0 : i32
    return %arg0, %c0_i32, %c0_i32_0 : i32, i32, i32
  }
}

</mosaic_0001>

<llo_original>
// kernel: tpu_custom_call.1
$region0: #{tpu_custom_call.1}
  #allocation0 [shape = 'u32[]', space=smem, size = 0x4, offset = 0x4, fixed_abs, tag = 'smem constant byte address 0x4 - core index']
  #allocation1 [shape = 'u32[72,128]{1,0:T(1,128)}', space=vmem, size = 0x9000, scoped, tag = 'internal scratch']
  #allocation2 [shape = 'bf16[18,18,128]{2,1,0:T(8,128)(2,1)}', space=vmem, size = 0x1b000, scoped, tag = 'scratch operand']
  #allocation3 [shape = 'bf16[16,16,1152]{2,1,0:T(8,128)(2,1)}', space=vmem, size = 0x90000, scoped, tag = 'scratch operand']
  %s0 = inlined_call_operand.hbm [shape: bf16[2,16,16,128], index: 0, kind: input, shape index: {}]
  %s1 = inlined_call_operand.hbm [shape: bf16[1152,128], index: 1, kind: input, shape index: {}]
  %s2 = inlined_call_operand.vmem [shape: f32[1,128], index: 2, kind: input, shape index: {}]
  %s3 = inlined_call_operand.vmem [shape: f32[1,128], index: 3, kind: input, shape index: {}]
  %s4 = inlined_call_operand.hbm [shape: bf16[1152,128], index: 4, kind: input, shape index: {}]
  %s5 = inlined_call_operand.vmem [shape: f32[1,128], index: 5, kind: input, shape index: {}]
  %s6 = inlined_call_operand.vmem [shape: f32[1,128], index: 6, kind: input, shape index: {}]
  %s7 = inlined_call_operand.hbm [shape: f32[64,128], index: 7, kind: input, shape index: {}]
  %s8 = inlined_call_operand.hbm [shape: f32[2,64,128], index: 8, kind: output, shape index: {}]
  %s9 = sld [smem:[#allocation0]]
  $region81: #{tpu_custom_call.1} parent=0
    _
  %s11 = ssub.s32 1, %s9
  %s12 = scalar_select 0, %s11, %s9
  $region1: #{tpu_custom_call.1} parent=0
    #allocation4 [shape = 'u8[131072]{0}', space=vmem, size = 0x20000, scoped, tag = 'input window, operand 0']
    #allocation5 [shape = 's32[2]{0}', space=sflag, size = 0x8, scoped, tag = 'scoped memory for tpu_custom_call.1']
    #allocation6 [shape = 's32[2]{0}', space=sflag, size = 0x8, scoped, tag = 'scoped memory for tpu_custom_call.1']
    #allocation7 [shape = 'u8[294912]{0}', space=vmem, size = 0x48000, scoped, tag = 'input window, operand 1, single buffered']
    #allocation8 [shape = 's32[1]{0}', space=sflag, size = 0x4, scoped, tag = 'scoped memory for tpu_custom_call.1']
    #allocation9 [shape = 'u8[294912]{0}', space=vmem, size = 0x48000, scoped, tag = 'input window, operand 4, single buffered']
    #allocation10 [shape = 'u8[32768]{0}', space=vmem, size = 0x8000, scoped, tag = 'input window, operand 7, single buffered']
    #allocation11 [shape = 's32[1]{0}', space=sflag, size = 0x4, scoped, tag = 'scoped memory for tpu_custom_call.1']
    #allocation12 [shape = 'u8[65536]{0}', space=vmem, size = 0x10000, scoped, tag = 'output window, operand 0']
    %13 = vsyncpa [#allocation5], 0
    %s14 = scalar_lea.sflag [#allocation5], 1
    %15 = vsyncpa %s14, 0
    %16 = vsyncpa [#allocation8], 0
    %17 = vsyncpa [#allocation11], 0
    %18 = vsyncpa [#allocation6], 0
    %s19 = scalar_lea.sflag [#allocation6], 1
    %20 = vsyncpa %s19, 0
    loop: start=0, step=1, limit=4
    $region2: #{tpu_custom_call.1} parent=1 // loop_pre_header
      _
    $region3: #{tpu_custom_call.1} parent=1 // loop_header
      %s22 = sphi 0, %s26
      %p23 = scmp.ge.s32.totalorder %s22, 4
      %s32 = sphi 0, %s34
      %s35 = sphi 0, %s32
      %s36 = sphi 0, %s35
      %s52 = sphi 0, %s36
      %s56 = sphi 0, %s56
      %s58 = sphi 0, %s56
      %s59 = sphi 0, %s58
      %s73 = sphi 0, %s59
      %s77 = sphi 0, %s77
      %s79 = sphi 0, %s77
      %s80 = sphi 0, %s79
      %s94 = sphi 0, %s80
      %s98 = sphi 0, %s98
      %s100 = sphi 0, %s98
      %s101 = sphi 0, %s100
      %s115 = sphi 0, %s101
      %s119 = sphi 0, %s119
      %s121 = sphi 0, %s119
      %s122 = sphi 0, %s121
      %s136 = sphi 0, %s122
      %s140 = sphi 0, %s140
      %s142 = sphi 0, %s140
      %s143 = sphi 0, %s142
      %s157 = sphi 0, %s143
      %s161 = sphi 0, %s161
      %s163 = sphi 0, %s161
      %s164 = sphi 0, %s163
      %s178 = sphi 0, %s164
      %s182 = sphi 0, %s182
      %s184 = sphi 0, %s182
      %s185 = sphi 0, %s184
      %s199 = sphi 0, %s185
      %s205 = sphi 0, %s207
      %s208 = sphi 0, %s205
      %s209 = sphi 0, %s208
      %s225 = sphi 0, %s209
    $region4: #{tpu_custom_call.1} parent=1 // loop_header_branch
      %25 = sbr.rel (%p23) target = $region8
    $region5: #{tpu_custom_call.1} parent=1 // loop_body
      %s27 = ssub.s32 %s22, 1
      %s28 = ssub.s32 %s22, 2
      %s29 = sadd.s32 %s22, 1
      %s30 = ssub.s32 %s22, %s29
      %p31 = scmp.eq.s32.totalorder %s30, 0
      %s33 = sadd.s32 %s32, 1
      %s34 = scalar_select %p31, %s32, %s33
      %p37 = pneg %p31
      %p38 = scmp.eq.s32.totalorder %s22, 1
      %p39 = por %p37, %p38
      %p40 = scmp.ne.s32.totalorder %s32, %s35
      %p41 = scmp.eq.s32.totalorder %s22, 0
      %p42 = por %p40, %p41
      %p43 = scmp.ne.s32.totalorder %s32, %s35
      %p44 = scmp.eq.s32.totalorder %s27, 1
      %p45 = por %p43, %p44
      %p46 = scmp.ne.s32.totalorder %s35, %s36
      %p47 = scmp.eq.s32.totalorder %s27, 0
      %p48 = por %p46, %p47
      %p49 = scmp.ne.s32.totalorder %s35, %s36
      %p50 = scmp.eq.s32.totalorder %s28, 1
      %p51 = por %p49, %p50
      %p53 = scmp.ne.s32.totalorder %s36, %s52
      %p54 = scmp.eq.s32.totalorder %s28, 0
      %p55 = por %p53, %p54
      %s57 = sadd.s32 %s56, 1
      %p60 = scmp.eq.s32.totalorder %s22, 1
      %p61 = scmp.ne.s32.totalorder %s56, %s58
      %p62 = scmp.eq.s32.totalorder %s22, 0
      %p63 = por %p61, %p62
      %p64 = scmp.ne.s32.totalorder %s56, %s58
      %p65 = scmp.eq.s32.totalorder %s27, 1
      %p66 = por %p64, %p65
      %p67 = scmp.ne.s32.totalorder %s58, %s59
      %p68 = scmp.eq.s32.totalorder %s27, 0
      %p69 = por %p67, %p68
      %p70 = scmp.ne.s32.totalorder %s58, %s59
      %p71 = scmp.eq.s32.totalorder %s28, 1
      %p72 = por %p70, %p71
      %p74 = scmp.ne.s32.totalorder %s59, %s73
      %p75 = scmp.eq.s32.totalorder %s28, 0
      %p76 = por %p74, %p75
      %s78 = sadd.s32 %s77, 1
      %p81 = scmp.eq.s32.totalorder %s22, 1
      %p82 = scmp.ne.s32.totalorder %s77, %s79
      %p83 = scmp.eq.s32.totalorder %s22, 0
      %p84 = por %p82, %p83
      %p85 = scmp.ne.s32.totalorder %s77, %s79
      %p86 = scmp.eq.s32.totalorder %s27, 1
      %p87 = por %p85, %p86
      %p88 = scmp.ne.s32.totalorder %s79, %s80
      %p89 = scmp.eq.s32.totalorder %s27, 0
      %p90 = por %p88, %p89
      %p91 = scmp.ne.s32.totalorder %s79, %s80
      %p92 = scmp.eq.s32.totalorder %s28, 1
      %p93 = por %p91, %p92
      %p95 = scmp.ne.s32.totalorder %s80, %s94
      %p96 = scmp.eq.s32.totalorder %s28, 0
      %p97 = por %p95, %p96
      %s99 = sadd.s32 %s98, 1
      %p102 = scmp.eq.s32.totalorder %s22, 1
      %p103 = scmp.ne.s32.totalorder %s98, %s100
      %p104 = scmp.eq.s32.totalorder %s22, 0
      %p105 = por %p103, %p104
      %p106 = scmp.ne.s32.totalorder %s98, %s100
      %p107 = scmp.eq.s32.totalorder %s27, 1
      %p108 = por %p106, %p107
      %p109 = scmp.ne.s32.totalorder %s100, %s101
      %p110 = scmp.eq.s32.totalorder %s27, 0
      %p111 = por %p109, %p110
      %p112 = scmp.ne.s32.totalorder %s100, %s101
      %p113 = scmp.eq.s32.totalorder %s28, 1
      %p114 = por %p112, %p113
      %p116 = scmp.ne.s32.totalorder %s101, %s115
      %p117 = scmp.eq.s32.totalorder %s28, 0
      %p118 = por %p116, %p117
      %s120 = sadd.s32 %s119, 1
      %p123 = scmp.eq.s32.totalorder %s22, 1
      %p124 = scmp.ne.s32.totalorder %s119, %s121
      %p125 = scmp.eq.s32.totalorder %s22, 0
      %p126 = por %p124, %p125
      %p127 = scmp.ne.s32.totalorder %s119, %s121
      %p128 = scmp.eq.s32.totalorder %s27, 1
      %p129 = por %p127, %p128
      %p130 = scmp.ne.s32.totalorder %s121, %s122
      %p131 = scmp.eq.s32.totalorder %s27, 0
      %p132 = por %p130, %p131
      %p133 = scmp.ne.s32.totalorder %s121, %s122
      %p134 = scmp.eq.s32.totalorder %s28, 1
      %p135 = por %p133, %p134
      %p137 = scmp.ne.s32.totalorder %s122, %s136
      %p138 = scmp.eq.s32.totalorder %s28, 0
      %p139 = por %p137, %p138
      %s141 = sadd.s32 %s140, 1
      %p144 = scmp.eq.s32.totalorder %s22, 1
      %p145 = scmp.ne.s32.totalorder %s140, %s142
      %p146 = scmp.eq.s32.totalorder %s22, 0
      %p147 = por %p145, %p146
      %p148 = scmp.ne.s32.totalorder %s140, %s142
      %p149 = scmp.eq.s32.totalorder %s27, 1
      %p150 = por %p148, %p149
      %p151 = scmp.ne.s32.totalorder %s142, %s143
      %p152 = scmp.eq.s32.totalorder %s27, 0
      %p153 = por %p151, %p152
      %p154 = scmp.ne.s32.totalorder %s142, %s143
      %p155 = scmp.eq.s32.totalorder %s28, 1
      %p156 = por %p154, %p155
      %p158 = scmp.ne.s32.totalorder %s143, %s157
      %p159 = scmp.eq.s32.totalorder %s28, 0
      %p160 = por %p158, %p159
      %s162 = sadd.s32 %s161, 1
      %p165 = scmp.eq.s32.totalorder %s22, 1
      %p166 = scmp.ne.s32.totalorder %s161, %s163
      %p167 = scmp.eq.s32.totalorder %s22, 0
      %p168 = por %p166, %p167
      %p169 = scmp.ne.s32.totalorder %s161, %s163
      %p170 = scmp.eq.s32.totalorder %s27, 1
      %p171 = por %p169, %p170
      %p172 = scmp.ne.s32.totalorder %s163, %s164
      %p173 = scmp.eq.s32.totalorder %s27, 0
      %p174 = por %p172, %p173
      %p175 = scmp.ne.s32.totalorder %s163, %s164
      %p176 = scmp.eq.s32.totalorder %s28, 1
      %p177 = por %p175, %p176
      %p179 = scmp.ne.s32.totalorder %s164, %s178
      %p180 = scmp.eq.s32.totalorder %s28, 0
      %p181 = por %p179, %p180
      %s183 = sadd.s32 %s182, 1
      %p186 = scmp.eq.s32.totalorder %s22, 1
      %p187 = scmp.ne.s32.totalorder %s182, %s184
      %p188 = scmp.eq.s32.totalorder %s22, 0
      %p189 = por %p187, %p188
      %p190 = scmp.ne.s32.totalorder %s182, %s184
      %p191 = scmp.eq.s32.totalorder %s27, 1
      %p192 = por %p190, %p191
      %p193 = scmp.ne.s32.totalorder %s184, %s185
      %p194 = scmp.eq.s32.totalorder %s27, 0
      %p195 = por %p193, %p194
      %p196 = scmp.ne.s32.totalorder %s184, %s185
      %p197 = scmp.eq.s32.totalorder %s28, 1
      %p198 = por %p196, %p197
      %p200 = scmp.ne.s32.totalorder %s185, %s199
      %p201 = scmp.eq.s32.totalorder %s28, 0
      %p202 = por %p200, %p201
      %s203 = ssub.s32 %s22, %s29
      %p204 = scmp.eq.s32.totalorder %s203, 0
      %s206 = sadd.s32 %s205, 1
      %s207 = scalar_select %p204, %s205, %s206
      %p210 = pneg %p204
      %p211 = scmp.eq.s32.totalorder %s22, 1
      %p212 = por %p210, %p211
      %p213 = scmp.ne.s32.totalorder %s205, %s208
      %p214 = scmp.eq.s32.totalorder %s22, 0
      %p215 = por %p213, %p214
      %p216 = scmp.ne.s32.totalorder %s205, %s208
      %p217 = scmp.eq.s32.totalorder %s27, 1
      %p218 = por %p216, %p217
      %p219 = scmp.ne.s32.totalorder %s208, %s209
      %p220 = scmp.eq.s32.totalorder %s27, 0
      %p221 = por %p219, %p220
      %p222 = scmp.ne.s32.totalorder %s208, %s209
      %p223 = scmp.eq.s32.totalorder %s28, 1
      %p224 = por %p222, %p223
      %p226 = scmp.ne.s32.totalorder %s209, %s225
      %p227 = scmp.eq.s32.totalorder %s28, 0
      %p228 = por %p226, %p227
      %p229 = scmp.le.s32.totalorder 1, %s22
      %p230 = scmp.lt.s32.totalorder %s22, 3
      %p231 = pnand %p229, %p230
      %p232 = pneg %p231
      // Predicated region
      $region9: #{tpu_custom_call.1} parent=5 // pred_check
        _
      $region10: #{tpu_custom_call.1} parent=5 // pred_check_branch
        %234 = sbr.rel (%p231) target = $region12
      $region11: #{tpu_custom_call.1} parent=5 // pred_region
        %s235 = ssub.s32 %s22, 1
        // Predicated region
        $region13: #{tpu_custom_call.1} parent=11 // pred_check
          %p236 = pneg %p69
        $region14: #{tpu_custom_call.1} parent=11 // pred_check_branch
          %238 = sbr.rel (%p236) target = $region16
        $region15: #{tpu_custom_call.1} parent=11 // pred_region
          %240 = vsyncadd [#allocation8], 0
          %s241 = sshll.u32 %s1, 4
          %s242 = int_to_ptr.hbm [resolvable:$true] %s241
          %s243 = sshll.u32 [#allocation7], 4
          %s244 = int_to_ptr.vmem [resolvable:$true] %s243
          %249 = dma.hbm_to_vmem [thread:$0]  %s242, 9216, %s244, [#allocation8], 64, 64, 4
        $region16: #{tpu_custom_call.1} parent=11 // pred_fallthru
          _
        // Predicated region
        $region17: #{tpu_custom_call.1} parent=11 // pred_check
          %p250 = pneg %p90
        $region18: #{tpu_custom_call.1} parent=11 // pred_check_branch
          %252 = sbr.rel (%p250) target = $region20
        $region19: #{tpu_custom_call.1} parent=11 // pred_region
          _
        $region20: #{tpu_custom_call.1} parent=11 // pred_fallthru
          _
        // Predicated region
        $region21: #{tpu_custom_call.1} parent=11 // pred_check
          %p253 = pneg %p111
        $region22: #{tpu_custom_call.1} parent=11 // pred_check_branch
          %255 = sbr.rel (%p253) target = $region24
        $region23: #{tpu_custom_call.1} parent=11 // pred_region
          _
        $region24: #{tpu_custom_call.1} parent=11 // pred_fallthru
          _
        // Predicated region
        $region25: #{tpu_custom_call.1} parent=11 // pred_check
          %p256 = pneg %p132
        $region26: #{tpu_custom_call.1} parent=11 // pred_check_branch
          %258 = sbr.rel (%p256) target = $region28
        $region27: #{tpu_custom_call.1} parent=11 // pred_region
          %260 = vsyncadd [#allocation8], 0
          %s261 = sshll.u32 %s4, 4
          %s262 = int_to_ptr.hbm [resolvable:$true] %s261
          %s263 = sshll.u32 [#allocation9], 4
          %s264 = int_to_ptr.vmem [resolvable:$true] %s263
          %269 = dma.hbm_to_vmem [thread:$0]  %s262, 9216, %s264, [#allocation8], 64, 64, 4
        $region28: #{tpu_custom_call.1} parent=11 // pred_fallthru
          _
        // Predicated region
        $region29: #{tpu_custom_call.1} parent=11 // pred_check
          %p270 = pneg %p153
        $region30: #{tpu_custom_call.1} parent=11 // pred_check_branch
          %272 = sbr.rel (%p270) target = $region32
        $region31: #{tpu_custom_call.1} parent=11 // pred_region
          _
        $region32: #{tpu_custom_call.1} parent=11 // pred_fallthru
          _
        // Predicated region
        $region33: #{tpu_custom_call.1} parent=11 // pred_check
          %p273 = pneg %p174
        $region34: #{tpu_custom_call.1} parent=11 // pred_check_branch
          %275 = sbr.rel (%p273) target = $region36
        $region35: #{tpu_custom_call.1} parent=11 // pred_region
          _
        $region36: #{tpu_custom_call.1} parent=11 // pred_fallthru
          _
        // Predicated region
        $region37: #{tpu_custom_call.1} parent=11 // pred_check
          %p276 = pneg %p195
        $region38: #{tpu_custom_call.1} parent=11 // pred_check_branch
          %278 = sbr.rel (%p276) target = $region40
        $region39: #{tpu_custom_call.1} parent=11 // pred_region
          %280 = vsyncadd [#allocation11], 0
          %s281 = sshll.u32 %s7, 4
          %s282 = int_to_ptr.hbm [resolvable:$true] %s281
          %s283 = sshll.u32 [#allocation10], 4
          %s284 = int_to_ptr.vmem [resolvable:$true] %s283
          %289 = dma.hbm_to_vmem [thread:$0]  %s282, 1024, %s284, [#allocation11], 128, 128, 8
        $region40: #{tpu_custom_call.1} parent=11 // pred_fallthru
          _
      $region12: #{tpu_custom_call.1} parent=5 // pred_fallthru
        _
      %p290 = scmp.lt.s32.totalorder %s22, 2
      // Predicated region
      $region41: #{tpu_custom_call.1} parent=5 // pred_check
        %p291 = pneg %p290
      $region42: #{tpu_custom_call.1} parent=5 // pred_check_branch
        %293 = sbr.rel (%p291) target = $region44
      $region43: #{tpu_custom_call.1} parent=5 // pred_region
        // Predicated region
        $region45: #{tpu_custom_call.1} parent=43 // pred_check
          %p294 = pneg %p42
        $region46: #{tpu_custom_call.1} parent=43 // pred_check_branch
          %296 = sbr.rel (%p294) target = $region48
        $region47: #{tpu_custom_call.1} parent=43 // pred_region
          %s297 = sand.u32 %s32, 1
          %s298 = scalar_lea.sflag [#allocation5], %s297
          %s299 = sand.u32 %s32, 1
          %s300 = smul.addr %s299, 128
          %s301 = scalar_lea.vmem [#allocation4], %s300
          %303 = vsyncadd %s298, 0
          %s304 = smul.addr %s22, 32
          %s305 = smul.addr %s304, 4
          %s306 = scalar_lea.hbm %s0, %s305
          %s307 = sshll.u32 %s306, 4
          %s308 = int_to_ptr.hbm [resolvable:$true] %s307
          %s309 = sshll.u32 %s301, 4
          %s310 = int_to_ptr.vmem [resolvable:$true] %s309
          %315 = dma.hbm_to_vmem [thread:$0]  %s308, 2048, %s310, %s298, 64, 64, 4
        $region48: #{tpu_custom_call.1} parent=43 // pred_fallthru
          _
      $region44: #{tpu_custom_call.1} parent=5 // pred_fallthru
        _
      %p316 = scmp.le.s32.totalorder 1, %s22
      %p317 = scmp.lt.s32.totalorder %s22, 3
      %p318 = pnand %p316, %p317
      %p319 = pneg %p318
      // Predicated region
      $region49: #{tpu_custom_call.1} parent=5 // pred_check
        _
      $region50: #{tpu_custom_call.1} parent=5 // pred_check_branch
        %321 = sbr.rel (%p318) target = $region52
      $region51: #{tpu_custom_call.1} parent=5 // pred_region
        %s322 = ssub.s32 %s22, 1
        %s323 = sand.u32 %s35, 1
        %s324 = scalar_lea.sflag [#allocation5], %s323
        %s325 = sand.u32 %s35, 1
        %s326 = smul.addr %s325, 128
        %s327 = scalar_lea.vmem [#allocation4], %s326
        // Predicated region
        $region53: #{tpu_custom_call.1} parent=51 // pred_check
          %p328 = pneg %p48
        $region54: #{tpu_custom_call.1} parent=51 // pred_check_branch
          %330 = sbr.rel (%p328) target = $region56
        $region55: #{tpu_custom_call.1} parent=51 // pred_region
          %332 = dma.done %s324, 2048
        $region56: #{tpu_custom_call.1} parent=51 // pred_fallthru
          _
        // Predicated region
        $region57: #{tpu_custom_call.1} parent=51 // pred_check
          %p333 = pneg %p69
        $region58: #{tpu_custom_call.1} parent=51 // pred_check_branch
          %335 = sbr.rel (%p333) target = $region60
        $region59: #{tpu_custom_call.1} parent=51 // pred_region
          %337 = dma.done [#allocation8], 9216
        $region60: #{tpu_custom_call.1} parent=51 // pred_fallthru
          _
        // Predicated region
        $region61: #{tpu_custom_call.1} parent=51 // pred_check
          %p338 = pneg %p132
        $region62: #{tpu_custom_call.1} parent=51 // pred_check_branch
          %340 = sbr.rel (%p338) target = $region64
        $region63: #{tpu_custom_call.1} parent=51 // pred_region
          %342 = dma.done [#allocation8], 9216
        $region64: #{tpu_custom_call.1} parent=51 // pred_fallthru
          _
        // Predicated region
        $region65: #{tpu_custom_call.1} parent=51 // pred_check
          %p343 = pneg %p195
        $region66: #{tpu_custom_call.1} parent=51 // pred_check_branch
          %345 = sbr.rel (%p343) target = $region68
        $region67: #{tpu_custom_call.1} parent=51 // pred_region
          %347 = dma.done [#allocation11], 1024
        $region68: #{tpu_custom_call.1} parent=51 // pred_fallthru
          _
        %s348 = sand.u32 %s35, 1
        %s349 = scalar_lea.sflag [#allocation5], %s348
        %s350 = sand.u32 %s35, 1
        %s351 = smul.addr %s350, 128
        %s352 = scalar_lea.vmem [#allocation4], %s351
        %p353 = pneg %p48
        %p354 = pneg %p45
        %p355 = pneg %p69
        %p356 = pneg %p66
        %p357 = pneg %p90
        %p358 = pneg %p87
        %p359 = pneg %p111
        %p360 = pneg %p108
        %p361 = pneg %p132
        %p362 = pneg %p129
        %p363 = pneg %p153
        %p364 = pneg %p150
        %p365 = pneg %p174
        %p366 = pneg %p171
        %p367 = pneg %p195
        %p368 = pneg %p192
        %p369 = pneg %p221
        %p370 = pneg %p218
        %s371 = sand.u32 %s208, 1
        %s372 = scalar_lea.sflag [#allocation6], %s371
        %s373 = sand.u32 %s208, 1
        %s374 = smul.addr %s373, 64
        %s375 = scalar_lea.vmem [#allocation12], %s374
        %377 = vst [vmem:[#allocation2] sm:$0xf] 0
        %378 = vst [vmem:[#allocation2 + $0x4] sm:$0xf] 0
        %379 = vst [vmem:[#allocation2 + $0x8] sm:$0x1] 0
        %s380 = scalar_lea.vmem [#allocation2], 204
        %381 = vst [vmem:[%s380] sm:$0xf] 0
        %382 = vst [vmem:[%s380 + $0x4] sm:$0xf] 0
        %383 = vst [vmem:[%s380 + $0x8] sm:$0x1] 0
        %vm384 = vcmask 1040384
        %vm385 = vsmask.f32 256
        %vm386 = vmand %vm384, %vm385
        %v387 = vld [vmem:[#allocation2] sm:$0x1]
        %v388 = vsel %vm386, 0, %v387
        %389 = vst [vmem:[#allocation2] sm:$0x1] %v388
        %v390 = vld [vmem:[#allocation2 + $0xc] sm:$0x1]
        %v391 = vsel %vm386, 0, %v390
        %392 = vst [vmem:[#allocation2 + $0xc] sm:$0x1] %v391
        %v393 = vld [vmem:[#allocation2 + $0x18] sm:$0x1]
        %v394 = vsel %vm386, 0, %v393
        %395 = vst [vmem:[#allocation2 + $0x18] sm:$0x1] %v394
        %v396 = vld [vmem:[#allocation2 + $0x24] sm:$0x1]
        %v397 = vsel %vm386, 0, %v396
        %398 = vst [vmem:[#allocation2 + $0x24] sm:$0x1] %v397
        %v399 = vld [vmem:[#allocation2 + $0x30] sm:$0x1]
        %v400 = vsel %vm386, 0, %v399
        %401 = vst [vmem:[#allocation2 + $0x30] sm:$0x1] %v400
        %v402 = vld [vmem:[#allocation2 + $0x3c] sm:$0x1]
        %v403 = vsel %vm386, 0, %v402
        %404 = vst [vmem:[#allocation2 + $0x3c] sm:$0x1] %v403
        %v405 = vld [vmem:[#allocation2 + $0x48] sm:$0x1]
        %v406 = vsel %vm386, 0, %v405
        %407 = vst [vmem:[#allocation2 + $0x48] sm:$0x1] %v406
        %v408 = vld [vmem:[#allocation2 + $0x54] sm:$0x1]
        %v409 = vsel %vm386, 0, %v408
        %410 = vst [vmem:[#allocation2 + $0x54] sm:$0x1] %v409
        %v411 = vld [vmem:[#allocation2 + $0x60] sm:$0x1]
        %v412 = vsel %vm386, 0, %v411
        %413 = vst [vmem:[#allocation2 + $0x60] sm:$0x1] %v412
        %v414 = vld [vmem:[#allocation2 + $0x6c] sm:$0x1]
        %v415 = vsel %vm386, 0, %v414
        %416 = vst [vmem:[#allocation2 + $0x6c] sm:$0x1] %v415
        %v417 = vld [vmem:[#allocation2 + $0x78] sm:$0x1]
        %v418 = vsel %vm386, 0, %v417
        %419 = vst [vmem:[#allocation2 + $0x78] sm:$0x1] %v418
        %v420 = vld [vmem:[#allocation2 + $0x84] sm:$0x1]
        %v421 = vsel %vm386, 0, %v420
        %422 = vst [vmem:[#allocation2 + $0x84] sm:$0x1] %v421
        %v423 = vld [vmem:[#allocation2 + $0x90] sm:$0x1]
        %v424 = vsel %vm386, 0, %v423
        %425 = vst [vmem:[#allocation2 + $0x90] sm:$0x1] %v424
        %v426 = vld [vmem:[#allocation2 + $0x9c] sm:$0x1]
        %v427 = vsel %vm386, 0, %v426
        %428 = vst [vmem:[#allocation2 + $0x9c] sm:$0x1] %v427
        %v429 = vld [vmem:[#allocation2 + $0xa8] sm:$0x1]
        %v430 = vsel %vm386, 0, %v429
        %431 = vst [vmem:[#allocation2 + $0xa8] sm:$0x1] %v430
        %v432 = vld [vmem:[#allocation2 + $0xb4] sm:$0x1]
        %v433 = vsel %vm386, 0, %v432
        %434 = vst [vmem:[#allocation2 + $0xb4] sm:$0x1] %v433
        %v435 = vld [vmem:[#allocation2 + $0xc0] sm:$0x1]
        %v436 = vsel %vm386, 0, %v435
        %437 = vst [vmem:[#allocation2 + $0xc0] sm:$0x1] %v436
        %v438 = vld [vmem:[#allocation2 + $0xcc] sm:$0x1]
        %v439 = vsel %vm386, 0, %v438
        %440 = vst [vmem:[#allocation2 + $0xcc] sm:$0x1] %v439
        %vm441 = vsmask.f32 7938
        %vm442 = vmand %vm384, %vm441
        %v443 = vld [vmem:[#allocation2 + $0x8] sm:$0x1]
        %v444 = vsel %vm442, 0, %v443
        %445 = vst [vmem:[#allocation2 + $0x8] sm:$0x1] %v444
        %v446 = vld [vmem:[#allocation2 + $0x14] sm:$0x1]
        %v447 = vsel %vm442, 0, %v446
        %448 = vst [vmem:[#allocation2 + $0x14] sm:$0x1] %v447
        %v449 = vld [vmem:[#allocation2 + $0x20] sm:$0x1]
        %v450 = vsel %vm442, 0, %v449
        %451 = vst [vmem:[#allocation2 + $0x20] sm:$0x1] %v450
        %v452 = vld [vmem:[#allocation2 + $0x2c] sm:$0x1]
        %v453 = vsel %vm442, 0, %v452
        %454 = vst [vmem:[#allocation2 + $0x2c] sm:$0x1] %v453
        %v455 = vld [vmem:[#allocation2 + $0x38] sm:$0x1]
        %v456 = vsel %vm442, 0, %v455
        %457 = vst [vmem:[#allocation2 + $0x38] sm:$0x1] %v456
        %v458 = vld [vmem:[#allocation2 + $0x44] sm:$0x1]
        %v459 = vsel %vm442, 0, %v458
        %460 = vst [vmem:[#allocation2 + $0x44] sm:$0x1] %v459
        %v461 = vld [vmem:[#allocation2 + $0x50] sm:$0x1]
        %v462 = vsel %vm442, 0, %v461
        %463 = vst [vmem:[#allocation2 + $0x50] sm:$0x1] %v462
        %v464 = vld [vmem:[#allocation2 + $0x5c] sm:$0x1]
        %v465 = vsel %vm442, 0, %v464
        %466 = vst [vmem:[#allocation2 + $0x5c] sm:$0x1] %v465
        %v467 = vld [vmem:[#allocation2 + $0x68] sm:$0x1]
        %v468 = vsel %vm442, 0, %v467
        %469 = vst [vmem:[#allocation2 + $0x68] sm:$0x1] %v468
        %v470 = vld [vmem:[#allocation2 + $0x74] sm:$0x1]
        %v471 = vsel %vm442, 0, %v470
        %472 = vst [vmem:[#allocation2 + $0x74] sm:$0x1] %v471
        %v473 = vld [vmem:[#allocation2 + $0x80] sm:$0x1]
        %v474 = vsel %vm442, 0, %v473
        %475 = vst [vmem:[#allocation2 + $0x80] sm:$0x1] %v474
        %v476 = vld [vmem:[#allocation2 + $0x8c] sm:$0x1]
        %v477 = vsel %vm442, 0, %v476
        %478 = vst [vmem:[#allocation2 + $0x8c] sm:$0x1] %v477
        %v479 = vld [vmem:[#allocation2 + $0x98] sm:$0x1]
        %v480 = vsel %vm442, 0, %v479
        %481 = vst [vmem:[#allocation2 + $0x98] sm:$0x1] %v480
        %v482 = vld [vmem:[#allocation2 + $0xa4] sm:$0x1]
        %v483 = vsel %vm442, 0, %v482
        %484 = vst [vmem:[#allocation2 + $0xa4] sm:$0x1] %v483
        %v485 = vld [vmem:[#allocation2 + $0xb0] sm:$0x1]
        %v486 = vsel %vm442, 0, %v485
        %487 = vst [vmem:[#allocation2 + $0xb0] sm:$0x1] %v486
        %v488 = vld [vmem:[#allocation2 + $0xbc] sm:$0x1]
        %v489 = vsel %vm442, 0, %v488
        %490 = vst [vmem:[#allocation2 + $0xbc] sm:$0x1] %v489
        %v491 = vld [vmem:[#allocation2 + $0xc8] sm:$0x1]
        %v492 = vsel %vm442, 0, %v491
        %493 = vst [vmem:[#allocation2 + $0xc8] sm:$0x1] %v492
        %v494 = vld [vmem:[#allocation2 + $0xd4] sm:$0x1]
        %v495 = vsel %vm442, 0, %v494
        %496 = vst [vmem:[#allocation2 + $0xd4] sm:$0x1] %v495
        %v497 = vld [vmem:[%s327] sm:$0xf]
        %v498 = vld [vmem:[%s327 + $0x4] sm:$0xf]
        %v499 = vld [vmem:[%s327 + $0x8] sm:$0xf]
        %v500 = vld [vmem:[%s327 + $0xc] sm:$0xf]
        %v501 = vld [vmem:[%s327 + $0x10] sm:$0xf]
        %v502 = vld [vmem:[%s327 + $0x14] sm:$0xf]
        %v503 = vld [vmem:[%s327 + $0x18] sm:$0xf]
        %v504 = vld [vmem:[%s327 + $0x1c] sm:$0xf]
        %v505 = vld [vmem:[%s327 + $0x20] sm:$0xf]
        %v506 = vld [vmem:[%s327 + $0x24] sm:$0xf]
        %v507 = vld [vmem:[%s327 + $0x28] sm:$0xf]
        %v508 = vld [vmem:[%s327 + $0x2c] sm:$0xf]
        %v509 = vld [vmem:[%s327 + $0x30] sm:$0xf]
        %v510 = vld [vmem:[%s327 + $0x34] sm:$0xf]
        %v511 = vld [vmem:[%s327 + $0x38] sm:$0xf]
        %v512 = vld [vmem:[%s327 + $0x3c] sm:$0xf]
        %v513 = vld [vmem:[%s327 + $0x40] sm:$0xf]
        %v514 = vld [vmem:[%s327 + $0x44] sm:$0xf]
        %v515 = vld [vmem:[%s327 + $0x48] sm:$0xf]
        %v516 = vld [vmem:[%s327 + $0x4c] sm:$0xf]
        %v517 = vld [vmem:[%s327 + $0x50] sm:$0xf]
        %v518 = vld [vmem:[%s327 + $0x54] sm:$0xf]
        %v519 = vld [vmem:[%s327 + $0x58] sm:$0xf]
        %v520 = vld [vmem:[%s327 + $0x5c] sm:$0xf]
        %v521 = vld [vmem:[%s327 + $0x60] sm:$0xf]
        %v522 = vld [vmem:[%s327 + $0x64] sm:$0xf]
        %v523 = vld [vmem:[%s327 + $0x68] sm:$0xf]
        %v524 = vld [vmem:[%s327 + $0x6c] sm:$0xf]
        %v525 = vld [vmem:[%s327 + $0x70] sm:$0xf]
        %v526 = vld [vmem:[%s327 + $0x74] sm:$0xf]
        %v527 = vld [vmem:[%s327 + $0x78] sm:$0xf]
        %v528 = vld [vmem:[%s327 + $0x7c] sm:$0xf]
        %vm529 = vsmask.f32 4368
        %vm530 = vmor %vm385, %vm529
        %v532 = vshrl.u32 %v497, 16
        %v534 = vrot.slane %v532, 7
        %v535 = vshll.u32 %v497, 16
        %v537 = vor.u32 %v534, %v535
        %v538 = vrot.slane %v534, 4
        %v540 = vshrl.u32 %v498, 16
        %v542 = vrot.slane %v540, 7
        %v543 = vshll.u32 %v498, 16
        %v545 = vor.u32 %v542, %v543
        %v546 = vsel %vm530, %v538, %v545
        %v547 = vrot.slane %v542, 4
        %v549 = vshrl.u32 %v499, 16
        %v551 = vrot.slane %v549, 7
        %v552 = vshll.u32 %v499, 16
        %v554 = vor.u32 %v551, %v552
        %v555 = vrot.slane %v551, 4
        %v557 = vshrl.u32 %v500, 16
        %v559 = vrot.slane %v557, 7
        %v560 = vshll.u32 %v500, 16
        %v562 = vor.u32 %v559, %v560
        %v563 = vsel %vm530, %v555, %v562
        %v564 = vrot.slane %v559, 4
        %v566 = vshrl.u32 %v501, 16
        %v568 = vrot.slane %v566, 7
        %v569 = vshll.u32 %v501, 16
        %v571 = vor.u32 %v568, %v569
        %v572 = vrot.slane %v568, 4
        %v574 = vshrl.u32 %v502, 16
        %v576 = vrot.slane %v574, 7
        %v577 = vshll.u32 %v502, 16
        %v579 = vor.u32 %v576, %v577
        %v580 = vsel %vm530, %v572, %v579
        %v581 = vrot.slane %v576, 4
        %v583 = vshrl.u32 %v503, 16
        %v585 = vrot.slane %v583, 7
        %v586 = vshll.u32 %v503, 16
        %v588 = vor.u32 %v585, %v586
        %v589 = vrot.slane %v585, 4
        %v591 = vshrl.u32 %v504, 16
        %v593 = vrot.slane %v591, 7
        %v594 = vshll.u32 %v504, 16
        %v596 = vor.u32 %v593, %v594
        %v597 = vsel %vm530, %v589, %v596
        %v598 = vrot.slane %v593, 4
        %v600 = vshrl.u32 %v505, 16
        %v602 = vrot.slane %v600, 7
        %v603 = vshll.u32 %v505, 16
        %v605 = vor.u32 %v602, %v603
        %v606 = vrot.slane %v602, 4
        %v608 = vshrl.u32 %v506, 16
        %v610 = vrot.slane %v608, 7
        %v611 = vshll.u32 %v506, 16
        %v613 = vor.u32 %v610, %v611
        %v614 = vsel %vm530, %v606, %v613
        %v615 = vrot.slane %v610, 4
        %v617 = vshrl.u32 %v507, 16
        %v619 = vrot.slane %v617, 7
        %v620 = vshll.u32 %v507, 16
        %v622 = vor.u32 %v619, %v620
        %v623 = vrot.slane %v619, 4
        %v625 = vshrl.u32 %v508, 16
        %v627 = vrot.slane %v625, 7
        %v628 = vshll.u32 %v508, 16
        %v630 = vor.u32 %v627, %v628
        %v631 = vsel %vm530, %v623, %v630
        %v632 = vrot.slane %v627, 4
        %v634 = vshrl.u32 %v509, 16
        %v636 = vrot.slane %v634, 7
        %v637 = vshll.u32 %v509, 16
        %v639 = vor.u32 %v636, %v637
        %v640 = vrot.slane %v636, 4
        %v642 = vshrl.u32 %v510, 16
        %v644 = vrot.slane %v642, 7
        %v645 = vshll.u32 %v510, 16
        %v647 = vor.u32 %v644, %v645
        %v648 = vsel %vm530, %v640, %v647
        %v649 = vrot.slane %v644, 4
        %v651 = vshrl.u32 %v511, 16
        %v653 = vrot.slane %v651, 7
        %v654 = vshll.u32 %v511, 16
        %v656 = vor.u32 %v653, %v654
        %v657 = vrot.slane %v653, 4
        %v659 = vshrl.u32 %v512, 16
        %v661 = vrot.slane %v659, 7
        %v662 = vshll.u32 %v512, 16
        %v664 = vor.u32 %v661, %v662
        %v665 = vsel %vm530, %v657, %v664
        %v666 = vrot.slane %v661, 4
        %v668 = vshrl.u32 %v513, 16
        %v670 = vrot.slane %v668, 7
        %v671 = vshll.u32 %v513, 16
        %v673 = vor.u32 %v670, %v671
        %v674 = vrot.slane %v670, 4
        %v676 = vshrl.u32 %v514, 16
        %v678 = vrot.slane %v676, 7
        %v679 = vshll.u32 %v514, 16
        %v681 = vor.u32 %v678, %v679
        %v682 = vsel %vm530, %v674, %v681
        %v683 = vrot.slane %v678, 4
        %v685 = vshrl.u32 %v515, 16
        %v687 = vrot.slane %v685, 7
        %v688 = vshll.u32 %v515, 16
        %v690 = vor.u32 %v687, %v688
        %v691 = vrot.slane %v687, 4
        %v693 = vshrl.u32 %v516, 16
        %v695 = vrot.slane %v693, 7
        %v696 = vshll.u32 %v516, 16
        %v698 = vor.u32 %v695, %v696
        %v699 = vsel %vm530, %v691, %v698
        %v700 = vrot.slane %v695, 4
        %v702 = vshrl.u32 %v517, 16
        %v704 = vrot.slane %v702, 7
        %v705 = vshll.u32 %v517, 16
        %v707 = vor.u32 %v704, %v705
        %v708 = vrot.slane %v704, 4
        %v710 = vshrl.u32 %v518, 16
        %v712 = vrot.slane %v710, 7
        %v713 = vshll.u32 %v518, 16
        %v715 = vor.u32 %v712, %v713
        %v716 = vsel %vm530, %v708, %v715
        %v717 = vrot.slane %v712, 4
        %v719 = vshrl.u32 %v519, 16
        %v721 = vrot.slane %v719, 7
        %v722 = vshll.u32 %v519, 16
        %v724 = vor.u32 %v721, %v722
        %v725 = vrot.slane %v721, 4
        %v727 = vshrl.u32 %v520, 16
        %v729 = vrot.slane %v727, 7
        %v730 = vshll.u32 %v520, 16
        %v732 = vor.u32 %v729, %v730
        %v733 = vsel %vm530, %v725, %v732
        %v734 = vrot.slane %v729, 4
        %v736 = vshrl.u32 %v521, 16
        %v738 = vrot.slane %v736, 7
        %v739 = vshll.u32 %v521, 16
        %v741 = vor.u32 %v738, %v739
        %v742 = vrot.slane %v738, 4
        %v744 = vshrl.u32 %v522, 16
        %v746 = vrot.slane %v744, 7
        %v747 = vshll.u32 %v522, 16
        %v749 = vor.u32 %v746, %v747
        %v750 = vsel %vm530, %v742, %v749
        %v751 = vrot.slane %v746, 4
        %v753 = vshrl.u32 %v523, 16
        %v755 = vrot.slane %v753, 7
        %v756 = vshll.u32 %v523, 16
        %v758 = vor.u32 %v755, %v756
        %v759 = vrot.slane %v755, 4
        %v761 = vshrl.u32 %v524, 16
        %v763 = vrot.slane %v761, 7
        %v764 = vshll.u32 %v524, 16
        %v766 = vor.u32 %v763, %v764
        %v767 = vsel %vm530, %v759, %v766
        %v768 = vrot.slane %v763, 4
        %v770 = vshrl.u32 %v525, 16
        %v772 = vrot.slane %v770, 7
        %v773 = vshll.u32 %v525, 16
        %v775 = vor.u32 %v772, %v773
        %v776 = vrot.slane %v772, 4
        %v778 = vshrl.u32 %v526, 16
        %v780 = vrot.slane %v778, 7
        %v781 = vshll.u32 %v526, 16
        %v783 = vor.u32 %v780, %v781
        %v784 = vsel %vm530, %v776, %v783
        %v785 = vrot.slane %v780, 4
        %v787 = vshrl.u32 %v527, 16
        %v789 = vrot.slane %v787, 7
        %v790 = vshll.u32 %v527, 16
        %v792 = vor.u32 %v789, %v790
        %v793 = vrot.slane %v789, 4
        %v795 = vshrl.u32 %v528, 16
        %v797 = vrot.slane %v795, 7
        %v798 = vshll.u32 %v528, 16
        %v800 = vor.u32 %v797, %v798
        %v801 = vsel %vm530, %v793, %v800
        %v802 = vrot.slane %v797, 4
        %s851 = scalar_lea.vmem [#allocation2], 12
        %vm852 = vcmask 1043456
        %vm853 = vmand %vm852, %vm441
        %v854 = vld [vmem:[%s851] sm:$0xf]
        %v855 = vsel %vm853, %v537, %v854
        %856 = vst [vmem:[%s851] sm:$0xf] %v855
        %857 = vst [vmem:[%s851 + $0x4] sm:$0xf] %v546
        %v858 = vld [vmem:[%s851 + $0x8] sm:$0x1]
        %v859 = vsel %vm386, %v547, %v858
        %860 = vst [vmem:[%s851 + $0x8] sm:$0x1] %v859
        %v861 = vld [vmem:[%s851 + $0xc] sm:$0xf]
        %v862 = vsel %vm853, %v554, %v861
        %863 = vst [vmem:[%s851 + $0xc] sm:$0xf] %v862
        %864 = vst [vmem:[%s851 + $0x10] sm:$0xf] %v563
        %v865 = vld [vmem:[%s851 + $0x14] sm:$0x1]
        %v866 = vsel %vm386, %v564, %v865
        %867 = vst [vmem:[%s851 + $0x14] sm:$0x1] %v866
        %v868 = vld [vmem:[%s851 + $0x18] sm:$0xf]
        %v869 = vsel %vm853, %v571, %v868
        %870 = vst [vmem:[%s851 + $0x18] sm:$0xf] %v869
        %871 = vst [vmem:[%s851 + $0x1c] sm:$0xf] %v580
        %v872 = vld [vmem:[%s851 + $0x20] sm:$0x1]
        %v873 = vsel %vm386, %v581, %v872
        %874 = vst [vmem:[%s851 + $0x20] sm:$0x1] %v873
        %v875 = vld [vmem:[%s851 + $0x24] sm:$0xf]
        %v876 = vsel %vm853, %v588, %v875
        %877 = vst [vmem:[%s851 + $0x24] sm:$0xf] %v876
        %878 = vst [vmem:[%s851 + $0x28] sm:$0xf] %v597
        %v879 = vld [vmem:[%s851 + $0x2c] sm:$0x1]
        %v880 = vsel %vm386, %v598, %v879
        %881 = vst [vmem:[%s851 + $0x2c] sm:$0x1] %v880
        %v882 = vld [vmem:[%s851 + $0x30] sm:$0xf]
        %v883 = vsel %vm853, %v605, %v882
        %884 = vst [vmem:[%s851 + $0x30] sm:$0xf] %v883
        %885 = vst [vmem:[%s851 + $0x34] sm:$0xf] %v614
        %v886 = vld [vmem:[%s851 + $0x38] sm:$0x1]
        %v887 = vsel %vm386, %v615, %v886
        %888 = vst [vmem:[%s851 + $0x38] sm:$0x1] %v887
        %v889 = vld [vmem:[%s851 + $0x3c] sm:$0xf]
        %v890 = vsel %vm853, %v622, %v889
        %891 = vst [vmem:[%s851 + $0x3c] sm:$0xf] %v890
        %892 = vst [vmem:[%s851 + $0x40] sm:$0xf] %v631
        %v893 = vld [vmem:[%s851 + $0x44] sm:$0x1]
        %v894 = vsel %vm386, %v632, %v893
        %895 = vst [vmem:[%s851 + $0x44] sm:$0x1] %v894
        %v896 = vld [vmem:[%s851 + $0x48] sm:$0xf]
        %v897 = vsel %vm853, %v639, %v896
        %898 = vst [vmem:[%s851 + $0x48] sm:$0xf] %v897
        %899 = vst [vmem:[%s851 + $0x4c] sm:$0xf] %v648
        %v900 = vld [vmem:[%s851 + $0x50] sm:$0x1]
        %v901 = vsel %vm386, %v649, %v900
        %902 = vst [vmem:[%s851 + $0x50] sm:$0x1] %v901
        %v903 = vld [vmem:[%s851 + $0x54] sm:$0xf]
        %v904 = vsel %vm853, %v656, %v903
        %905 = vst [vmem:[%s851 + $0x54] sm:$0xf] %v904
        %906 = vst [vmem:[%s851 + $0x58] sm:$0xf] %v665
        %v907 = vld [vmem:[%s851 + $0x5c] sm:$0x1]
        %v908 = vsel %vm386, %v666, %v907
        %909 = vst [vmem:[%s851 + $0x5c] sm:$0x1] %v908
        %v910 = vld [vmem:[%s851 + $0x60] sm:$0xf]
        %v911 = vsel %vm853, %v673, %v910
        %912 = vst [vmem:[%s851 + $0x60] sm:$0xf] %v911
        %913 = vst [vmem:[%s851 + $0x64] sm:$0xf] %v682
        %v914 = vld [vmem:[%s851 + $0x68] sm:$0x1]
        %v915 = vsel %vm386, %v683, %v914
        %916 = vst [vmem:[%s851 + $0x68] sm:$0x1] %v915
        %v917 = vld [vmem:[%s851 + $0x6c] sm:$0xf]
        %v918 = vsel %vm853, %v690, %v917
        %919 = vst [vmem:[%s851 + $0x6c] sm:$0xf] %v918
        %920 = vst [vmem:[%s851 + $0x70] sm:$0xf] %v699
        %v921 = vld [vmem:[%s851 + $0x74] sm:$0x1]
        %v922 = vsel %vm386, %v700, %v921
        %923 = vst [vmem:[%s851 + $0x74] sm:$0x1] %v922
        %v924 = vld [vmem:[%s851 + $0x78] sm:$0xf]
        %v925 = vsel %vm853, %v707, %v924
        %926 = vst [vmem:[%s851 + $0x78] sm:$0xf] %v925
        %927 = vst [vmem:[%s851 + $0x7c] sm:$0xf] %v716
        %v928 = vld [vmem:[%s851 + $0x80] sm:$0x1]
        %v929 = vsel %vm386, %v717, %v928
        %930 = vst [vmem:[%s851 + $0x80] sm:$0x1] %v929
        %v931 = vld [vmem:[%s851 + $0x84] sm:$0xf]
        %v932 = vsel %vm853, %v724, %v931
        %933 = vst [vmem:[%s851 + $0x84] sm:$0xf] %v932
        %934 = vst [vmem:[%s851 + $0x88] sm:$0xf] %v733
        %v935 = vld [vmem:[%s851 + $0x8c] sm:$0x1]
        %v936 = vsel %vm386, %v734, %v935
        %937 = vst [vmem:[%s851 + $0x8c] sm:$0x1] %v936
        %v938 = vld [vmem:[%s851 + $0x90] sm:$0xf]
        %v939 = vsel %vm853, %v741, %v938
        %940 = vst [vmem:[%s851 + $0x90] sm:$0xf] %v939
        %941 = vst [vmem:[%s851 + $0x94] sm:$0xf] %v750
        %v942 = vld [vmem:[%s851 + $0x98] sm:$0x1]
        %v943 = vsel %vm386, %v751, %v942
        %944 = vst [vmem:[%s851 + $0x98] sm:$0x1] %v943
        %v945 = vld [vmem:[%s851 + $0x9c] sm:$0xf]
        %v946 = vsel %vm853, %v758, %v945
        %947 = vst [vmem:[%s851 + $0x9c] sm:$0xf] %v946
        %948 = vst [vmem:[%s851 + $0xa0] sm:$0xf] %v767
        %v949 = vld [vmem:[%s851 + $0xa4] sm:$0x1]
        %v950 = vsel %vm386, %v768, %v949
        %951 = vst [vmem:[%s851 + $0xa4] sm:$0x1] %v950
        %v952 = vld [vmem:[%s851 + $0xa8] sm:$0xf]
        %v953 = vsel %vm853, %v775, %v952
        %954 = vst [vmem:[%s851 + $0xa8] sm:$0xf] %v953
        %955 = vst [vmem:[%s851 + $0xac] sm:$0xf] %v784
        %v956 = vld [vmem:[%s851 + $0xb0] sm:$0x1]
        %v957 = vsel %vm386, %v785, %v956
        %958 = vst [vmem:[%s851 + $0xb0] sm:$0x1] %v957
        %v959 = vld [vmem:[%s851 + $0xb4] sm:$0xf]
        %v960 = vsel %vm853, %v792, %v959
        %961 = vst [vmem:[%s851 + $0xb4] sm:$0xf] %v960
        %962 = vst [vmem:[%s851 + $0xb8] sm:$0xf] %v801
        %v963 = vld [vmem:[%s851 + $0xbc] sm:$0x1]
        %v964 = vsel %vm386, %v802, %v963
        %965 = vst [vmem:[%s851 + $0xbc] sm:$0x1] %v964
        %v966 = vld [vmem:[#allocation2] sm:$0xf]
        %v967 = vld [vmem:[#allocation2 + $0x4] sm:$0xf]
        %v968 = vld [vmem:[#allocation2 + $0xc] sm:$0xf]
        %v969 = vld [vmem:[#allocation2 + $0x10] sm:$0xf]
        %v970 = vld [vmem:[#allocation2 + $0x18] sm:$0xf]
        %v971 = vld [vmem:[#allocation2 + $0x1c] sm:$0xf]
        %v972 = vld [vmem:[#allocation2 + $0x24] sm:$0xf]
        %v973 = vld [vmem:[#allocation2 + $0x28] sm:$0xf]
        %v974 = vld [vmem:[#allocation2 + $0x30] sm:$0xf]
        %v975 = vld [vmem:[#allocation2 + $0x34] sm:$0xf]
        %v976 = vld [vmem:[#allocation2 + $0x3c] sm:$0xf]
        %v977 = vld [vmem:[#allocation2 + $0x40] sm:$0xf]
        %v978 = vld [vmem:[#allocation2 + $0x48] sm:$0xf]
        %v979 = vld [vmem:[#allocation2 + $0x4c] sm:$0xf]
        %v980 = vld [vmem:[#allocation2 + $0x54] sm:$0xf]
        %v981 = vld [vmem:[#allocation2 + $0x58] sm:$0xf]
        %v982 = vld [vmem:[#allocation2 + $0x60] sm:$0xf]
        %v983 = vld [vmem:[#allocation2 + $0x64] sm:$0xf]
        %v984 = vld [vmem:[#allocation2 + $0x6c] sm:$0xf]
        %v985 = vld [vmem:[#allocation2 + $0x70] sm:$0xf]
        %v986 = vld [vmem:[#allocation2 + $0x78] sm:$0xf]
        %v987 = vld [vmem:[#allocation2 + $0x7c] sm:$0xf]
        %v988 = vld [vmem:[#allocation2 + $0x84] sm:$0xf]
        %v989 = vld [vmem:[#allocation2 + $0x88] sm:$0xf]
        %v990 = vld [vmem:[#allocation2 + $0x90] sm:$0xf]
        %v991 = vld [vmem:[#allocation2 + $0x94] sm:$0xf]
        %v992 = vld [vmem:[#allocation2 + $0x9c] sm:$0xf]
        %v993 = vld [vmem:[#allocation2 + $0xa0] sm:$0xf]
        %v994 = vld [vmem:[#allocation2 + $0xa8] sm:$0xf]
        %v995 = vld [vmem:[#allocation2 + $0xac] sm:$0xf]
        %v996 = vld [vmem:[#allocation2 + $0xb4] sm:$0xf]
        %v997 = vld [vmem:[#allocation2 + $0xb8] sm:$0xf]
        %998 = vst [vmem:[#allocation3] sm:$0xf] %v966
        %999 = vst [vmem:[#allocation3 + $0x24] sm:$0xf] %v967
        %1000 = vst [vmem:[#allocation3 + $0x48] sm:$0xf] %v968
        %1001 = vst [vmem:[#allocation3 + $0x6c] sm:$0xf] %v969
        %1002 = vst [vmem:[#allocation3 + $0x90] sm:$0xf] %v970
        %1003 = vst [vmem:[#allocation3 + $0xb4] sm:$0xf] %v971
        %1004 = vst [vmem:[#allocation3 + $0xd8] sm:$0xf] %v972
        %1005 = vst [vmem:[#allocation3 + $0xfc] sm:$0xf] %v973
        %1006 = vst [vmem:[#allocation3 + $0x120] sm:$0xf] %v974
        %1007 = vst [vmem:[#allocation3 + $0x144] sm:$0xf] %v975
        %1008 = vst [vmem:[#allocation3 + $0x168] sm:$0xf] %v976
        %1009 = vst [vmem:[#allocation3 + $0x18c] sm:$0xf] %v977
        %1010 = vst [vmem:[#allocation3 + $0x1b0] sm:$0xf] %v978
        %1011 = vst [vmem:[#allocation3 + $0x1d4] sm:$0xf] %v979
        %1012 = vst [vmem:[#allocation3 + $0x1f8] sm:$0xf] %v980
        %1013 = vst [vmem:[#allocation3 + $0x21c] sm:$0xf] %v981
        %1014 = vst [vmem:[#allocation3 + $0x240] sm:$0xf] %v982
        %1015 = vst [vmem:[#allocation3 + $0x264] sm:$0xf] %v983
        %1016 = vst [vmem:[#allocation3 + $0x288] sm:$0xf] %v984
        %1017 = vst [vmem:[#allocation3 + $0x2ac] sm:$0xf] %v985
        %1018 = vst [vmem:[#allocation3 + $0x2d0] sm:$0xf] %v986
        %1019 = vst [vmem:[#allocation3 + $0x2f4] sm:$0xf] %v987
        %1020 = vst [vmem:[#allocation3 + $0x318] sm:$0xf] %v988
        %1021 = vst [vmem:[#allocation3 + $0x33c] sm:$0xf] %v989
        %1022 = vst [vmem:[#allocation3 + $0x360] sm:$0xf] %v990
        %1023 = vst [vmem:[#allocation3 + $0x384] sm:$0xf] %v991
        %1024 = vst [vmem:[#allocation3 + $0x3a8] sm:$0xf] %v992
        %1025 = vst [vmem:[#allocation3 + $0x3cc] sm:$0xf] %v993
        %1026 = vst [vmem:[#allocation3 + $0x3f0] sm:$0xf] %v994
        %1027 = vst [vmem:[#allocation3 + $0x414] sm:$0xf] %v995
        %1028 = vst [vmem:[#allocation3 + $0x438] sm:$0xf] %v996
        %1029 = vst [vmem:[#allocation3 + $0x45c] sm:$0xf] %v997
        %v1030 = vld [vmem:[#allocation2] sm:$0xf]
        %v1031 = vld [vmem:[#allocation2 + $0x4] sm:$0xf]
        %v1032 = vld [vmem:[#allocation2 + $0x8] sm:$0x1]
        %v1033 = vld [vmem:[#allocation2 + $0xc] sm:$0xf]
        %v1034 = vld [vmem:[#allocation2 + $0x10] sm:$0xf]
        %v1035 = vld [vmem:[#allocation2 + $0x14] sm:$0x1]
        %v1036 = vld [vmem:[#allocation2 + $0x18] sm:$0xf]
        %v1037 = vld [vmem:[#allocation2 + $0x1c] sm:$0xf]
        %v1038 = vld [vmem:[#allocation2 + $0x20] sm:$0x1]
        %v1039 = vld [vmem:[#allocation2 + $0x24] sm:$0xf]
        %v1040 = vld [vmem:[#allocation2 + $0x28] sm:$0xf]
        %v1041 = vld [vmem:[#allocation2 + $0x2c] sm:$0x1]
        %v1042 = vld [vmem:[#allocation2 + $0x30] sm:$0xf]
        %v1043 = vld [vmem:[#allocation2 + $0x34] sm:$0xf]
        %v1044 = vld [vmem:[#allocation2 + $0x38] sm:$0x1]
        %v1045 = vld [vmem:[#allocation2 + $0x3c] sm:$0xf]
        %v1046 = vld [vmem:[#allocation2 + $0x40] sm:$0xf]
        %v1047 = vld [vmem:[#allocation2 + $0x44] sm:$0x1]
        %v1048 = vld [vmem:[#allocation2 + $0x48] sm:$0xf]
        %v1049 = vld [vmem:[#allocation2 + $0x4c] sm:$0xf]
        %v1050 = vld [vmem:[#allocation2 + $0x50] sm:$0x1]
        %v1051 = vld [vmem:[#allocation2 + $0x54] sm:$0xf]
        %v1052 = vld [vmem:[#allocation2 + $0x58] sm:$0xf]
        %v1053 = vld [vmem:[#allocation2 + $0x5c] sm:$0x1]
        %v1054 = vld [vmem:[#allocation2 + $0x60] sm:$0xf]
        %v1055 = vld [vmem:[#allocation2 + $0x64] sm:$0xf]
        %v1056 = vld [vmem:[#allocation2 + $0x68] sm:$0x1]
        %v1057 = vld [vmem:[#allocation2 + $0x6c] sm:$0xf]
        %v1058 = vld [vmem:[#allocation2 + $0x70] sm:$0xf]
        %v1059 = vld [vmem:[#allocation2 + $0x74] sm:$0x1]
        %v1060 = vld [vmem:[#allocation2 + $0x78] sm:$0xf]
        %v1061 = vld [vmem:[#allocation2 + $0x7c] sm:$0xf]
        %v1062 = vld [vmem:[#allocation2 + $0x80] sm:$0x1]
        %v1063 = vld [vmem:[#allocation2 + $0x84] sm:$0xf]
        %v1064 = vld [vmem:[#allocation2 + $0x88] sm:$0xf]
        %v1065 = vld [vmem:[#allocation2 + $0x8c] sm:$0x1]
        %v1066 = vld [vmem:[#allocation2 + $0x90] sm:$0xf]
        %v1067 = vld [vmem:[#allocation2 + $0x94] sm:$0xf]
        %v1068 = vld [vmem:[#allocation2 + $0x98] sm:$0x1]
        %v1069 = vld [vmem:[#allocation2 + $0x9c] sm:$0xf]
        %v1070 = vld [vmem:[#allocation2 + $0xa0] sm:$0xf]
        %v1071 = vld [vmem:[#allocation2 + $0xa4] sm:$0x1]
        %v1072 = vld [vmem:[#allocation2 + $0xa8] sm:$0xf]
        %v1073 = vld [vmem:[#allocation2 + $0xac] sm:$0xf]
        %v1074 = vld [vmem:[#allocation2 + $0xb0] sm:$0x1]
        %v1075 = vld [vmem:[#allocation2 + $0xb4] sm:$0xf]
        %v1076 = vld [vmem:[#allocation2 + $0xb8] sm:$0xf]
        %v1077 = vld [vmem:[#allocation2 + $0xbc] sm:$0x1]
        %vm1078 = vsmask.f32 3328
        %vm1079 = vsmask.f32 7440
        %vm1080 = vmor %vm1078, %vm1079
        %v1082 = vshrl.u32 %v1030, 16
        %v1084 = vrot.slane %v1082, 4
        %v1085 = vshll.u32 %v1030, 16
        %v1087 = vrot.slane %v1085, 5
        %v1088 = vor.u32 %v1084, %v1087
        %v1089 = vrot.slane %v1088, 4
        %v1091 = vshll.u32 %v1031, 16
        %v1093 = vrot.slane %v1091, 5
        %v1094 = vsel %vm1080, %v1089, %v1093
        %v1095 = vshrl.u32 %v1031, 16
        %v1097 = vrot.slane %v1095, 4
        %v1098 = vor.u32 %v1097, %v1093
        %v1099 = vrot.slane %v1098, 4
        %v1101 = vshll.u32 %v1032, 16
        %v1103 = vrot.slane %v1101, 5
        %v1104 = vsel %vm1080, %v1099, %v1103
        %v1106 = vshrl.u32 %v1033, 16
        %v1108 = vrot.slane %v1106, 4
        %v1109 = vshll.u32 %v1033, 16
        %v1111 = vrot.slane %v1109, 5
        %v1112 = vor.u32 %v1108, %v1111
        %v1113 = vrot.slane %v1112, 4
        %v1115 = vshll.u32 %v1034, 16
        %v1117 = vrot.slane %v1115, 5
        %v1118 = vsel %vm1080, %v1113, %v1117
        %v1119 = vshrl.u32 %v1034, 16
        %v1121 = vrot.slane %v1119, 4
        %v1122 = vor.u32 %v1121, %v1117
        %v1123 = vrot.slane %v1122, 4
        %v1125 = vshll.u32 %v1035, 16
        %v1127 = vrot.slane %v1125, 5
        %v1128 = vsel %vm1080, %v1123, %v1127
        %v1130 = vshrl.u32 %v1036, 16
        %v1132 = vrot.slane %v1130, 4
        %v1133 = vshll.u32 %v1036, 16
        %v1135 = vrot.slane %v1133, 5
        %v1136 = vor.u32 %v1132, %v1135
        %v1137 = vrot.slane %v1136, 4
        %v1139 = vshll.u32 %v1037, 16
        %v1141 = vrot.slane %v1139, 5
        %v1142 = vsel %vm1080, %v1137, %v1141
        %v1143 = vshrl.u32 %v1037, 16
        %v1145 = vrot.slane %v1143, 4
        %v1146 = vor.u32 %v1145, %v1141
        %v1147 = vrot.slane %v1146, 4
        %v1149 = vshll.u32 %v1038, 16
        %v1151 = vrot.slane %v1149, 5
        %v1152 = vsel %vm1080, %v1147, %v1151
        %v1154 = vshrl.u32 %v1039, 16
        %v1156 = vrot.slane %v1154, 4
        %v1157 = vshll.u32 %v1039, 16
        %v1159 = vrot.slane %v1157, 5
        %v1160 = vor.u32 %v1156, %v1159
        %v1161 = vrot.slane %v1160, 4
        %v1163 = vshll.u32 %v1040, 16
        %v1165 = vrot.slane %v1163, 5
        %v1166 = vsel %vm1080, %v1161, %v1165
        %v1167 = vshrl.u32 %v1040, 16
        %v1169 = vrot.slane %v1167, 4
        %v1170 = vor.u32 %v1169, %v1165
        %v1171 = vrot.slane %v1170, 4
        %v1173 = vshll.u32 %v1041, 16
        %v1175 = vrot.slane %v1173, 5
        %v1176 = vsel %vm1080, %v1171, %v1175
        %v1178 = vshrl.u32 %v1042, 16
        %v1180 = vrot.slane %v1178, 4
        %v1181 = vshll.u32 %v1042, 16
        %v1183 = vrot.slane %v1181, 5
        %v1184 = vor.u32 %v1180, %v1183
        %v1185 = vrot.slane %v1184, 4
        %v1187 = vshll.u32 %v1043, 16
        %v1189 = vrot.slane %v1187, 5
        %v1190 = vsel %vm1080, %v1185, %v1189
        %v1191 = vshrl.u32 %v1043, 16
        %v1193 = vrot.slane %v1191, 4
        %v1194 = vor.u32 %v1193, %v1189
        %v1195 = vrot.slane %v1194, 4
        %v1197 = vshll.u32 %v1044, 16
        %v1199 = vrot.slane %v1197, 5
        %v1200 = vsel %vm1080, %v1195, %v1199
        %v1202 = vshrl.u32 %v1045, 16
        %v1204 = vrot.slane %v1202, 4
        %v1205 = vshll.u32 %v1045, 16
        %v1207 = vrot.slane %v1205, 5
        %v1208 = vor.u32 %v1204, %v1207
        %v1209 = vrot.slane %v1208, 4
        %v1211 = vshll.u32 %v1046, 16
        %v1213 = vrot.slane %v1211, 5
        %v1214 = vsel %vm1080, %v1209, %v1213
        %v1215 = vshrl.u32 %v1046, 16
        %v1217 = vrot.slane %v1215, 4
        %v1218 = vor.u32 %v1217, %v1213
        %v1219 = vrot.slane %v1218, 4
        %v1221 = vshll.u32 %v1047, 16
        %v1223 = vrot.slane %v1221, 5
        %v1224 = vsel %vm1080, %v1219, %v1223
        %v1226 = vshrl.u32 %v1048, 16
        %v1228 = vrot.slane %v1226, 4
        %v1229 = vshll.u32 %v1048, 16
        %v1231 = vrot.slane %v1229, 5
        %v1232 = vor.u32 %v1228, %v1231
        %v1233 = vrot.slane %v1232, 4
        %v1235 = vshll.u32 %v1049, 16
        %v1237 = vrot.slane %v1235, 5
        %v1238 = vsel %vm1080, %v1233, %v1237
        %v1239 = vshrl.u32 %v1049, 16
        %v1241 = vrot.slane %v1239, 4
        %v1242 = vor.u32 %v1241, %v1237
        %v1243 = vrot.slane %v1242, 4
        %v1245 = vshll.u32 %v1050, 16
        %v1247 = vrot.slane %v1245, 5
        %v1248 = vsel %vm1080, %v1243, %v1247
        %v1250 = vshrl.u32 %v1051, 16
        %v1252 = vrot.slane %v1250, 4
        %v1253 = vshll.u32 %v1051, 16
        %v1255 = vrot.slane %v1253, 5
        %v1256 = vor.u32 %v1252, %v1255
        %v1257 = vrot.slane %v1256, 4
        %v1259 = vshll.u32 %v1052, 16
        %v1261 = vrot.slane %v1259, 5
        %v1262 = vsel %vm1080, %v1257, %v1261
        %v1263 = vshrl.u32 %v1052, 16
        %v1265 = vrot.slane %v1263, 4
        %v1266 = vor.u32 %v1265, %v1261
        %v1267 = vrot.slane %v1266, 4
        %v1269 = vshll.u32 %v1053, 16
        %v1271 = vrot.slane %v1269, 5
        %v1272 = vsel %vm1080, %v1267, %v1271
        %v1274 = vshrl.u32 %v1054, 16
        %v1276 = vrot.slane %v1274, 4
        %v1277 = vshll.u32 %v1054, 16
        %v1279 = vrot.slane %v1277, 5
        %v1280 = vor.u32 %v1276, %v1279
        %v1281 = vrot.slane %v1280, 4
        %v1283 = vshll.u32 %v1055, 16
        %v1285 = vrot.slane %v1283, 5
        %v1286 = vsel %vm1080, %v1281, %v1285
        %v1287 = vshrl.u32 %v1055, 16
        %v1289 = vrot.slane %v1287, 4
        %v1290 = vor.u32 %v1289, %v1285
        %v1291 = vrot.slane %v1290, 4
        %v1293 = vshll.u32 %v1056, 16
        %v1295 = vrot.slane %v1293, 5
        %v1296 = vsel %vm1080, %v1291, %v1295
        %v1298 = vshrl.u32 %v1057, 16
        %v1300 = vrot.slane %v1298, 4
        %v1301 = vshll.u32 %v1057, 16
        %v1303 = vrot.slane %v1301, 5
        %v1304 = vor.u32 %v1300, %v1303
        %v1305 = vrot.slane %v1304, 4
        %v1307 = vshll.u32 %v1058, 16
        %v1309 = vrot.slane %v1307, 5
        %v1310 = vsel %vm1080, %v1305, %v1309
        %v1311 = vshrl.u32 %v1058, 16
        %v1313 = vrot.slane %v1311, 4
        %v1314 = vor.u32 %v1313, %v1309
        %v1315 = vrot.slane %v1314, 4
        %v1317 = vshll.u32 %v1059, 16
        %v1319 = vrot.slane %v1317, 5
        %v1320 = vsel %vm1080, %v1315, %v1319
        %v1322 = vshrl.u32 %v1060, 16
        %v1324 = vrot.slane %v1322, 4
        %v1325 = vshll.u32 %v1060, 16
        %v1327 = vrot.slane %v1325, 5
        %v1328 = vor.u32 %v1324, %v1327
        %v1329 = vrot.slane %v1328, 4
        %v1331 = vshll.u32 %v1061, 16
        %v1333 = vrot.slane %v1331, 5
        %v1334 = vsel %vm1080, %v1329, %v1333
        %v1335 = vshrl.u32 %v1061, 16
        %v1337 = vrot.slane %v1335, 4
        %v1338 = vor.u32 %v1337, %v1333
        %v1339 = vrot.slane %v1338, 4
        %v1341 = vshll.u32 %v1062, 16
        %v1343 = vrot.slane %v1341, 5
        %v1344 = vsel %vm1080, %v1339, %v1343
        %v1346 = vshrl.u32 %v1063, 16
        %v1348 = vrot.slane %v1346, 4
        %v1349 = vshll.u32 %v1063, 16
        %v1351 = vrot.slane %v1349, 5
        %v1352 = vor.u32 %v1348, %v1351
        %v1353 = vrot.slane %v1352, 4
        %v1355 = vshll.u32 %v1064, 16
        %v1357 = vrot.slane %v1355, 5
        %v1358 = vsel %vm1080, %v1353, %v1357
        %v1359 = vshrl.u32 %v1064, 16
        %v1361 = vrot.slane %v1359, 4
        %v1362 = vor.u32 %v1361, %v1357
        %v1363 = vrot.slane %v1362, 4
        %v1365 = vshll.u32 %v1065, 16
        %v1367 = vrot.slane %v1365, 5
        %v1368 = vsel %vm1080, %v1363, %v1367
        %v1370 = vshrl.u32 %v1066, 16
        %v1372 = vrot.slane %v1370, 4
        %v1373 = vshll.u32 %v1066, 16
        %v1375 = vrot.slane %v1373, 5
        %v1376 = vor.u32 %v1372, %v1375
        %v1377 = vrot.slane %v1376, 4
        %v1379 = vshll.u32 %v1067, 16
        %v1381 = vrot.slane %v1379, 5
        %v1382 = vsel %vm1080, %v1377, %v1381
        %v1383 = vshrl.u32 %v1067, 16
        %v1385 = vrot.slane %v1383, 4
        %v1386 = vor.u32 %v1385, %v1381
        %v1387 = vrot.slane %v1386, 4
        %v1389 = vshll.u32 %v1068, 16
        %v1391 = vrot.slane %v1389, 5
        %v1392 = vsel %vm1080, %v1387, %v1391
        %v1394 = vshrl.u32 %v1069, 16
        %v1396 = vrot.slane %v1394, 4
        %v1397 = vshll.u32 %v1069, 16
        %v1399 = vrot.slane %v1397, 5
        %v1400 = vor.u32 %v1396, %v1399
        %v1401 = vrot.slane %v1400, 4
        %v1403 = vshll.u32 %v1070, 16
        %v1405 = vrot.slane %v1403, 5
        %v1406 = vsel %vm1080, %v1401, %v1405
        %v1407 = vshrl.u32 %v1070, 16
        %v1409 = vrot.slane %v1407, 4
        %v1410 = vor.u32 %v1409, %v1405
        %v1411 = vrot.slane %v1410, 4
        %v1413 = vshll.u32 %v1071, 16
        %v1415 = vrot.slane %v1413, 5
        %v1416 = vsel %vm1080, %v1411, %v1415
        %v1418 = vshrl.u32 %v1072, 16
        %v1420 = vrot.slane %v1418, 4
        %v1421 = vshll.u32 %v1072, 16
        %v1423 = vrot.slane %v1421, 5
        %v1424 = vor.u32 %v1420, %v1423
        %v1425 = vrot.slane %v1424, 4
        %v1427 = vshll.u32 %v1073, 16
        %v1429 = vrot.slane %v1427, 5
        %v1430 = vsel %vm1080, %v1425, %v1429
        %v1431 = vshrl.u32 %v1073, 16
        %v1433 = vrot.slane %v1431, 4
        %v1434 = vor.u32 %v1433, %v1429
        %v1435 = vrot.slane %v1434, 4
        %v1437 = vshll.u32 %v1074, 16
        %v1439 = vrot.slane %v1437, 5
        %v1440 = vsel %vm1080, %v1435, %v1439
        %v1442 = vshrl.u32 %v1075, 16
        %v1444 = vrot.slane %v1442, 4
        %v1445 = vshll.u32 %v1075, 16
        %v1447 = vrot.slane %v1445, 5
        %v1448 = vor.u32 %v1444, %v1447
        %v1449 = vrot.slane %v1448, 4
        %v1451 = vshll.u32 %v1076, 16
        %v1453 = vrot.slane %v1451, 5
        %v1454 = vsel %vm1080, %v1449, %v1453
        %v1455 = vshrl.u32 %v1076, 16
        %v1457 = vrot.slane %v1455, 4
        %v1458 = vor.u32 %v1457, %v1453
        %v1459 = vrot.slane %v1458, 4
        %v1461 = vshll.u32 %v1077, 16
        %v1463 = vrot.slane %v1461, 5
        %v1464 = vsel %vm1080, %v1459, %v1463
        %1497 = vst [vmem:[#allocation3 + $0x4] sm:$0xf] %v1094
        %1498 = vst [vmem:[#allocation3 + $0x28] sm:$0xf] %v1104
        %1499 = vst [vmem:[#allocation3 + $0x4c] sm:$0xf] %v1118
        %1500 = vst [vmem:[#allocation3 + $0x70] sm:$0xf] %v1128
        %1501 = vst [vmem:[#allocation3 + $0x94] sm:$0xf] %v1142
        %1502 = vst [vmem:[#allocation3 + $0xb8] sm:$0xf] %v1152
        %1503 = vst [vmem:[#allocation3 + $0xdc] sm:$0xf] %v1166
        %1504 = vst [vmem:[#allocation3 + $0x100] sm:$0xf] %v1176
        %1505 = vst [vmem:[#allocation3 + $0x124] sm:$0xf] %v1190
        %1506 = vst [vmem:[#allocation3 + $0x148] sm:$0xf] %v1200
        %1507 = vst [vmem:[#allocation3 + $0x16c] sm:$0xf] %v1214
        %1508 = vst [vmem:[#allocation3 + $0x190] sm:$0xf] %v1224
        %1509 = vst [vmem:[#allocation3 + $0x1b4] sm:$0xf] %v1238
        %1510 = vst [vmem:[#allocation3 + $0x1d8] sm:$0xf] %v1248
        %1511 = vst [vmem:[#allocation3 + $0x1fc] sm:$0xf] %v1262
        %1512 = vst [vmem:[#allocation3 + $0x220] sm:$0xf] %v1272
        %1513 = vst [vmem:[#allocation3 + $0x244] sm:$0xf] %v1286
        %1514 = vst [vmem:[#allocation3 + $0x268] sm:$0xf] %v1296
        %1515 = vst [vmem:[#allocation3 + $0x28c] sm:$0xf] %v1310
        %1516 = vst [vmem:[#allocation3 + $0x2b0] sm:$0xf] %v1320
        %1517 = vst [vmem:[#allocation3 + $0x2d4] sm:$0xf] %v1334
        %1518 = vst [vmem:[#allocation3 + $0x2f8] sm:$0xf] %v1344
        %1519 = vst [vmem:[#allocation3 + $0x31c] sm:$0xf] %v1358
        %1520 = vst [vmem:[#allocation3 + $0x340] sm:$0xf] %v1368
        %1521 = vst [vmem:[#allocation3 + $0x364] sm:$0xf] %v1382
        %1522 = vst [vmem:[#allocation3 + $0x388] sm:$0xf] %v1392
        %1523 = vst [vmem:[#allocation3 + $0x3ac] sm:$0xf] %v1406
        %1524 = vst [vmem:[#allocation3 + $0x3d0] sm:$0xf] %v1416
        %1525 = vst [vmem:[#allocation3 + $0x3f4] sm:$0xf] %v1430
        %1526 = vst [vmem:[#allocation3 + $0x418] sm:$0xf] %v1440
        %1527 = vst [vmem:[#allocation3 + $0x43c] sm:$0xf] %v1454
        %1528 = vst [vmem:[#allocation3 + $0x460] sm:$0xf] %v1464
        %v1529 = vld [vmem:[#allocation2] sm:$0xe]
        %v1530 = vld [vmem:[#allocation2 + $0x4] sm:$0xf]
        %v1531 = vld [vmem:[#allocation2 + $0x8] sm:$0x1]
        %v1532 = vld [vmem:[#allocation2 + $0xc] sm:$0xe]
        %v1533 = vld [vmem:[#allocation2 + $0x10] sm:$0xf]
        %v1534 = vld [vmem:[#allocation2 + $0x14] sm:$0x1]
        %v1535 = vld [vmem:[#allocation2 + $0x18] sm:$0xe]
        %v1536 = vld [vmem:[#allocation2 + $0x1c] sm:$0xf]
        %v1537 = vld [vmem:[#allocation2 + $0x20] sm:$0x1]
        %v1538 = vld [vmem:[#allocation2 + $0x24] sm:$0xe]
        %v1539 = vld [vmem:[#allocation2 + $0x28] sm:$0xf]
        %v1540 = vld [vmem:[#allocation2 + $0x2c] sm:$0x1]
        %v1541 = vld [vmem:[#allocation2 + $0x30] sm:$0xe]
        %v1542 = vld [vmem:[#allocation2 + $0x34] sm:$0xf]
        %v1543 = vld [vmem:[#allocation2 + $0x38] sm:$0x1]
        %v1544 = vld [vmem:[#allocation2 + $0x3c] sm:$0xe]
        %v1545 = vld [vmem:[#allocation2 + $0x40] sm:$0xf]
        %v1546 = vld [vmem:[#allocation2 + $0x44] sm:$0x1]
        %v1547 = vld [vmem:[#allocation2 + $0x48] sm:$0xe]
        %v1548 = vld [vmem:[#allocation2 + $0x4c] sm:$0xf]
        %v1549 = vld [vmem:[#allocation2 + $0x50] sm:$0x1]
        %v1550 = vld [vmem:[#allocation2 + $0x54] sm:$0xe]
        %v1551 = vld [vmem:[#allocation2 + $0x58] sm:$0xf]
        %v1552 = vld [vmem:[#allocation2 + $0x5c] sm:$0x1]
        %v1553 = vld [vmem:[#allocation2 + $0x60] sm:$0xe]
        %v1554 = vld [vmem:[#allocation2 + $0x64] sm:$0xf]
        %v1555 = vld [vmem:[#allocation2 + $0x68] sm:$0x1]
        %v1556 = vld [vmem:[#allocation2 + $0x6c] sm:$0xe]
        %v1557 = vld [vmem:[#allocation2 + $0x70] sm:$0xf]
        %v1558 = vld [vmem:[#allocation2 + $0x74] sm:$0x1]
        %v1559 = vld [vmem:[#allocation2 + $0x78] sm:$0xe]
        %v1560 = vld [vmem:[#allocation2 + $0x7c] sm:$0xf]
        %v1561 = vld [vmem:[#allocation2 + $0x80] sm:$0x1]
        %v1562 = vld [vmem:[#allocation2 + $0x84] sm:$0xe]
        %v1563 = vld [vmem:[#allocation2 + $0x88] sm:$0xf]
        %v1564 = vld [vmem:[#allocation2 + $0x8c] sm:$0x1]
        %v1565 = vld [vmem:[#allocation2 + $0x90] sm:$0xe]
        %v1566 = vld [vmem:[#allocation2 + $0x94] sm:$0xf]
        %v1567 = vld [vmem:[#allocation2 + $0x98] sm:$0x1]
        %v1568 = vld [vmem:[#allocation2 + $0x9c] sm:$0xe]
        %v1569 = vld [vmem:[#allocation2 + $0xa0] sm:$0xf]
        %v1570 = vld [vmem:[#allocation2 + $0xa4] sm:$0x1]
        %v1571 = vld [vmem:[#allocation2 + $0xa8] sm:$0xe]
        %v1572 = vld [vmem:[#allocation2 + $0xac] sm:$0xf]
        %v1573 = vld [vmem:[#allocation2 + $0xb0] sm:$0x1]
        %v1574 = vld [vmem:[#allocation2 + $0xb4] sm:$0xe]
        %v1575 = vld [vmem:[#allocation2 + $0xb8] sm:$0xf]
        %v1576 = vld [vmem:[#allocation2 + $0xbc] sm:$0x1]
        %vm1625 = vcmask 1042432
        %vm1626 = vcmask 1046532
        %vm1627 = vmor %vm1625, %vm1626
        %v1628 = vrot.slane %v1529, 5
        %v1629 = vrot.slane %v1628, 4
        %v1630 = vrot.slane %v1530, 5
        %v1631 = vsel %vm1627, %v1629, %v1630
        %v1632 = vrot.slane %v1630, 4
        %v1633 = vrot.slane %v1531, 5
        %v1634 = vsel %vm1627, %v1632, %v1633
        %v1635 = vrot.slane %v1532, 5
        %v1636 = vrot.slane %v1635, 4
        %v1637 = vrot.slane %v1533, 5
        %v1638 = vsel %vm1627, %v1636, %v1637
        %v1639 = vrot.slane %v1637, 4
        %v1640 = vrot.slane %v1534, 5
        %v1641 = vsel %vm1627, %v1639, %v1640
        %v1642 = vrot.slane %v1535, 5
        %v1643 = vrot.slane %v1642, 4
        %v1644 = vrot.slane %v1536, 5
        %v1645 = vsel %vm1627, %v1643, %v1644
        %v1646 = vrot.slane %v1644, 4
        %v1647 = vrot.slane %v1537, 5
        %v1648 = vsel %vm1627, %v1646, %v1647
        %v1649 = vrot.slane %v1538, 5
        %v1650 = vrot.slane %v1649, 4
        %v1651 = vrot.slane %v1539, 5
        %v1652 = vsel %vm1627, %v1650, %v1651
        %v1653 = vrot.slane %v1651, 4
        %v1654 = vrot.slane %v1540, 5
        %v1655 = vsel %vm1627, %v1653, %v1654
        %v1656 = vrot.slane %v1541, 5
        %v1657 = vrot.slane %v1656, 4
        %v1658 = vrot.slane %v1542, 5
        %v1659 = vsel %vm1627, %v1657, %v1658
        %v1660 = vrot.slane %v1658, 4
        %v1661 = vrot.slane %v1543, 5
        %v1662 = vsel %vm1627, %v1660, %v1661
        %v1663 = vrot.slane %v1544, 5
        %v1664 = vrot.slane %v1663, 4
        %v1665 = vrot.slane %v1545, 5
        %v1666 = vsel %vm1627, %v1664, %v1665
        %v1667 = vrot.slane %v1665, 4
        %v1668 = vrot.slane %v1546, 5
        %v1669 = vsel %vm1627, %v1667, %v1668
        %v1670 = vrot.slane %v1547, 5
        %v1671 = vrot.slane %v1670, 4
        %v1672 = vrot.slane %v1548, 5
        %v1673 = vsel %vm1627, %v1671, %v1672
        %v1674 = vrot.slane %v1672, 4
        %v1675 = vrot.slane %v1549, 5
        %v1676 = vsel %vm1627, %v1674, %v1675
        %v1677 = vrot.slane %v1550, 5
        %v1678 = vrot.slane %v1677, 4
        %v1679 = vrot.slane %v1551, 5
        %v1680 = vsel %vm1627, %v1678, %v1679
        %v1681 = vrot.slane %v1679, 4
        %v1682 = vrot.slane %v1552, 5
        %v1683 = vsel %vm1627, %v1681, %v1682
        %v1684 = vrot.slane %v1553, 5
        %v1685 = vrot.slane %v1684, 4
        %v1686 = vrot.slane %v1554, 5
        %v1687 = vsel %vm1627, %v1685, %v1686
        %v1688 = vrot.slane %v1686, 4
        %v1689 = vrot.slane %v1555, 5
        %v1690 = vsel %vm1627, %v1688, %v1689
        %v1691 = vrot.slane %v1556, 5
        %v1692 = vrot.slane %v1691, 4
        %v1693 = vrot.slane %v1557, 5
        %v1694 = vsel %vm1627, %v1692, %v1693
        %v1695 = vrot.slane %v1693, 4
        %v1696 = vrot.slane %v1558, 5
        %v1697 = vsel %vm1627, %v1695, %v1696
        %v1698 = vrot.slane %v1559, 5
        %v1699 = vrot.slane %v1698, 4
        %v1700 = vrot.slane %v1560, 5
        %v1701 = vsel %vm1627, %v1699, %v1700
        %v1702 = vrot.slane %v1700, 4
        %v1703 = vrot.slane %v1561, 5
        %v1704 = vsel %vm1627, %v1702, %v1703
        %v1705 = vrot.slane %v1562, 5
        %v1706 = vrot.slane %v1705, 4
        %v1707 = vrot.slane %v1563, 5
        %v1708 = vsel %vm1627, %v1706, %v1707
        %v1709 = vrot.slane %v1707, 4
        %v1710 = vrot.slane %v1564, 5
        %v1711 = vsel %vm1627, %v1709, %v1710
        %v1712 = vrot.slane %v1565, 5
        %v1713 = vrot.slane %v1712, 4
        %v1714 = vrot.slane %v1566, 5
        %v1715 = vsel %vm1627, %v1713, %v1714
        %v1716 = vrot.slane %v1714, 4
        %v1717 = vrot.slane %v1567, 5
        %v1718 = vsel %vm1627, %v1716, %v1717
        %v1719 = vrot.slane %v1568, 5
        %v1720 = vrot.slane %v1719, 4
        %v1721 = vrot.slane %v1569, 5
        %v1722 = vsel %vm1627, %v1720, %v1721
        %v1723 = vrot.slane %v1721, 4
        %v1724 = vrot.slane %v1570, 5
        %v1725 = vsel %vm1627, %v1723, %v1724
        %v1726 = vrot.slane %v1571, 5
        %v1727 = vrot.slane %v1726, 4
        %v1728 = vrot.slane %v1572, 5
        %v1729 = vsel %vm1627, %v1727, %v1728
        %v1730 = vrot.slane %v1728, 4
        %v1731 = vrot.slane %v1573, 5
        %v1732 = vsel %vm1627, %v1730, %v1731
        %v1733 = vrot.slane %v1574, 5
        %v1734 = vrot.slane %v1733, 4
        %v1735 = vrot.slane %v1575, 5
        %v1736 = vsel %vm1627, %v1734, %v1735
        %v1737 = vrot.slane %v1735, 4
        %v1738 = vrot.slane %v1576, 5
        %v1739 = vsel %vm1627, %v1737, %v1738
        %1772 = vst [vmem:[#allocation3 + $0x8] sm:$0xf] %v1631
        %1773 = vst [vmem:[#allocation3 + $0x2c] sm:$0xf] %v1634
        %1774 = vst [vmem:[#allocation3 + $0x50] sm:$0xf] %v1638
        %1775 = vst [vmem:[#allocation3 + $0x74] sm:$0xf] %v1641
        %1776 = vst [vmem:[#allocation3 + $0x98] sm:$0xf] %v1645
        %1777 = vst [vmem:[#allocation3 + $0xbc] sm:$0xf] %v1648
        %1778 = vst [vmem:[#allocation3 + $0xe0] sm:$0xf] %v1652
        %1779 = vst [vmem:[#allocation3 + $0x104] sm:$0xf] %v1655
        %1780 = vst [vmem:[#allocation3 + $0x128] sm:$0xf] %v1659
        %1781 = vst [vmem:[#allocation3 + $0x14c] sm:$0xf] %v1662
        %1782 = vst [vmem:[#allocation3 + $0x170] sm:$0xf] %v1666
        %1783 = vst [vmem:[#allocation3 + $0x194] sm:$0xf] %v1669
        %1784 = vst [vmem:[#allocation3 + $0x1b8] sm:$0xf] %v1673
        %1785 = vst [vmem:[#allocation3 + $0x1dc] sm:$0xf] %v1676
        %1786 = vst [vmem:[#allocation3 + $0x200] sm:$0xf] %v1680
        %1787 = vst [vmem:[#allocation3 + $0x224] sm:$0xf] %v1683
        %1788 = vst [vmem:[#allocation3 + $0x248] sm:$0xf] %v1687
        %1789 = vst [vmem:[#allocation3 + $0x26c] sm:$0xf] %v1690
        %1790 = vst [vmem:[#allocation3 + $0x290] sm:$0xf] %v1694
        %1791 = vst [vmem:[#allocation3 + $0x2b4] sm:$0xf] %v1697
        %1792 = vst [vmem:[#allocation3 + $0x2d8] sm:$0xf] %v1701
        %1793 = vst [vmem:[#allocation3 + $0x2fc] sm:$0xf] %v1704
        %1794 = vst [vmem:[#allocation3 + $0x320] sm:$0xf] %v1708
        %1795 = vst [vmem:[#allocation3 + $0x344] sm:$0xf] %v1711
        %1796 = vst [vmem:[#allocation3 + $0x368] sm:$0xf] %v1715
        %1797 = vst [vmem:[#allocation3 + $0x38c] sm:$0xf] %v1718
        %1798 = vst [vmem:[#allocation3 + $0x3b0] sm:$0xf] %v1722
        %1799 = vst [vmem:[#allocation3 + $0x3d4] sm:$0xf] %v1725
        %1800 = vst [vmem:[#allocation3 + $0x3f8] sm:$0xf] %v1729
        %1801 = vst [vmem:[#allocation3 + $0x41c] sm:$0xf] %v1732
        %1802 = vst [vmem:[#allocation3 + $0x440] sm:$0xf] %v1736
        %1803 = vst [vmem:[#allocation3 + $0x464] sm:$0xf] %v1739
        %v1804 = vld [vmem:[%s851] sm:$0xf]
        %v1805 = vld [vmem:[%s851 + $0x4] sm:$0xf]
        %v1806 = vld [vmem:[%s851 + $0xc] sm:$0xf]
        %v1807 = vld [vmem:[%s851 + $0x10] sm:$0xf]
        %v1808 = vld [vmem:[%s851 + $0x18] sm:$0xf]
        %v1809 = vld [vmem:[%s851 + $0x1c] sm:$0xf]
        %v1810 = vld [vmem:[%s851 + $0x24] sm:$0xf]
        %v1811 = vld [vmem:[%s851 + $0x28] sm:$0xf]
        %v1812 = vld [vmem:[%s851 + $0x30] sm:$0xf]
        %v1813 = vld [vmem:[%s851 + $0x34] sm:$0xf]
        %v1814 = vld [vmem:[%s851 + $0x3c] sm:$0xf]
        %v1815 = vld [vmem:[%s851 + $0x40] sm:$0xf]
        %v1816 = vld [vmem:[%s851 + $0x48] sm:$0xf]
        %v1817 = vld [vmem:[%s851 + $0x4c] sm:$0xf]
        %v1818 = vld [vmem:[%s851 + $0x54] sm:$0xf]
        %v1819 = vld [vmem:[%s851 + $0x58] sm:$0xf]
        %v1820 = vld [vmem:[%s851 + $0x60] sm:$0xf]
        %v1821 = vld [vmem:[%s851 + $0x64] sm:$0xf]
        %v1822 = vld [vmem:[%s851 + $0x6c] sm:$0xf]
        %v1823 = vld [vmem:[%s851 + $0x70] sm:$0xf]
        %v1824 = vld [vmem:[%s851 + $0x78] sm:$0xf]
        %v1825 = vld [vmem:[%s851 + $0x7c] sm:$0xf]
        %v1826 = vld [vmem:[%s851 + $0x84] sm:$0xf]
        %v1827 = vld [vmem:[%s851 + $0x88] sm:$0xf]
        %v1828 = vld [vmem:[%s851 + $0x90] sm:$0xf]
        %v1829 = vld [vmem:[%s851 + $0x94] sm:$0xf]
        %v1830 = vld [vmem:[%s851 + $0x9c] sm:$0xf]
        %v1831 = vld [vmem:[%s851 + $0xa0] sm:$0xf]
        %v1832 = vld [vmem:[%s851 + $0xa8] sm:$0xf]
        %v1833 = vld [vmem:[%s851 + $0xac] sm:$0xf]
        %v1834 = vld [vmem:[%s851 + $0xb4] sm:$0xf]
        %v1835 = vld [vmem:[%s851 + $0xb8] sm:$0xf]
        %1836 = vst [vmem:[#allocation3 + $0xc] sm:$0xf] %v1804
        %1837 = vst [vmem:[#allocation3 + $0x30] sm:$0xf] %v1805
        %1838 = vst [vmem:[#allocation3 + $0x54] sm:$0xf] %v1806
        %1839 = vst [vmem:[#allocation3 + $0x78] sm:$0xf] %v1807
        %1840 = vst [vmem:[#allocation3 + $0x9c] sm:$0xf] %v1808
        %1841 = vst [vmem:[#allocation3 + $0xc0] sm:$0xf] %v1809
        %1842 = vst [vmem:[#allocation3 + $0xe4] sm:$0xf] %v1810
        %1843 = vst [vmem:[#allocation3 + $0x108] sm:$0xf] %v1811
        %1844 = vst [vmem:[#allocation3 + $0x12c] sm:$0xf] %v1812
        %1845 = vst [vmem:[#allocation3 + $0x150] sm:$0xf] %v1813
        %1846 = vst [vmem:[#allocation3 + $0x174] sm:$0xf] %v1814
        %1847 = vst [vmem:[#allocation3 + $0x198] sm:$0xf] %v1815
        %1848 = vst [vmem:[#allocation3 + $0x1bc] sm:$0xf] %v1816
        %1849 = vst [vmem:[#allocation3 + $0x1e0] sm:$0xf] %v1817
        %1850 = vst [vmem:[#allocation3 + $0x204] sm:$0xf] %v1818
        %1851 = vst [vmem:[#allocation3 + $0x228] sm:$0xf] %v1819
        %1852 = vst [vmem:[#allocation3 + $0x24c] sm:$0xf] %v1820
        %1853 = vst [vmem:[#allocation3 + $0x270] sm:$0xf] %v1821
        %1854 = vst [vmem:[#allocation3 + $0x294] sm:$0xf] %v1822
        %1855 = vst [vmem:[#allocation3 + $0x2b8] sm:$0xf] %v1823
        %1856 = vst [vmem:[#allocation3 + $0x2dc] sm:$0xf] %v1824
        %1857 = vst [vmem:[#allocation3 + $0x300] sm:$0xf] %v1825
        %1858 = vst [vmem:[#allocation3 + $0x324] sm:$0xf] %v1826
        %1859 = vst [vmem:[#allocation3 + $0x348] sm:$0xf] %v1827
        %1860 = vst [vmem:[#allocation3 + $0x36c] sm:$0xf] %v1828
        %1861 = vst [vmem:[#allocation3 + $0x390] sm:$0xf] %v1829
        %1862 = vst [vmem:[#allocation3 + $0x3b4] sm:$0xf] %v1830
        %1863 = vst [vmem:[#allocation3 + $0x3d8] sm:$0xf] %v1831
        %1864 = vst [vmem:[#allocation3 + $0x3fc] sm:$0xf] %v1832
        %1865 = vst [vmem:[#allocation3 + $0x420] sm:$0xf] %v1833
        %1866 = vst [vmem:[#allocation3 + $0x444] sm:$0xf] %v1834
        %1867 = vst [vmem:[#allocation3 + $0x468] sm:$0xf] %v1835
        %v1868 = vld [vmem:[%s851] sm:$0xf]
        %v1869 = vld [vmem:[%s851 + $0x4] sm:$0xf]
        %v1870 = vld [vmem:[%s851 + $0x8] sm:$0x1]
        %v1871 = vld [vmem:[%s851 + $0xc] sm:$0xf]
        %v1872 = vld [vmem:[%s851 + $0x10] sm:$0xf]
        %v1873 = vld [vmem:[%s851 + $0x14] sm:$0x1]
        %v1874 = vld [vmem:[%s851 + $0x18] sm:$0xf]
        %v1875 = vld [vmem:[%s851 + $0x1c] sm:$0xf]
        %v1876 = vld [vmem:[%s851 + $0x20] sm:$0x1]
        %v1877 = vld [vmem:[%s851 + $0x24] sm:$0xf]
        %v1878 = vld [vmem:[%s851 + $0x28] sm:$0xf]
        %v1879 = vld [vmem:[%s851 + $0x2c] sm:$0x1]
        %v1880 = vld [vmem:[%s851 + $0x30] sm:$0xf]
        %v1881 = vld [vmem:[%s851 + $0x34] sm:$0xf]
        %v1882 = vld [vmem:[%s851 + $0x38] sm:$0x1]
        %v1883 = vld [vmem:[%s851 + $0x3c] sm:$0xf]
        %v1884 = vld [vmem:[%s851 + $0x40] sm:$0xf]
        %v1885 = vld [vmem:[%s851 + $0x44] sm:$0x1]
        %v1886 = vld [vmem:[%s851 + $0x48] sm:$0xf]
        %v1887 = vld [vmem:[%s851 + $0x4c] sm:$0xf]
        %v1888 = vld [vmem:[%s851 + $0x50] sm:$0x1]
        %v1889 = vld [vmem:[%s851 + $0x54] sm:$0xf]
        %v1890 = vld [vmem:[%s851 + $0x58] sm:$0xf]
        %v1891 = vld [vmem:[%s851 + $0x5c] sm:$0x1]
        %v1892 = vld [vmem:[%s851 + $0x60] sm:$0xf]
        %v1893 = vld [vmem:[%s851 + $0x64] sm:$0xf]
        %v1894 = vld [vmem:[%s851 + $0x68] sm:$0x1]
        %v1895 = vld [vmem:[%s851 + $0x6c] sm:$0xf]
        %v1896 = vld [vmem:[%s851 + $0x70] sm:$0xf]
        %v1897 = vld [vmem:[%s851 + $0x74] sm:$0x1]
        %v1898 = vld [vmem:[%s851 + $0x78] sm:$0xf]
        %v1899 = vld [vmem:[%s851 + $0x7c] sm:$0xf]
        %v1900 = vld [vmem:[%s851 + $0x80] sm:$0x1]
        %v1901 = vld [vmem:[%s851 + $0x84] sm:$0xf]
        %v1902 = vld [vmem:[%s851 + $0x88] sm:$0xf]
        %v1903 = vld [vmem:[%s851 + $0x8c] sm:$0x1]
        %v1904 = vld [vmem:[%s851 + $0x90] sm:$0xf]
        %v1905 = vld [vmem:[%s851 + $0x94] sm:$0xf]
        %v1906 = vld [vmem:[%s851 + $0x98] sm:$0x1]
        %v1907 = vld [vmem:[%s851 + $0x9c] sm:$0xf]
        %v1908 = vld [vmem:[%s851 + $0xa0] sm:$0xf]
        %v1909 = vld [vmem:[%s851 + $0xa4] sm:$0x1]
        %v1910 = vld [vmem:[%s851 + $0xa8] sm:$0xf]
        %v1911 = vld [vmem:[%s851 + $0xac] sm:$0xf]
        %v1912 = vld [vmem:[%s851 + $0xb0] sm:$0x1]
        %v1913 = vld [vmem:[%s851 + $0xb4] sm:$0xf]
        %v1914 = vld [vmem:[%s851 + $0xb8] sm:$0xf]
        %v1915 = vld [vmem:[%s851 + $0xbc] sm:$0x1]
        %v1917 = vshrl.u32 %v1868, 16
        %v1919 = vrot.slane %v1917, 4
        %v1920 = vshll.u32 %v1868, 16
        %v1922 = vrot.slane %v1920, 5
        %v1923 = vor.u32 %v1919, %v1922
        %v1924 = vrot.slane %v1923, 4
        %v1926 = vshll.u32 %v1869, 16
        %v1928 = vrot.slane %v1926, 5
        %v1929 = vsel %vm1080, %v1924, %v1928
        %v1930 = vshrl.u32 %v1869, 16
        %v1932 = vrot.slane %v1930, 4
        %v1933 = vor.u32 %v1932, %v1928
        %v1934 = vrot.slane %v1933, 4
        %v1936 = vshll.u32 %v1870, 16
        %v1938 = vrot.slane %v1936, 5
        %v1939 = vsel %vm1080, %v1934, %v1938
        %v1941 = vshrl.u32 %v1871, 16
        %v1943 = vrot.slane %v1941, 4
        %v1944 = vshll.u32 %v1871, 16
        %v1946 = vrot.slane %v1944, 5
        %v1947 = vor.u32 %v1943, %v1946
        %v1948 = vrot.slane %v1947, 4
        %v1950 = vshll.u32 %v1872, 16
        %v1952 = vrot.slane %v1950, 5
        %v1953 = vsel %vm1080, %v1948, %v1952
        %v1954 = vshrl.u32 %v1872, 16
        %v1956 = vrot.slane %v1954, 4
        %v1957 = vor.u32 %v1956, %v1952
        %v1958 = vrot.slane %v1957, 4
        %v1960 = vshll.u32 %v1873, 16
        %v1962 = vrot.slane %v1960, 5
        %v1963 = vsel %vm1080, %v1958, %v1962
        %v1965 = vshrl.u32 %v1874, 16
        %v1967 = vrot.slane %v1965, 4
        %v1968 = vshll.u32 %v1874, 16
        %v1970 = vrot.slane %v1968, 5
        %v1971 = vor.u32 %v1967, %v1970
        %v1972 = vrot.slane %v1971, 4
        %v1974 = vshll.u32 %v1875, 16
        %v1976 = vrot.slane %v1974, 5
        %v1977 = vsel %vm1080, %v1972, %v1976
        %v1978 = vshrl.u32 %v1875, 16
        %v1980 = vrot.slane %v1978, 4
        %v1981 = vor.u32 %v1980, %v1976
        %v1982 = vrot.slane %v1981, 4
        %v1984 = vshll.u32 %v1876, 16
        %v1986 = vrot.slane %v1984, 5
        %v1987 = vsel %vm1080, %v1982, %v1986
        %v1989 = vshrl.u32 %v1877, 16
        %v1991 = vrot.slane %v1989, 4
        %v1992 = vshll.u32 %v1877, 16
        %v1994 = vrot.slane %v1992, 5
        %v1995 = vor.u32 %v1991, %v1994
        %v1996 = vrot.slane %v1995, 4
        %v1998 = vshll.u32 %v1878, 16
        %v2000 = vrot.slane %v1998, 5
        %v2001 = vsel %vm1080, %v1996, %v2000
        %v2002 = vshrl.u32 %v1878, 16
        %v2004 = vrot.slane %v2002, 4
        %v2005 = vor.u32 %v2004, %v2000
        %v2006 = vrot.slane %v2005, 4
        %v2008 = vshll.u32 %v1879, 16
        %v2010 = vrot.slane %v2008, 5
        %v2011 = vsel %vm1080, %v2006, %v2010
        %v2013 = vshrl.u32 %v1880, 16
        %v2015 = vrot.slane %v2013, 4
        %v2016 = vshll.u32 %v1880, 16
        %v2018 = vrot.slane %v2016, 5
        %v2019 = vor.u32 %v2015, %v2018
        %v2020 = vrot.slane %v2019, 4
        %v2022 = vshll.u32 %v1881, 16
        %v2024 = vrot.slane %v2022, 5
        %v2025 = vsel %vm1080, %v2020, %v2024
        %v2026 = vshrl.u32 %v1881, 16
        %v2028 = vrot.slane %v2026, 4
        %v2029 = vor.u32 %v2028, %v2024
        %v2030 = vrot.slane %v2029, 4
        %v2032 = vshll.u32 %v1882, 16
        %v2034 = vrot.slane %v2032, 5
        %v2035 = vsel %vm1080, %v2030, %v2034
        %v2037 = vshrl.u32 %v1883, 16
        %v2039 = vrot.slane %v2037, 4
        %v2040 = vshll.u32 %v1883, 16
        %v2042 = vrot.slane %v2040, 5
        %v2043 = vor.u32 %v2039, %v2042
        %v2044 = vrot.slane %v2043, 4
        %v2046 = vshll.u32 %v1884, 16
        %v2048 = vrot.slane %v2046, 5
        %v2049 = vsel %vm1080, %v2044, %v2048
        %v2050 = vshrl.u32 %v1884, 16
        %v2052 = vrot.slane %v2050, 4
        %v2053 = vor.u32 %v2052, %v2048
        %v2054 = vrot.slane %v2053, 4
        %v2056 = vshll.u32 %v1885, 16
        %v2058 = vrot.slane %v2056, 5
        %v2059 = vsel %vm1080, %v2054, %v2058
        %v2061 = vshrl.u32 %v1886, 16
        %v2063 = vrot.slane %v2061, 4
        %v2064 = vshll.u32 %v1886, 16
        %v2066 = vrot.slane %v2064, 5
        %v2067 = vor.u32 %v2063, %v2066
        %v2068 = vrot.slane %v2067, 4
        %v2070 = vshll.u32 %v1887, 16
        %v2072 = vrot.slane %v2070, 5
        %v2073 = vsel %vm1080, %v2068, %v2072
        %v2074 = vshrl.u32 %v1887, 16
        %v2076 = vrot.slane %v2074, 4
        %v2077 = vor.u32 %v2076, %v2072
        %v2078 = vrot.slane %v2077, 4
        %v2080 = vshll.u32 %v1888, 16
        %v2082 = vrot.slane %v2080, 5
        %v2083 = vsel %vm1080, %v2078, %v2082
        %v2085 = vshrl.u32 %v1889, 16
        %v2087 = vrot.slane %v2085, 4
        %v2088 = vshll.u32 %v1889, 16
        %v2090 = vrot.slane %v2088, 5
        %v2091 = vor.u32 %v2087, %v2090
        %v2092 = vrot.slane %v2091, 4
        %v2094 = vshll.u32 %v1890, 16
        %v2096 = vrot.slane %v2094, 5
        %v2097 = vsel %vm1080, %v2092, %v2096
        %v2098 = vshrl.u32 %v1890, 16
        %v2100 = vrot.slane %v2098, 4
        %v2101 = vor.u32 %v2100, %v2096
        %v2102 = vrot.slane %v2101, 4
        %v2104 = vshll.u32 %v1891, 16
        %v2106 = vrot.slane %v2104, 5
        %v2107 = vsel %vm1080, %v2102, %v2106
        %v2109 = vshrl.u32 %v1892, 16
        %v2111 = vrot.slane %v2109, 4
        %v2112 = vshll.u32 %v1892, 16
        %v2114 = vrot.slane %v2112, 5
        %v2115 = vor.u32 %v2111, %v2114
        %v2116 = vrot.slane %v2115, 4
        %v2118 = vshll.u32 %v1893, 16
        %v2120 = vrot.slane %v2118, 5
        %v2121 = vsel %vm1080, %v2116, %v2120
        %v2122 = vshrl.u32 %v1893, 16
        %v2124 = vrot.slane %v2122, 4
        %v2125 = vor.u32 %v2124, %v2120
        %v2126 = vrot.slane %v2125, 4
        %v2128 = vshll.u32 %v1894, 16
        %v2130 = vrot.slane %v2128, 5
        %v2131 = vsel %vm1080, %v2126, %v2130
        %v2133 = vshrl.u32 %v1895, 16
        %v2135 = vrot.slane %v2133, 4
        %v2136 = vshll.u32 %v1895, 16
        %v2138 = vrot.slane %v2136, 5
        %v2139 = vor.u32 %v2135, %v2138
        %v2140 = vrot.slane %v2139, 4
        %v2142 = vshll.u32 %v1896, 16
        %v2144 = vrot.slane %v2142, 5
        %v2145 = vsel %vm1080, %v2140, %v2144
        %v2146 = vshrl.u32 %v1896, 16
        %v2148 = vrot.slane %v2146, 4
        %v2149 = vor.u32 %v2148, %v2144
        %v2150 = vrot.slane %v2149, 4
        %v2152 = vshll.u32 %v1897, 16
        %v2154 = vrot.slane %v2152, 5
        %v2155 = vsel %vm1080, %v2150, %v2154
        %v2157 = vshrl.u32 %v1898, 16
        %v2159 = vrot.slane %v2157, 4
        %v2160 = vshll.u32 %v1898, 16
        %v2162 = vrot.slane %v2160, 5
        %v2163 = vor.u32 %v2159, %v2162
        %v2164 = vrot.slane %v2163, 4
        %v2166 = vshll.u32 %v1899, 16
        %v2168 = vrot.slane %v2166, 5
        %v2169 = vsel %vm1080, %v2164, %v2168
        %v2170 = vshrl.u32 %v1899, 16
        %v2172 = vrot.slane %v2170, 4
        %v2173 = vor.u32 %v2172, %v2168
        %v2174 = vrot.slane %v2173, 4
        %v2176 = vshll.u32 %v1900, 16
        %v2178 = vrot.slane %v2176, 5
        %v2179 = vsel %vm1080, %v2174, %v2178
        %v2181 = vshrl.u32 %v1901, 16
        %v2183 = vrot.slane %v2181, 4
        %v2184 = vshll.u32 %v1901, 16
        %v2186 = vrot.slane %v2184, 5
        %v2187 = vor.u32 %v2183, %v2186
        %v2188 = vrot.slane %v2187, 4
        %v2190 = vshll.u32 %v1902, 16
        %v2192 = vrot.slane %v2190, 5
        %v2193 = vsel %vm1080, %v2188, %v2192
        %v2194 = vshrl.u32 %v1902, 16
        %v2196 = vrot.slane %v2194, 4
        %v2197 = vor.u32 %v2196, %v2192
        %v2198 = vrot.slane %v2197, 4
        %v2200 = vshll.u32 %v1903, 16
        %v2202 = vrot.slane %v2200, 5
        %v2203 = vsel %vm1080, %v2198, %v2202
        %v2205 = vshrl.u32 %v1904, 16
        %v2207 = vrot.slane %v2205, 4
        %v2208 = vshll.u32 %v1904, 16
        %v2210 = vrot.slane %v2208, 5
        %v2211 = vor.u32 %v2207, %v2210
        %v2212 = vrot.slane %v2211, 4
        %v2214 = vshll.u32 %v1905, 16
        %v2216 = vrot.slane %v2214, 5
        %v2217 = vsel %vm1080, %v2212, %v2216
        %v2218 = vshrl.u32 %v1905, 16
        %v2220 = vrot.slane %v2218, 4
        %v2221 = vor.u32 %v2220, %v2216
        %v2222 = vrot.slane %v2221, 4
        %v2224 = vshll.u32 %v1906, 16
        %v2226 = vrot.slane %v2224, 5
        %v2227 = vsel %vm1080, %v2222, %v2226
        %v2229 = vshrl.u32 %v1907, 16
        %v2231 = vrot.slane %v2229, 4
        %v2232 = vshll.u32 %v1907, 16
        %v2234 = vrot.slane %v2232, 5
        %v2235 = vor.u32 %v2231, %v2234
        %v2236 = vrot.slane %v2235, 4
        %v2238 = vshll.u32 %v1908, 16
        %v2240 = vrot.slane %v2238, 5
        %v2241 = vsel %vm1080, %v2236, %v2240
        %v2242 = vshrl.u32 %v1908, 16
        %v2244 = vrot.slane %v2242, 4
        %v2245 = vor.u32 %v2244, %v2240
        %v2246 = vrot.slane %v2245, 4
        %v2248 = vshll.u32 %v1909, 16
        %v2250 = vrot.slane %v2248, 5
        %v2251 = vsel %vm1080, %v2246, %v2250
        %v2253 = vshrl.u32 %v1910, 16
        %v2255 = vrot.slane %v2253, 4
        %v2256 = vshll.u32 %v1910, 16
        %v2258 = vrot.slane %v2256, 5
        %v2259 = vor.u32 %v2255, %v2258
        %v2260 = vrot.slane %v2259, 4
        %v2262 = vshll.u32 %v1911, 16
        %v2264 = vrot.slane %v2262, 5
        %v2265 = vsel %vm1080, %v2260, %v2264
        %v2266 = vshrl.u32 %v1911, 16
        %v2268 = vrot.slane %v2266, 4
        %v2269 = vor.u32 %v2268, %v2264
        %v2270 = vrot.slane %v2269, 4
        %v2272 = vshll.u32 %v1912, 16
        %v2274 = vrot.slane %v2272, 5
        %v2275 = vsel %vm1080, %v2270, %v2274
        %v2277 = vshrl.u32 %v1913, 16
        %v2279 = vrot.slane %v2277, 4
        %v2280 = vshll.u32 %v1913, 16
        %v2282 = vrot.slane %v2280, 5
        %v2283 = vor.u32 %v2279, %v2282
        %v2284 = vrot.slane %v2283, 4
        %v2286 = vshll.u32 %v1914, 16
        %v2288 = vrot.slane %v2286, 5
        %v2289 = vsel %vm1080, %v2284, %v2288
        %v2290 = vshrl.u32 %v1914, 16
        %v2292 = vrot.slane %v2290, 4
        %v2293 = vor.u32 %v2292, %v2288
        %v2294 = vrot.slane %v2293, 4
        %v2296 = vshll.u32 %v1915, 16
        %v2298 = vrot.slane %v2296, 5
        %v2299 = vsel %vm1080, %v2294, %v2298
        %2332 = vst [vmem:[#allocation3 + $0x10] sm:$0xf] %v1929
        %2333 = vst [vmem:[#allocation3 + $0x34] sm:$0xf] %v1939
        %2334 = vst [vmem:[#allocation3 + $0x58] sm:$0xf] %v1953
        %2335 = vst [vmem:[#allocation3 + $0x7c] sm:$0xf] %v1963
        %2336 = vst [vmem:[#allocation3 + $0xa0] sm:$0xf] %v1977
        %2337 = vst [vmem:[#allocation3 + $0xc4] sm:$0xf] %v1987
        %2338 = vst [vmem:[#allocation3 + $0xe8] sm:$0xf] %v2001
        %2339 = vst [vmem:[#allocation3 + $0x10c] sm:$0xf] %v2011
        %2340 = vst [vmem:[#allocation3 + $0x130] sm:$0xf] %v2025
        %2341 = vst [vmem:[#allocation3 + $0x154] sm:$0xf] %v2035
        %2342 = vst [vmem:[#allocation3 + $0x178] sm:$0xf] %v2049
        %2343 = vst [vmem:[#allocation3 + $0x19c] sm:$0xf] %v2059
        %2344 = vst [vmem:[#allocation3 + $0x1c0] sm:$0xf] %v2073
        %2345 = vst [vmem:[#allocation3 + $0x1e4] sm:$0xf] %v2083
        %2346 = vst [vmem:[#allocation3 + $0x208] sm:$0xf] %v2097
        %2347 = vst [vmem:[#allocation3 + $0x22c] sm:$0xf] %v2107
        %2348 = vst [vmem:[#allocation3 + $0x250] sm:$0xf] %v2121
        %2349 = vst [vmem:[#allocation3 + $0x274] sm:$0xf] %v2131
        %2350 = vst [vmem:[#allocation3 + $0x298] sm:$0xf] %v2145
        %2351 = vst [vmem:[#allocation3 + $0x2bc] sm:$0xf] %v2155
        %2352 = vst [vmem:[#allocation3 + $0x2e0] sm:$0xf] %v2169
        %2353 = vst [vmem:[#allocation3 + $0x304] sm:$0xf] %v2179
        %2354 = vst [vmem:[#allocation3 + $0x328] sm:$0xf] %v2193
        %2355 = vst [vmem:[#allocation3 + $0x34c] sm:$0xf] %v2203
        %2356 = vst [vmem:[#allocation3 + $0x370] sm:$0xf] %v2217
        %2357 = vst [vmem:[#allocation3 + $0x394] sm:$0xf] %v2227
        %2358 = vst [vmem:[#allocation3 + $0x3b8] sm:$0xf] %v2241
        %2359 = vst [vmem:[#allocation3 + $0x3dc] sm:$0xf] %v2251
        %2360 = vst [vmem:[#allocation3 + $0x400] sm:$0xf] %v2265
        %2361 = vst [vmem:[#allocation3 + $0x424] sm:$0xf] %v2275
        %2362 = vst [vmem:[#allocation3 + $0x448] sm:$0xf] %v2289
        %2363 = vst [vmem:[#allocation3 + $0x46c] sm:$0xf] %v2299
        %v2364 = vld [vmem:[%s851] sm:$0xe]
        %v2365 = vld [vmem:[%s851 + $0x4] sm:$0xf]
        %v2366 = vld [vmem:[%s851 + $0x8] sm:$0x1]
        %v2367 = vld [vmem:[%s851 + $0xc] sm:$0xe]
        %v2368 = vld [vmem:[%s851 + $0x10] sm:$0xf]
        %v2369 = vld [vmem:[%s851 + $0x14] sm:$0x1]
        %v2370 = vld [vmem:[%s851 + $0x18] sm:$0xe]
        %v2371 = vld [vmem:[%s851 + $0x1c] sm:$0xf]
        %v2372 = vld [vmem:[%s851 + $0x20] sm:$0x1]
        %v2373 = vld [vmem:[%s851 + $0x24] sm:$0xe]
        %v2374 = vld [vmem:[%s851 + $0x28] sm:$0xf]
        %v2375 = vld [vmem:[%s851 + $0x2c] sm:$0x1]
        %v2376 = vld [vmem:[%s851 + $0x30] sm:$0xe]
        %v2377 = vld [vmem:[%s851 + $0x34] sm:$0xf]
        %v2378 = vld [vmem:[%s851 + $0x38] sm:$0x1]
        %v2379 = vld [vmem:[%s851 + $0x3c] sm:$0xe]
        %v2380 = vld [vmem:[%s851 + $0x40] sm:$0xf]
        %v2381 = vld [vmem:[%s851 + $0x44] sm:$0x1]
        %v2382 = vld [vmem:[%s851 + $0x48] sm:$0xe]
        %v2383 = vld [vmem:[%s851 + $0x4c] sm:$0xf]
        %v2384 = vld [vmem:[%s851 + $0x50] sm:$0x1]
        %v2385 = vld [vmem:[%s851 + $0x54] sm:$0xe]
        %v2386 = vld [vmem:[%s851 + $0x58] sm:$0xf]
        %v2387 = vld [vmem:[%s851 + $0x5c] sm:$0x1]
        %v2388 = vld [vmem:[%s851 + $0x60] sm:$0xe]
        %v2389 = vld [vmem:[%s851 + $0x64] sm:$0xf]
        %v2390 = vld [vmem:[%s851 + $0x68] sm:$0x1]
        %v2391 = vld [vmem:[%s851 + $0x6c] sm:$0xe]
        %v2392 = vld [vmem:[%s851 + $0x70] sm:$0xf]
        %v2393 = vld [vmem:[%s851 + $0x74] sm:$0x1]
        %v2394 = vld [vmem:[%s851 + $0x78] sm:$0xe]
        %v2395 = vld [vmem:[%s851 + $0x7c] sm:$0xf]
        %v2396 = vld [vmem:[%s851 + $0x80] sm:$0x1]
        %v2397 = vld [vmem:[%s851 + $0x84] sm:$0xe]
        %v2398 = vld [vmem:[%s851 + $0x88] sm:$0xf]
        %v2399 = vld [vmem:[%s851 + $0x8c] sm:$0x1]
        %v2400 = vld [vmem:[%s851 + $0x90] sm:$0xe]
        %v2401 = vld [vmem:[%s851 + $0x94] sm:$0xf]
        %v2402 = vld [vmem:[%s851 + $0x98] sm:$0x1]
        %v2403 = vld [vmem:[%s851 + $0x9c] sm:$0xe]
        %v2404 = vld [vmem:[%s851 + $0xa0] sm:$0xf]
        %v2405 = vld [vmem:[%s851 + $0xa4] sm:$0x1]
        %v2406 = vld [vmem:[%s851 + $0xa8] sm:$0xe]
        %v2407 = vld [vmem:[%s851 + $0xac] sm:$0xf]
        %v2408 = vld [vmem:[%s851 + $0xb0] sm:$0x1]
        %v2409 = vld [vmem:[%s851 + $0xb4] sm:$0xe]
        %v2410 = vld [vmem:[%s851 + $0xb8] sm:$0xf]
        %v2411 = vld [vmem:[%s851 + $0xbc] sm:$0x1]
        %v2460 = vrot.slane %v2364, 5
        %v2461 = vrot.slane %v2460, 4
        %v2462 = vrot.slane %v2365, 5
        %v2463 = vsel %vm1627, %v2461, %v2462
        %v2464 = vrot.slane %v2462, 4
        %v2465 = vrot.slane %v2366, 5
        %v2466 = vsel %vm1627, %v2464, %v2465
        %v2467 = vrot.slane %v2367, 5
        %v2468 = vrot.slane %v2467, 4
        %v2469 = vrot.slane %v2368, 5
        %v2470 = vsel %vm1627, %v2468, %v2469
        %v2471 = vrot.slane %v2469, 4
        %v2472 = vrot.slane %v2369, 5
        %v2473 = vsel %vm1627, %v2471, %v2472
        %v2474 = vrot.slane %v2370, 5
        %v2475 = vrot.slane %v2474, 4
        %v2476 = vrot.slane %v2371, 5
        %v2477 = vsel %vm1627, %v2475, %v2476
        %v2478 = vrot.slane %v2476, 4
        %v2479 = vrot.slane %v2372, 5
        %v2480 = vsel %vm1627, %v2478, %v2479
        %v2481 = vrot.slane %v2373, 5
        %v2482 = vrot.slane %v2481, 4
        %v2483 = vrot.slane %v2374, 5
        %v2484 = vsel %vm1627, %v2482, %v2483
        %v2485 = vrot.slane %v2483, 4
        %v2486 = vrot.slane %v2375, 5
        %v2487 = vsel %vm1627, %v2485, %v2486
        %v2488 = vrot.slane %v2376, 5
        %v2489 = vrot.slane %v2488, 4
        %v2490 = vrot.slane %v2377, 5
        %v2491 = vsel %vm1627, %v2489, %v2490
        %v2492 = vrot.slane %v2490, 4
        %v2493 = vrot.slane %v2378, 5
        %v2494 = vsel %vm1627, %v2492, %v2493
        %v2495 = vrot.slane %v2379, 5
        %v2496 = vrot.slane %v2495, 4
        %v2497 = vrot.slane %v2380, 5
        %v2498 = vsel %vm1627, %v2496, %v2497
        %v2499 = vrot.slane %v2497, 4
        %v2500 = vrot.slane %v2381, 5
        %v2501 = vsel %vm1627, %v2499, %v2500
        %v2502 = vrot.slane %v2382, 5
        %v2503 = vrot.slane %v2502, 4
        %v2504 = vrot.slane %v2383, 5
        %v2505 = vsel %vm1627, %v2503, %v2504
        %v2506 = vrot.slane %v2504, 4
        %v2507 = vrot.slane %v2384, 5
        %v2508 = vsel %vm1627, %v2506, %v2507
        %v2509 = vrot.slane %v2385, 5
        %v2510 = vrot.slane %v2509, 4
        %v2511 = vrot.slane %v2386, 5
        %v2512 = vsel %vm1627, %v2510, %v2511
        %v2513 = vrot.slane %v2511, 4
        %v2514 = vrot.slane %v2387, 5
        %v2515 = vsel %vm1627, %v2513, %v2514
        %v2516 = vrot.slane %v2388, 5
        %v2517 = vrot.slane %v2516, 4
        %v2518 = vrot.slane %v2389, 5
        %v2519 = vsel %vm1627, %v2517, %v2518
        %v2520 = vrot.slane %v2518, 4
        %v2521 = vrot.slane %v2390, 5
        %v2522 = vsel %vm1627, %v2520, %v2521
        %v2523 = vrot.slane %v2391, 5
        %v2524 = vrot.slane %v2523, 4
        %v2525 = vrot.slane %v2392, 5
        %v2526 = vsel %vm1627, %v2524, %v2525
        %v2527 = vrot.slane %v2525, 4
        %v2528 = vrot.slane %v2393, 5
        %v2529 = vsel %vm1627, %v2527, %v2528
        %v2530 = vrot.slane %v2394, 5
        %v2531 = vrot.slane %v2530, 4
        %v2532 = vrot.slane %v2395, 5
        %v2533 = vsel %vm1627, %v2531, %v2532
        %v2534 = vrot.slane %v2532, 4
        %v2535 = vrot.slane %v2396, 5
        %v2536 = vsel %vm1627, %v2534, %v2535
        %v2537 = vrot.slane %v2397, 5
        %v2538 = vrot.slane %v2537, 4
        %v2539 = vrot.slane %v2398, 5
        %v2540 = vsel %vm1627, %v2538, %v2539
        %v2541 = vrot.slane %v2539, 4
        %v2542 = vrot.slane %v2399, 5
        %v2543 = vsel %vm1627, %v2541, %v2542
        %v2544 = vrot.slane %v2400, 5
        %v2545 = vrot.slane %v2544, 4
        %v2546 = vrot.slane %v2401, 5
        %v2547 = vsel %vm1627, %v2545, %v2546
        %v2548 = vrot.slane %v2546, 4
        %v2549 = vrot.slane %v2402, 5
        %v2550 = vsel %vm1627, %v2548, %v2549
        %v2551 = vrot.slane %v2403, 5
        %v2552 = vrot.slane %v2551, 4
        %v2553 = vrot.slane %v2404, 5
        %v2554 = vsel %vm1627, %v2552, %v2553
        %v2555 = vrot.slane %v2553, 4
        %v2556 = vrot.slane %v2405, 5
        %v2557 = vsel %vm1627, %v2555, %v2556
        %v2558 = vrot.slane %v2406, 5
        %v2559 = vrot.slane %v2558, 4
        %v2560 = vrot.slane %v2407, 5
        %v2561 = vsel %vm1627, %v2559, %v2560
        %v2562 = vrot.slane %v2560, 4
        %v2563 = vrot.slane %v2408, 5
        %v2564 = vsel %vm1627, %v2562, %v2563
        %v2565 = vrot.slane %v2409, 5
        %v2566 = vrot.slane %v2565, 4
        %v2567 = vrot.slane %v2410, 5
        %v2568 = vsel %vm1627, %v2566, %v2567
        %v2569 = vrot.slane %v2567, 4
        %v2570 = vrot.slane %v2411, 5
        %v2571 = vsel %vm1627, %v2569, %v2570
        %2604 = vst [vmem:[#allocation3 + $0x14] sm:$0xf] %v2463
        %2605 = vst [vmem:[#allocation3 + $0x38] sm:$0xf] %v2466
        %2606 = vst [vmem:[#allocation3 + $0x5c] sm:$0xf] %v2470
        %2607 = vst [vmem:[#allocation3 + $0x80] sm:$0xf] %v2473
        %2608 = vst [vmem:[#allocation3 + $0xa4] sm:$0xf] %v2477
        %2609 = vst [vmem:[#allocation3 + $0xc8] sm:$0xf] %v2480
        %2610 = vst [vmem:[#allocation3 + $0xec] sm:$0xf] %v2484
        %2611 = vst [vmem:[#allocation3 + $0x110] sm:$0xf] %v2487
        %2612 = vst [vmem:[#allocation3 + $0x134] sm:$0xf] %v2491
        %2613 = vst [vmem:[#allocation3 + $0x158] sm:$0xf] %v2494
        %2614 = vst [vmem:[#allocation3 + $0x17c] sm:$0xf] %v2498
        %2615 = vst [vmem:[#allocation3 + $0x1a0] sm:$0xf] %v2501
        %2616 = vst [vmem:[#allocation3 + $0x1c4] sm:$0xf] %v2505
        %2617 = vst [vmem:[#allocation3 + $0x1e8] sm:$0xf] %v2508
        %2618 = vst [vmem:[#allocation3 + $0x20c] sm:$0xf] %v2512
        %2619 = vst [vmem:[#allocation3 + $0x230] sm:$0xf] %v2515
        %2620 = vst [vmem:[#allocation3 + $0x254] sm:$0xf] %v2519
        %2621 = vst [vmem:[#allocation3 + $0x278] sm:$0xf] %v2522
        %2622 = vst [vmem:[#allocation3 + $0x29c] sm:$0xf] %v2526
        %2623 = vst [vmem:[#allocation3 + $0x2c0] sm:$0xf] %v2529
        %2624 = vst [vmem:[#allocation3 + $0x2e4] sm:$0xf] %v2533
        %2625 = vst [vmem:[#allocation3 + $0x308] sm:$0xf] %v2536
        %2626 = vst [vmem:[#allocation3 + $0x32c] sm:$0xf] %v2540
        %2627 = vst [vmem:[#allocation3 + $0x350] sm:$0xf] %v2543
        %2628 = vst [vmem:[#allocation3 + $0x374] sm:$0xf] %v2547
        %2629 = vst [vmem:[#allocation3 + $0x398] sm:$0xf] %v2550
        %2630 = vst [vmem:[#allocation3 + $0x3bc] sm:$0xf] %v2554
        %2631 = vst [vmem:[#allocation3 + $0x3e0] sm:$0xf] %v2557
        %2632 = vst [vmem:[#allocation3 + $0x404] sm:$0xf] %v2561
        %2633 = vst [vmem:[#allocation3 + $0x428] sm:$0xf] %v2564
        %2634 = vst [vmem:[#allocation3 + $0x44c] sm:$0xf] %v2568
        %2635 = vst [vmem:[#allocation3 + $0x470] sm:$0xf] %v2571
        %s2636 = scalar_lea.vmem [#allocation2], 24
        %v2637 = vld [vmem:[%s2636] sm:$0xf]
        %v2638 = vld [vmem:[%s2636 + $0x4] sm:$0xf]
        %v2639 = vld [vmem:[%s2636 + $0xc] sm:$0xf]
        %v2640 = vld [vmem:[%s2636 + $0x10] sm:$0xf]
        %v2641 = vld [vmem:[%s2636 + $0x18] sm:$0xf]
        %v2642 = vld [vmem:[%s2636 + $0x1c] sm:$0xf]
        %v2643 = vld [vmem:[%s2636 + $0x24] sm:$0xf]
        %v2644 = vld [vmem:[%s2636 + $0x28] sm:$0xf]
        %v2645 = vld [vmem:[%s2636 + $0x30] sm:$0xf]
        %v2646 = vld [vmem:[%s2636 + $0x34] sm:$0xf]
        %v2647 = vld [vmem:[%s2636 + $0x3c] sm:$0xf]
        %v2648 = vld [vmem:[%s2636 + $0x40] sm:$0xf]
        %v2649 = vld [vmem:[%s2636 + $0x48] sm:$0xf]
        %v2650 = vld [vmem:[%s2636 + $0x4c] sm:$0xf]
        %v2651 = vld [vmem:[%s2636 + $0x54] sm:$0xf]
        %v2652 = vld [vmem:[%s2636 + $0x58] sm:$0xf]
        %v2653 = vld [vmem:[%s2636 + $0x60] sm:$0xf]
        %v2654 = vld [vmem:[%s2636 + $0x64] sm:$0xf]
        %v2655 = vld [vmem:[%s2636 + $0x6c] sm:$0xf]
        %v2656 = vld [vmem:[%s2636 + $0x70] sm:$0xf]
        %v2657 = vld [vmem:[%s2636 + $0x78] sm:$0xf]
        %v2658 = vld [vmem:[%s2636 + $0x7c] sm:$0xf]
        %v2659 = vld [vmem:[%s2636 + $0x84] sm:$0xf]
        %v2660 = vld [vmem:[%s2636 + $0x88] sm:$0xf]
        %v2661 = vld [vmem:[%s2636 + $0x90] sm:$0xf]
        %v2662 = vld [vmem:[%s2636 + $0x94] sm:$0xf]
        %v2663 = vld [vmem:[%s2636 + $0x9c] sm:$0xf]
        %v2664 = vld [vmem:[%s2636 + $0xa0] sm:$0xf]
        %v2665 = vld [vmem:[%s2636 + $0xa8] sm:$0xf]
        %v2666 = vld [vmem:[%s2636 + $0xac] sm:$0xf]
        %v2667 = vld [vmem:[%s2636 + $0xb4] sm:$0xf]
        %v2668 = vld [vmem:[%s2636 + $0xb8] sm:$0xf]
        %2669 = vst [vmem:[#allocation3 + $0x18] sm:$0xf] %v2637
        %2670 = vst [vmem:[#allocation3 + $0x3c] sm:$0xf] %v2638
        %2671 = vst [vmem:[#allocation3 + $0x60] sm:$0xf] %v2639
        %2672 = vst [vmem:[#allocation3 + $0x84] sm:$0xf] %v2640
        %2673 = vst [vmem:[#allocation3 + $0xa8] sm:$0xf] %v2641
        %2674 = vst [vmem:[#allocation3 + $0xcc] sm:$0xf] %v2642
        %2675 = vst [vmem:[#allocation3 + $0xf0] sm:$0xf] %v2643
        %2676 = vst [vmem:[#allocation3 + $0x114] sm:$0xf] %v2644
        %2677 = vst [vmem:[#allocation3 + $0x138] sm:$0xf] %v2645
        %2678 = vst [vmem:[#allocation3 + $0x15c] sm:$0xf] %v2646
        %2679 = vst [vmem:[#allocation3 + $0x180] sm:$0xf] %v2647
        %2680 = vst [vmem:[#allocation3 + $0x1a4] sm:$0xf] %v2648
        %2681 = vst [vmem:[#allocation3 + $0x1c8] sm:$0xf] %v2649
        %2682 = vst [vmem:[#allocation3 + $0x1ec] sm:$0xf] %v2650
        %2683 = vst [vmem:[#allocation3 + $0x210] sm:$0xf] %v2651
        %2684 = vst [vmem:[#allocation3 + $0x234] sm:$0xf] %v2652
        %2685 = vst [vmem:[#allocation3 + $0x258] sm:$0xf] %v2653
        %2686 = vst [vmem:[#allocation3 + $0x27c] sm:$0xf] %v2654
        %2687 = vst [vmem:[#allocation3 + $0x2a0] sm:$0xf] %v2655
        %2688 = vst [vmem:[#allocation3 + $0x2c4] sm:$0xf] %v2656
        %2689 = vst [vmem:[#allocation3 + $0x2e8] sm:$0xf] %v2657
        %2690 = vst [vmem:[#allocation3 + $0x30c] sm:$0xf] %v2658
        %2691 = vst [vmem:[#allocation3 + $0x330] sm:$0xf] %v2659
        %2692 = vst [vmem:[#allocation3 + $0x354] sm:$0xf] %v2660
        %2693 = vst [vmem:[#allocation3 + $0x378] sm:$0xf] %v2661
        %2694 = vst [vmem:[#allocation3 + $0x39c] sm:$0xf] %v2662
        %2695 = vst [vmem:[#allocation3 + $0x3c0] sm:$0xf] %v2663
        %2696 = vst [vmem:[#allocation3 + $0x3e4] sm:$0xf] %v2664
        %2697 = vst [vmem:[#allocation3 + $0x408] sm:$0xf] %v2665
        %2698 = vst [vmem:[#allocation3 + $0x42c] sm:$0xf] %v2666
        %2699 = vst [vmem:[#allocation3 + $0x450] sm:$0xf] %v2667
        %2700 = vst [vmem:[#allocation3 + $0x474] sm:$0xf] %v2668
        %v2701 = vld [vmem:[%s2636] sm:$0xf]
        %v2702 = vld [vmem:[%s2636 + $0x4] sm:$0xf]
        %v2703 = vld [vmem:[%s2636 + $0x8] sm:$0x1]
        %v2704 = vld [vmem:[%s2636 + $0xc] sm:$0xf]
        %v2705 = vld [vmem:[%s2636 + $0x10] sm:$0xf]
        %v2706 = vld [vmem:[%s2636 + $0x14] sm:$0x1]
        %v2707 = vld [vmem:[%s2636 + $0x18] sm:$0xf]
        %v2708 = vld [vmem:[%s2636 + $0x1c] sm:$0xf]
        %v2709 = vld [vmem:[%s2636 + $0x20] sm:$0x1]
        %v2710 = vld [vmem:[%s2636 + $0x24] sm:$0xf]
        %v2711 = vld [vmem:[%s2636 + $0x28] sm:$0xf]
        %v2712 = vld [vmem:[%s2636 + $0x2c] sm:$0x1]
        %v2713 = vld [vmem:[%s2636 + $0x30] sm:$0xf]
        %v2714 = vld [vmem:[%s2636 + $0x34] sm:$0xf]
        %v2715 = vld [vmem:[%s2636 + $0x38] sm:$0x1]
        %v2716 = vld [vmem:[%s2636 + $0x3c] sm:$0xf]
        %v2717 = vld [vmem:[%s2636 + $0x40] sm:$0xf]
        %v2718 = vld [vmem:[%s2636 + $0x44] sm:$0x1]
        %v2719 = vld [vmem:[%s2636 + $0x48] sm:$0xf]
        %v2720 = vld [vmem:[%s2636 + $0x4c] sm:$0xf]
        %v2721 = vld [vmem:[%s2636 + $0x50] sm:$0x1]
        %v2722 = vld [vmem:[%s2636 + $0x54] sm:$0xf]
        %v2723 = vld [vmem:[%s2636 + $0x58] sm:$0xf]
        %v2724 = vld [vmem:[%s2636 + $0x5c] sm:$0x1]
        %v2725 = vld [vmem:[%s2636 + $0x60] sm:$0xf]
        %v2726 = vld [vmem:[%s2636 + $0x64] sm:$0xf]
        %v2727 = vld [vmem:[%s2636 + $0x68] sm:$0x1]
        %v2728 = vld [vmem:[%s2636 + $0x6c] sm:$0xf]
        %v2729 = vld [vmem:[%s2636 + $0x70] sm:$0xf]
        %v2730 = vld [vmem:[%s2636 + $0x74] sm:$0x1]
        %v2731 = vld [vmem:[%s2636 + $0x78] sm:$0xf]
        %v2732 = vld [vmem:[%s2636 + $0x7c] sm:$0xf]
        %v2733 = vld [vmem:[%s2636 + $0x80] sm:$0x1]
        %v2734 = vld [vmem:[%s2636 + $0x84] sm:$0xf]
        %v2735 = vld [vmem:[%s2636 + $0x88] sm:$0xf]
        %v2736 = vld [vmem:[%s2636 + $0x8c] sm:$0x1]
        %v2737 = vld [vmem:[%s2636 + $0x90] sm:$0xf]
        %v2738 = vld [vmem:[%s2636 + $0x94] sm:$0xf]
        %v2739 = vld [vmem:[%s2636 + $0x98] sm:$0x1]
        %v2740 = vld [vmem:[%s2636 + $0x9c] sm:$0xf]
        %v2741 = vld [vmem:[%s2636 + $0xa0] sm:$0xf]
        %v2742 = vld [vmem:[%s2636 + $0xa4] sm:$0x1]
        %v2743 = vld [vmem:[%s2636 + $0xa8] sm:$0xf]
        %v2744 = vld [vmem:[%s2636 + $0xac] sm:$0xf]
        %v2745 = vld [vmem:[%s2636 + $0xb0] sm:$0x1]
        %v2746 = vld [vmem:[%s2636 + $0xb4] sm:$0xf]
        %v2747 = vld [vmem:[%s2636 + $0xb8] sm:$0xf]
        %v2748 = vld [vmem:[%s2636 + $0xbc] sm:$0x1]
        %v2750 = vshrl.u32 %v2701, 16
        %v2752 = vrot.slane %v2750, 4
        %v2753 = vshll.u32 %v2701, 16
        %v2755 = vrot.slane %v2753, 5
        %v2756 = vor.u32 %v2752, %v2755
        %v2757 = vrot.slane %v2756, 4
        %v2759 = vshll.u32 %v2702, 16
        %v2761 = vrot.slane %v2759, 5
        %v2762 = vsel %vm1080, %v2757, %v2761
        %v2763 = vshrl.u32 %v2702, 16
        %v2765 = vrot.slane %v2763, 4
        %v2766 = vor.u32 %v2765, %v2761
        %v2767 = vrot.slane %v2766, 4
        %v2769 = vshll.u32 %v2703, 16
        %v2771 = vrot.slane %v2769, 5
        %v2772 = vsel %vm1080, %v2767, %v2771
        %v2774 = vshrl.u32 %v2704, 16
        %v2776 = vrot.slane %v2774, 4
        %v2777 = vshll.u32 %v2704, 16
        %v2779 = vrot.slane %v2777, 5
        %v2780 = vor.u32 %v2776, %v2779
        %v2781 = vrot.slane %v2780, 4
        %v2783 = vshll.u32 %v2705, 16
        %v2785 = vrot.slane %v2783, 5
        %v2786 = vsel %vm1080, %v2781, %v2785
        %v2787 = vshrl.u32 %v2705, 16
        %v2789 = vrot.slane %v2787, 4
        %v2790 = vor.u32 %v2789, %v2785
        %v2791 = vrot.slane %v2790, 4
        %v2793 = vshll.u32 %v2706, 16
        %v2795 = vrot.slane %v2793, 5
        %v2796 = vsel %vm1080, %v2791, %v2795
        %v2798 = vshrl.u32 %v2707, 16
        %v2800 = vrot.slane %v2798, 4
        %v2801 = vshll.u32 %v2707, 16
        %v2803 = vrot.slane %v2801, 5
        %v2804 = vor.u32 %v2800, %v2803
        %v2805 = vrot.slane %v2804, 4
        %v2807 = vshll.u32 %v2708, 16
        %v2809 = vrot.slane %v2807, 5
        %v2810 = vsel %vm1080, %v2805, %v2809
        %v2811 = vshrl.u32 %v2708, 16
        %v2813 = vrot.slane %v2811, 4
        %v2814 = vor.u32 %v2813, %v2809
        %v2815 = vrot.slane %v2814, 4
        %v2817 = vshll.u32 %v2709, 16
        %v2819 = vrot.slane %v2817, 5
        %v2820 = vsel %vm1080, %v2815, %v2819
        %v2822 = vshrl.u32 %v2710, 16
        %v2824 = vrot.slane %v2822, 4
        %v2825 = vshll.u32 %v2710, 16
        %v2827 = vrot.slane %v2825, 5
        %v2828 = vor.u32 %v2824, %v2827
        %v2829 = vrot.slane %v2828, 4
        %v2831 = vshll.u32 %v2711, 16
        %v2833 = vrot.slane %v2831, 5
        %v2834 = vsel %vm1080, %v2829, %v2833
        %v2835 = vshrl.u32 %v2711, 16
        %v2837 = vrot.slane %v2835, 4
        %v2838 = vor.u32 %v2837, %v2833
        %v2839 = vrot.slane %v2838, 4
        %v2841 = vshll.u32 %v2712, 16
        %v2843 = vrot.slane %v2841, 5
        %v2844 = vsel %vm1080, %v2839, %v2843
        %v2846 = vshrl.u32 %v2713, 16
        %v2848 = vrot.slane %v2846, 4
        %v2849 = vshll.u32 %v2713, 16
        %v2851 = vrot.slane %v2849, 5
        %v2852 = vor.u32 %v2848, %v2851
        %v2853 = vrot.slane %v2852, 4
        %v2855 = vshll.u32 %v2714, 16
        %v2857 = vrot.slane %v2855, 5
        %v2858 = vsel %vm1080, %v2853, %v2857
        %v2859 = vshrl.u32 %v2714, 16
        %v2861 = vrot.slane %v2859, 4
        %v2862 = vor.u32 %v2861, %v2857
        %v2863 = vrot.slane %v2862, 4
        %v2865 = vshll.u32 %v2715, 16
        %v2867 = vrot.slane %v2865, 5
        %v2868 = vsel %vm1080, %v2863, %v2867
        %v2870 = vshrl.u32 %v2716, 16
        %v2872 = vrot.slane %v2870, 4
        %v2873 = vshll.u32 %v2716, 16
        %v2875 = vrot.slane %v2873, 5
        %v2876 = vor.u32 %v2872, %v2875
        %v2877 = vrot.slane %v2876, 4
        %v2879 = vshll.u32 %v2717, 16
        %v2881 = vrot.slane %v2879, 5
        %v2882 = vsel %vm1080, %v2877, %v2881
        %v2883 = vshrl.u32 %v2717, 16
        %v2885 = vrot.slane %v2883, 4
        %v2886 = vor.u32 %v2885, %v2881
        %v2887 = vrot.slane %v2886, 4
        %v2889 = vshll.u32 %v2718, 16
        %v2891 = vrot.slane %v2889, 5
        %v2892 = vsel %vm1080, %v2887, %v2891
        %v2894 = vshrl.u32 %v2719, 16
        %v2896 = vrot.slane %v2894, 4
        %v2897 = vshll.u32 %v2719, 16
        %v2899 = vrot.slane %v2897, 5
        %v2900 = vor.u32 %v2896, %v2899
        %v2901 = vrot.slane %v2900, 4
        %v2903 = vshll.u32 %v2720, 16
        %v2905 = vrot.slane %v2903, 5
        %v2906 = vsel %vm1080, %v2901, %v2905
        %v2907 = vshrl.u32 %v2720, 16
        %v2909 = vrot.slane %v2907, 4
        %v2910 = vor.u32 %v2909, %v2905
        %v2911 = vrot.slane %v2910, 4
        %v2913 = vshll.u32 %v2721, 16
        %v2915 = vrot.slane %v2913, 5
        %v2916 = vsel %vm1080, %v2911, %v2915
        %v2918 = vshrl.u32 %v2722, 16
        %v2920 = vrot.slane %v2918, 4
        %v2921 = vshll.u32 %v2722, 16
        %v2923 = vrot.slane %v2921, 5
        %v2924 = vor.u32 %v2920, %v2923
        %v2925 = vrot.slane %v2924, 4
        %v2927 = vshll.u32 %v2723, 16
        %v2929 = vrot.slane %v2927, 5
        %v2930 = vsel %vm1080, %v2925, %v2929
        %v2931 = vshrl.u32 %v2723, 16
        %v2933 = vrot.slane %v2931, 4
        %v2934 = vor.u32 %v2933, %v2929
        %v2935 = vrot.slane %v2934, 4
        %v2937 = vshll.u32 %v2724, 16
        %v2939 = vrot.slane %v2937, 5
        %v2940 = vsel %vm1080, %v2935, %v2939
        %v2942 = vshrl.u32 %v2725, 16
        %v2944 = vrot.slane %v2942, 4
        %v2945 = vshll.u32 %v2725, 16
        %v2947 = vrot.slane %v2945, 5
        %v2948 = vor.u32 %v2944, %v2947
        %v2949 = vrot.slane %v2948, 4
        %v2951 = vshll.u32 %v2726, 16
        %v2953 = vrot.slane %v2951, 5
        %v2954 = vsel %vm1080, %v2949, %v2953
        %v2955 = vshrl.u32 %v2726, 16
        %v2957 = vrot.slane %v2955, 4
        %v2958 = vor.u32 %v2957, %v2953
        %v2959 = vrot.slane %v2958, 4
        %v2961 = vshll.u32 %v2727, 16
        %v2963 = vrot.slane %v2961, 5
        %v2964 = vsel %vm1080, %v2959, %v2963
        %v2966 = vshrl.u32 %v2728, 16
        %v2968 = vrot.slane %v2966, 4
        %v2969 = vshll.u32 %v2728, 16
        %v2971 = vrot.slane %v2969, 5
        %v2972 = vor.u32 %v2968, %v2971
        %v2973 = vrot.slane %v2972, 4
        %v2975 = vshll.u32 %v2729, 16
        %v2977 = vrot.slane %v2975, 5
        %v2978 = vsel %vm1080, %v2973, %v2977
        %v2979 = vshrl.u32 %v2729, 16
        %v2981 = vrot.slane %v2979, 4
        %v2982 = vor.u32 %v2981, %v2977
        %v2983 = vrot.slane %v2982, 4
        %v2985 = vshll.u32 %v2730, 16
        %v2987 = vrot.slane %v2985, 5
        %v2988 = vsel %vm1080, %v2983, %v2987
        %v2990 = vshrl.u32 %v2731, 16
        %v2992 = vrot.slane %v2990, 4
        %v2993 = vshll.u32 %v2731, 16
        %v2995 = vrot.slane %v2993, 5
        %v2996 = vor.u32 %v2992, %v2995
        %v2997 = vrot.slane %v2996, 4
        %v2999 = vshll.u32 %v2732, 16
        %v3001 = vrot.slane %v2999, 5
        %v3002 = vsel %vm1080, %v2997, %v3001
        %v3003 = vshrl.u32 %v2732, 16
        %v3005 = vrot.slane %v3003, 4
        %v3006 = vor.u32 %v3005, %v3001
        %v3007 = vrot.slane %v3006, 4
        %v3009 = vshll.u32 %v2733, 16
        %v3011 = vrot.slane %v3009, 5
        %v3012 = vsel %vm1080, %v3007, %v3011
        %v3014 = vshrl.u32 %v2734, 16
        %v3016 = vrot.slane %v3014, 4
        %v3017 = vshll.u32 %v2734, 16
        %v3019 = vrot.slane %v3017, 5
        %v3020 = vor.u32 %v3016, %v3019
        %v3021 = vrot.slane %v3020, 4
        %v3023 = vshll.u32 %v2735, 16
        %v3025 = vrot.slane %v3023, 5
        %v3026 = vsel %vm1080, %v3021, %v3025
        %v3027 = vshrl.u32 %v2735, 16
        %v3029 = vrot.slane %v3027, 4
        %v3030 = vor.u32 %v3029, %v3025
        %v3031 = vrot.slane %v3030, 4
        %v3033 = vshll.u32 %v2736, 16
        %v3035 = vrot.slane %v3033, 5
        %v3036 = vsel %vm1080, %v3031, %v3035
        %v3038 = vshrl.u32 %v2737, 16
        %v3040 = vrot.slane %v3038, 4
        %v3041 = vshll.u32 %v2737, 16
        %v3043 = vrot.slane %v3041, 5
        %v3044 = vor.u32 %v3040, %v3043
        %v3045 = vrot.slane %v3044, 4
        %v3047 = vshll.u32 %v2738, 16
        %v3049 = vrot.slane %v3047, 5
        %v3050 = vsel %vm1080, %v3045, %v3049
        %v3051 = vshrl.u32 %v2738, 16
        %v3053 = vrot.slane %v3051, 4
        %v3054 = vor.u32 %v3053, %v3049
        %v3055 = vrot.slane %v3054, 4
        %v3057 = vshll.u32 %v2739, 16
        %v3059 = vrot.slane %v3057, 5
        %v3060 = vsel %vm1080, %v3055, %v3059
        %v3062 = vshrl.u32 %v2740, 16
        %v3064 = vrot.slane %v3062, 4
        %v3065 = vshll.u32 %v2740, 16
        %v3067 = vrot.slane %v3065, 5
        %v3068 = vor.u32 %v3064, %v3067
        %v3069 = vrot.slane %v3068, 4
        %v3071 = vshll.u32 %v2741, 16
        %v3073 = vrot.slane %v3071, 5
        %v3074 = vsel %vm1080, %v3069, %v3073
        %v3075 = vshrl.u32 %v2741, 16
        %v3077 = vrot.slane %v3075, 4
        %v3078 = vor.u32 %v3077, %v3073
        %v3079 = vrot.slane %v3078, 4
        %v3081 = vshll.u32 %v2742, 16
        %v3083 = vrot.slane %v3081, 5
        %v3084 = vsel %vm1080, %v3079, %v3083
        %v3086 = vshrl.u32 %v2743, 16
        %v3088 = vrot.slane %v3086, 4
        %v3089 = vshll.u32 %v2743, 16
        %v3091 = vrot.slane %v3089, 5
        %v3092 = vor.u32 %v3088, %v3091
        %v3093 = vrot.slane %v3092, 4
        %v3095 = vshll.u32 %v2744, 16
        %v3097 = vrot.slane %v3095, 5
        %v3098 = vsel %vm1080, %v3093, %v3097
        %v3099 = vshrl.u32 %v2744, 16
        %v3101 = vrot.slane %v3099, 4
        %v3102 = vor.u32 %v3101, %v3097
        %v3103 = vrot.slane %v3102, 4
        %v3105 = vshll.u32 %v2745, 16
        %v3107 = vrot.slane %v3105, 5
        %v3108 = vsel %vm1080, %v3103, %v3107
        %v3110 = vshrl.u32 %v2746, 16
        %v3112 = vrot.slane %v3110, 4
        %v3113 = vshll.u32 %v2746, 16
        %v3115 = vrot.slane %v3113, 5
        %v3116 = vor.u32 %v3112, %v3115
        %v3117 = vrot.slane %v3116, 4
        %v3119 = vshll.u32 %v2747, 16
        %v3121 = vrot.slane %v3119, 5
        %v3122 = vsel %vm1080, %v3117, %v3121
        %v3123 = vshrl.u32 %v2747, 16
        %v3125 = vrot.slane %v3123, 4
        %v3126 = vor.u32 %v3125, %v3121
        %v3127 = vrot.slane %v3126, 4
        %v3129 = vshll.u32 %v2748, 16
        %v3131 = vrot.slane %v3129, 5
        %v3132 = vsel %vm1080, %v3127, %v3131
        %3165 = vst [vmem:[#allocation3 + $0x1c] sm:$0xf] %v2762
        %3166 = vst [vmem:[#allocation3 + $0x40] sm:$0xf] %v2772
        %3167 = vst [vmem:[#allocation3 + $0x64] sm:$0xf] %v2786
        %3168 = vst [vmem:[#allocation3 + $0x88] sm:$0xf] %v2796
        %3169 = vst [vmem:[#allocation3 + $0xac] sm:$0xf] %v2810
        %3170 = vst [vmem:[#allocation3 + $0xd0] sm:$0xf] %v2820
        %3171 = vst [vmem:[#allocation3 + $0xf4] sm:$0xf] %v2834
        %3172 = vst [vmem:[#allocation3 + $0x118] sm:$0xf] %v2844
        %3173 = vst [vmem:[#allocation3 + $0x13c] sm:$0xf] %v2858
        %3174 = vst [vmem:[#allocation3 + $0x160] sm:$0xf] %v2868
        %3175 = vst [vmem:[#allocation3 + $0x184] sm:$0xf] %v2882
        %3176 = vst [vmem:[#allocation3 + $0x1a8] sm:$0xf] %v2892
        %3177 = vst [vmem:[#allocation3 + $0x1cc] sm:$0xf] %v2906
        %3178 = vst [vmem:[#allocation3 + $0x1f0] sm:$0xf] %v2916
        %3179 = vst [vmem:[#allocation3 + $0x214] sm:$0xf] %v2930
        %3180 = vst [vmem:[#allocation3 + $0x238] sm:$0xf] %v2940
        %3181 = vst [vmem:[#allocation3 + $0x25c] sm:$0xf] %v2954
        %3182 = vst [vmem:[#allocation3 + $0x280] sm:$0xf] %v2964
        %3183 = vst [vmem:[#allocation3 + $0x2a4] sm:$0xf] %v2978
        %3184 = vst [vmem:[#allocation3 + $0x2c8] sm:$0xf] %v2988
        %3185 = vst [vmem:[#allocation3 + $0x2ec] sm:$0xf] %v3002
        %3186 = vst [vmem:[#allocation3 + $0x310] sm:$0xf] %v3012
        %3187 = vst [vmem:[#allocation3 + $0x334] sm:$0xf] %v3026
        %3188 = vst [vmem:[#allocation3 + $0x358] sm:$0xf] %v3036
        %3189 = vst [vmem:[#allocation3 + $0x37c] sm:$0xf] %v3050
        %3190 = vst [vmem:[#allocation3 + $0x3a0] sm:$0xf] %v3060
        %3191 = vst [vmem:[#allocation3 + $0x3c4] sm:$0xf] %v3074
        %3192 = vst [vmem:[#allocation3 + $0x3e8] sm:$0xf] %v3084
        %3193 = vst [vmem:[#allocation3 + $0x40c] sm:$0xf] %v3098
        %3194 = vst [vmem:[#allocation3 + $0x430] sm:$0xf] %v3108
        %3195 = vst [vmem:[#allocation3 + $0x454] sm:$0xf] %v3122
        %3196 = vst [vmem:[#allocation3 + $0x478] sm:$0xf] %v3132
        %v3197 = vld [vmem:[%s2636] sm:$0xe]
        %v3198 = vld [vmem:[%s2636 + $0x4] sm:$0xf]
        %v3199 = vld [vmem:[%s2636 + $0x8] sm:$0x1]
        %v3200 = vld [vmem:[%s2636 + $0xc] sm:$0xe]
        %v3201 = vld [vmem:[%s2636 + $0x10] sm:$0xf]
        %v3202 = vld [vmem:[%s2636 + $0x14] sm:$0x1]
        %v3203 = vld [vmem:[%s2636 + $0x18] sm:$0xe]
        %v3204 = vld [vmem:[%s2636 + $0x1c] sm:$0xf]
        %v3205 = vld [vmem:[%s2636 + $0x20] sm:$0x1]
        %v3206 = vld [vmem:[%s2636 + $0x24] sm:$0xe]
        %v3207 = vld [vmem:[%s2636 + $0x28] sm:$0xf]
        %v3208 = vld [vmem:[%s2636 + $0x2c] sm:$0x1]
        %v3209 = vld [vmem:[%s2636 + $0x30] sm:$0xe]
        %v3210 = vld [vmem:[%s2636 + $0x34] sm:$0xf]
        %v3211 = vld [vmem:[%s2636 + $0x38] sm:$0x1]
        %v3212 = vld [vmem:[%s2636 + $0x3c] sm:$0xe]
        %v3213 = vld [vmem:[%s2636 + $0x40] sm:$0xf]
        %v3214 = vld [vmem:[%s2636 + $0x44] sm:$0x1]
        %v3215 = vld [vmem:[%s2636 + $0x48] sm:$0xe]
        %v3216 = vld [vmem:[%s2636 + $0x4c] sm:$0xf]
        %v3217 = vld [vmem:[%s2636 + $0x50] sm:$0x1]
        %v3218 = vld [vmem:[%s2636 + $0x54] sm:$0xe]
        %v3219 = vld [vmem:[%s2636 + $0x58] sm:$0xf]
        %v3220 = vld [vmem:[%s2636 + $0x5c] sm:$0x1]
        %v3221 = vld [vmem:[%s2636 + $0x60] sm:$0xe]
        %v3222 = vld [vmem:[%s2636 + $0x64] sm:$0xf]
        %v3223 = vld [vmem:[%s2636 + $0x68] sm:$0x1]
        %v3224 = vld [vmem:[%s2636 + $0x6c] sm:$0xe]
        %v3225 = vld [vmem:[%s2636 + $0x70] sm:$0xf]
        %v3226 = vld [vmem:[%s2636 + $0x74] sm:$0x1]
        %v3227 = vld [vmem:[%s2636 + $0x78] sm:$0xe]
        %v3228 = vld [vmem:[%s2636 + $0x7c] sm:$0xf]
        %v3229 = vld [vmem:[%s2636 + $0x80] sm:$0x1]
        %v3230 = vld [vmem:[%s2636 + $0x84] sm:$0xe]
        %v3231 = vld [vmem:[%s2636 + $0x88] sm:$0xf]
        %v3232 = vld [vmem:[%s2636 + $0x8c] sm:$0x1]
        %v3233 = vld [vmem:[%s2636 + $0x90] sm:$0xe]
        %v3234 = vld [vmem:[%s2636 + $0x94] sm:$0xf]
        %v3235 = vld [vmem:[%s2636 + $0x98] sm:$0x1]
        %v3236 = vld [vmem:[%s2636 + $0x9c] sm:$0xe]
        %v3237 = vld [vmem:[%s2636 + $0xa0] sm:$0xf]
        %v3238 = vld [vmem:[%s2636 + $0xa4] sm:$0x1]
        %v3239 = vld [vmem:[%s2636 + $0xa8] sm:$0xe]
        %v3240 = vld [vmem:[%s2636 + $0xac] sm:$0xf]
        %v3241 = vld [vmem:[%s2636 + $0xb0] sm:$0x1]
        %v3242 = vld [vmem:[%s2636 + $0xb4] sm:$0xe]
        %v3243 = vld [vmem:[%s2636 + $0xb8] sm:$0xf]
        %v3244 = vld [vmem:[%s2636 + $0xbc] sm:$0x1]
        %v3293 = vrot.slane %v3197, 5
        %v3294 = vrot.slane %v3293, 4
        %v3295 = vrot.slane %v3198, 5
        %v3296 = vsel %vm1627, %v3294, %v3295
        %v3297 = vrot.slane %v3295, 4
        %v3298 = vrot.slane %v3199, 5
        %v3299 = vsel %vm1627, %v3297, %v3298
        %v3300 = vrot.slane %v3200, 5
        %v3301 = vrot.slane %v3300, 4
        %v3302 = vrot.slane %v3201, 5
        %v3303 = vsel %vm1627, %v3301, %v3302
        %v3304 = vrot.slane %v3302, 4
        %v3305 = vrot.slane %v3202, 5
        %v3306 = vsel %vm1627, %v3304, %v3305
        %v3307 = vrot.slane %v3203, 5
        %v3308 = vrot.slane %v3307, 4
        %v3309 = vrot.slane %v3204, 5
        %v3310 = vsel %vm1627, %v3308, %v3309
        %v3311 = vrot.slane %v3309, 4
        %v3312 = vrot.slane %v3205, 5
        %v3313 = vsel %vm1627, %v3311, %v3312
        %v3314 = vrot.slane %v3206, 5
        %v3315 = vrot.slane %v3314, 4
        %v3316 = vrot.slane %v3207, 5
        %v3317 = vsel %vm1627, %v3315, %v3316
        %v3318 = vrot.slane %v3316, 4
        %v3319 = vrot.slane %v3208, 5
        %v3320 = vsel %vm1627, %v3318, %v3319
        %v3321 = vrot.slane %v3209, 5
        %v3322 = vrot.slane %v3321, 4
        %v3323 = vrot.slane %v3210, 5
        %v3324 = vsel %vm1627, %v3322, %v3323
        %v3325 = vrot.slane %v3323, 4
        %v3326 = vrot.slane %v3211, 5
        %v3327 = vsel %vm1627, %v3325, %v3326
        %v3328 = vrot.slane %v3212, 5
        %v3329 = vrot.slane %v3328, 4
        %v3330 = vrot.slane %v3213, 5
        %v3331 = vsel %vm1627, %v3329, %v3330
        %v3332 = vrot.slane %v3330, 4
        %v3333 = vrot.slane %v3214, 5
        %v3334 = vsel %vm1627, %v3332, %v3333
        %v3335 = vrot.slane %v3215, 5
        %v3336 = vrot.slane %v3335, 4
        %v3337 = vrot.slane %v3216, 5
        %v3338 = vsel %vm1627, %v3336, %v3337
        %v3339 = vrot.slane %v3337, 4
        %v3340 = vrot.slane %v3217, 5
        %v3341 = vsel %vm1627, %v3339, %v3340
        %v3342 = vrot.slane %v3218, 5
        %v3343 = vrot.slane %v3342, 4
        %v3344 = vrot.slane %v3219, 5
        %v3345 = vsel %vm1627, %v3343, %v3344
        %v3346 = vrot.slane %v3344, 4
        %v3347 = vrot.slane %v3220, 5
        %v3348 = vsel %vm1627, %v3346, %v3347
        %v3349 = vrot.slane %v3221, 5
        %v3350 = vrot.slane %v3349, 4
        %v3351 = vrot.slane %v3222, 5
        %v3352 = vsel %vm1627, %v3350, %v3351
        %v3353 = vrot.slane %v3351, 4
        %v3354 = vrot.slane %v3223, 5
        %v3355 = vsel %vm1627, %v3353, %v3354
        %v3356 = vrot.slane %v3224, 5
        %v3357 = vrot.slane %v3356, 4
        %v3358 = vrot.slane %v3225, 5
        %v3359 = vsel %vm1627, %v3357, %v3358
        %v3360 = vrot.slane %v3358, 4
        %v3361 = vrot.slane %v3226, 5
        %v3362 = vsel %vm1627, %v3360, %v3361
        %v3363 = vrot.slane %v3227, 5
        %v3364 = vrot.slane %v3363, 4
        %v3365 = vrot.slane %v3228, 5
        %v3366 = vsel %vm1627, %v3364, %v3365
        %v3367 = vrot.slane %v3365, 4
        %v3368 = vrot.slane %v3229, 5
        %v3369 = vsel %vm1627, %v3367, %v3368
        %v3370 = vrot.slane %v3230, 5
        %v3371 = vrot.slane %v3370, 4
        %v3372 = vrot.slane %v3231, 5
        %v3373 = vsel %vm1627, %v3371, %v3372
        %v3374 = vrot.slane %v3372, 4
        %v3375 = vrot.slane %v3232, 5
        %v3376 = vsel %vm1627, %v3374, %v3375
        %v3377 = vrot.slane %v3233, 5
        %v3378 = vrot.slane %v3377, 4
        %v3379 = vrot.slane %v3234, 5
        %v3380 = vsel %vm1627, %v3378, %v3379
        %v3381 = vrot.slane %v3379, 4
        %v3382 = vrot.slane %v3235, 5
        %v3383 = vsel %vm1627, %v3381, %v3382
        %v3384 = vrot.slane %v3236, 5
        %v3385 = vrot.slane %v3384, 4
        %v3386 = vrot.slane %v3237, 5
        %v3387 = vsel %vm1627, %v3385, %v3386
        %v3388 = vrot.slane %v3386, 4
        %v3389 = vrot.slane %v3238, 5
        %v3390 = vsel %vm1627, %v3388, %v3389
        %v3391 = vrot.slane %v3239, 5
        %v3392 = vrot.slane %v3391, 4
        %v3393 = vrot.slane %v3240, 5
        %v3394 = vsel %vm1627, %v3392, %v3393
        %v3395 = vrot.slane %v3393, 4
        %v3396 = vrot.slane %v3241, 5
        %v3397 = vsel %vm1627, %v3395, %v3396
        %v3398 = vrot.slane %v3242, 5
        %v3399 = vrot.slane %v3398, 4
        %v3400 = vrot.slane %v3243, 5
        %v3401 = vsel %vm1627, %v3399, %v3400
        %v3402 = vrot.slane %v3400, 4
        %v3403 = vrot.slane %v3244, 5
        %v3404 = vsel %vm1627, %v3402, %v3403
        %3437 = vst [vmem:[#allocation3 + $0x20] sm:$0xf] %v3296
        %3438 = vst [vmem:[#allocation3 + $0x44] sm:$0xf] %v3299
        %3439 = vst [vmem:[#allocation3 + $0x68] sm:$0xf] %v3303
        %3440 = vst [vmem:[#allocation3 + $0x8c] sm:$0xf] %v3306
        %3441 = vst [vmem:[#allocation3 + $0xb0] sm:$0xf] %v3310
        %3442 = vst [vmem:[#allocation3 + $0xd4] sm:$0xf] %v3313
        %3443 = vst [vmem:[#allocation3 + $0xf8] sm:$0xf] %v3317
        %3444 = vst [vmem:[#allocation3 + $0x11c] sm:$0xf] %v3320
        %3445 = vst [vmem:[#allocation3 + $0x140] sm:$0xf] %v3324
        %3446 = vst [vmem:[#allocation3 + $0x164] sm:$0xf] %v3327
        %3447 = vst [vmem:[#allocation3 + $0x188] sm:$0xf] %v3331
        %3448 = vst [vmem:[#allocation3 + $0x1ac] sm:$0xf] %v3334
        %3449 = vst [vmem:[#allocation3 + $0x1d0] sm:$0xf] %v3338
        %3450 = vst [vmem:[#allocation3 + $0x1f4] sm:$0xf] %v3341
        %3451 = vst [vmem:[#allocation3 + $0x218] sm:$0xf] %v3345
        %3452 = vst [vmem:[#allocation3 + $0x23c] sm:$0xf] %v3348
        %3453 = vst [vmem:[#allocation3 + $0x260] sm:$0xf] %v3352
        %3454 = vst [vmem:[#allocation3 + $0x284] sm:$0xf] %v3355
        %3455 = vst [vmem:[#allocation3 + $0x2a8] sm:$0xf] %v3359
        %3456 = vst [vmem:[#allocation3 + $0x2cc] sm:$0xf] %v3362
        %3457 = vst [vmem:[#allocation3 + $0x2f0] sm:$0xf] %v3366
        %3458 = vst [vmem:[#allocation3 + $0x314] sm:$0xf] %v3369
        %3459 = vst [vmem:[#allocation3 + $0x338] sm:$0xf] %v3373
        %3460 = vst [vmem:[#allocation3 + $0x35c] sm:$0xf] %v3376
        %3461 = vst [vmem:[#allocation3 + $0x380] sm:$0xf] %v3380
        %3462 = vst [vmem:[#allocation3 + $0x3a4] sm:$0xf] %v3383
        %3463 = vst [vmem:[#allocation3 + $0x3c8] sm:$0xf] %v3387
        %3464 = vst [vmem:[#allocation3 + $0x3ec] sm:$0xf] %v3390
        %3465 = vst [vmem:[#allocation3 + $0x410] sm:$0xf] %v3394
        %3466 = vst [vmem:[#allocation3 + $0x434] sm:$0xf] %v3397
        %3467 = vst [vmem:[#allocation3 + $0x458] sm:$0xf] %v3401
        %3468 = vst [vmem:[#allocation3 + $0x47c] sm:$0xf] %v3404
        %v3469 = vld [vmem:[#allocation3] sm:$0xff]
        %v3470 = vld [vmem:[#allocation3 + $0x8] sm:$0xff]
        %v3471 = vld [vmem:[#allocation3 + $0x10] sm:$0xff]
        %v3472 = vld [vmem:[#allocation3 + $0x18] sm:$0xff]
        %v3473 = vld [vmem:[#allocation3 + $0x20] sm:$0xf]
        %v3474 = vld [vmem:[#allocation3 + $0x24] sm:$0xff]
        %v3475 = vld [vmem:[#allocation3 + $0x2c] sm:$0xff]
        %v3476 = vld [vmem:[#allocation3 + $0x34] sm:$0xff]
        %v3477 = vld [vmem:[#allocation3 + $0x3c] sm:$0xff]
        %v3478 = vld [vmem:[#allocation3 + $0x44] sm:$0xf]
        %v3479 = vld [vmem:[#allocation3 + $0x48] sm:$0xff]
        %v3480 = vld [vmem:[#allocation3 + $0x50] sm:$0xff]
        %v3481 = vld [vmem:[#allocation3 + $0x58] sm:$0xff]
        %v3482 = vld [vmem:[#allocation3 + $0x60] sm:$0xff]
        %v3483 = vld [vmem:[#allocation3 + $0x68] sm:$0xf]
        %v3484 = vld [vmem:[#allocation3 + $0x6c] sm:$0xff]
        %v3485 = vld [vmem:[#allocation3 + $0x74] sm:$0xff]
        %v3486 = vld [vmem:[#allocation3 + $0x7c] sm:$0xff]
        %v3487 = vld [vmem:[#allocation3 + $0x84] sm:$0xff]
        %v3488 = vld [vmem:[#allocation3 + $0x8c] sm:$0xf]
        %v3489 = vld [vmem:[#allocation3 + $0x90] sm:$0xff]
        %v3490 = vld [vmem:[#allocation3 + $0x98] sm:$0xff]
        %v3491 = vld [vmem:[#allocation3 + $0xa0] sm:$0xff]
        %v3492 = vld [vmem:[#allocation3 + $0xa8] sm:$0xff]
        %v3493 = vld [vmem:[#allocation3 + $0xb0] sm:$0xf]
        %v3494 = vld [vmem:[#allocation3 + $0xb4] sm:$0xff]
        %v3495 = vld [vmem:[#allocation3 + $0xbc] sm:$0xff]
        %v3496 = vld [vmem:[#allocation3 + $0xc4] sm:$0xff]
        %v3497 = vld [vmem:[#allocation3 + $0xcc] sm:$0xff]
        %v3498 = vld [vmem:[#allocation3 + $0xd4] sm:$0xf]
        %v3499 = vld [vmem:[#allocation3 + $0xd8] sm:$0xff]
        %v3500 = vld [vmem:[#allocation3 + $0xe0] sm:$0xff]
        %v3501 = vld [vmem:[#allocation3 + $0xe8] sm:$0xff]
        %v3502 = vld [vmem:[#allocation3 + $0xf0] sm:$0xff]
        %v3503 = vld [vmem:[#allocation3 + $0xf8] sm:$0xf]
        %v3504 = vld [vmem:[#allocation3 + $0xfc] sm:$0xff]
        %v3505 = vld [vmem:[#allocation3 + $0x104] sm:$0xff]
        %v3506 = vld [vmem:[#allocation3 + $0x10c] sm:$0xff]
        %v3507 = vld [vmem:[#allocation3 + $0x114] sm:$0xff]
        %v3508 = vld [vmem:[#allocation3 + $0x11c] sm:$0xf]
        %v3509 = vld [vmem:[#allocation3 + $0x120] sm:$0xff]
        %v3510 = vld [vmem:[#allocation3 + $0x128] sm:$0xff]
        %v3511 = vld [vmem:[#allocation3 + $0x130] sm:$0xff]
        %v3512 = vld [vmem:[#allocation3 + $0x138] sm:$0xff]
        %v3513 = vld [vmem:[#allocation3 + $0x140] sm:$0xf]
        %v3514 = vld [vmem:[#allocation3 + $0x144] sm:$0xff]
        %v3515 = vld [vmem:[#allocation3 + $0x14c] sm:$0xff]
        %v3516 = vld [vmem:[#allocation3 + $0x154] sm:$0xff]
        %v3517 = vld [vmem:[#allocation3 + $0x15c] sm:$0xff]
        %v3518 = vld [vmem:[#allocation3 + $0x164] sm:$0xf]
        %v3519 = vld [vmem:[#allocation3 + $0x168] sm:$0xff]
        %v3520 = vld [vmem:[#allocation3 + $0x170] sm:$0xff]
        %v3521 = vld [vmem:[#allocation3 + $0x178] sm:$0xff]
        %v3522 = vld [vmem:[#allocation3 + $0x180] sm:$0xff]
        %v3523 = vld [vmem:[#allocation3 + $0x188] sm:$0xf]
        %v3524 = vld [vmem:[#allocation3 + $0x18c] sm:$0xff]
        %v3525 = vld [vmem:[#allocation3 + $0x194] sm:$0xff]
        %v3526 = vld [vmem:[#allocation3 + $0x19c] sm:$0xff]
        %v3527 = vld [vmem:[#allocation3 + $0x1a4] sm:$0xff]
        %v3528 = vld [vmem:[#allocation3 + $0x1ac] sm:$0xf]
        %v3529 = vld [vmem:[#allocation3 + $0x1b0] sm:$0xff]
        %v3530 = vld [vmem:[#allocation3 + $0x1b8] sm:$0xff]
        %v3531 = vld [vmem:[#allocation3 + $0x1c0] sm:$0xff]
        %v3532 = vld [vmem:[#allocation3 + $0x1c8] sm:$0xff]
        %v3533 = vld [vmem:[#allocation3 + $0x1d0] sm:$0xf]
        %v3534 = vld [vmem:[#allocation3 + $0x1d4] sm:$0xff]
        %v3535 = vld [vmem:[#allocation3 + $0x1dc] sm:$0xff]
        %v3536 = vld [vmem:[#allocation3 + $0x1e4] sm:$0xff]
        %v3537 = vld [vmem:[#allocation3 + $0x1ec] sm:$0xff]
        %v3538 = vld [vmem:[#allocation3 + $0x1f4] sm:$0xf]
        %v3539 = vld [vmem:[#allocation3 + $0x1f8] sm:$0xff]
        %v3540 = vld [vmem:[#allocation3 + $0x200] sm:$0xff]
        %v3541 = vld [vmem:[#allocation3 + $0x208] sm:$0xff]
        %v3542 = vld [vmem:[#allocation3 + $0x210] sm:$0xff]
        %v3543 = vld [vmem:[#allocation3 + $0x218] sm:$0xf]
        %v3544 = vld [vmem:[#allocation3 + $0x21c] sm:$0xff]
        %v3545 = vld [vmem:[#allocation3 + $0x224] sm:$0xff]
        %v3546 = vld [vmem:[#allocation3 + $0x22c] sm:$0xff]
        %v3547 = vld [vmem:[#allocation3 + $0x234] sm:$0xff]
        %v3548 = vld [vmem:[#allocation3 + $0x23c] sm:$0xf]
        %v3549 = vld [vmem:[#allocation3 + $0x240] sm:$0xff]
        %v3550 = vld [vmem:[#allocation3 + $0x248] sm:$0xff]
        %v3551 = vld [vmem:[#allocation3 + $0x250] sm:$0xff]
        %v3552 = vld [vmem:[#allocation3 + $0x258] sm:$0xff]
        %v3553 = vld [vmem:[#allocation3 + $0x260] sm:$0xf]
        %v3554 = vld [vmem:[#allocation3 + $0x264] sm:$0xff]
        %v3555 = vld [vmem:[#allocation3 + $0x26c] sm:$0xff]
        %v3556 = vld [vmem:[#allocation3 + $0x274] sm:$0xff]
        %v3557 = vld [vmem:[#allocation3 + $0x27c] sm:$0xff]
        %v3558 = vld [vmem:[#allocation3 + $0x284] sm:$0xf]
        %v3559 = vld [vmem:[#allocation3 + $0x288] sm:$0xff]
        %v3560 = vld [vmem:[#allocation3 + $0x290] sm:$0xff]
        %v3561 = vld [vmem:[#allocation3 + $0x298] sm:$0xff]
        %v3562 = vld [vmem:[#allocation3 + $0x2a0] sm:$0xff]
        %v3563 = vld [vmem:[#allocation3 + $0x2a8] sm:$0xf]
        %v3564 = vld [vmem:[#allocation3 + $0x2ac] sm:$0xff]
        %v3565 = vld [vmem:[#allocation3 + $0x2b4] sm:$0xff]
        %v3566 = vld [vmem:[#allocation3 + $0x2bc] sm:$0xff]
        %v3567 = vld [vmem:[#allocation3 + $0x2c4] sm:$0xff]
        %v3568 = vld [vmem:[#allocation3 + $0x2cc] sm:$0xf]
        %v3569 = vld [vmem:[#allocation3 + $0x2d0] sm:$0xff]
        %v3570 = vld [vmem:[#allocation3 + $0x2d8] sm:$0xff]
        %v3571 = vld [vmem:[#allocation3 + $0x2e0] sm:$0xff]
        %v3572 = vld [vmem:[#allocation3 + $0x2e8] sm:$0xff]
        %v3573 = vld [vmem:[#allocation3 + $0x2f0] sm:$0xf]
        %v3574 = vld [vmem:[#allocation3 + $0x2f4] sm:$0xff]
        %v3575 = vld [vmem:[#allocation3 + $0x2fc] sm:$0xff]
        %v3576 = vld [vmem:[#allocation3 + $0x304] sm:$0xff]
        %v3577 = vld [vmem:[#allocation3 + $0x30c] sm:$0xff]
        %v3578 = vld [vmem:[#allocation3 + $0x314] sm:$0xf]
        %v3579 = vld [vmem:[#allocation3 + $0x318] sm:$0xff]
        %v3580 = vld [vmem:[#allocation3 + $0x320] sm:$0xff]
        %v3581 = vld [vmem:[#allocation3 + $0x328] sm:$0xff]
        %v3582 = vld [vmem:[#allocation3 + $0x330] sm:$0xff]
        %v3583 = vld [vmem:[#allocation3 + $0x338] sm:$0xf]
        %v3584 = vld [vmem:[#allocation3 + $0x33c] sm:$0xff]
        %v3585 = vld [vmem:[#allocation3 + $0x344] sm:$0xff]
        %v3586 = vld [vmem:[#allocation3 + $0x34c] sm:$0xff]
        %v3587 = vld [vmem:[#allocation3 + $0x354] sm:$0xff]
        %v3588 = vld [vmem:[#allocation3 + $0x35c] sm:$0xf]
        %v3589 = vld [vmem:[#allocation3 + $0x360] sm:$0xff]
        %v3590 = vld [vmem:[#allocation3 + $0x368] sm:$0xff]
        %v3591 = vld [vmem:[#allocation3 + $0x370] sm:$0xff]
        %v3592 = vld [vmem:[#allocation3 + $0x378] sm:$0xff]
        %v3593 = vld [vmem:[#allocation3 + $0x380] sm:$0xf]
        %v3594 = vld [vmem:[#allocation3 + $0x384] sm:$0xff]
        %v3595 = vld [vmem:[#allocation3 + $0x38c] sm:$0xff]
        %v3596 = vld [vmem:[#allocation3 + $0x394] sm:$0xff]
        %v3597 = vld [vmem:[#allocation3 + $0x39c] sm:$0xff]
        %v3598 = vld [vmem:[#allocation3 + $0x3a4] sm:$0xf]
        %v3599 = vld [vmem:[#allocation3 + $0x3a8] sm:$0xff]
        %v3600 = vld [vmem:[#allocation3 + $0x3b0] sm:$0xff]
        %v3601 = vld [vmem:[#allocation3 + $0x3b8] sm:$0xff]
        %v3602 = vld [vmem:[#allocation3 + $0x3c0] sm:$0xff]
        %v3603 = vld [vmem:[#allocation3 + $0x3c8] sm:$0xf]
        %v3604 = vld [vmem:[#allocation3 + $0x3cc] sm:$0xff]
        %v3605 = vld [vmem:[#allocation3 + $0x3d4] sm:$0xff]
        %v3606 = vld [vmem:[#allocation3 + $0x3dc] sm:$0xff]
        %v3607 = vld [vmem:[#allocation3 + $0x3e4] sm:$0xff]
        %v3608 = vld [vmem:[#allocation3 + $0x3ec] sm:$0xf]
        %v3609 = vld [vmem:[#allocation3 + $0x3f0] sm:$0xff]
        %v3610 = vld [vmem:[#allocation3 + $0x3f8] sm:$0xff]
        %v3611 = vld [vmem:[#allocation3 + $0x400] sm:$0xff]
        %v3612 = vld [vmem:[#allocation3 + $0x408] sm:$0xff]
        %v3613 = vld [vmem:[#allocation3 + $0x410] sm:$0xf]
        %v3614 = vld [vmem:[#allocation3 + $0x414] sm:$0xff]
        %v3615 = vld [vmem:[#allocation3 + $0x41c] sm:$0xff]
        %v3616 = vld [vmem:[#allocation3 + $0x424] sm:$0xff]
        %v3617 = vld [vmem:[#allocation3 + $0x42c] sm:$0xff]
        %v3618 = vld [vmem:[#allocation3 + $0x434] sm:$0xf]
        %v3619 = vld [vmem:[#allocation3 + $0x438] sm:$0xff]
        %v3620 = vld [vmem:[#allocation3 + $0x440] sm:$0xff]
        %v3621 = vld [vmem:[#allocation3 + $0x448] sm:$0xff]
        %v3622 = vld [vmem:[#allocation3 + $0x450] sm:$0xff]
        %v3623 = vld [vmem:[#allocation3 + $0x458] sm:$0xf]
        %v3624 = vld [vmem:[#allocation3 + $0x45c] sm:$0xff]
        %v3625 = vld [vmem:[#allocation3 + $0x464] sm:$0xff]
        %v3626 = vld [vmem:[#allocation3 + $0x46c] sm:$0xff]
        %v3627 = vld [vmem:[#allocation3 + $0x474] sm:$0xff]
        %v3628 = vld [vmem:[#allocation3 + $0x47c] sm:$0xf]
        %v3629 = vld [vmem:[#allocation7] sm:$0xf]
        %v3630 = vld [vmem:[#allocation7 + $0x4] sm:$0xf]
        %v3631 = vld [vmem:[#allocation7 + $0x8] sm:$0xf]
        %v3632 = vld [vmem:[#allocation7 + $0xc] sm:$0xf]
        %v3633 = vld [vmem:[#allocation7 + $0x10] sm:$0xf]
        %v3634 = vld [vmem:[#allocation7 + $0x14] sm:$0xf]
        %v3635 = vld [vmem:[#allocation7 + $0x18] sm:$0xf]
        %v3636 = vld [vmem:[#allocation7 + $0x1c] sm:$0xf]
        %v3637 = vld [vmem:[#allocation7 + $0x20] sm:$0xf]
        %v3638 = vld [vmem:[#allocation7 + $0x24] sm:$0xf]
        %v3639 = vld [vmem:[#allocation7 + $0x28] sm:$0xf]
        %v3640 = vld [vmem:[#allocation7 + $0x2c] sm:$0xf]
        %v3641 = vld [vmem:[#allocation7 + $0x30] sm:$0xf]
        %v3642 = vld [vmem:[#allocation7 + $0x34] sm:$0xf]
        %v3643 = vld [vmem:[#allocation7 + $0x38] sm:$0xf]
        %v3644 = vld [vmem:[#allocation7 + $0x3c] sm:$0xf]
        %v3645 = vld [vmem:[#allocation7 + $0x40] sm:$0xf]
        %v3646 = vld [vmem:[#allocation7 + $0x44] sm:$0xf]
        %v3647 = vld [vmem:[#allocation7 + $0x48] sm:$0xf]
        %v3648 = vld [vmem:[#allocation7 + $0x4c] sm:$0xf]
        %v3649 = vld [vmem:[#allocation7 + $0x50] sm:$0xf]
        %v3650 = vld [vmem:[#allocation7 + $0x54] sm:$0xf]
        %v3651 = vld [vmem:[#allocation7 + $0x58] sm:$0xf]
        %v3652 = vld [vmem:[#allocation7 + $0x5c] sm:$0xf]
        %v3653 = vld [vmem:[#allocation7 + $0x60] sm:$0xf]
        %v3654 = vld [vmem:[#allocation7 + $0x64] sm:$0xf]
        %v3655 = vld [vmem:[#allocation7 + $0x68] sm:$0xf]
        %v3656 = vld [vmem:[#allocation7 + $0x6c] sm:$0xf]
        %v3657 = vld [vmem:[#allocation7 + $0x70] sm:$0xf]
        %v3658 = vld [vmem:[#allocation7 + $0x74] sm:$0xf]
        %v3659 = vld [vmem:[#allocation7 + $0x78] sm:$0xf]
        %v3660 = vld [vmem:[#allocation7 + $0x7c] sm:$0xf]
        %v3661 = vld [vmem:[#allocation7 + $0x80] sm:$0xf]
        %v3662 = vld [vmem:[#allocation7 + $0x84] sm:$0xf]
        %v3663 = vld [vmem:[#allocation7 + $0x88] sm:$0xf]
        %v3664 = vld [vmem:[#allocation7 + $0x8c] sm:$0xf]
        %v3665 = vld [vmem:[#allocation7 + $0x90] sm:$0xf]
        %v3666 = vld [vmem:[#allocation7 + $0x94] sm:$0xf]
        %v3667 = vld [vmem:[#allocation7 + $0x98] sm:$0xf]
        %v3668 = vld [vmem:[#allocation7 + $0x9c] sm:$0xf]
        %v3669 = vld [vmem:[#allocation7 + $0xa0] sm:$0xf]
        %v3670 = vld [vmem:[#allocation7 + $0xa4] sm:$0xf]
        %v3671 = vld [vmem:[#allocation7 + $0xa8] sm:$0xf]
        %v3672 = vld [vmem:[#allocation7 + $0xac] sm:$0xf]
        %v3673 = vld [vmem:[#allocation7 + $0xb0] sm:$0xf]
        %v3674 = vld [vmem:[#allocation7 + $0xb4] sm:$0xf]
        %v3675 = vld [vmem:[#allocation7 + $0xb8] sm:$0xf]
        %v3676 = vld [vmem:[#allocation7 + $0xbc] sm:$0xf]
        %v3677 = vld [vmem:[#allocation7 + $0xc0] sm:$0xf]
        %v3678 = vld [vmem:[#allocation7 + $0xc4] sm:$0xf]
        %v3679 = vld [vmem:[#allocation7 + $0xc8] sm:$0xf]
        %v3680 = vld [vmem:[#allocation7 + $0xcc] sm:$0xf]
        %v3681 = vld [vmem:[#allocation7 + $0xd0] sm:$0xf]
        %v3682 = vld [vmem:[#allocation7 + $0xd4] sm:$0xf]
        %v3683 = vld [vmem:[#allocation7 + $0xd8] sm:$0xf]
        %v3684 = vld [vmem:[#allocation7 + $0xdc] sm:$0xf]
        %v3685 = vld [vmem:[#allocation7 + $0xe0] sm:$0xf]
        %v3686 = vld [vmem:[#allocation7 + $0xe4] sm:$0xf]
        %v3687 = vld [vmem:[#allocation7 + $0xe8] sm:$0xf]
        %v3688 = vld [vmem:[#allocation7 + $0xec] sm:$0xf]
        %v3689 = vld [vmem:[#allocation7 + $0xf0] sm:$0xf]
        %v3690 = vld [vmem:[#allocation7 + $0xf4] sm:$0xf]
        %v3691 = vld [vmem:[#allocation7 + $0xf8] sm:$0xf]
        %v3692 = vld [vmem:[#allocation7 + $0xfc] sm:$0xf]
        %v3693 = vld [vmem:[#allocation7 + $0x100] sm:$0xf]
        %v3694 = vld [vmem:[#allocation7 + $0x104] sm:$0xf]
        %v3695 = vld [vmem:[#allocation7 + $0x108] sm:$0xf]
        %v3696 = vld [vmem:[#allocation7 + $0x10c] sm:$0xf]
        %v3697 = vld [vmem:[#allocation7 + $0x110] sm:$0xf]
        %v3698 = vld [vmem:[#allocation7 + $0x114] sm:$0xf]
        %v3699 = vld [vmem:[#allocation7 + $0x118] sm:$0xf]
        %v3700 = vld [vmem:[#allocation7 + $0x11c] sm:$0xf]
        %v3701 = vld [vmem:[#allocation7 + $0x120] sm:$0xf]
        %v3702 = vld [vmem:[#allocation7 + $0x124] sm:$0xf]
        %v3703 = vld [vmem:[#allocation7 + $0x128] sm:$0xf]
        %v3704 = vld [vmem:[#allocation7 + $0x12c] sm:$0xf]
        %v3705 = vld [vmem:[#allocation7 + $0x130] sm:$0xf]
        %v3706 = vld [vmem:[#allocation7 + $0x134] sm:$0xf]
        %v3707 = vld [vmem:[#allocation7 + $0x138] sm:$0xf]
        %v3708 = vld [vmem:[#allocation7 + $0x13c] sm:$0xf]
        %v3709 = vld [vmem:[#allocation7 + $0x140] sm:$0xf]
        %v3710 = vld [vmem:[#allocation7 + $0x144] sm:$0xf]
        %v3711 = vld [vmem:[#allocation7 + $0x148] sm:$0xf]
        %v3712 = vld [vmem:[#allocation7 + $0x14c] sm:$0xf]
        %v3713 = vld [vmem:[#allocation7 + $0x150] sm:$0xf]
        %v3714 = vld [vmem:[#allocation7 + $0x154] sm:$0xf]
        %v3715 = vld [vmem:[#allocation7 + $0x158] sm:$0xf]
        %v3716 = vld [vmem:[#allocation7 + $0x15c] sm:$0xf]
        %v3717 = vld [vmem:[#allocation7 + $0x160] sm:$0xf]
        %v3718 = vld [vmem:[#allocation7 + $0x164] sm:$0xf]
        %v3719 = vld [vmem:[#allocation7 + $0x168] sm:$0xf]
        %v3720 = vld [vmem:[#allocation7 + $0x16c] sm:$0xf]
        %v3721 = vld [vmem:[#allocation7 + $0x170] sm:$0xf]
        %v3722 = vld [vmem:[#allocation7 + $0x174] sm:$0xf]
        %v3723 = vld [vmem:[#allocation7 + $0x178] sm:$0xf]
        %v3724 = vld [vmem:[#allocation7 + $0x17c] sm:$0xf]
        %v3725 = vld [vmem:[#allocation7 + $0x180] sm:$0xf]
        %v3726 = vld [vmem:[#allocation7 + $0x184] sm:$0xf]
        %v3727 = vld [vmem:[#allocation7 + $0x188] sm:$0xf]
        %v3728 = vld [vmem:[#allocation7 + $0x18c] sm:$0xf]
        %v3729 = vld [vmem:[#allocation7 + $0x190] sm:$0xf]
        %v3730 = vld [vmem:[#allocation7 + $0x194] sm:$0xf]
        %v3731 = vld [vmem:[#allocation7 + $0x198] sm:$0xf]
        %v3732 = vld [vmem:[#allocation7 + $0x19c] sm:$0xf]
        %v3733 = vld [vmem:[#allocation7 + $0x1a0] sm:$0xf]
        %v3734 = vld [vmem:[#allocation7 + $0x1a4] sm:$0xf]
        %v3735 = vld [vmem:[#allocation7 + $0x1a8] sm:$0xf]
        %v3736 = vld [vmem:[#allocation7 + $0x1ac] sm:$0xf]
        %v3737 = vld [vmem:[#allocation7 + $0x1b0] sm:$0xf]
        %v3738 = vld [vmem:[#allocation7 + $0x1b4] sm:$0xf]
        %v3739 = vld [vmem:[#allocation7 + $0x1b8] sm:$0xf]
        %v3740 = vld [vmem:[#allocation7 + $0x1bc] sm:$0xf]
        %v3741 = vld [vmem:[#allocation7 + $0x1c0] sm:$0xf]
        %v3742 = vld [vmem:[#allocation7 + $0x1c4] sm:$0xf]
        %v3743 = vld [vmem:[#allocation7 + $0x1c8] sm:$0xf]
        %v3744 = vld [vmem:[#allocation7 + $0x1cc] sm:$0xf]
        %v3745 = vld [vmem:[#allocation7 + $0x1d0] sm:$0xf]
        %v3746 = vld [vmem:[#allocation7 + $0x1d4] sm:$0xf]
        %v3747 = vld [vmem:[#allocation7 + $0x1d8] sm:$0xf]
        %v3748 = vld [vmem:[#allocation7 + $0x1dc] sm:$0xf]
        %v3749 = vld [vmem:[#allocation7 + $0x1e0] sm:$0xf]
        %v3750 = vld [vmem:[#allocation7 + $0x1e4] sm:$0xf]
        %v3751 = vld [vmem:[#allocation7 + $0x1e8] sm:$0xf]
        %v3752 = vld [vmem:[#allocation7 + $0x1ec] sm:$0xf]
        %v3753 = vld [vmem:[#allocation7 + $0x1f0] sm:$0xf]
        %v3754 = vld [vmem:[#allocation7 + $0x1f4] sm:$0xf]
        %v3755 = vld [vmem:[#allocation7 + $0x1f8] sm:$0xf]
        %v3756 = vld [vmem:[#allocation7 + $0x1fc] sm:$0xf]
        %v3757 = vld [vmem:[#allocation7 + $0x200] sm:$0xf]
        %v3758 = vld [vmem:[#allocation7 + $0x204] sm:$0xf]
        %v3759 = vld [vmem:[#allocation7 + $0x208] sm:$0xf]
        %v3760 = vld [vmem:[#allocation7 + $0x20c] sm:$0xf]
        %v3761 = vld [vmem:[#allocation7 + $0x210] sm:$0xf]
        %v3762 = vld [vmem:[#allocation7 + $0x214] sm:$0xf]
        %v3763 = vld [vmem:[#allocation7 + $0x218] sm:$0xf]
        %v3764 = vld [vmem:[#allocation7 + $0x21c] sm:$0xf]
        %v3765 = vld [vmem:[#allocation7 + $0x220] sm:$0xf]
        %v3766 = vld [vmem:[#allocation7 + $0x224] sm:$0xf]
        %v3767 = vld [vmem:[#allocation7 + $0x228] sm:$0xf]
        %v3768 = vld [vmem:[#allocation7 + $0x22c] sm:$0xf]
        %v3769 = vld [vmem:[#allocation7 + $0x230] sm:$0xf]
        %v3770 = vld [vmem:[#allocation7 + $0x234] sm:$0xf]
        %v3771 = vld [vmem:[#allocation7 + $0x238] sm:$0xf]
        %v3772 = vld [vmem:[#allocation7 + $0x23c] sm:$0xf]
        %v3933 = vunpack.c.l.b16 %v3469
        %v3934 = vunpack.c.h.b16 %v3469
        %v3935 = vunpack.c.l.b16 %v3470
        %v3936 = vunpack.c.h.b16 %v3470
        %v3937 = vunpack.c.l.b16 %v3471
        %v3938 = vunpack.c.h.b16 %v3471
        %v3939 = vunpack.c.l.b16 %v3472
        %v3940 = vunpack.c.h.b16 %v3472
        %v3941 = vunpack.c.l.b16 %v3473
        %v3942 = vunpack.c.l.b16 %v3474
        %v3943 = vunpack.c.h.b16 %v3474
        %v3944 = vunpack.c.l.b16 %v3475
        %v3945 = vunpack.c.h.b16 %v3475
        %v3946 = vunpack.c.l.b16 %v3476
        %v3947 = vunpack.c.h.b16 %v3476
        %v3948 = vunpack.c.l.b16 %v3477
        %v3949 = vunpack.c.h.b16 %v3477
        %v3950 = vunpack.c.l.b16 %v3478
        %v3951 = vunpack.c.l.b16 %v3479
        %v3952 = vunpack.c.h.b16 %v3479
        %v3953 = vunpack.c.l.b16 %v3480
        %v3954 = vunpack.c.h.b16 %v3480
        %v3955 = vunpack.c.l.b16 %v3481
        %v3956 = vunpack.c.h.b16 %v3481
        %v3957 = vunpack.c.l.b16 %v3482
        %v3958 = vunpack.c.h.b16 %v3482
        %v3959 = vunpack.c.l.b16 %v3483
        %v3960 = vunpack.c.l.b16 %v3484
        %v3961 = vunpack.c.h.b16 %v3484
        %v3962 = vunpack.c.l.b16 %v3485
        %v3963 = vunpack.c.h.b16 %v3485
        %v3964 = vunpack.c.l.b16 %v3486
        %v3965 = vunpack.c.h.b16 %v3486
        %v3966 = vunpack.c.l.b16 %v3487
        %v3967 = vunpack.c.h.b16 %v3487
        %v3968 = vunpack.c.l.b16 %v3488
        %v3969 = vunpack.c.l.b16 %v3489
        %v3970 = vunpack.c.h.b16 %v3489
        %v3971 = vunpack.c.l.b16 %v3490
        %v3972 = vunpack.c.h.b16 %v3490
        %v3973 = vunpack.c.l.b16 %v3491
        %v3974 = vunpack.c.h.b16 %v3491
        %v3975 = vunpack.c.l.b16 %v3492
        %v3976 = vunpack.c.h.b16 %v3492
        %v3977 = vunpack.c.l.b16 %v3493
        %v3978 = vunpack.c.l.b16 %v3494
        %v3979 = vunpack.c.h.b16 %v3494
        %v3980 = vunpack.c.l.b16 %v3495
        %v3981 = vunpack.c.h.b16 %v3495
        %v3982 = vunpack.c.l.b16 %v3496
        %v3983 = vunpack.c.h.b16 %v3496
        %v3984 = vunpack.c.l.b16 %v3497
        %v3985 = vunpack.c.h.b16 %v3497
        %v3986 = vunpack.c.l.b16 %v3498
        %v3987 = vunpack.c.l.b16 %v3499
        %v3988 = vunpack.c.h.b16 %v3499
        %v3989 = vunpack.c.l.b16 %v3500
        %v3990 = vunpack.c.h.b16 %v3500
        %v3991 = vunpack.c.l.b16 %v3501
        %v3992 = vunpack.c.h.b16 %v3501
        %v3993 = vunpack.c.l.b16 %v3502
        %v3994 = vunpack.c.h.b16 %v3502
        %v3995 = vunpack.c.l.b16 %v3503
        %v3996 = vunpack.c.l.b16 %v3504
        %v3997 = vunpack.c.h.b16 %v3504
        %v3998 = vunpack.c.l.b16 %v3505
        %v3999 = vunpack.c.h.b16 %v3505
        %v4000 = vunpack.c.l.b16 %v3506
        %v4001 = vunpack.c.h.b16 %v3506
        %v4002 = vunpack.c.l.b16 %v3507
        %v4003 = vunpack.c.h.b16 %v3507
        %v4004 = vunpack.c.l.b16 %v3508
        %v4005 = vunpack.c.l.b16 %v3509
        %v4006 = vunpack.c.h.b16 %v3509
        %v4007 = vunpack.c.l.b16 %v3510
        %v4008 = vunpack.c.h.b16 %v3510
        %v4009 = vunpack.c.l.b16 %v3511
        %v4010 = vunpack.c.h.b16 %v3511
        %v4011 = vunpack.c.l.b16 %v3512
        %v4012 = vunpack.c.h.b16 %v3512
        %v4013 = vunpack.c.l.b16 %v3513
        %v4014 = vunpack.c.l.b16 %v3514
        %v4015 = vunpack.c.h.b16 %v3514
        %v4016 = vunpack.c.l.b16 %v3515
        %v4017 = vunpack.c.h.b16 %v3515
        %v4018 = vunpack.c.l.b16 %v3516
        %v4019 = vunpack.c.h.b16 %v3516
        %v4020 = vunpack.c.l.b16 %v3517
        %v4021 = vunpack.c.h.b16 %v3517
        %v4022 = vunpack.c.l.b16 %v3518
        %v4023 = vunpack.c.l.b16 %v3519
        %v4024 = vunpack.c.h.b16 %v3519
        %v4025 = vunpack.c.l.b16 %v3520
        %v4026 = vunpack.c.h.b16 %v3520
        %v4027 = vunpack.c.l.b16 %v3521
        %v4028 = vunpack.c.h.b16 %v3521
        %v4029 = vunpack.c.l.b16 %v3522
        %v4030 = vunpack.c.h.b16 %v3522
        %v4031 = vunpack.c.l.b16 %v3523
        %v4032 = vunpack.c.l.b16 %v3524
        %v4033 = vunpack.c.h.b16 %v3524
        %v4034 = vunpack.c.l.b16 %v3525
        %v4035 = vunpack.c.h.b16 %v3525
        %v4036 = vunpack.c.l.b16 %v3526
        %v4037 = vunpack.c.h.b16 %v3526
        %v4038 = vunpack.c.l.b16 %v3527
        %v4039 = vunpack.c.h.b16 %v3527
        %v4040 = vunpack.c.l.b16 %v3528
        %v4041 = vunpack.c.l.b16 %v3529
        %v4042 = vunpack.c.h.b16 %v3529
        %v4043 = vunpack.c.l.b16 %v3530
        %v4044 = vunpack.c.h.b16 %v3530
        %v4045 = vunpack.c.l.b16 %v3531
        %v4046 = vunpack.c.h.b16 %v3531
        %v4047 = vunpack.c.l.b16 %v3532
        %v4048 = vunpack.c.h.b16 %v3532
        %v4049 = vunpack.c.l.b16 %v3533
        %v4050 = vunpack.c.l.b16 %v3534
        %v4051 = vunpack.c.h.b16 %v3534
        %v4052 = vunpack.c.l.b16 %v3535
        %v4053 = vunpack.c.h.b16 %v3535
        %v4054 = vunpack.c.l.b16 %v3536
        %v4055 = vunpack.c.h.b16 %v3536
        %v4056 = vunpack.c.l.b16 %v3537
        %v4057 = vunpack.c.h.b16 %v3537
        %v4058 = vunpack.c.l.b16 %v3538
        %v4059 = vunpack.c.l.b16 %v3539
        %v4060 = vunpack.c.h.b16 %v3539
        %v4061 = vunpack.c.l.b16 %v3540
        %v4062 = vunpack.c.h.b16 %v3540
        %v4063 = vunpack.c.l.b16 %v3541
        %v4064 = vunpack.c.h.b16 %v3541
        %v4065 = vunpack.c.l.b16 %v3542
        %v4066 = vunpack.c.h.b16 %v3542
        %v4067 = vunpack.c.l.b16 %v3543
        %v4068 = vunpack.c.l.b16 %v3544
        %v4069 = vunpack.c.h.b16 %v3544
        %v4070 = vunpack.c.l.b16 %v3545
        %v4071 = vunpack.c.h.b16 %v3545
        %v4072 = vunpack.c.l.b16 %v3546
        %v4073 = vunpack.c.h.b16 %v3546
        %v4074 = vunpack.c.l.b16 %v3547
        %v4075 = vunpack.c.h.b16 %v3547
        %v4076 = vunpack.c.l.b16 %v3548
        %v4077 = vunpack.c.l.b16 %v3549
        %v4078 = vunpack.c.h.b16 %v3549
        %v4079 = vunpack.c.l.b16 %v3550
        %v4080 = vunpack.c.h.b16 %v3550
        %v4081 = vunpack.c.l.b16 %v3551
        %v4082 = vunpack.c.h.b16 %v3551
        %v4083 = vunpack.c.l.b16 %v3552
        %v4084 = vunpack.c.h.b16 %v3552
        %v4085 = vunpack.c.l.b16 %v3553
        %v4086 = vunpack.c.l.b16 %v3554
        %v4087 = vunpack.c.h.b16 %v3554
        %v4088 = vunpack.c.l.b16 %v3555
        %v4089 = vunpack.c.h.b16 %v3555
        %v4090 = vunpack.c.l.b16 %v3556
        %v4091 = vunpack.c.h.b16 %v3556
        %v4092 = vunpack.c.l.b16 %v3557
        %v4093 = vunpack.c.h.b16 %v3557
        %v4094 = vunpack.c.l.b16 %v3558
        %v4095 = vunpack.c.l.b16 %v3559
        %v4096 = vunpack.c.h.b16 %v3559
        %v4097 = vunpack.c.l.b16 %v3560
        %v4098 = vunpack.c.h.b16 %v3560
        %v4099 = vunpack.c.l.b16 %v3561
        %v4100 = vunpack.c.h.b16 %v3561
        %v4101 = vunpack.c.l.b16 %v3562
        %v4102 = vunpack.c.h.b16 %v3562
        %v4103 = vunpack.c.l.b16 %v3563
        %v4104 = vunpack.c.l.b16 %v3564
        %v4105 = vunpack.c.h.b16 %v3564
        %v4106 = vunpack.c.l.b16 %v3565
        %v4107 = vunpack.c.h.b16 %v3565
        %v4108 = vunpack.c.l.b16 %v3566
        %v4109 = vunpack.c.h.b16 %v3566
        %v4110 = vunpack.c.l.b16 %v3567
        %v4111 = vunpack.c.h.b16 %v3567
        %v4112 = vunpack.c.l.b16 %v3568
        %v4113 = vunpack.c.l.b16 %v3569
        %v4114 = vunpack.c.h.b16 %v3569
        %v4115 = vunpack.c.l.b16 %v3570
        %v4116 = vunpack.c.h.b16 %v3570
        %v4117 = vunpack.c.l.b16 %v3571
        %v4118 = vunpack.c.h.b16 %v3571
        %v4119 = vunpack.c.l.b16 %v3572
        %v4120 = vunpack.c.h.b16 %v3572
        %v4121 = vunpack.c.l.b16 %v3573
        %v4122 = vunpack.c.l.b16 %v3574
        %v4123 = vunpack.c.h.b16 %v3574
        %v4124 = vunpack.c.l.b16 %v3575
        %v4125 = vunpack.c.h.b16 %v3575
        %v4126 = vunpack.c.l.b16 %v3576
        %v4127 = vunpack.c.h.b16 %v3576
        %v4128 = vunpack.c.l.b16 %v3577
        %v4129 = vunpack.c.h.b16 %v3577
        %v4130 = vunpack.c.l.b16 %v3578
        %v4131 = vunpack.c.l.b16 %v3579
        %v4132 = vunpack.c.h.b16 %v3579
        %v4133 = vunpack.c.l.b16 %v3580
        %v4134 = vunpack.c.h.b16 %v3580
        %v4135 = vunpack.c.l.b16 %v3581
        %v4136 = vunpack.c.h.b16 %v3581
        %v4137 = vunpack.c.l.b16 %v3582
        %v4138 = vunpack.c.h.b16 %v3582
        %v4139 = vunpack.c.l.b16 %v3583
        %v4140 = vunpack.c.l.b16 %v3584
        %v4141 = vunpack.c.h.b16 %v3584
        %v4142 = vunpack.c.l.b16 %v3585
        %v4143 = vunpack.c.h.b16 %v3585
        %v4144 = vunpack.c.l.b16 %v3586
        %v4145 = vunpack.c.h.b16 %v3586
        %v4146 = vunpack.c.l.b16 %v3587
        %v4147 = vunpack.c.h.b16 %v3587
        %v4148 = vunpack.c.l.b16 %v3588
        %v4149 = vunpack.c.l.b16 %v3589
        %v4150 = vunpack.c.h.b16 %v3589
        %v4151 = vunpack.c.l.b16 %v3590
        %v4152 = vunpack.c.h.b16 %v3590
        %v4153 = vunpack.c.l.b16 %v3591
        %v4154 = vunpack.c.h.b16 %v3591
        %v4155 = vunpack.c.l.b16 %v3592
        %v4156 = vunpack.c.h.b16 %v3592
        %v4157 = vunpack.c.l.b16 %v3593
        %v4158 = vunpack.c.l.b16 %v3594
        %v4159 = vunpack.c.h.b16 %v3594
        %v4160 = vunpack.c.l.b16 %v3595
        %v4161 = vunpack.c.h.b16 %v3595
        %v4162 = vunpack.c.l.b16 %v3596
        %v4163 = vunpack.c.h.b16 %v3596
        %v4164 = vunpack.c.l.b16 %v3597
        %v4165 = vunpack.c.h.b16 %v3597
        %v4166 = vunpack.c.l.b16 %v3598
        %v4167 = vunpack.c.l.b16 %v3599
        %v4168 = vunpack.c.h.b16 %v3599
        %v4169 = vunpack.c.l.b16 %v3600
        %v4170 = vunpack.c.h.b16 %v3600
        %v4171 = vunpack.c.l.b16 %v3601
        %v4172 = vunpack.c.h.b16 %v3601
        %v4173 = vunpack.c.l.b16 %v3602
        %v4174 = vunpack.c.h.b16 %v3602
        %v4175 = vunpack.c.l.b16 %v3603
        %v4176 = vunpack.c.l.b16 %v3604
        %v4177 = vunpack.c.h.b16 %v3604
        %v4178 = vunpack.c.l.b16 %v3605
        %v4179 = vunpack.c.h.b16 %v3605
        %v4180 = vunpack.c.l.b16 %v3606
        %v4181 = vunpack.c.h.b16 %v3606
        %v4182 = vunpack.c.l.b16 %v3607
        %v4183 = vunpack.c.h.b16 %v3607
        %v4184 = vunpack.c.l.b16 %v3608
        %v4185 = vunpack.c.l.b16 %v3609
        %v4186 = vunpack.c.h.b16 %v3609
        %v4187 = vunpack.c.l.b16 %v3610
        %v4188 = vunpack.c.h.b16 %v3610
        %v4189 = vunpack.c.l.b16 %v3611
        %v4190 = vunpack.c.h.b16 %v3611
        %v4191 = vunpack.c.l.b16 %v3612
        %v4192 = vunpack.c.h.b16 %v3612
        %v4193 = vunpack.c.l.b16 %v3613
        %v4194 = vunpack.c.l.b16 %v3614
        %v4195 = vunpack.c.h.b16 %v3614
        %v4196 = vunpack.c.l.b16 %v3615
        %v4197 = vunpack.c.h.b16 %v3615
        %v4198 = vunpack.c.l.b16 %v3616
        %v4199 = vunpack.c.h.b16 %v3616
        %v4200 = vunpack.c.l.b16 %v3617
        %v4201 = vunpack.c.h.b16 %v3617
        %v4202 = vunpack.c.l.b16 %v3618
        %v4203 = vunpack.c.l.b16 %v3619
        %v4204 = vunpack.c.h.b16 %v3619
        %v4205 = vunpack.c.l.b16 %v3620
        %v4206 = vunpack.c.h.b16 %v3620
        %v4207 = vunpack.c.l.b16 %v3621
        %v4208 = vunpack.c.h.b16 %v3621
        %v4209 = vunpack.c.l.b16 %v3622
        %v4210 = vunpack.c.h.b16 %v3622
        %v4211 = vunpack.c.l.b16 %v3623
        %v4212 = vunpack.c.l.b16 %v3624
        %v4213 = vunpack.c.h.b16 %v3624
        %v4214 = vunpack.c.l.b16 %v3625
        %v4215 = vunpack.c.h.b16 %v3625
        %v4216 = vunpack.c.l.b16 %v3626
        %v4217 = vunpack.c.h.b16 %v3626
        %v4218 = vunpack.c.l.b16 %v3627
        %v4219 = vunpack.c.h.b16 %v3627
        %v4220 = vunpack.c.l.b16 %v3628
        %v4221 = vpack.c.b16 %v3942, %v3933
        %v4222 = vpack.c.b16 %v3943, %v3934
        %v4223 = vpack.c.b16 %v3944, %v3935
        %v4224 = vpack.c.b16 %v3945, %v3936
        %v4225 = vpack.c.b16 %v3946, %v3937
        %v4226 = vpack.c.b16 %v3947, %v3938
        %v4227 = vpack.c.b16 %v3948, %v3939
        %v4228 = vpack.c.b16 %v3949, %v3940
        %v4229 = vpack.c.b16 %v3950, %v3941
        %v4230 = vpack.c.b16 %v3960, %v3951
        %v4231 = vpack.c.b16 %v3961, %v3952
        %v4232 = vpack.c.b16 %v3962, %v3953
        %v4233 = vpack.c.b16 %v3963, %v3954
        %v4234 = vpack.c.b16 %v3964, %v3955
        %v4235 = vpack.c.b16 %v3965, %v3956
        %v4236 = vpack.c.b16 %v3966, %v3957
        %v4237 = vpack.c.b16 %v3967, %v3958
        %v4238 = vpack.c.b16 %v3968, %v3959
        %v4239 = vpack.c.b16 %v3978, %v3969
        %v4240 = vpack.c.b16 %v3979, %v3970
        %v4241 = vpack.c.b16 %v3980, %v3971
        %v4242 = vpack.c.b16 %v3981, %v3972
        %v4243 = vpack.c.b16 %v3982, %v3973
        %v4244 = vpack.c.b16 %v3983, %v3974
        %v4245 = vpack.c.b16 %v3984, %v3975
        %v4246 = vpack.c.b16 %v3985, %v3976
        %v4247 = vpack.c.b16 %v3986, %v3977
        %v4248 = vpack.c.b16 %v3996, %v3987
        %v4249 = vpack.c.b16 %v3997, %v3988
        %v4250 = vpack.c.b16 %v3998, %v3989
        %v4251 = vpack.c.b16 %v3999, %v3990
        %v4252 = vpack.c.b16 %v4000, %v3991
        %v4253 = vpack.c.b16 %v4001, %v3992
        %v4254 = vpack.c.b16 %v4002, %v3993
        %v4255 = vpack.c.b16 %v4003, %v3994
        %v4256 = vpack.c.b16 %v4004, %v3995
        %v4257 = vpack.c.b16 %v4014, %v4005
        %v4258 = vpack.c.b16 %v4015, %v4006
        %v4259 = vpack.c.b16 %v4016, %v4007
        %v4260 = vpack.c.b16 %v4017, %v4008
        %v4261 = vpack.c.b16 %v4018, %v4009
        %v4262 = vpack.c.b16 %v4019, %v4010
        %v4263 = vpack.c.b16 %v4020, %v4011
        %v4264 = vpack.c.b16 %v4021, %v4012
        %v4265 = vpack.c.b16 %v4022, %v4013
        %v4266 = vpack.c.b16 %v4032, %v4023
        %v4267 = vpack.c.b16 %v4033, %v4024
        %v4268 = vpack.c.b16 %v4034, %v4025
        %v4269 = vpack.c.b16 %v4035, %v4026
        %v4270 = vpack.c.b16 %v4036, %v4027
        %v4271 = vpack.c.b16 %v4037, %v4028
        %v4272 = vpack.c.b16 %v4038, %v4029
        %v4273 = vpack.c.b16 %v4039, %v4030
        %v4274 = vpack.c.b16 %v4040, %v4031
        %v4275 = vpack.c.b16 %v4050, %v4041
        %v4276 = vpack.c.b16 %v4051, %v4042
        %v4277 = vpack.c.b16 %v4052, %v4043
        %v4278 = vpack.c.b16 %v4053, %v4044
        %v4279 = vpack.c.b16 %v4054, %v4045
        %v4280 = vpack.c.b16 %v4055, %v4046
        %v4281 = vpack.c.b16 %v4056, %v4047
        %v4282 = vpack.c.b16 %v4057, %v4048
        %v4283 = vpack.c.b16 %v4058, %v4049
        %v4284 = vpack.c.b16 %v4068, %v4059
        %v4285 = vpack.c.b16 %v4069, %v4060
        %v4286 = vpack.c.b16 %v4070, %v4061
        %v4287 = vpack.c.b16 %v4071, %v4062
        %v4288 = vpack.c.b16 %v4072, %v4063
        %v4289 = vpack.c.b16 %v4073, %v4064
        %v4290 = vpack.c.b16 %v4074, %v4065
        %v4291 = vpack.c.b16 %v4075, %v4066
        %v4292 = vpack.c.b16 %v4076, %v4067
        %v4293 = vpack.c.b16 %v4086, %v4077
        %v4294 = vpack.c.b16 %v4087, %v4078
        %v4295 = vpack.c.b16 %v4088, %v4079
        %v4296 = vpack.c.b16 %v4089, %v4080
        %v4297 = vpack.c.b16 %v4090, %v4081
        %v4298 = vpack.c.b16 %v4091, %v4082
        %v4299 = vpack.c.b16 %v4092, %v4083
        %v4300 = vpack.c.b16 %v4093, %v4084
        %v4301 = vpack.c.b16 %v4094, %v4085
        %v4302 = vpack.c.b16 %v4104, %v4095
        %v4303 = vpack.c.b16 %v4105, %v4096
        %v4304 = vpack.c.b16 %v4106, %v4097
        %v4305 = vpack.c.b16 %v4107, %v4098
        %v4306 = vpack.c.b16 %v4108, %v4099
        %v4307 = vpack.c.b16 %v4109, %v4100
        %v4308 = vpack.c.b16 %v4110, %v4101
        %v4309 = vpack.c.b16 %v4111, %v4102
        %v4310 = vpack.c.b16 %v4112, %v4103
        %v4311 = vpack.c.b16 %v4122, %v4113
        %v4312 = vpack.c.b16 %v4123, %v4114
        %v4313 = vpack.c.b16 %v4124, %v4115
        %v4314 = vpack.c.b16 %v4125, %v4116
        %v4315 = vpack.c.b16 %v4126, %v4117
        %v4316 = vpack.c.b16 %v4127, %v4118
        %v4317 = vpack.c.b16 %v4128, %v4119
        %v4318 = vpack.c.b16 %v4129, %v4120
        %v4319 = vpack.c.b16 %v4130, %v4121
        %v4320 = vpack.c.b16 %v4140, %v4131
        %v4321 = vpack.c.b16 %v4141, %v4132
        %v4322 = vpack.c.b16 %v4142, %v4133
        %v4323 = vpack.c.b16 %v4143, %v4134
        %v4324 = vpack.c.b16 %v4144, %v4135
        %v4325 = vpack.c.b16 %v4145, %v4136
        %v4326 = vpack.c.b16 %v4146, %v4137
        %v4327 = vpack.c.b16 %v4147, %v4138
        %v4328 = vpack.c.b16 %v4148, %v4139
        %v4329 = vpack.c.b16 %v4158, %v4149
        %v4330 = vpack.c.b16 %v4159, %v4150
        %v4331 = vpack.c.b16 %v4160, %v4151
        %v4332 = vpack.c.b16 %v4161, %v4152
        %v4333 = vpack.c.b16 %v4162, %v4153
        %v4334 = vpack.c.b16 %v4163, %v4154
        %v4335 = vpack.c.b16 %v4164, %v4155
        %v4336 = vpack.c.b16 %v4165, %v4156
        %v4337 = vpack.c.b16 %v4166, %v4157
        %v4338 = vpack.c.b16 %v4176, %v4167
        %v4339 = vpack.c.b16 %v4177, %v4168
        %v4340 = vpack.c.b16 %v4178, %v4169
        %v4341 = vpack.c.b16 %v4179, %v4170
        %v4342 = vpack.c.b16 %v4180, %v4171
        %v4343 = vpack.c.b16 %v4181, %v4172
        %v4344 = vpack.c.b16 %v4182, %v4173
        %v4345 = vpack.c.b16 %v4183, %v4174
        %v4346 = vpack.c.b16 %v4184, %v4175
        %v4347 = vpack.c.b16 %v4194, %v4185
        %v4348 = vpack.c.b16 %v4195, %v4186
        %v4349 = vpack.c.b16 %v4196, %v4187
        %v4350 = vpack.c.b16 %v4197, %v4188
        %v4351 = vpack.c.b16 %v4198, %v4189
        %v4352 = vpack.c.b16 %v4199, %v4190
        %v4353 = vpack.c.b16 %v4200, %v4191
        %v4354 = vpack.c.b16 %v4201, %v4192
        %v4355 = vpack.c.b16 %v4202, %v4193
        %v4356 = vpack.c.b16 %v4212, %v4203
        %v4357 = vpack.c.b16 %v4213, %v4204
        %v4358 = vpack.c.b16 %v4214, %v4205
        %v4359 = vpack.c.b16 %v4215, %v4206
        %v4360 = vpack.c.b16 %v4216, %v4207
        %v4361 = vpack.c.b16 %v4217, %v4208
        %v4362 = vpack.c.b16 %v4218, %v4209
        %v4363 = vpack.c.b16 %v4219, %v4210
        %v4364 = vpack.c.b16 %v4220, %v4211
        %v4653 = vunpack.c.l.b16 %v3629
        %v4654 = vunpack.c.l.b16 %v3630
        %v4655 = vunpack.c.l.b16 %v3631
        %v4656 = vunpack.c.l.b16 %v3632
        %v4657 = vunpack.c.l.b16 %v3633
        %v4658 = vunpack.c.l.b16 %v3634
        %v4659 = vunpack.c.l.b16 %v3635
        %v4660 = vunpack.c.l.b16 %v3636
        %v4661 = vunpack.c.l.b16 %v3637
        %v4662 = vunpack.c.l.b16 %v3638
        %v4663 = vunpack.c.l.b16 %v3639
        %v4664 = vunpack.c.l.b16 %v3640
        %v4665 = vunpack.c.l.b16 %v3641
        %v4666 = vunpack.c.l.b16 %v3642
        %v4667 = vunpack.c.l.b16 %v3643
        %v4668 = vunpack.c.l.b16 %v3644
        %v4669 = vunpack.c.l.b16 %v3645
        %v4670 = vunpack.c.l.b16 %v3646
        %v4671 = vunpack.c.l.b16 %v3647
        %v4672 = vunpack.c.l.b16 %v3648
        %v4673 = vunpack.c.l.b16 %v3649
        %v4674 = vunpack.c.l.b16 %v3650
        %v4675 = vunpack.c.l.b16 %v3651
        %v4676 = vunpack.c.l.b16 %v3652
        %v4677 = vunpack.c.l.b16 %v3653
        %v4678 = vunpack.c.l.b16 %v3654
        %v4679 = vunpack.c.l.b16 %v3655
        %v4680 = vunpack.c.l.b16 %v3656
        %v4681 = vunpack.c.l.b16 %v3657
        %v4682 = vunpack.c.l.b16 %v3658
        %v4683 = vunpack.c.l.b16 %v3659
        %v4684 = vunpack.c.l.b16 %v3660
        %v4685 = vunpack.c.l.b16 %v3661
        %v4686 = vunpack.c.l.b16 %v3662
        %v4687 = vunpack.c.l.b16 %v3663
        %v4688 = vunpack.c.l.b16 %v3664
        %v4689 = vunpack.c.l.b16 %v3665
        %v4690 = vunpack.c.l.b16 %v3666
        %v4691 = vunpack.c.l.b16 %v3667
        %v4692 = vunpack.c.l.b16 %v3668
        %v4693 = vunpack.c.l.b16 %v3669
        %v4694 = vunpack.c.l.b16 %v3670
        %v4695 = vunpack.c.l.b16 %v3671
        %v4696 = vunpack.c.l.b16 %v3672
        %v4697 = vunpack.c.l.b16 %v3673
        %v4698 = vunpack.c.l.b16 %v3674
        %v4699 = vunpack.c.l.b16 %v3675
        %v4700 = vunpack.c.l.b16 %v3676
        %v4701 = vunpack.c.l.b16 %v3677
        %v4702 = vunpack.c.l.b16 %v3678
        %v4703 = vunpack.c.l.b16 %v3679
        %v4704 = vunpack.c.l.b16 %v3680
        %v4705 = vunpack.c.l.b16 %v3681
        %v4706 = vunpack.c.l.b16 %v3682
        %v4707 = vunpack.c.l.b16 %v3683
        %v4708 = vunpack.c.l.b16 %v3684
        %v4709 = vunpack.c.l.b16 %v3685
        %v4710 = vunpack.c.l.b16 %v3686
        %v4711 = vunpack.c.l.b16 %v3687
        %v4712 = vunpack.c.l.b16 %v3688
        %v4713 = vunpack.c.l.b16 %v3689
        %v4714 = vunpack.c.l.b16 %v3690
        %v4715 = vunpack.c.l.b16 %v3691
        %v4716 = vunpack.c.l.b16 %v3692
        %v4717 = vunpack.c.l.b16 %v3693
        %v4718 = vunpack.c.l.b16 %v3694
        %v4719 = vunpack.c.l.b16 %v3695
        %v4720 = vunpack.c.l.b16 %v3696
        %v4721 = vunpack.c.l.b16 %v3697
        %v4722 = vunpack.c.l.b16 %v3698
        %v4723 = vunpack.c.l.b16 %v3699
        %v4724 = vunpack.c.l.b16 %v3700
        %v4725 = vunpack.c.l.b16 %v3701
        %v4726 = vunpack.c.l.b16 %v3702
        %v4727 = vunpack.c.l.b16 %v3703
        %v4728 = vunpack.c.l.b16 %v3704
        %v4729 = vunpack.c.l.b16 %v3705
        %v4730 = vunpack.c.l.b16 %v3706
        %v4731 = vunpack.c.l.b16 %v3707
        %v4732 = vunpack.c.l.b16 %v3708
        %v4733 = vunpack.c.l.b16 %v3709
        %v4734 = vunpack.c.l.b16 %v3710
        %v4735 = vunpack.c.l.b16 %v3711
        %v4736 = vunpack.c.l.b16 %v3712
        %v4737 = vunpack.c.l.b16 %v3713
        %v4738 = vunpack.c.l.b16 %v3714
        %v4739 = vunpack.c.l.b16 %v3715
        %v4740 = vunpack.c.l.b16 %v3716
        %v4741 = vunpack.c.l.b16 %v3717
        %v4742 = vunpack.c.l.b16 %v3718
        %v4743 = vunpack.c.l.b16 %v3719
        %v4744 = vunpack.c.l.b16 %v3720
        %v4745 = vunpack.c.l.b16 %v3721
        %v4746 = vunpack.c.l.b16 %v3722
        %v4747 = vunpack.c.l.b16 %v3723
        %v4748 = vunpack.c.l.b16 %v3724
        %v4749 = vunpack.c.l.b16 %v3725
        %v4750 = vunpack.c.l.b16 %v3726
        %v4751 = vunpack.c.l.b16 %v3727
        %v4752 = vunpack.c.l.b16 %v3728
        %v4753 = vunpack.c.l.b16 %v3729
        %v4754 = vunpack.c.l.b16 %v3730
        %v4755 = vunpack.c.l.b16 %v3731
        %v4756 = vunpack.c.l.b16 %v3732
        %v4757 = vunpack.c.l.b16 %v3733
        %v4758 = vunpack.c.l.b16 %v3734
        %v4759 = vunpack.c.l.b16 %v3735
        %v4760 = vunpack.c.l.b16 %v3736
        %v4761 = vunpack.c.l.b16 %v3737
        %v4762 = vunpack.c.l.b16 %v3738
        %v4763 = vunpack.c.l.b16 %v3739
        %v4764 = vunpack.c.l.b16 %v3740
        %v4765 = vunpack.c.l.b16 %v3741
        %v4766 = vunpack.c.l.b16 %v3742
        %v4767 = vunpack.c.l.b16 %v3743
        %v4768 = vunpack.c.l.b16 %v3744
        %v4769 = vunpack.c.l.b16 %v3745
        %v4770 = vunpack.c.l.b16 %v3746
        %v4771 = vunpack.c.l.b16 %v3747
        %v4772 = vunpack.c.l.b16 %v3748
        %v4773 = vunpack.c.l.b16 %v3749
        %v4774 = vunpack.c.l.b16 %v3750
        %v4775 = vunpack.c.l.b16 %v3751
        %v4776 = vunpack.c.l.b16 %v3752
        %v4777 = vunpack.c.l.b16 %v3753
        %v4778 = vunpack.c.l.b16 %v3754
        %v4779 = vunpack.c.l.b16 %v3755
        %v4780 = vunpack.c.l.b16 %v3756
        %v4781 = vunpack.c.l.b16 %v3757
        %v4782 = vunpack.c.l.b16 %v3758
        %v4783 = vunpack.c.l.b16 %v3759
        %v4784 = vunpack.c.l.b16 %v3760
        %v4785 = vunpack.c.l.b16 %v3761
        %v4786 = vunpack.c.l.b16 %v3762
        %v4787 = vunpack.c.l.b16 %v3763
        %v4788 = vunpack.c.l.b16 %v3764
        %v4789 = vunpack.c.l.b16 %v3765
        %v4790 = vunpack.c.l.b16 %v3766
        %v4791 = vunpack.c.l.b16 %v3767
        %v4792 = vunpack.c.l.b16 %v3768
        %v4793 = vunpack.c.l.b16 %v3769
        %v4794 = vunpack.c.l.b16 %v3770
        %v4795 = vunpack.c.l.b16 %v3771
        %v4796 = vunpack.c.l.b16 %v3772
        %v4797 = vpack.c.b16 %v4654, %v4653
        %v4798 = vpack.c.b16 %v4656, %v4655
        %v4799 = vpack.c.b16 %v4658, %v4657
        %v4800 = vpack.c.b16 %v4660, %v4659
        %v4801 = vpack.c.b16 %v4662, %v4661
        %v4802 = vpack.c.b16 %v4664, %v4663
        %v4803 = vpack.c.b16 %v4666, %v4665
        %v4804 = vpack.c.b16 %v4668, %v4667
        %v4805 = vpack.c.b16 %v4670, %v4669
        %v4806 = vpack.c.b16 %v4672, %v4671
        %v4807 = vpack.c.b16 %v4674, %v4673
        %v4808 = vpack.c.b16 %v4676, %v4675
        %v4809 = vpack.c.b16 %v4678, %v4677
        %v4810 = vpack.c.b16 %v4680, %v4679
        %v4811 = vpack.c.b16 %v4682, %v4681
        %v4812 = vpack.c.b16 %v4684, %v4683
        %v4813 = vpack.c.b16 %v4686, %v4685
        %v4814 = vpack.c.b16 %v4688, %v4687
        %v4815 = vpack.c.b16 %v4690, %v4689
        %v4816 = vpack.c.b16 %v4692, %v4691
        %v4817 = vpack.c.b16 %v4694, %v4693
        %v4818 = vpack.c.b16 %v4696, %v4695
        %v4819 = vpack.c.b16 %v4698, %v4697
        %v4820 = vpack.c.b16 %v4700, %v4699
        %v4821 = vpack.c.b16 %v4702, %v4701
        %v4822 = vpack.c.b16 %v4704, %v4703
        %v4823 = vpack.c.b16 %v4706, %v4705
        %v4824 = vpack.c.b16 %v4708, %v4707
        %v4825 = vpack.c.b16 %v4710, %v4709
        %v4826 = vpack.c.b16 %v4712, %v4711
        %v4827 = vpack.c.b16 %v4714, %v4713
        %v4828 = vpack.c.b16 %v4716, %v4715
        %v4829 = vpack.c.b16 %v4718, %v4717
        %v4830 = vpack.c.b16 %v4720, %v4719
        %v4831 = vpack.c.b16 %v4722, %v4721
        %v4832 = vpack.c.b16 %v4724, %v4723
        %v4833 = vpack.c.b16 %v4726, %v4725
        %v4834 = vpack.c.b16 %v4728, %v4727
        %v4835 = vpack.c.b16 %v4730, %v4729
        %v4836 = vpack.c.b16 %v4732, %v4731
        %v4837 = vpack.c.b16 %v4734, %v4733
        %v4838 = vpack.c.b16 %v4736, %v4735
        %v4839 = vpack.c.b16 %v4738, %v4737
        %v4840 = vpack.c.b16 %v4740, %v4739
        %v4841 = vpack.c.b16 %v4742, %v4741
        %v4842 = vpack.c.b16 %v4744, %v4743
        %v4843 = vpack.c.b16 %v4746, %v4745
        %v4844 = vpack.c.b16 %v4748, %v4747
        %v4845 = vpack.c.b16 %v4750, %v4749
        %v4846 = vpack.c.b16 %v4752, %v4751
        %v4847 = vpack.c.b16 %v4754, %v4753
        %v4848 = vpack.c.b16 %v4756, %v4755
        %v4849 = vpack.c.b16 %v4758, %v4757
        %v4850 = vpack.c.b16 %v4760, %v4759
        %v4851 = vpack.c.b16 %v4762, %v4761
        %v4852 = vpack.c.b16 %v4764, %v4763
        %v4853 = vpack.c.b16 %v4766, %v4765
        %v4854 = vpack.c.b16 %v4768, %v4767
        %v4855 = vpack.c.b16 %v4770, %v4769
        %v4856 = vpack.c.b16 %v4772, %v4771
        %v4857 = vpack.c.b16 %v4774, %v4773
        %v4858 = vpack.c.b16 %v4776, %v4775
        %v4859 = vpack.c.b16 %v4778, %v4777
        %v4860 = vpack.c.b16 %v4780, %v4779
        %v4861 = vpack.c.b16 %v4782, %v4781
        %v4862 = vpack.c.b16 %v4784, %v4783
        %v4863 = vpack.c.b16 %v4786, %v4785
        %v4864 = vpack.c.b16 %v4788, %v4787
        %v4865 = vpack.c.b16 %v4790, %v4789
        %v4866 = vpack.c.b16 %v4792, %v4791
        %v4867 = vpack.c.b16 %v4794, %v4793
        %v4868 = vpack.c.b16 %v4796, %v4795
        %4941 = vmatpush.bf16.msra.mxu0 %v4804
        %4942 = vmatpush.bf16.msra.mxu0 %v4803
        %4943 = vmatpush.bf16.msra.mxu0 %v4802
        %4944 = vmatpush.bf16.msra.mxu0 %v4801
        %4945 = vmatpush.bf16.msra.mxu0 %v4800
        %4946 = vmatpush.bf16.msra.mxu0 %v4799
        %4947 = vmatpush.bf16.msra.mxu0 %v4798
        %4948 = vmatpush.bf16.msra.mxu0 %v4797
        %4949 = vmatmul.bf16.gmra.mxu0 %v4221
        %v4950 = vpop.f32.mrf.mxu0
        %v4951 = vadd.f32 0.0, %v4950
        %v4952 = vpop.f32.mrf.mxu0
        %v4953 = vadd.f32 0.0, %v4952
        %4954 = vmatmul.bf16.gmra.mxu0 %v4230
        %v4955 = vpop.f32.mrf.mxu0
        %v4956 = vadd.f32 0.0, %v4955
        %v4957 = vpop.f32.mrf.mxu0
        %v4958 = vadd.f32 0.0, %v4957
        %4959 = vmatmul.bf16.gmra.mxu0 %v4239
        %v4960 = vpop.f32.mrf.mxu0
        %v4961 = vadd.f32 0.0, %v4960
        %v4962 = vpop.f32.mrf.mxu0
        %v4963 = vadd.f32 0.0, %v4962
        %4964 = vmatmul.bf16.gmra.mxu0 %v4248
        %v4965 = vpop.f32.mrf.mxu0
        %v4966 = vadd.f32 0.0, %v4965
        %v4967 = vpop.f32.mrf.mxu0
        %v4968 = vadd.f32 0.0, %v4967
        %4969 = vmatmul.bf16.gmra.mxu0 %v4257
        %v4970 = vpop.f32.mrf.mxu0
        %v4971 = vadd.f32 0.0, %v4970
        %v4972 = vpop.f32.mrf.mxu0
        %v4973 = vadd.f32 0.0, %v4972
        %4974 = vmatmul.bf16.gmra.mxu0 %v4266
        %v4975 = vpop.f32.mrf.mxu0
        %v4976 = vadd.f32 0.0, %v4975
        %v4977 = vpop.f32.mrf.mxu0
        %v4978 = vadd.f32 0.0, %v4977
        %4979 = vmatmul.bf16.gmra.mxu0 %v4275
        %v4980 = vpop.f32.mrf.mxu0
        %v4981 = vadd.f32 0.0, %v4980
        %v4982 = vpop.f32.mrf.mxu0
        %v4983 = vadd.f32 0.0, %v4982
        %4984 = vmatmul.bf16.gmra.mxu0 %v4284
        %v4985 = vpop.f32.mrf.mxu0
        %v4986 = vadd.f32 0.0, %v4985
        %v4987 = vpop.f32.mrf.mxu0
        %v4988 = vadd.f32 0.0, %v4987
        %4989 = vmatmul.bf16.gmra.mxu0 %v4293
        %v4990 = vpop.f32.mrf.mxu0
        %v4991 = vadd.f32 0.0, %v4990
        %v4992 = vpop.f32.mrf.mxu0
        %v4993 = vadd.f32 0.0, %v4992
        %4994 = vmatmul.bf16.gmra.mxu0 %v4302
        %v4995 = vpop.f32.mrf.mxu0
        %v4996 = vadd.f32 0.0, %v4995
        %v4997 = vpop.f32.mrf.mxu0
        %v4998 = vadd.f32 0.0, %v4997
        %4999 = vmatmul.bf16.gmra.mxu0 %v4311
        %v5000 = vpop.f32.mrf.mxu0
        %v5001 = vadd.f32 0.0, %v5000
        %v5002 = vpop.f32.mrf.mxu0
        %v5003 = vadd.f32 0.0, %v5002
        %5004 = vmatmul.bf16.gmra.mxu0 %v4320
        %v5005 = vpop.f32.mrf.mxu0
        %v5006 = vadd.f32 0.0, %v5005
        %v5007 = vpop.f32.mrf.mxu0
        %v5008 = vadd.f32 0.0, %v5007
        %5009 = vmatmul.bf16.gmra.mxu0 %v4329
        %v5010 = vpop.f32.mrf.mxu0
        %v5011 = vadd.f32 0.0, %v5010
        %v5012 = vpop.f32.mrf.mxu0
        %v5013 = vadd.f32 0.0, %v5012
        %5014 = vmatmul.bf16.gmra.mxu0 %v4338
        %v5015 = vpop.f32.mrf.mxu0
        %v5016 = vadd.f32 0.0, %v5015
        %v5017 = vpop.f32.mrf.mxu0
        %v5018 = vadd.f32 0.0, %v5017
        %5019 = vmatmul.bf16.gmra.mxu0 %v4347
        %v5020 = vpop.f32.mrf.mxu0
        %v5021 = vadd.f32 0.0, %v5020
        %v5022 = vpop.f32.mrf.mxu0
        %v5023 = vadd.f32 0.0, %v5022
        %5024 = vmatmul.bf16.gmra.mxu0 %v4356
        %v5025 = vpop.f32.mrf.mxu0
        %v5026 = vadd.f32 0.0, %v5025
        %v5027 = vpop.f32.mrf.mxu0
        %v5028 = vadd.f32 0.0, %v5027
        %5029 = vdwg.mxu0
        %5030 = vmatpush.bf16.msra.mxu0 %v4812
        %5031 = vmatpush.bf16.msra.mxu0 %v4811
        %5032 = vmatpush.bf16.msra.mxu0 %v4810
        %5033 = vmatpush.bf16.msra.mxu0 %v4809
        %5034 = vmatpush.bf16.msra.mxu0 %v4808
        %5035 = vmatpush.bf16.msra.mxu0 %v4807
        %5036 = vmatpush.bf16.msra.mxu0 %v4806
        %5037 = vmatpush.bf16.msra.mxu0 %v4805
        %5038 = vmatmul.bf16.gmra.mxu0 %v4222
        %v5039 = vpop.f32.mrf.mxu0
        %v5040 = vadd.f32 %v4951, %v5039
        %v5041 = vpop.f32.mrf.mxu0
        %v5042 = vadd.f32 %v4953, %v5041
        %5043 = vmatmul.bf16.gmra.mxu0 %v4231
        %v5044 = vpop.f32.mrf.mxu0
        %v5045 = vadd.f32 %v4956, %v5044
        %v5046 = vpop.f32.mrf.mxu0
        %v5047 = vadd.f32 %v4958, %v5046
        %5048 = vmatmul.bf16.gmra.mxu0 %v4240
        %v5049 = vpop.f32.mrf.mxu0
        %v5050 = vadd.f32 %v4961, %v5049
        %v5051 = vpop.f32.mrf.mxu0
        %v5052 = vadd.f32 %v4963, %v5051
        %5053 = vmatmul.bf16.gmra.mxu0 %v4249
        %v5054 = vpop.f32.mrf.mxu0
        %v5055 = vadd.f32 %v4966, %v5054
        %v5056 = vpop.f32.mrf.mxu0
        %v5057 = vadd.f32 %v4968, %v5056
        %5058 = vmatmul.bf16.gmra.mxu0 %v4258
        %v5059 = vpop.f32.mrf.mxu0
        %v5060 = vadd.f32 %v4971, %v5059
        %v5061 = vpop.f32.mrf.mxu0
        %v5062 = vadd.f32 %v4973, %v5061
        %5063 = vmatmul.bf16.gmra.mxu0 %v4267
        %v5064 = vpop.f32.mrf.mxu0
        %v5065 = vadd.f32 %v4976, %v5064
        %v5066 = vpop.f32.mrf.mxu0
        %v5067 = vadd.f32 %v4978, %v5066
        %5068 = vmatmul.bf16.gmra.mxu0 %v4276
        %v5069 = vpop.f32.mrf.mxu0
        %v5070 = vadd.f32 %v4981, %v5069
        %v5071 = vpop.f32.mrf.mxu0
        %v5072 = vadd.f32 %v4983, %v5071
        %5073 = vmatmul.bf16.gmra.mxu0 %v4285
        %v5074 = vpop.f32.mrf.mxu0
        %v5075 = vadd.f32 %v4986, %v5074
        %v5076 = vpop.f32.mrf.mxu0
        %v5077 = vadd.f32 %v4988, %v5076
        %5078 = vmatmul.bf16.gmra.mxu0 %v4294
        %v5079 = vpop.f32.mrf.mxu0
        %v5080 = vadd.f32 %v4991, %v5079
        %v5081 = vpop.f32.mrf.mxu0
        %v5082 = vadd.f32 %v4993, %v5081
        %5083 = vmatmul.bf16.gmra.mxu0 %v4303
        %v5084 = vpop.f32.mrf.mxu0
        %v5085 = vadd.f32 %v4996, %v5084
        %v5086 = vpop.f32.mrf.mxu0
        %v5087 = vadd.f32 %v4998, %v5086
        %5088 = vmatmul.bf16.gmra.mxu0 %v4312
        %v5089 = vpop.f32.mrf.mxu0
        %v5090 = vadd.f32 %v5001, %v5089
        %v5091 = vpop.f32.mrf.mxu0
        %v5092 = vadd.f32 %v5003, %v5091
        %5093 = vmatmul.bf16.gmra.mxu0 %v4321
        %v5094 = vpop.f32.mrf.mxu0
        %v5095 = vadd.f32 %v5006, %v5094
        %v5096 = vpop.f32.mrf.mxu0
        %v5097 = vadd.f32 %v5008, %v5096
        %5098 = vmatmul.bf16.gmra.mxu0 %v4330
        %v5099 = vpop.f32.mrf.mxu0
        %v5100 = vadd.f32 %v5011, %v5099
        %v5101 = vpop.f32.mrf.mxu0
        %v5102 = vadd.f32 %v5013, %v5101
        %5103 = vmatmul.bf16.gmra.mxu0 %v4339
        %v5104 = vpop.f32.mrf.mxu0
        %v5105 = vadd.f32 %v5016, %v5104
        %v5106 = vpop.f32.mrf.mxu0
        %v5107 = vadd.f32 %v5018, %v5106
        %5108 = vmatmul.bf16.gmra.mxu0 %v4348
        %v5109 = vpop.f32.mrf.mxu0
        %v5110 = vadd.f32 %v5021, %v5109
        %v5111 = vpop.f32.mrf.mxu0
        %v5112 = vadd.f32 %v5023, %v5111
        %5113 = vmatmul.bf16.gmra.mxu0 %v4357
        %v5114 = vpop.f32.mrf.mxu0
        %v5115 = vadd.f32 %v5026, %v5114
        %v5116 = vpop.f32.mrf.mxu0
        %v5117 = vadd.f32 %v5028, %v5116
        %5118 = vdwg.mxu0
        %5119 = vmatpush.bf16.msra.mxu0 %v4820
        %5120 = vmatpush.bf16.msra.mxu0 %v4819
        %5121 = vmatpush.bf16.msra.mxu0 %v4818
        %5122 = vmatpush.bf16.msra.mxu0 %v4817
        %5123 = vmatpush.bf16.msra.mxu0 %v4816
        %5124 = vmatpush.bf16.msra.mxu0 %v4815
        %5125 = vmatpush.bf16.msra.mxu0 %v4814
        %5126 = vmatpush.bf16.msra.mxu0 %v4813
        %5127 = vmatmul.bf16.gmra.mxu0 %v4223
        %v5128 = vpop.f32.mrf.mxu0
        %v5129 = vadd.f32 %v5040, %v5128
        %v5130 = vpop.f32.mrf.mxu0
        %v5131 = vadd.f32 %v5042, %v5130
        %5132 = vmatmul.bf16.gmra.mxu0 %v4232
        %v5133 = vpop.f32.mrf.mxu0
        %v5134 = vadd.f32 %v5045, %v5133
        %v5135 = vpop.f32.mrf.mxu0
        %v5136 = vadd.f32 %v5047, %v5135
        %5137 = vmatmul.bf16.gmra.mxu0 %v4241
        %v5138 = vpop.f32.mrf.mxu0
        %v5139 = vadd.f32 %v5050, %v5138
        %v5140 = vpop.f32.mrf.mxu0
        %v5141 = vadd.f32 %v5052, %v5140
        %5142 = vmatmul.bf16.gmra.mxu0 %v4250
        %v5143 = vpop.f32.mrf.mxu0
        %v5144 = vadd.f32 %v5055, %v5143
        %v5145 = vpop.f32.mrf.mxu0
        %v5146 = vadd.f32 %v5057, %v5145
        %5147 = vmatmul.bf16.gmra.mxu0 %v4259
        %v5148 = vpop.f32.mrf.mxu0
        %v5149 = vadd.f32 %v5060, %v5148
        %v5150 = vpop.f32.mrf.mxu0
        %v5151 = vadd.f32 %v5062, %v5150
        %5152 = vmatmul.bf16.gmra.mxu0 %v4268
        %v5153 = vpop.f32.mrf.mxu0
        %v5154 = vadd.f32 %v5065, %v5153
        %v5155 = vpop.f32.mrf.mxu0
        %v5156 = vadd.f32 %v5067, %v5155
        %5157 = vmatmul.bf16.gmra.mxu0 %v4277
        %v5158 = vpop.f32.mrf.mxu0
        %v5159 = vadd.f32 %v5070, %v5158
        %v5160 = vpop.f32.mrf.mxu0
        %v5161 = vadd.f32 %v5072, %v5160
        %5162 = vmatmul.bf16.gmra.mxu0 %v4286
        %v5163 = vpop.f32.mrf.mxu0
        %v5164 = vadd.f32 %v5075, %v5163
        %v5165 = vpop.f32.mrf.mxu0
        %v5166 = vadd.f32 %v5077, %v5165
        %5167 = vmatmul.bf16.gmra.mxu0 %v4295
        %v5168 = vpop.f32.mrf.mxu0
        %v5169 = vadd.f32 %v5080, %v5168
        %v5170 = vpop.f32.mrf.mxu0
        %v5171 = vadd.f32 %v5082, %v5170
        %5172 = vmatmul.bf16.gmra.mxu0 %v4304
        %v5173 = vpop.f32.mrf.mxu0
        %v5174 = vadd.f32 %v5085, %v5173
        %v5175 = vpop.f32.mrf.mxu0
        %v5176 = vadd.f32 %v5087, %v5175
        %5177 = vmatmul.bf16.gmra.mxu0 %v4313
        %v5178 = vpop.f32.mrf.mxu0
        %v5179 = vadd.f32 %v5090, %v5178
        %v5180 = vpop.f32.mrf.mxu0
        %v5181 = vadd.f32 %v5092, %v5180
        %5182 = vmatmul.bf16.gmra.mxu0 %v4322
        %v5183 = vpop.f32.mrf.mxu0
        %v5184 = vadd.f32 %v5095, %v5183
        %v5185 = vpop.f32.mrf.mxu0
        %v5186 = vadd.f32 %v5097, %v5185
        %5187 = vmatmul.bf16.gmra.mxu0 %v4331
        %v5188 = vpop.f32.mrf.mxu0
        %v5189 = vadd.f32 %v5100, %v5188
        %v5190 = vpop.f32.mrf.mxu0
        %v5191 = vadd.f32 %v5102, %v5190
        %5192 = vmatmul.bf16.gmra.mxu0 %v4340
        %v5193 = vpop.f32.mrf.mxu0
        %v5194 = vadd.f32 %v5105, %v5193
        %v5195 = vpop.f32.mrf.mxu0
        %v5196 = vadd.f32 %v5107, %v5195
        %5197 = vmatmul.bf16.gmra.mxu0 %v4349
        %v5198 = vpop.f32.mrf.mxu0
        %v5199 = vadd.f32 %v5110, %v5198
        %v5200 = vpop.f32.mrf.mxu0
        %v5201 = vadd.f32 %v5112, %v5200
        %5202 = vmatmul.bf16.gmra.mxu0 %v4358
        %v5203 = vpop.f32.mrf.mxu0
        %v5204 = vadd.f32 %v5115, %v5203
        %v5205 = vpop.f32.mrf.mxu0
        %v5206 = vadd.f32 %v5117, %v5205
        %5207 = vdwg.mxu0
        %5208 = vmatpush.bf16.msra.mxu0 %v4828
        %5209 = vmatpush.bf16.msra.mxu0 %v4827
        %5210 = vmatpush.bf16.msra.mxu0 %v4826
        %5211 = vmatpush.bf16.msra.mxu0 %v4825
        %5212 = vmatpush.bf16.msra.mxu0 %v4824
        %5213 = vmatpush.bf16.msra.mxu0 %v4823
        %5214 = vmatpush.bf16.msra.mxu0 %v4822
        %5215 = vmatpush.bf16.msra.mxu0 %v4821
        %5216 = vmatmul.bf16.gmra.mxu0 %v4224
        %v5217 = vpop.f32.mrf.mxu0
        %v5218 = vadd.f32 %v5129, %v5217
        %v5219 = vpop.f32.mrf.mxu0
        %v5220 = vadd.f32 %v5131, %v5219
        %5221 = vmatmul.bf16.gmra.mxu0 %v4233
        %v5222 = vpop.f32.mrf.mxu0
        %v5223 = vadd.f32 %v5134, %v5222
        %v5224 = vpop.f32.mrf.mxu0
        %v5225 = vadd.f32 %v5136, %v5224
        %5226 = vmatmul.bf16.gmra.mxu0 %v4242
        %v5227 = vpop.f32.mrf.mxu0
        %v5228 = vadd.f32 %v5139, %v5227
        %v5229 = vpop.f32.mrf.mxu0
        %v5230 = vadd.f32 %v5141, %v5229
        %5231 = vmatmul.bf16.gmra.mxu0 %v4251
        %v5232 = vpop.f32.mrf.mxu0
        %v5233 = vadd.f32 %v5144, %v5232
        %v5234 = vpop.f32.mrf.mxu0
        %v5235 = vadd.f32 %v5146, %v5234
        %5236 = vmatmul.bf16.gmra.mxu0 %v4260
        %v5237 = vpop.f32.mrf.mxu0
        %v5238 = vadd.f32 %v5149, %v5237
        %v5239 = vpop.f32.mrf.mxu0
        %v5240 = vadd.f32 %v5151, %v5239
        %5241 = vmatmul.bf16.gmra.mxu0 %v4269
        %v5242 = vpop.f32.mrf.mxu0
        %v5243 = vadd.f32 %v5154, %v5242
        %v5244 = vpop.f32.mrf.mxu0
        %v5245 = vadd.f32 %v5156, %v5244
        %5246 = vmatmul.bf16.gmra.mxu0 %v4278
        %v5247 = vpop.f32.mrf.mxu0
        %v5248 = vadd.f32 %v5159, %v5247
        %v5249 = vpop.f32.mrf.mxu0
        %v5250 = vadd.f32 %v5161, %v5249
        %5251 = vmatmul.bf16.gmra.mxu0 %v4287
        %v5252 = vpop.f32.mrf.mxu0
        %v5253 = vadd.f32 %v5164, %v5252
        %v5254 = vpop.f32.mrf.mxu0
        %v5255 = vadd.f32 %v5166, %v5254
        %5256 = vmatmul.bf16.gmra.mxu0 %v4296
        %v5257 = vpop.f32.mrf.mxu0
        %v5258 = vadd.f32 %v5169, %v5257
        %v5259 = vpop.f32.mrf.mxu0
        %v5260 = vadd.f32 %v5171, %v5259
        %5261 = vmatmul.bf16.gmra.mxu0 %v4305
        %v5262 = vpop.f32.mrf.mxu0
        %v5263 = vadd.f32 %v5174, %v5262
        %v5264 = vpop.f32.mrf.mxu0
        %v5265 = vadd.f32 %v5176, %v5264
        %5266 = vmatmul.bf16.gmra.mxu0 %v4314
        %v5267 = vpop.f32.mrf.mxu0
        %v5268 = vadd.f32 %v5179, %v5267
        %v5269 = vpop.f32.mrf.mxu0
        %v5270 = vadd.f32 %v5181, %v5269
        %5271 = vmatmul.bf16.gmra.mxu0 %v4323
        %v5272 = vpop.f32.mrf.mxu0
        %v5273 = vadd.f32 %v5184, %v5272
        %v5274 = vpop.f32.mrf.mxu0
        %v5275 = vadd.f32 %v5186, %v5274
        %5276 = vmatmul.bf16.gmra.mxu0 %v4332
        %v5277 = vpop.f32.mrf.mxu0
        %v5278 = vadd.f32 %v5189, %v5277
        %v5279 = vpop.f32.mrf.mxu0
        %v5280 = vadd.f32 %v5191, %v5279
        %5281 = vmatmul.bf16.gmra.mxu0 %v4341
        %v5282 = vpop.f32.mrf.mxu0
        %v5283 = vadd.f32 %v5194, %v5282
        %v5284 = vpop.f32.mrf.mxu0
        %v5285 = vadd.f32 %v5196, %v5284
        %5286 = vmatmul.bf16.gmra.mxu0 %v4350
        %v5287 = vpop.f32.mrf.mxu0
        %v5288 = vadd.f32 %v5199, %v5287
        %v5289 = vpop.f32.mrf.mxu0
        %v5290 = vadd.f32 %v5201, %v5289
        %5291 = vmatmul.bf16.gmra.mxu0 %v4359
        %v5292 = vpop.f32.mrf.mxu0
        %v5293 = vadd.f32 %v5204, %v5292
        %v5294 = vpop.f32.mrf.mxu0
        %v5295 = vadd.f32 %v5206, %v5294
        %5296 = vdwg.mxu0
        %5297 = vmatpush.bf16.msra.mxu0 %v4836
        %5298 = vmatpush.bf16.msra.mxu0 %v4835
        %5299 = vmatpush.bf16.msra.mxu0 %v4834
        %5300 = vmatpush.bf16.msra.mxu0 %v4833
        %5301 = vmatpush.bf16.msra.mxu0 %v4832
        %5302 = vmatpush.bf16.msra.mxu0 %v4831
        %5303 = vmatpush.bf16.msra.mxu0 %v4830
        %5304 = vmatpush.bf16.msra.mxu0 %v4829
        %5305 = vmatmul.bf16.gmra.mxu0 %v4225
        %v5306 = vpop.f32.mrf.mxu0
        %v5307 = vadd.f32 %v5218, %v5306
        %v5308 = vpop.f32.mrf.mxu0
        %v5309 = vadd.f32 %v5220, %v5308
        %5310 = vmatmul.bf16.gmra.mxu0 %v4234
        %v5311 = vpop.f32.mrf.mxu0
        %v5312 = vadd.f32 %v5223, %v5311
        %v5313 = vpop.f32.mrf.mxu0
        %v5314 = vadd.f32 %v5225, %v5313
        %5315 = vmatmul.bf16.gmra.mxu0 %v4243
        %v5316 = vpop.f32.mrf.mxu0
        %v5317 = vadd.f32 %v5228, %v5316
        %v5318 = vpop.f32.mrf.mxu0
        %v5319 = vadd.f32 %v5230, %v5318
        %5320 = vmatmul.bf16.gmra.mxu0 %v4252
        %v5321 = vpop.f32.mrf.mxu0
        %v5322 = vadd.f32 %v5233, %v5321
        %v5323 = vpop.f32.mrf.mxu0
        %v5324 = vadd.f32 %v5235, %v5323
        %5325 = vmatmul.bf16.gmra.mxu0 %v4261
        %v5326 = vpop.f32.mrf.mxu0
        %v5327 = vadd.f32 %v5238, %v5326
        %v5328 = vpop.f32.mrf.mxu0
        %v5329 = vadd.f32 %v5240, %v5328
        %5330 = vmatmul.bf16.gmra.mxu0 %v4270
        %v5331 = vpop.f32.mrf.mxu0
        %v5332 = vadd.f32 %v5243, %v5331
        %v5333 = vpop.f32.mrf.mxu0
        %v5334 = vadd.f32 %v5245, %v5333
        %5335 = vmatmul.bf16.gmra.mxu0 %v4279
        %v5336 = vpop.f32.mrf.mxu0
        %v5337 = vadd.f32 %v5248, %v5336
        %v5338 = vpop.f32.mrf.mxu0
        %v5339 = vadd.f32 %v5250, %v5338
        %5340 = vmatmul.bf16.gmra.mxu0 %v4288
        %v5341 = vpop.f32.mrf.mxu0
        %v5342 = vadd.f32 %v5253, %v5341
        %v5343 = vpop.f32.mrf.mxu0
        %v5344 = vadd.f32 %v5255, %v5343
        %5345 = vmatmul.bf16.gmra.mxu0 %v4297
        %v5346 = vpop.f32.mrf.mxu0
        %v5347 = vadd.f32 %v5258, %v5346
        %v5348 = vpop.f32.mrf.mxu0
        %v5349 = vadd.f32 %v5260, %v5348
        %5350 = vmatmul.bf16.gmra.mxu0 %v4306
        %v5351 = vpop.f32.mrf.mxu0
        %v5352 = vadd.f32 %v5263, %v5351
        %v5353 = vpop.f32.mrf.mxu0
        %v5354 = vadd.f32 %v5265, %v5353
        %5355 = vmatmul.bf16.gmra.mxu0 %v4315
        %v5356 = vpop.f32.mrf.mxu0
        %v5357 = vadd.f32 %v5268, %v5356
        %v5358 = vpop.f32.mrf.mxu0
        %v5359 = vadd.f32 %v5270, %v5358
        %5360 = vmatmul.bf16.gmra.mxu0 %v4324
        %v5361 = vpop.f32.mrf.mxu0
        %v5362 = vadd.f32 %v5273, %v5361
        %v5363 = vpop.f32.mrf.mxu0
        %v5364 = vadd.f32 %v5275, %v5363
        %5365 = vmatmul.bf16.gmra.mxu0 %v4333
        %v5366 = vpop.f32.mrf.mxu0
        %v5367 = vadd.f32 %v5278, %v5366
        %v5368 = vpop.f32.mrf.mxu0
        %v5369 = vadd.f32 %v5280, %v5368
        %5370 = vmatmul.bf16.gmra.mxu0 %v4342
        %v5371 = vpop.f32.mrf.mxu0
        %v5372 = vadd.f32 %v5283, %v5371
        %v5373 = vpop.f32.mrf.mxu0
        %v5374 = vadd.f32 %v5285, %v5373
        %5375 = vmatmul.bf16.gmra.mxu0 %v4351
        %v5376 = vpop.f32.mrf.mxu0
        %v5377 = vadd.f32 %v5288, %v5376
        %v5378 = vpop.f32.mrf.mxu0
        %v5379 = vadd.f32 %v5290, %v5378
        %5380 = vmatmul.bf16.gmra.mxu0 %v4360
        %v5381 = vpop.f32.mrf.mxu0
        %v5382 = vadd.f32 %v5293, %v5381
        %v5383 = vpop.f32.mrf.mxu0
        %v5384 = vadd.f32 %v5295, %v5383
        %5385 = vdwg.mxu0
        %5386 = vmatpush.bf16.msra.mxu0 %v4844
        %5387 = vmatpush.bf16.msra.mxu0 %v4843
        %5388 = vmatpush.bf16.msra.mxu0 %v4842
        %5389 = vmatpush.bf16.msra.mxu0 %v4841
        %5390 = vmatpush.bf16.msra.mxu0 %v4840
        %5391 = vmatpush.bf16.msra.mxu0 %v4839
        %5392 = vmatpush.bf16.msra.mxu0 %v4838
        %5393 = vmatpush.bf16.msra.mxu0 %v4837
        %5394 = vmatmul.bf16.gmra.mxu0 %v4226
        %v5395 = vpop.f32.mrf.mxu0
        %v5396 = vadd.f32 %v5307, %v5395
        %v5397 = vpop.f32.mrf.mxu0
        %v5398 = vadd.f32 %v5309, %v5397
        %5399 = vmatmul.bf16.gmra.mxu0 %v4235
        %v5400 = vpop.f32.mrf.mxu0
        %v5401 = vadd.f32 %v5312, %v5400
        %v5402 = vpop.f32.mrf.mxu0
        %v5403 = vadd.f32 %v5314, %v5402
        %5404 = vmatmul.bf16.gmra.mxu0 %v4244
        %v5405 = vpop.f32.mrf.mxu0
        %v5406 = vadd.f32 %v5317, %v5405
        %v5407 = vpop.f32.mrf.mxu0
        %v5408 = vadd.f32 %v5319, %v5407
        %5409 = vmatmul.bf16.gmra.mxu0 %v4253
        %v5410 = vpop.f32.mrf.mxu0
        %v5411 = vadd.f32 %v5322, %v5410
        %v5412 = vpop.f32.mrf.mxu0
        %v5413 = vadd.f32 %v5324, %v5412
        %5414 = vmatmul.bf16.gmra.mxu0 %v4262
        %v5415 = vpop.f32.mrf.mxu0
        %v5416 = vadd.f32 %v5327, %v5415
        %v5417 = vpop.f32.mrf.mxu0
        %v5418 = vadd.f32 %v5329, %v5417
        %5419 = vmatmul.bf16.gmra.mxu0 %v4271
        %v5420 = vpop.f32.mrf.mxu0
        %v5421 = vadd.f32 %v5332, %v5420
        %v5422 = vpop.f32.mrf.mxu0
        %v5423 = vadd.f32 %v5334, %v5422
        %5424 = vmatmul.bf16.gmra.mxu0 %v4280
        %v5425 = vpop.f32.mrf.mxu0
        %v5426 = vadd.f32 %v5337, %v5425
        %v5427 = vpop.f32.mrf.mxu0
        %v5428 = vadd.f32 %v5339, %v5427
        %5429 = vmatmul.bf16.gmra.mxu0 %v4289
        %v5430 = vpop.f32.mrf.mxu0
        %v5431 = vadd.f32 %v5342, %v5430
        %v5432 = vpop.f32.mrf.mxu0
        %v5433 = vadd.f32 %v5344, %v5432
        %5434 = vmatmul.bf16.gmra.mxu0 %v4298
        %v5435 = vpop.f32.mrf.mxu0
        %v5436 = vadd.f32 %v5347, %v5435
        %v5437 = vpop.f32.mrf.mxu0
        %v5438 = vadd.f32 %v5349, %v5437
        %5439 = vmatmul.bf16.gmra.mxu0 %v4307
        %v5440 = vpop.f32.mrf.mxu0
        %v5441 = vadd.f32 %v5352, %v5440
        %v5442 = vpop.f32.mrf.mxu0
        %v5443 = vadd.f32 %v5354, %v5442
        %5444 = vmatmul.bf16.gmra.mxu0 %v4316
        %v5445 = vpop.f32.mrf.mxu0
        %v5446 = vadd.f32 %v5357, %v5445
        %v5447 = vpop.f32.mrf.mxu0
        %v5448 = vadd.f32 %v5359, %v5447
        %5449 = vmatmul.bf16.gmra.mxu0 %v4325
        %v5450 = vpop.f32.mrf.mxu0
        %v5451 = vadd.f32 %v5362, %v5450
        %v5452 = vpop.f32.mrf.mxu0
        %v5453 = vadd.f32 %v5364, %v5452
        %5454 = vmatmul.bf16.gmra.mxu0 %v4334
        %v5455 = vpop.f32.mrf.mxu0
        %v5456 = vadd.f32 %v5367, %v5455
        %v5457 = vpop.f32.mrf.mxu0
        %v5458 = vadd.f32 %v5369, %v5457
        %5459 = vmatmul.bf16.gmra.mxu0 %v4343
        %v5460 = vpop.f32.mrf.mxu0
        %v5461 = vadd.f32 %v5372, %v5460
        %v5462 = vpop.f32.mrf.mxu0
        %v5463 = vadd.f32 %v5374, %v5462
        %5464 = vmatmul.bf16.gmra.mxu0 %v4352
        %v5465 = vpop.f32.mrf.mxu0
        %v5466 = vadd.f32 %v5377, %v5465
        %v5467 = vpop.f32.mrf.mxu0
        %v5468 = vadd.f32 %v5379, %v5467
        %5469 = vmatmul.bf16.gmra.mxu0 %v4361
        %v5470 = vpop.f32.mrf.mxu0
        %v5471 = vadd.f32 %v5382, %v5470
        %v5472 = vpop.f32.mrf.mxu0
        %v5473 = vadd.f32 %v5384, %v5472
        %5474 = vdwg.mxu0
        %5475 = vmatpush.bf16.msra.mxu0 %v4852
        %5476 = vmatpush.bf16.msra.mxu0 %v4851
        %5477 = vmatpush.bf16.msra.mxu0 %v4850
        %5478 = vmatpush.bf16.msra.mxu0 %v4849
        %5479 = vmatpush.bf16.msra.mxu0 %v4848
        %5480 = vmatpush.bf16.msra.mxu0 %v4847
        %5481 = vmatpush.bf16.msra.mxu0 %v4846
        %5482 = vmatpush.bf16.msra.mxu0 %v4845
        %5483 = vmatmul.bf16.gmra.mxu0 %v4227
        %v5484 = vpop.f32.mrf.mxu0
        %v5485 = vadd.f32 %v5396, %v5484
        %v5486 = vpop.f32.mrf.mxu0
        %v5487 = vadd.f32 %v5398, %v5486
        %5488 = vmatmul.bf16.gmra.mxu0 %v4236
        %v5489 = vpop.f32.mrf.mxu0
        %v5490 = vadd.f32 %v5401, %v5489
        %v5491 = vpop.f32.mrf.mxu0
        %v5492 = vadd.f32 %v5403, %v5491
        %5493 = vmatmul.bf16.gmra.mxu0 %v4245
        %v5494 = vpop.f32.mrf.mxu0
        %v5495 = vadd.f32 %v5406, %v5494
        %v5496 = vpop.f32.mrf.mxu0
        %v5497 = vadd.f32 %v5408, %v5496
        %5498 = vmatmul.bf16.gmra.mxu0 %v4254
        %v5499 = vpop.f32.mrf.mxu0
        %v5500 = vadd.f32 %v5411, %v5499
        %v5501 = vpop.f32.mrf.mxu0
        %v5502 = vadd.f32 %v5413, %v5501
        %5503 = vmatmul.bf16.gmra.mxu0 %v4263
        %v5504 = vpop.f32.mrf.mxu0
        %v5505 = vadd.f32 %v5416, %v5504
        %v5506 = vpop.f32.mrf.mxu0
        %v5507 = vadd.f32 %v5418, %v5506
        %5508 = vmatmul.bf16.gmra.mxu0 %v4272
        %v5509 = vpop.f32.mrf.mxu0
        %v5510 = vadd.f32 %v5421, %v5509
        %v5511 = vpop.f32.mrf.mxu0
        %v5512 = vadd.f32 %v5423, %v5511
        %5513 = vmatmul.bf16.gmra.mxu0 %v4281
        %v5514 = vpop.f32.mrf.mxu0
        %v5515 = vadd.f32 %v5426, %v5514
        %v5516 = vpop.f32.mrf.mxu0
        %v5517 = vadd.f32 %v5428, %v5516
        %5518 = vmatmul.bf16.gmra.mxu0 %v4290
        %v5519 = vpop.f32.mrf.mxu0
        %v5520 = vadd.f32 %v5431, %v5519
        %v5521 = vpop.f32.mrf.mxu0
        %v5522 = vadd.f32 %v5433, %v5521
        %5523 = vmatmul.bf16.gmra.mxu0 %v4299
        %v5524 = vpop.f32.mrf.mxu0
        %v5525 = vadd.f32 %v5436, %v5524
        %v5526 = vpop.f32.mrf.mxu0
        %v5527 = vadd.f32 %v5438, %v5526
        %5528 = vmatmul.bf16.gmra.mxu0 %v4308
        %v5529 = vpop.f32.mrf.mxu0
        %v5530 = vadd.f32 %v5441, %v5529
        %v5531 = vpop.f32.mrf.mxu0
        %v5532 = vadd.f32 %v5443, %v5531
        %5533 = vmatmul.bf16.gmra.mxu0 %v4317
        %v5534 = vpop.f32.mrf.mxu0
        %v5535 = vadd.f32 %v5446, %v5534
        %v5536 = vpop.f32.mrf.mxu0
        %v5537 = vadd.f32 %v5448, %v5536
        %5538 = vmatmul.bf16.gmra.mxu0 %v4326
        %v5539 = vpop.f32.mrf.mxu0
        %v5540 = vadd.f32 %v5451, %v5539
        %v5541 = vpop.f32.mrf.mxu0
        %v5542 = vadd.f32 %v5453, %v5541
        %5543 = vmatmul.bf16.gmra.mxu0 %v4335
        %v5544 = vpop.f32.mrf.mxu0
        %v5545 = vadd.f32 %v5456, %v5544
        %v5546 = vpop.f32.mrf.mxu0
        %v5547 = vadd.f32 %v5458, %v5546
        %5548 = vmatmul.bf16.gmra.mxu0 %v4344
        %v5549 = vpop.f32.mrf.mxu0
        %v5550 = vadd.f32 %v5461, %v5549
        %v5551 = vpop.f32.mrf.mxu0
        %v5552 = vadd.f32 %v5463, %v5551
        %5553 = vmatmul.bf16.gmra.mxu0 %v4353
        %v5554 = vpop.f32.mrf.mxu0
        %v5555 = vadd.f32 %v5466, %v5554
        %v5556 = vpop.f32.mrf.mxu0
        %v5557 = vadd.f32 %v5468, %v5556
        %5558 = vmatmul.bf16.gmra.mxu0 %v4362
        %v5559 = vpop.f32.mrf.mxu0
        %v5560 = vadd.f32 %v5471, %v5559
        %v5561 = vpop.f32.mrf.mxu0
        %v5562 = vadd.f32 %v5473, %v5561
        %5563 = vdwg.mxu0
        %5564 = vmatpush.bf16.msra.mxu0 %v4860
        %5565 = vmatpush.bf16.msra.mxu0 %v4859
        %5566 = vmatpush.bf16.msra.mxu0 %v4858
        %5567 = vmatpush.bf16.msra.mxu0 %v4857
        %5568 = vmatpush.bf16.msra.mxu0 %v4856
        %5569 = vmatpush.bf16.msra.mxu0 %v4855
        %5570 = vmatpush.bf16.msra.mxu0 %v4854
        %5571 = vmatpush.bf16.msra.mxu0 %v4853
        %5572 = vmatmul.bf16.gmra.mxu0 %v4228
        %v5573 = vpop.f32.mrf.mxu0
        %v5574 = vadd.f32 %v5485, %v5573
        %v5575 = vpop.f32.mrf.mxu0
        %v5576 = vadd.f32 %v5487, %v5575
        %5577 = vmatmul.bf16.gmra.mxu0 %v4237
        %v5578 = vpop.f32.mrf.mxu0
        %v5579 = vadd.f32 %v5490, %v5578
        %v5580 = vpop.f32.mrf.mxu0
        %v5581 = vadd.f32 %v5492, %v5580
        %5582 = vmatmul.bf16.gmra.mxu0 %v4246
        %v5583 = vpop.f32.mrf.mxu0
        %v5584 = vadd.f32 %v5495, %v5583
        %v5585 = vpop.f32.mrf.mxu0
        %v5586 = vadd.f32 %v5497, %v5585
        %5587 = vmatmul.bf16.gmra.mxu0 %v4255
        %v5588 = vpop.f32.mrf.mxu0
        %v5589 = vadd.f32 %v5500, %v5588
        %v5590 = vpop.f32.mrf.mxu0
        %v5591 = vadd.f32 %v5502, %v5590
        %5592 = vmatmul.bf16.gmra.mxu0 %v4264
        %v5593 = vpop.f32.mrf.mxu0
        %v5594 = vadd.f32 %v5505, %v5593
        %v5595 = vpop.f32.mrf.mxu0
        %v5596 = vadd.f32 %v5507, %v5595
        %5597 = vmatmul.bf16.gmra.mxu0 %v4273
        %v5598 = vpop.f32.mrf.mxu0
        %v5599 = vadd.f32 %v5510, %v5598
        %v5600 = vpop.f32.mrf.mxu0
        %v5601 = vadd.f32 %v5512, %v5600
        %5602 = vmatmul.bf16.gmra.mxu0 %v4282
        %v5603 = vpop.f32.mrf.mxu0
        %v5604 = vadd.f32 %v5515, %v5603
        %v5605 = vpop.f32.mrf.mxu0
        %v5606 = vadd.f32 %v5517, %v5605
        %5607 = vmatmul.bf16.gmra.mxu0 %v4291
        %v5608 = vpop.f32.mrf.mxu0
        %v5609 = vadd.f32 %v5520, %v5608
        %v5610 = vpop.f32.mrf.mxu0
        %v5611 = vadd.f32 %v5522, %v5610
        %5612 = vmatmul.bf16.gmra.mxu0 %v4300
        %v5613 = vpop.f32.mrf.mxu0
        %v5614 = vadd.f32 %v5525, %v5613
        %v5615 = vpop.f32.mrf.mxu0
        %v5616 = vadd.f32 %v5527, %v5615
        %5617 = vmatmul.bf16.gmra.mxu0 %v4309
        %v5618 = vpop.f32.mrf.mxu0
        %v5619 = vadd.f32 %v5530, %v5618
        %v5620 = vpop.f32.mrf.mxu0
        %v5621 = vadd.f32 %v5532, %v5620
        %5622 = vmatmul.bf16.gmra.mxu0 %v4318
        %v5623 = vpop.f32.mrf.mxu0
        %v5624 = vadd.f32 %v5535, %v5623
        %v5625 = vpop.f32.mrf.mxu0
        %v5626 = vadd.f32 %v5537, %v5625
        %5627 = vmatmul.bf16.gmra.mxu0 %v4327
        %v5628 = vpop.f32.mrf.mxu0
        %v5629 = vadd.f32 %v5540, %v5628
        %v5630 = vpop.f32.mrf.mxu0
        %v5631 = vadd.f32 %v5542, %v5630
        %5632 = vmatmul.bf16.gmra.mxu0 %v4336
        %v5633 = vpop.f32.mrf.mxu0
        %v5634 = vadd.f32 %v5545, %v5633
        %v5635 = vpop.f32.mrf.mxu0
        %v5636 = vadd.f32 %v5547, %v5635
        %5637 = vmatmul.bf16.gmra.mxu0 %v4345
        %v5638 = vpop.f32.mrf.mxu0
        %v5639 = vadd.f32 %v5550, %v5638
        %v5640 = vpop.f32.mrf.mxu0
        %v5641 = vadd.f32 %v5552, %v5640
        %5642 = vmatmul.bf16.gmra.mxu0 %v4354
        %v5643 = vpop.f32.mrf.mxu0
        %v5644 = vadd.f32 %v5555, %v5643
        %v5645 = vpop.f32.mrf.mxu0
        %v5646 = vadd.f32 %v5557, %v5645
        %5647 = vmatmul.bf16.gmra.mxu0 %v4363
        %v5648 = vpop.f32.mrf.mxu0
        %v5649 = vadd.f32 %v5560, %v5648
        %v5650 = vpop.f32.mrf.mxu0
        %v5651 = vadd.f32 %v5562, %v5650
        %5652 = vdwg.mxu0
        %5653 = vmatpush.bf16.msra.mxu0 %v4868
        %5654 = vmatpush.bf16.msra.mxu0 %v4867
        %5655 = vmatpush.bf16.msra.mxu0 %v4866
        %5656 = vmatpush.bf16.msra.mxu0 %v4865
        %5657 = vmatpush.bf16.msra.mxu0 %v4864
        %5658 = vmatpush.bf16.msra.mxu0 %v4863
        %5659 = vmatpush.bf16.msra.mxu0 %v4862
        %5660 = vmatpush.bf16.msra.mxu0 %v4861
        %5661 = vmatmul.bf16.gmra.mxu0 %v4229
        %v5662 = vpop.f32.mrf.mxu0
        %v5663 = vadd.f32 %v5574, %v5662
        %v5664 = vpop.f32.mrf.mxu0
        %v5665 = vadd.f32 %v5576, %v5664
        %5666 = vmatmul.bf16.gmra.mxu0 %v4238
        %v5667 = vpop.f32.mrf.mxu0
        %v5668 = vadd.f32 %v5579, %v5667
        %v5669 = vpop.f32.mrf.mxu0
        %v5670 = vadd.f32 %v5581, %v5669
        %5671 = vmatmul.bf16.gmra.mxu0 %v4247
        %v5672 = vpop.f32.mrf.mxu0
        %v5673 = vadd.f32 %v5584, %v5672
        %v5674 = vpop.f32.mrf.mxu0
        %v5675 = vadd.f32 %v5586, %v5674
        %5676 = vmatmul.bf16.gmra.mxu0 %v4256
        %v5677 = vpop.f32.mrf.mxu0
        %v5678 = vadd.f32 %v5589, %v5677
        %v5679 = vpop.f32.mrf.mxu0
        %v5680 = vadd.f32 %v5591, %v5679
        %5681 = vmatmul.bf16.gmra.mxu0 %v4265
        %v5682 = vpop.f32.mrf.mxu0
        %v5683 = vadd.f32 %v5594, %v5682
        %v5684 = vpop.f32.mrf.mxu0
        %v5685 = vadd.f32 %v5596, %v5684
        %5686 = vmatmul.bf16.gmra.mxu0 %v4274
        %v5687 = vpop.f32.mrf.mxu0
        %v5688 = vadd.f32 %v5599, %v5687
        %v5689 = vpop.f32.mrf.mxu0
        %v5690 = vadd.f32 %v5601, %v5689
        %5691 = vmatmul.bf16.gmra.mxu0 %v4283
        %v5692 = vpop.f32.mrf.mxu0
        %v5693 = vadd.f32 %v5604, %v5692
        %v5694 = vpop.f32.mrf.mxu0
        %v5695 = vadd.f32 %v5606, %v5694
        %5696 = vmatmul.bf16.gmra.mxu0 %v4292
        %v5697 = vpop.f32.mrf.mxu0
        %v5698 = vadd.f32 %v5609, %v5697
        %v5699 = vpop.f32.mrf.mxu0
        %v5700 = vadd.f32 %v5611, %v5699
        %5701 = vmatmul.bf16.gmra.mxu0 %v4301
        %v5702 = vpop.f32.mrf.mxu0
        %v5703 = vadd.f32 %v5614, %v5702
        %v5704 = vpop.f32.mrf.mxu0
        %v5705 = vadd.f32 %v5616, %v5704
        %5706 = vmatmul.bf16.gmra.mxu0 %v4310
        %v5707 = vpop.f32.mrf.mxu0
        %v5708 = vadd.f32 %v5619, %v5707
        %v5709 = vpop.f32.mrf.mxu0
        %v5710 = vadd.f32 %v5621, %v5709
        %5711 = vmatmul.bf16.gmra.mxu0 %v4319
        %v5712 = vpop.f32.mrf.mxu0
        %v5713 = vadd.f32 %v5624, %v5712
        %v5714 = vpop.f32.mrf.mxu0
        %v5715 = vadd.f32 %v5626, %v5714
        %5716 = vmatmul.bf16.gmra.mxu0 %v4328
        %v5717 = vpop.f32.mrf.mxu0
        %v5718 = vadd.f32 %v5629, %v5717
        %v5719 = vpop.f32.mrf.mxu0
        %v5720 = vadd.f32 %v5631, %v5719
        %5721 = vmatmul.bf16.gmra.mxu0 %v4337
        %v5722 = vpop.f32.mrf.mxu0
        %v5723 = vadd.f32 %v5634, %v5722
        %v5724 = vpop.f32.mrf.mxu0
        %v5725 = vadd.f32 %v5636, %v5724
        %5726 = vmatmul.bf16.gmra.mxu0 %v4346
        %v5727 = vpop.f32.mrf.mxu0
        %v5728 = vadd.f32 %v5639, %v5727
        %v5729 = vpop.f32.mrf.mxu0
        %v5730 = vadd.f32 %v5641, %v5729
        %5731 = vmatmul.bf16.gmra.mxu0 %v4355
        %v5732 = vpop.f32.mrf.mxu0
        %v5733 = vadd.f32 %v5644, %v5732
        %v5734 = vpop.f32.mrf.mxu0
        %v5735 = vadd.f32 %v5646, %v5734
        %5736 = vmatmul.bf16.gmra.mxu0 %v4364
        %v5737 = vpop.f32.mrf.mxu0
        %v5738 = vadd.f32 %v5649, %v5737
        %v5739 = vpop.f32.mrf.mxu0
        %v5740 = vadd.f32 %v5651, %v5739
        %5741 = vdwg.mxu0
        %v5742 = vld [vmem:[%s2] sm:$0x1]
        %v5744 = vperm.slane %v5742, 0
        %v5746 = vmul.f32 %v5663, %v5744
        %v5747 = vmul.f32 %v5665, %v5744
        %v5748 = vmul.f32 %v5668, %v5744
        %v5749 = vmul.f32 %v5670, %v5744
        %v5750 = vmul.f32 %v5673, %v5744
        %v5751 = vmul.f32 %v5675, %v5744
        %v5752 = vmul.f32 %v5678, %v5744
        %v5753 = vmul.f32 %v5680, %v5744
        %v5754 = vmul.f32 %v5683, %v5744
        %v5755 = vmul.f32 %v5685, %v5744
        %v5756 = vmul.f32 %v5688, %v5744
        %v5757 = vmul.f32 %v5690, %v5744
        %v5758 = vmul.f32 %v5693, %v5744
        %v5759 = vmul.f32 %v5695, %v5744
        %v5760 = vmul.f32 %v5698, %v5744
        %v5761 = vmul.f32 %v5700, %v5744
        %v5762 = vmul.f32 %v5703, %v5744
        %v5763 = vmul.f32 %v5705, %v5744
        %v5764 = vmul.f32 %v5708, %v5744
        %v5765 = vmul.f32 %v5710, %v5744
        %v5766 = vmul.f32 %v5713, %v5744
        %v5767 = vmul.f32 %v5715, %v5744
        %v5768 = vmul.f32 %v5718, %v5744
        %v5769 = vmul.f32 %v5720, %v5744
        %v5770 = vmul.f32 %v5723, %v5744
        %v5771 = vmul.f32 %v5725, %v5744
        %v5772 = vmul.f32 %v5728, %v5744
        %v5773 = vmul.f32 %v5730, %v5744
        %v5774 = vmul.f32 %v5733, %v5744
        %v5775 = vmul.f32 %v5735, %v5744
        %v5776 = vmul.f32 %v5738, %v5744
        %v5777 = vmul.f32 %v5740, %v5744
        %v5778 = vld [vmem:[%s3] sm:$0x1]
        %v5780 = vperm.slane %v5778, 0
        %v5782 = vadd.f32 %v5746, %v5780
        %v5783 = vadd.f32 %v5747, %v5780
        %v5784 = vadd.f32 %v5748, %v5780
        %v5785 = vadd.f32 %v5749, %v5780
        %v5786 = vadd.f32 %v5750, %v5780
        %v5787 = vadd.f32 %v5751, %v5780
        %v5788 = vadd.f32 %v5752, %v5780
        %v5789 = vadd.f32 %v5753, %v5780
        %v5790 = vadd.f32 %v5754, %v5780
        %v5791 = vadd.f32 %v5755, %v5780
        %v5792 = vadd.f32 %v5756, %v5780
        %v5793 = vadd.f32 %v5757, %v5780
        %v5794 = vadd.f32 %v5758, %v5780
        %v5795 = vadd.f32 %v5759, %v5780
        %v5796 = vadd.f32 %v5760, %v5780
        %v5797 = vadd.f32 %v5761, %v5780
        %v5798 = vadd.f32 %v5762, %v5780
        %v5799 = vadd.f32 %v5763, %v5780
        %v5800 = vadd.f32 %v5764, %v5780
        %v5801 = vadd.f32 %v5765, %v5780
        %v5802 = vadd.f32 %v5766, %v5780
        %v5803 = vadd.f32 %v5767, %v5780
        %v5804 = vadd.f32 %v5768, %v5780
        %v5805 = vadd.f32 %v5769, %v5780
        %v5806 = vadd.f32 %v5770, %v5780
        %v5807 = vadd.f32 %v5771, %v5780
        %v5808 = vadd.f32 %v5772, %v5780
        %v5809 = vadd.f32 %v5773, %v5780
        %v5810 = vadd.f32 %v5774, %v5780
        %v5811 = vadd.f32 %v5775, %v5780
        %v5812 = vadd.f32 %v5776, %v5780
        %v5813 = vadd.f32 %v5777, %v5780
        %v5814 = vmax.f32 %v5782, 0.0
        %v5815 = vmax.f32 %v5783, 0.0
        %v5816 = vmax.f32 %v5784, 0.0
        %v5817 = vmax.f32 %v5785, 0.0
        %v5818 = vmax.f32 %v5786, 0.0
        %v5819 = vmax.f32 %v5787, 0.0
        %v5820 = vmax.f32 %v5788, 0.0
        %v5821 = vmax.f32 %v5789, 0.0
        %v5822 = vmax.f32 %v5790, 0.0
        %v5823 = vmax.f32 %v5791, 0.0
        %v5824 = vmax.f32 %v5792, 0.0
        %v5825 = vmax.f32 %v5793, 0.0
        %v5826 = vmax.f32 %v5794, 0.0
        %v5827 = vmax.f32 %v5795, 0.0
        %v5828 = vmax.f32 %v5796, 0.0
        %v5829 = vmax.f32 %v5797, 0.0
        %v5830 = vmax.f32 %v5798, 0.0
        %v5831 = vmax.f32 %v5799, 0.0
        %v5832 = vmax.f32 %v5800, 0.0
        %v5833 = vmax.f32 %v5801, 0.0
        %v5834 = vmax.f32 %v5802, 0.0
        %v5835 = vmax.f32 %v5803, 0.0
        %v5836 = vmax.f32 %v5804, 0.0
        %v5837 = vmax.f32 %v5805, 0.0
        %v5838 = vmax.f32 %v5806, 0.0
        %v5839 = vmax.f32 %v5807, 0.0
        %v5840 = vmax.f32 %v5808, 0.0
        %v5841 = vmax.f32 %v5809, 0.0
        %v5842 = vmax.f32 %v5810, 0.0
        %v5843 = vmax.f32 %v5811, 0.0
        %v5844 = vmax.f32 %v5812, 0.0
        %v5845 = vmax.f32 %v5813, 0.0
        %v5846 = vpack.c.bf16 %v5814, %v5814
        %v5847 = vpack.c.bf16 %v5815, %v5815
        %v5848 = vpack.c.bf16 %v5816, %v5816
        %v5849 = vpack.c.bf16 %v5817, %v5817
        %v5850 = vpack.c.bf16 %v5818, %v5818
        %v5851 = vpack.c.bf16 %v5819, %v5819
        %v5852 = vpack.c.bf16 %v5820, %v5820
        %v5853 = vpack.c.bf16 %v5821, %v5821
        %v5854 = vpack.c.bf16 %v5822, %v5822
        %v5855 = vpack.c.bf16 %v5823, %v5823
        %v5856 = vpack.c.bf16 %v5824, %v5824
        %v5857 = vpack.c.bf16 %v5825, %v5825
        %v5858 = vpack.c.bf16 %v5826, %v5826
        %v5859 = vpack.c.bf16 %v5827, %v5827
        %v5860 = vpack.c.bf16 %v5828, %v5828
        %v5861 = vpack.c.bf16 %v5829, %v5829
        %v5862 = vpack.c.bf16 %v5830, %v5830
        %v5863 = vpack.c.bf16 %v5831, %v5831
        %v5864 = vpack.c.bf16 %v5832, %v5832
        %v5865 = vpack.c.bf16 %v5833, %v5833
        %v5866 = vpack.c.bf16 %v5834, %v5834
        %v5867 = vpack.c.bf16 %v5835, %v5835
        %v5868 = vpack.c.bf16 %v5836, %v5836
        %v5869 = vpack.c.bf16 %v5837, %v5837
        %v5870 = vpack.c.bf16 %v5838, %v5838
        %v5871 = vpack.c.bf16 %v5839, %v5839
        %v5872 = vpack.c.bf16 %v5840, %v5840
        %v5873 = vpack.c.bf16 %v5841, %v5841
        %v5874 = vpack.c.bf16 %v5842, %v5842
        %v5875 = vpack.c.bf16 %v5843, %v5843
        %v5876 = vpack.c.bf16 %v5844, %v5844
        %v5877 = vpack.c.bf16 %v5845, %v5845
        %v5879 = vshrl.u32 %v5846, 16
        %v5881 = vrot.slane %v5879, 7
        %v5882 = vshll.u32 %v5846, 16
        %v5884 = vor.u32 %v5881, %v5882
        %v5885 = vrot.slane %v5881, 4
        %v5887 = vshrl.u32 %v5847, 16
        %v5889 = vrot.slane %v5887, 7
        %v5890 = vshll.u32 %v5847, 16
        %v5892 = vor.u32 %v5889, %v5890
        %v5893 = vsel %vm530, %v5885, %v5892
        %v5894 = vrot.slane %v5889, 4
        %v5896 = vshrl.u32 %v5848, 16
        %v5898 = vrot.slane %v5896, 7
        %v5899 = vshll.u32 %v5848, 16
        %v5901 = vor.u32 %v5898, %v5899
        %v5902 = vrot.slane %v5898, 4
        %v5904 = vshrl.u32 %v5849, 16
        %v5906 = vrot.slane %v5904, 7
        %v5907 = vshll.u32 %v5849, 16
        %v5909 = vor.u32 %v5906, %v5907
        %v5910 = vsel %vm530, %v5902, %v5909
        %v5911 = vrot.slane %v5906, 4
        %v5913 = vshrl.u32 %v5850, 16
        %v5915 = vrot.slane %v5913, 7
        %v5916 = vshll.u32 %v5850, 16
        %v5918 = vor.u32 %v5915, %v5916
        %v5919 = vrot.slane %v5915, 4
        %v5921 = vshrl.u32 %v5851, 16
        %v5923 = vrot.slane %v5921, 7
        %v5924 = vshll.u32 %v5851, 16
        %v5926 = vor.u32 %v5923, %v5924
        %v5927 = vsel %vm530, %v5919, %v5926
        %v5928 = vrot.slane %v5923, 4
        %v5930 = vshrl.u32 %v5852, 16
        %v5932 = vrot.slane %v5930, 7
        %v5933 = vshll.u32 %v5852, 16
        %v5935 = vor.u32 %v5932, %v5933
        %v5936 = vrot.slane %v5932, 4
        %v5938 = vshrl.u32 %v5853, 16
        %v5940 = vrot.slane %v5938, 7
        %v5941 = vshll.u32 %v5853, 16
        %v5943 = vor.u32 %v5940, %v5941
        %v5944 = vsel %vm530, %v5936, %v5943
        %v5945 = vrot.slane %v5940, 4
        %v5947 = vshrl.u32 %v5854, 16
        %v5949 = vrot.slane %v5947, 7
        %v5950 = vshll.u32 %v5854, 16
        %v5952 = vor.u32 %v5949, %v5950
        %v5953 = vrot.slane %v5949, 4
        %v5955 = vshrl.u32 %v5855, 16
        %v5957 = vrot.slane %v5955, 7
        %v5958 = vshll.u32 %v5855, 16
        %v5960 = vor.u32 %v5957, %v5958
        %v5961 = vsel %vm530, %v5953, %v5960
        %v5962 = vrot.slane %v5957, 4
        %v5964 = vshrl.u32 %v5856, 16
        %v5966 = vrot.slane %v5964, 7
        %v5967 = vshll.u32 %v5856, 16
        %v5969 = vor.u32 %v5966, %v5967
        %v5970 = vrot.slane %v5966, 4
        %v5972 = vshrl.u32 %v5857, 16
        %v5974 = vrot.slane %v5972, 7
        %v5975 = vshll.u32 %v5857, 16
        %v5977 = vor.u32 %v5974, %v5975
        %v5978 = vsel %vm530, %v5970, %v5977
        %v5979 = vrot.slane %v5974, 4
        %v5981 = vshrl.u32 %v5858, 16
        %v5983 = vrot.slane %v5981, 7
        %v5984 = vshll.u32 %v5858, 16
        %v5986 = vor.u32 %v5983, %v5984
        %v5987 = vrot.slane %v5983, 4
        %v5989 = vshrl.u32 %v5859, 16
        %v5991 = vrot.slane %v5989, 7
        %v5992 = vshll.u32 %v5859, 16
        %v5994 = vor.u32 %v5991, %v5992
        %v5995 = vsel %vm530, %v5987, %v5994
        %v5996 = vrot.slane %v5991, 4
        %v5998 = vshrl.u32 %v5860, 16
        %v6000 = vrot.slane %v5998, 7
        %v6001 = vshll.u32 %v5860, 16
        %v6003 = vor.u32 %v6000, %v6001
        %v6004 = vrot.slane %v6000, 4
        %v6006 = vshrl.u32 %v5861, 16
        %v6008 = vrot.slane %v6006, 7
        %v6009 = vshll.u32 %v5861, 16
        %v6011 = vor.u32 %v6008, %v6009
        %v6012 = vsel %vm530, %v6004, %v6011
        %v6013 = vrot.slane %v6008, 4
        %v6015 = vshrl.u32 %v5862, 16
        %v6017 = vrot.slane %v6015, 7
        %v6018 = vshll.u32 %v5862, 16
        %v6020 = vor.u32 %v6017, %v6018
        %v6021 = vrot.slane %v6017, 4
        %v6023 = vshrl.u32 %v5863, 16
        %v6025 = vrot.slane %v6023, 7
        %v6026 = vshll.u32 %v5863, 16
        %v6028 = vor.u32 %v6025, %v6026
        %v6029 = vsel %vm530, %v6021, %v6028
        %v6030 = vrot.slane %v6025, 4
        %v6032 = vshrl.u32 %v5864, 16
        %v6034 = vrot.slane %v6032, 7
        %v6035 = vshll.u32 %v5864, 16
        %v6037 = vor.u32 %v6034, %v6035
        %v6038 = vrot.slane %v6034, 4
        %v6040 = vshrl.u32 %v5865, 16
        %v6042 = vrot.slane %v6040, 7
        %v6043 = vshll.u32 %v5865, 16
        %v6045 = vor.u32 %v6042, %v6043
        %v6046 = vsel %vm530, %v6038, %v6045
        %v6047 = vrot.slane %v6042, 4
        %v6049 = vshrl.u32 %v5866, 16
        %v6051 = vrot.slane %v6049, 7
        %v6052 = vshll.u32 %v5866, 16
        %v6054 = vor.u32 %v6051, %v6052
        %v6055 = vrot.slane %v6051, 4
        %v6057 = vshrl.u32 %v5867, 16
        %v6059 = vrot.slane %v6057, 7
        %v6060 = vshll.u32 %v5867, 16
        %v6062 = vor.u32 %v6059, %v6060
        %v6063 = vsel %vm530, %v6055, %v6062
        %v6064 = vrot.slane %v6059, 4
        %v6066 = vshrl.u32 %v5868, 16
        %v6068 = vrot.slane %v6066, 7
        %v6069 = vshll.u32 %v5868, 16
        %v6071 = vor.u32 %v6068, %v6069
        %v6072 = vrot.slane %v6068, 4
        %v6074 = vshrl.u32 %v5869, 16
        %v6076 = vrot.slane %v6074, 7
        %v6077 = vshll.u32 %v5869, 16
        %v6079 = vor.u32 %v6076, %v6077
        %v6080 = vsel %vm530, %v6072, %v6079
        %v6081 = vrot.slane %v6076, 4
        %v6083 = vshrl.u32 %v5870, 16
        %v6085 = vrot.slane %v6083, 7
        %v6086 = vshll.u32 %v5870, 16
        %v6088 = vor.u32 %v6085, %v6086
        %v6089 = vrot.slane %v6085, 4
        %v6091 = vshrl.u32 %v5871, 16
        %v6093 = vrot.slane %v6091, 7
        %v6094 = vshll.u32 %v5871, 16
        %v6096 = vor.u32 %v6093, %v6094
        %v6097 = vsel %vm530, %v6089, %v6096
        %v6098 = vrot.slane %v6093, 4
        %v6100 = vshrl.u32 %v5872, 16
        %v6102 = vrot.slane %v6100, 7
        %v6103 = vshll.u32 %v5872, 16
        %v6105 = vor.u32 %v6102, %v6103
        %v6106 = vrot.slane %v6102, 4
        %v6108 = vshrl.u32 %v5873, 16
        %v6110 = vrot.slane %v6108, 7
        %v6111 = vshll.u32 %v5873, 16
        %v6113 = vor.u32 %v6110, %v6111
        %v6114 = vsel %vm530, %v6106, %v6113
        %v6115 = vrot.slane %v6110, 4
        %v6117 = vshrl.u32 %v5874, 16
        %v6119 = vrot.slane %v6117, 7
        %v6120 = vshll.u32 %v5874, 16
        %v6122 = vor.u32 %v6119, %v6120
        %v6123 = vrot.slane %v6119, 4
        %v6125 = vshrl.u32 %v5875, 16
        %v6127 = vrot.slane %v6125, 7
        %v6128 = vshll.u32 %v5875, 16
        %v6130 = vor.u32 %v6127, %v6128
        %v6131 = vsel %vm530, %v6123, %v6130
        %v6132 = vrot.slane %v6127, 4
        %v6134 = vshrl.u32 %v5876, 16
        %v6136 = vrot.slane %v6134, 7
        %v6137 = vshll.u32 %v5876, 16
        %v6139 = vor.u32 %v6136, %v6137
        %v6140 = vrot.slane %v6136, 4
        %v6142 = vshrl.u32 %v5877, 16
        %v6144 = vrot.slane %v6142, 7
        %v6145 = vshll.u32 %v5877, 16
        %v6147 = vor.u32 %v6144, %v6145
        %v6148 = vsel %vm530, %v6140, %v6147
        %v6149 = vrot.slane %v6144, 4
        %v6198 = vld [vmem:[%s851] sm:$0xf]
        %v6199 = vsel %vm853, %v5884, %v6198
        %6200 = vst [vmem:[%s851] sm:$0xf] %v6199
        %6201 = vst [vmem:[%s851 + $0x4] sm:$0xf] %v5893
        %v6202 = vld [vmem:[%s851 + $0x8] sm:$0x1]
        %v6203 = vsel %vm386, %v5894, %v6202
        %6204 = vst [vmem:[%s851 + $0x8] sm:$0x1] %v6203
        %v6205 = vld [vmem:[%s851 + $0xc] sm:$0xf]
        %v6206 = vsel %vm853, %v5901, %v6205
        %6207 = vst [vmem:[%s851 + $0xc] sm:$0xf] %v6206
        %6208 = vst [vmem:[%s851 + $0x10] sm:$0xf] %v5910
        %v6209 = vld [vmem:[%s851 + $0x14] sm:$0x1]
        %v6210 = vsel %vm386, %v5911, %v6209
        %6211 = vst [vmem:[%s851 + $0x14] sm:$0x1] %v6210
        %v6212 = vld [vmem:[%s851 + $0x18] sm:$0xf]
        %v6213 = vsel %vm853, %v5918, %v6212
        %6214 = vst [vmem:[%s851 + $0x18] sm:$0xf] %v6213
        %6215 = vst [vmem:[%s851 + $0x1c] sm:$0xf] %v5927
        %v6216 = vld [vmem:[%s851 + $0x20] sm:$0x1]
        %v6217 = vsel %vm386, %v5928, %v6216
        %6218 = vst [vmem:[%s851 + $0x20] sm:$0x1] %v6217
        %v6219 = vld [vmem:[%s851 + $0x24] sm:$0xf]
        %v6220 = vsel %vm853, %v5935, %v6219
        %6221 = vst [vmem:[%s851 + $0x24] sm:$0xf] %v6220
        %6222 = vst [vmem:[%s851 + $0x28] sm:$0xf] %v5944
        %v6223 = vld [vmem:[%s851 + $0x2c] sm:$0x1]
        %v6224 = vsel %vm386, %v5945, %v6223
        %6225 = vst [vmem:[%s851 + $0x2c] sm:$0x1] %v6224
        %v6226 = vld [vmem:[%s851 + $0x30] sm:$0xf]
        %v6227 = vsel %vm853, %v5952, %v6226
        %6228 = vst [vmem:[%s851 + $0x30] sm:$0xf] %v6227
        %6229 = vst [vmem:[%s851 + $0x34] sm:$0xf] %v5961
        %v6230 = vld [vmem:[%s851 + $0x38] sm:$0x1]
        %v6231 = vsel %vm386, %v5962, %v6230
        %6232 = vst [vmem:[%s851 + $0x38] sm:$0x1] %v6231
        %v6233 = vld [vmem:[%s851 + $0x3c] sm:$0xf]
        %v6234 = vsel %vm853, %v5969, %v6233
        %6235 = vst [vmem:[%s851 + $0x3c] sm:$0xf] %v6234
        %6236 = vst [vmem:[%s851 + $0x40] sm:$0xf] %v5978
        %v6237 = vld [vmem:[%s851 + $0x44] sm:$0x1]
        %v6238 = vsel %vm386, %v5979, %v6237
        %6239 = vst [vmem:[%s851 + $0x44] sm:$0x1] %v6238
        %v6240 = vld [vmem:[%s851 + $0x48] sm:$0xf]
        %v6241 = vsel %vm853, %v5986, %v6240
        %6242 = vst [vmem:[%s851 + $0x48] sm:$0xf] %v6241
        %6243 = vst [vmem:[%s851 + $0x4c] sm:$0xf] %v5995
        %v6244 = vld [vmem:[%s851 + $0x50] sm:$0x1]
        %v6245 = vsel %vm386, %v5996, %v6244
        %6246 = vst [vmem:[%s851 + $0x50] sm:$0x1] %v6245
        %v6247 = vld [vmem:[%s851 + $0x54] sm:$0xf]
        %v6248 = vsel %vm853, %v6003, %v6247
        %6249 = vst [vmem:[%s851 + $0x54] sm:$0xf] %v6248
        %6250 = vst [vmem:[%s851 + $0x58] sm:$0xf] %v6012
        %v6251 = vld [vmem:[%s851 + $0x5c] sm:$0x1]
        %v6252 = vsel %vm386, %v6013, %v6251
        %6253 = vst [vmem:[%s851 + $0x5c] sm:$0x1] %v6252
        %v6254 = vld [vmem:[%s851 + $0x60] sm:$0xf]
        %v6255 = vsel %vm853, %v6020, %v6254
        %6256 = vst [vmem:[%s851 + $0x60] sm:$0xf] %v6255
        %6257 = vst [vmem:[%s851 + $0x64] sm:$0xf] %v6029
        %v6258 = vld [vmem:[%s851 + $0x68] sm:$0x1]
        %v6259 = vsel %vm386, %v6030, %v6258
        %6260 = vst [vmem:[%s851 + $0x68] sm:$0x1] %v6259
        %v6261 = vld [vmem:[%s851 + $0x6c] sm:$0xf]
        %v6262 = vsel %vm853, %v6037, %v6261
        %6263 = vst [vmem:[%s851 + $0x6c] sm:$0xf] %v6262
        %6264 = vst [vmem:[%s851 + $0x70] sm:$0xf] %v6046
        %v6265 = vld [vmem:[%s851 + $0x74] sm:$0x1]
        %v6266 = vsel %vm386, %v6047, %v6265
        %6267 = vst [vmem:[%s851 + $0x74] sm:$0x1] %v6266
        %v6268 = vld [vmem:[%s851 + $0x78] sm:$0xf]
        %v6269 = vsel %vm853, %v6054, %v6268
        %6270 = vst [vmem:[%s851 + $0x78] sm:$0xf] %v6269
        %6271 = vst [vmem:[%s851 + $0x7c] sm:$0xf] %v6063
        %v6272 = vld [vmem:[%s851 + $0x80] sm:$0x1]
        %v6273 = vsel %vm386, %v6064, %v6272
        %6274 = vst [vmem:[%s851 + $0x80] sm:$0x1] %v6273
        %v6275 = vld [vmem:[%s851 + $0x84] sm:$0xf]
        %v6276 = vsel %vm853, %v6071, %v6275
        %6277 = vst [vmem:[%s851 + $0x84] sm:$0xf] %v6276
        %6278 = vst [vmem:[%s851 + $0x88] sm:$0xf] %v6080
        %v6279 = vld [vmem:[%s851 + $0x8c] sm:$0x1]
        %v6280 = vsel %vm386, %v6081, %v6279
        %6281 = vst [vmem:[%s851 + $0x8c] sm:$0x1] %v6280
        %v6282 = vld [vmem:[%s851 + $0x90] sm:$0xf]
        %v6283 = vsel %vm853, %v6088, %v6282
        %6284 = vst [vmem:[%s851 + $0x90] sm:$0xf] %v6283
        %6285 = vst [vmem:[%s851 + $0x94] sm:$0xf] %v6097
        %v6286 = vld [vmem:[%s851 + $0x98] sm:$0x1]
        %v6287 = vsel %vm386, %v6098, %v6286
        %6288 = vst [vmem:[%s851 + $0x98] sm:$0x1] %v6287
        %v6289 = vld [vmem:[%s851 + $0x9c] sm:$0xf]
        %v6290 = vsel %vm853, %v6105, %v6289
        %6291 = vst [vmem:[%s851 + $0x9c] sm:$0xf] %v6290
        %6292 = vst [vmem:[%s851 + $0xa0] sm:$0xf] %v6114
        %v6293 = vld [vmem:[%s851 + $0xa4] sm:$0x1]
        %v6294 = vsel %vm386, %v6115, %v6293
        %6295 = vst [vmem:[%s851 + $0xa4] sm:$0x1] %v6294
        %v6296 = vld [vmem:[%s851 + $0xa8] sm:$0xf]
        %v6297 = vsel %vm853, %v6122, %v6296
        %6298 = vst [vmem:[%s851 + $0xa8] sm:$0xf] %v6297
        %6299 = vst [vmem:[%s851 + $0xac] sm:$0xf] %v6131
        %v6300 = vld [vmem:[%s851 + $0xb0] sm:$0x1]
        %v6301 = vsel %vm386, %v6132, %v6300
        %6302 = vst [vmem:[%s851 + $0xb0] sm:$0x1] %v6301
        %v6303 = vld [vmem:[%s851 + $0xb4] sm:$0xf]
        %v6304 = vsel %vm853, %v6139, %v6303
        %6305 = vst [vmem:[%s851 + $0xb4] sm:$0xf] %v6304
        %6306 = vst [vmem:[%s851 + $0xb8] sm:$0xf] %v6148
        %v6307 = vld [vmem:[%s851 + $0xbc] sm:$0x1]
        %v6308 = vsel %vm386, %v6149, %v6307
        %6309 = vst [vmem:[%s851 + $0xbc] sm:$0x1] %v6308
        %v6310 = vld [vmem:[#allocation2] sm:$0xf]
        %v6311 = vld [vmem:[#allocation2 + $0x4] sm:$0xf]
        %v6312 = vld [vmem:[#allocation2 + $0xc] sm:$0xf]
        %v6313 = vld [vmem:[#allocation2 + $0x10] sm:$0xf]
        %v6314 = vld [vmem:[#allocation2 + $0x18] sm:$0xf]
        %v6315 = vld [vmem:[#allocation2 + $0x1c] sm:$0xf]
        %v6316 = vld [vmem:[#allocation2 + $0x24] sm:$0xf]
        %v6317 = vld [vmem:[#allocation2 + $0x28] sm:$0xf]
        %v6318 = vld [vmem:[#allocation2 + $0x30] sm:$0xf]
        %v6319 = vld [vmem:[#allocation2 + $0x34] sm:$0xf]
        %v6320 = vld [vmem:[#allocation2 + $0x3c] sm:$0xf]
        %v6321 = vld [vmem:[#allocation2 + $0x40] sm:$0xf]
        %v6322 = vld [vmem:[#allocation2 + $0x48] sm:$0xf]
        %v6323 = vld [vmem:[#allocation2 + $0x4c] sm:$0xf]
        %v6324 = vld [vmem:[#allocation2 + $0x54] sm:$0xf]
        %v6325 = vld [vmem:[#allocation2 + $0x58] sm:$0xf]
        %v6326 = vld [vmem:[#allocation2 + $0x60] sm:$0xf]
        %v6327 = vld [vmem:[#allocation2 + $0x64] sm:$0xf]
        %v6328 = vld [vmem:[#allocation2 + $0x6c] sm:$0xf]
        %v6329 = vld [vmem:[#allocation2 + $0x70] sm:$0xf]
        %v6330 = vld [vmem:[#allocation2 + $0x78] sm:$0xf]
        %v6331 = vld [vmem:[#allocation2 + $0x7c] sm:$0xf]
        %v6332 = vld [vmem:[#allocation2 + $0x84] sm:$0xf]
        %v6333 = vld [vmem:[#allocation2 + $0x88] sm:$0xf]
        %v6334 = vld [vmem:[#allocation2 + $0x90] sm:$0xf]
        %v6335 = vld [vmem:[#allocation2 + $0x94] sm:$0xf]
        %v6336 = vld [vmem:[#allocation2 + $0x9c] sm:$0xf]
        %v6337 = vld [vmem:[#allocation2 + $0xa0] sm:$0xf]
        %v6338 = vld [vmem:[#allocation2 + $0xa8] sm:$0xf]
        %v6339 = vld [vmem:[#allocation2 + $0xac] sm:$0xf]
        %v6340 = vld [vmem:[#allocation2 + $0xb4] sm:$0xf]
        %v6341 = vld [vmem:[#allocation2 + $0xb8] sm:$0xf]
        %6342 = vst [vmem:[#allocation3] sm:$0xf] %v6310
        %6343 = vst [vmem:[#allocation3 + $0x24] sm:$0xf] %v6311
        %6344 = vst [vmem:[#allocation3 + $0x48] sm:$0xf] %v6312
        %6345 = vst [vmem:[#allocation3 + $0x6c] sm:$0xf] %v6313
        %6346 = vst [vmem:[#allocation3 + $0x90] sm:$0xf] %v6314
        %6347 = vst [vmem:[#allocation3 + $0xb4] sm:$0xf] %v6315
        %6348 = vst [vmem:[#allocation3 + $0xd8] sm:$0xf] %v6316
        %6349 = vst [vmem:[#allocation3 + $0xfc] sm:$0xf] %v6317
        %6350 = vst [vmem:[#allocation3 + $0x120] sm:$0xf] %v6318
        %6351 = vst [vmem:[#allocation3 + $0x144] sm:$0xf] %v6319
        %6352 = vst [vmem:[#allocation3 + $0x168] sm:$0xf] %v6320
        %6353 = vst [vmem:[#allocation3 + $0x18c] sm:$0xf] %v6321
        %6354 = vst [vmem:[#allocation3 + $0x1b0] sm:$0xf] %v6322
        %6355 = vst [vmem:[#allocation3 + $0x1d4] sm:$0xf] %v6323
        %6356 = vst [vmem:[#allocation3 + $0x1f8] sm:$0xf] %v6324
        %6357 = vst [vmem:[#allocation3 + $0x21c] sm:$0xf] %v6325
        %6358 = vst [vmem:[#allocation3 + $0x240] sm:$0xf] %v6326
        %6359 = vst [vmem:[#allocation3 + $0x264] sm:$0xf] %v6327
        %6360 = vst [vmem:[#allocation3 + $0x288] sm:$0xf] %v6328
        %6361 = vst [vmem:[#allocation3 + $0x2ac] sm:$0xf] %v6329
        %6362 = vst [vmem:[#allocation3 + $0x2d0] sm:$0xf] %v6330
        %6363 = vst [vmem:[#allocation3 + $0x2f4] sm:$0xf] %v6331
        %6364 = vst [vmem:[#allocation3 + $0x318] sm:$0xf] %v6332
        %6365 = vst [vmem:[#allocation3 + $0x33c] sm:$0xf] %v6333
        %6366 = vst [vmem:[#allocation3 + $0x360] sm:$0xf] %v6334
        %6367 = vst [vmem:[#allocation3 + $0x384] sm:$0xf] %v6335
        %6368 = vst [vmem:[#allocation3 + $0x3a8] sm:$0xf] %v6336
        %6369 = vst [vmem:[#allocation3 + $0x3cc] sm:$0xf] %v6337
        %6370 = vst [vmem:[#allocation3 + $0x3f0] sm:$0xf] %v6338
        %6371 = vst [vmem:[#allocation3 + $0x414] sm:$0xf] %v6339
        %6372 = vst [vmem:[#allocation3 + $0x438] sm:$0xf] %v6340
        %6373 = vst [vmem:[#allocation3 + $0x45c] sm:$0xf] %v6341
        %v6374 = vld [vmem:[#allocation2] sm:$0xf]
        %v6375 = vld [vmem:[#allocation2 + $0x4] sm:$0xf]
        %v6376 = vld [vmem:[#allocation2 + $0x8] sm:$0x1]
        %v6377 = vld [vmem:[#allocation2 + $0xc] sm:$0xf]
        %v6378 = vld [vmem:[#allocation2 + $0x10] sm:$0xf]
        %v6379 = vld [vmem:[#allocation2 + $0x14] sm:$0x1]
        %v6380 = vld [vmem:[#allocation2 + $0x18] sm:$0xf]
        %v6381 = vld [vmem:[#allocation2 + $0x1c] sm:$0xf]
        %v6382 = vld [vmem:[#allocation2 + $0x20] sm:$0x1]
        %v6383 = vld [vmem:[#allocation2 + $0x24] sm:$0xf]
        %v6384 = vld [vmem:[#allocation2 + $0x28] sm:$0xf]
        %v6385 = vld [vmem:[#allocation2 + $0x2c] sm:$0x1]
        %v6386 = vld [vmem:[#allocation2 + $0x30] sm:$0xf]
        %v6387 = vld [vmem:[#allocation2 + $0x34] sm:$0xf]
        %v6388 = vld [vmem:[#allocation2 + $0x38] sm:$0x1]
        %v6389 = vld [vmem:[#allocation2 + $0x3c] sm:$0xf]
        %v6390 = vld [vmem:[#allocation2 + $0x40] sm:$0xf]
        %v6391 = vld [vmem:[#allocation2 + $0x44] sm:$0x1]
        %v6392 = vld [vmem:[#allocation2 + $0x48] sm:$0xf]
        %v6393 = vld [vmem:[#allocation2 + $0x4c] sm:$0xf]
        %v6394 = vld [vmem:[#allocation2 + $0x50] sm:$0x1]
        %v6395 = vld [vmem:[#allocation2 + $0x54] sm:$0xf]
        %v6396 = vld [vmem:[#allocation2 + $0x58] sm:$0xf]
        %v6397 = vld [vmem:[#allocation2 + $0x5c] sm:$0x1]
        %v6398 = vld [vmem:[#allocation2 + $0x60] sm:$0xf]
        %v6399 = vld [vmem:[#allocation2 + $0x64] sm:$0xf]
        %v6400 = vld [vmem:[#allocation2 + $0x68] sm:$0x1]
        %v6401 = vld [vmem:[#allocation2 + $0x6c] sm:$0xf]
        %v6402 = vld [vmem:[#allocation2 + $0x70] sm:$0xf]
        %v6403 = vld [vmem:[#allocation2 + $0x74] sm:$0x1]
        %v6404 = vld [vmem:[#allocation2 + $0x78] sm:$0xf]
        %v6405 = vld [vmem:[#allocation2 + $0x7c] sm:$0xf]
        %v6406 = vld [vmem:[#allocation2 + $0x80] sm:$0x1]
        %v6407 = vld [vmem:[#allocation2 + $0x84] sm:$0xf]
        %v6408 = vld [vmem:[#allocation2 + $0x88] sm:$0xf]
        %v6409 = vld [vmem:[#allocation2 + $0x8c] sm:$0x1]
        %v6410 = vld [vmem:[#allocation2 + $0x90] sm:$0xf]
        %v6411 = vld [vmem:[#allocation2 + $0x94] sm:$0xf]
        %v6412 = vld [vmem:[#allocation2 + $0x98] sm:$0x1]
        %v6413 = vld [vmem:[#allocation2 + $0x9c] sm:$0xf]
        %v6414 = vld [vmem:[#allocation2 + $0xa0] sm:$0xf]
        %v6415 = vld [vmem:[#allocation2 + $0xa4] sm:$0x1]
        %v6416 = vld [vmem:[#allocation2 + $0xa8] sm:$0xf]
        %v6417 = vld [vmem:[#allocation2 + $0xac] sm:$0xf]
        %v6418 = vld [vmem:[#allocation2 + $0xb0] sm:$0x1]
        %v6419 = vld [vmem:[#allocation2 + $0xb4] sm:$0xf]
        %v6420 = vld [vmem:[#allocation2 + $0xb8] sm:$0xf]
        %v6421 = vld [vmem:[#allocation2 + $0xbc] sm:$0x1]
        %v6423 = vshrl.u32 %v6374, 16
        %v6425 = vrot.slane %v6423, 4
        %v6426 = vshll.u32 %v6374, 16
        %v6428 = vrot.slane %v6426, 5
        %v6429 = vor.u32 %v6425, %v6428
        %v6430 = vrot.slane %v6429, 4
        %v6432 = vshll.u32 %v6375, 16
        %v6434 = vrot.slane %v6432, 5
        %v6435 = vsel %vm1080, %v6430, %v6434
        %v6436 = vshrl.u32 %v6375, 16
        %v6438 = vrot.slane %v6436, 4
        %v6439 = vor.u32 %v6438, %v6434
        %v6440 = vrot.slane %v6439, 4
        %v6442 = vshll.u32 %v6376, 16
        %v6444 = vrot.slane %v6442, 5
        %v6445 = vsel %vm1080, %v6440, %v6444
        %v6447 = vshrl.u32 %v6377, 16
        %v6449 = vrot.slane %v6447, 4
        %v6450 = vshll.u32 %v6377, 16
        %v6452 = vrot.slane %v6450, 5
        %v6453 = vor.u32 %v6449, %v6452
        %v6454 = vrot.slane %v6453, 4
        %v6456 = vshll.u32 %v6378, 16
        %v6458 = vrot.slane %v6456, 5
        %v6459 = vsel %vm1080, %v6454, %v6458
        %v6460 = vshrl.u32 %v6378, 16
        %v6462 = vrot.slane %v6460, 4
        %v6463 = vor.u32 %v6462, %v6458
        %v6464 = vrot.slane %v6463, 4
        %v6466 = vshll.u32 %v6379, 16
        %v6468 = vrot.slane %v6466, 5
        %v6469 = vsel %vm1080, %v6464, %v6468
        %v6471 = vshrl.u32 %v6380, 16
        %v6473 = vrot.slane %v6471, 4
        %v6474 = vshll.u32 %v6380, 16
        %v6476 = vrot.slane %v6474, 5
        %v6477 = vor.u32 %v6473, %v6476
        %v6478 = vrot.slane %v6477, 4
        %v6480 = vshll.u32 %v6381, 16
        %v6482 = vrot.slane %v6480, 5
        %v6483 = vsel %vm1080, %v6478, %v6482
        %v6484 = vshrl.u32 %v6381, 16
        %v6486 = vrot.slane %v6484, 4
        %v6487 = vor.u32 %v6486, %v6482
        %v6488 = vrot.slane %v6487, 4
        %v6490 = vshll.u32 %v6382, 16
        %v6492 = vrot.slane %v6490, 5
        %v6493 = vsel %vm1080, %v6488, %v6492
        %v6495 = vshrl.u32 %v6383, 16
        %v6497 = vrot.slane %v6495, 4
        %v6498 = vshll.u32 %v6383, 16
        %v6500 = vrot.slane %v6498, 5
        %v6501 = vor.u32 %v6497, %v6500
        %v6502 = vrot.slane %v6501, 4
        %v6504 = vshll.u32 %v6384, 16
        %v6506 = vrot.slane %v6504, 5
        %v6507 = vsel %vm1080, %v6502, %v6506
        %v6508 = vshrl.u32 %v6384, 16
        %v6510 = vrot.slane %v6508, 4
        %v6511 = vor.u32 %v6510, %v6506
        %v6512 = vrot.slane %v6511, 4
        %v6514 = vshll.u32 %v6385, 16
        %v6516 = vrot.slane %v6514, 5
        %v6517 = vsel %vm1080, %v6512, %v6516
        %v6519 = vshrl.u32 %v6386, 16
        %v6521 = vrot.slane %v6519, 4
        %v6522 = vshll.u32 %v6386, 16
        %v6524 = vrot.slane %v6522, 5
        %v6525 = vor.u32 %v6521, %v6524
        %v6526 = vrot.slane %v6525, 4
        %v6528 = vshll.u32 %v6387, 16
        %v6530 = vrot.slane %v6528, 5
        %v6531 = vsel %vm1080, %v6526, %v6530
        %v6532 = vshrl.u32 %v6387, 16
        %v6534 = vrot.slane %v6532, 4
        %v6535 = vor.u32 %v6534, %v6530
        %v6536 = vrot.slane %v6535, 4
        %v6538 = vshll.u32 %v6388, 16
        %v6540 = vrot.slane %v6538, 5
        %v6541 = vsel %vm1080, %v6536, %v6540
        %v6543 = vshrl.u32 %v6389, 16
        %v6545 = vrot.slane %v6543, 4
        %v6546 = vshll.u32 %v6389, 16
        %v6548 = vrot.slane %v6546, 5
        %v6549 = vor.u32 %v6545, %v6548
        %v6550 = vrot.slane %v6549, 4
        %v6552 = vshll.u32 %v6390, 16
        %v6554 = vrot.slane %v6552, 5
        %v6555 = vsel %vm1080, %v6550, %v6554
        %v6556 = vshrl.u32 %v6390, 16
        %v6558 = vrot.slane %v6556, 4
        %v6559 = vor.u32 %v6558, %v6554
        %v6560 = vrot.slane %v6559, 4
        %v6562 = vshll.u32 %v6391, 16
        %v6564 = vrot.slane %v6562, 5
        %v6565 = vsel %vm1080, %v6560, %v6564
        %v6567 = vshrl.u32 %v6392, 16
        %v6569 = vrot.slane %v6567, 4
        %v6570 = vshll.u32 %v6392, 16
        %v6572 = vrot.slane %v6570, 5
        %v6573 = vor.u32 %v6569, %v6572
        %v6574 = vrot.slane %v6573, 4
        %v6576 = vshll.u32 %v6393, 16
        %v6578 = vrot.slane %v6576, 5
        %v6579 = vsel %vm1080, %v6574, %v6578
        %v6580 = vshrl.u32 %v6393, 16
        %v6582 = vrot.slane %v6580, 4
        %v6583 = vor.u32 %v6582, %v6578
        %v6584 = vrot.slane %v6583, 4
        %v6586 = vshll.u32 %v6394, 16
        %v6588 = vrot.slane %v6586, 5
        %v6589 = vsel %vm1080, %v6584, %v6588
        %v6591 = vshrl.u32 %v6395, 16
        %v6593 = vrot.slane %v6591, 4
        %v6594 = vshll.u32 %v6395, 16
        %v6596 = vrot.slane %v6594, 5
        %v6597 = vor.u32 %v6593, %v6596
        %v6598 = vrot.slane %v6597, 4
        %v6600 = vshll.u32 %v6396, 16
        %v6602 = vrot.slane %v6600, 5
        %v6603 = vsel %vm1080, %v6598, %v6602
        %v6604 = vshrl.u32 %v6396, 16
        %v6606 = vrot.slane %v6604, 4
        %v6607 = vor.u32 %v6606, %v6602
        %v6608 = vrot.slane %v6607, 4
        %v6610 = vshll.u32 %v6397, 16
        %v6612 = vrot.slane %v6610, 5
        %v6613 = vsel %vm1080, %v6608, %v6612
        %v6615 = vshrl.u32 %v6398, 16
        %v6617 = vrot.slane %v6615, 4
        %v6618 = vshll.u32 %v6398, 16
        %v6620 = vrot.slane %v6618, 5
        %v6621 = vor.u32 %v6617, %v6620
        %v6622 = vrot.slane %v6621, 4
        %v6624 = vshll.u32 %v6399, 16
        %v6626 = vrot.slane %v6624, 5
        %v6627 = vsel %vm1080, %v6622, %v6626
        %v6628 = vshrl.u32 %v6399, 16
        %v6630 = vrot.slane %v6628, 4
        %v6631 = vor.u32 %v6630, %v6626
        %v6632 = vrot.slane %v6631, 4
        %v6634 = vshll.u32 %v6400, 16
        %v6636 = vrot.slane %v6634, 5
        %v6637 = vsel %vm1080, %v6632, %v6636
        %v6639 = vshrl.u32 %v6401, 16
        %v6641 = vrot.slane %v6639, 4
        %v6642 = vshll.u32 %v6401, 16
        %v6644 = vrot.slane %v6642, 5
        %v6645 = vor.u32 %v6641, %v6644
        %v6646 = vrot.slane %v6645, 4
        %v6648 = vshll.u32 %v6402, 16
        %v6650 = vrot.slane %v6648, 5
        %v6651 = vsel %vm1080, %v6646, %v6650
        %v6652 = vshrl.u32 %v6402, 16
        %v6654 = vrot.slane %v6652, 4
        %v6655 = vor.u32 %v6654, %v6650
        %v6656 = vrot.slane %v6655, 4
        %v6658 = vshll.u32 %v6403, 16
        %v6660 = vrot.slane %v6658, 5
        %v6661 = vsel %vm1080, %v6656, %v6660
        %v6663 = vshrl.u32 %v6404, 16
        %v6665 = vrot.slane %v6663, 4
        %v6666 = vshll.u32 %v6404, 16
        %v6668 = vrot.slane %v6666, 5
        %v6669 = vor.u32 %v6665, %v6668
        %v6670 = vrot.slane %v6669, 4
        %v6672 = vshll.u32 %v6405, 16
        %v6674 = vrot.slane %v6672, 5
        %v6675 = vsel %vm1080, %v6670, %v6674
        %v6676 = vshrl.u32 %v6405, 16
        %v6678 = vrot.slane %v6676, 4
        %v6679 = vor.u32 %v6678, %v6674
        %v6680 = vrot.slane %v6679, 4
        %v6682 = vshll.u32 %v6406, 16
        %v6684 = vrot.slane %v6682, 5
        %v6685 = vsel %vm1080, %v6680, %v6684
        %v6687 = vshrl.u32 %v6407, 16
        %v6689 = vrot.slane %v6687, 4
        %v6690 = vshll.u32 %v6407, 16
        %v6692 = vrot.slane %v6690, 5
        %v6693 = vor.u32 %v6689, %v6692
        %v6694 = vrot.slane %v6693, 4
        %v6696 = vshll.u32 %v6408, 16
        %v6698 = vrot.slane %v6696, 5
        %v6699 = vsel %vm1080, %v6694, %v6698
        %v6700 = vshrl.u32 %v6408, 16
        %v6702 = vrot.slane %v6700, 4
        %v6703 = vor.u32 %v6702, %v6698
        %v6704 = vrot.slane %v6703, 4
        %v6706 = vshll.u32 %v6409, 16
        %v6708 = vrot.slane %v6706, 5
        %v6709 = vsel %vm1080, %v6704, %v6708
        %v6711 = vshrl.u32 %v6410, 16
        %v6713 = vrot.slane %v6711, 4
        %v6714 = vshll.u32 %v6410, 16
        %v6716 = vrot.slane %v6714, 5
        %v6717 = vor.u32 %v6713, %v6716
        %v6718 = vrot.slane %v6717, 4
        %v6720 = vshll.u32 %v6411, 16
        %v6722 = vrot.slane %v6720, 5
        %v6723 = vsel %vm1080, %v6718, %v6722
        %v6724 = vshrl.u32 %v6411, 16
        %v6726 = vrot.slane %v6724, 4
        %v6727 = vor.u32 %v6726, %v6722
        %v6728 = vrot.slane %v6727, 4
        %v6730 = vshll.u32 %v6412, 16
        %v6732 = vrot.slane %v6730, 5
        %v6733 = vsel %vm1080, %v6728, %v6732
        %v6735 = vshrl.u32 %v6413, 16
        %v6737 = vrot.slane %v6735, 4
        %v6738 = vshll.u32 %v6413, 16
        %v6740 = vrot.slane %v6738, 5
        %v6741 = vor.u32 %v6737, %v6740
        %v6742 = vrot.slane %v6741, 4
        %v6744 = vshll.u32 %v6414, 16
        %v6746 = vrot.slane %v6744, 5
        %v6747 = vsel %vm1080, %v6742, %v6746
        %v6748 = vshrl.u32 %v6414, 16
        %v6750 = vrot.slane %v6748, 4
        %v6751 = vor.u32 %v6750, %v6746
        %v6752 = vrot.slane %v6751, 4
        %v6754 = vshll.u32 %v6415, 16
        %v6756 = vrot.slane %v6754, 5
        %v6757 = vsel %vm1080, %v6752, %v6756
        %v6759 = vshrl.u32 %v6416, 16
        %v6761 = vrot.slane %v6759, 4
        %v6762 = vshll.u32 %v6416, 16
        %v6764 = vrot.slane %v6762, 5
        %v6765 = vor.u32 %v6761, %v6764
        %v6766 = vrot.slane %v6765, 4
        %v6768 = vshll.u32 %v6417, 16
        %v6770 = vrot.slane %v6768, 5
        %v6771 = vsel %vm1080, %v6766, %v6770
        %v6772 = vshrl.u32 %v6417, 16
        %v6774 = vrot.slane %v6772, 4
        %v6775 = vor.u32 %v6774, %v6770
        %v6776 = vrot.slane %v6775, 4
        %v6778 = vshll.u32 %v6418, 16
        %v6780 = vrot.slane %v6778, 5
        %v6781 = vsel %vm1080, %v6776, %v6780
        %v6783 = vshrl.u32 %v6419, 16
        %v6785 = vrot.slane %v6783, 4
        %v6786 = vshll.u32 %v6419, 16
        %v6788 = vrot.slane %v6786, 5
        %v6789 = vor.u32 %v6785, %v6788
        %v6790 = vrot.slane %v6789, 4
        %v6792 = vshll.u32 %v6420, 16
        %v6794 = vrot.slane %v6792, 5
        %v6795 = vsel %vm1080, %v6790, %v6794
        %v6796 = vshrl.u32 %v6420, 16
        %v6798 = vrot.slane %v6796, 4
        %v6799 = vor.u32 %v6798, %v6794
        %v6800 = vrot.slane %v6799, 4
        %v6802 = vshll.u32 %v6421, 16
        %v6804 = vrot.slane %v6802, 5
        %v6805 = vsel %vm1080, %v6800, %v6804
        %6838 = vst [vmem:[#allocation3 + $0x4] sm:$0xf] %v6435
        %6839 = vst [vmem:[#allocation3 + $0x28] sm:$0xf] %v6445
        %6840 = vst [vmem:[#allocation3 + $0x4c] sm:$0xf] %v6459
        %6841 = vst [vmem:[#allocation3 + $0x70] sm:$0xf] %v6469
        %6842 = vst [vmem:[#allocation3 + $0x94] sm:$0xf] %v6483
        %6843 = vst [vmem:[#allocation3 + $0xb8] sm:$0xf] %v6493
        %6844 = vst [vmem:[#allocation3 + $0xdc] sm:$0xf] %v6507
        %6845 = vst [vmem:[#allocation3 + $0x100] sm:$0xf] %v6517
        %6846 = vst [vmem:[#allocation3 + $0x124] sm:$0xf] %v6531
        %6847 = vst [vmem:[#allocation3 + $0x148] sm:$0xf] %v6541
        %6848 = vst [vmem:[#allocation3 + $0x16c] sm:$0xf] %v6555
        %6849 = vst [vmem:[#allocation3 + $0x190] sm:$0xf] %v6565
        %6850 = vst [vmem:[#allocation3 + $0x1b4] sm:$0xf] %v6579
        %6851 = vst [vmem:[#allocation3 + $0x1d8] sm:$0xf] %v6589
        %6852 = vst [vmem:[#allocation3 + $0x1fc] sm:$0xf] %v6603
        %6853 = vst [vmem:[#allocation3 + $0x220] sm:$0xf] %v6613
        %6854 = vst [vmem:[#allocation3 + $0x244] sm:$0xf] %v6627
        %6855 = vst [vmem:[#allocation3 + $0x268] sm:$0xf] %v6637
        %6856 = vst [vmem:[#allocation3 + $0x28c] sm:$0xf] %v6651
        %6857 = vst [vmem:[#allocation3 + $0x2b0] sm:$0xf] %v6661
        %6858 = vst [vmem:[#allocation3 + $0x2d4] sm:$0xf] %v6675
        %6859 = vst [vmem:[#allocation3 + $0x2f8] sm:$0xf] %v6685
        %6860 = vst [vmem:[#allocation3 + $0x31c] sm:$0xf] %v6699
        %6861 = vst [vmem:[#allocation3 + $0x340] sm:$0xf] %v6709
        %6862 = vst [vmem:[#allocation3 + $0x364] sm:$0xf] %v6723
        %6863 = vst [vmem:[#allocation3 + $0x388] sm:$0xf] %v6733
        %6864 = vst [vmem:[#allocation3 + $0x3ac] sm:$0xf] %v6747
        %6865 = vst [vmem:[#allocation3 + $0x3d0] sm:$0xf] %v6757
        %6866 = vst [vmem:[#allocation3 + $0x3f4] sm:$0xf] %v6771
        %6867 = vst [vmem:[#allocation3 + $0x418] sm:$0xf] %v6781
        %6868 = vst [vmem:[#allocation3 + $0x43c] sm:$0xf] %v6795
        %6869 = vst [vmem:[#allocation3 + $0x460] sm:$0xf] %v6805
        %v6870 = vld [vmem:[#allocation2] sm:$0xe]
        %v6871 = vld [vmem:[#allocation2 + $0x4] sm:$0xf]
        %v6872 = vld [vmem:[#allocation2 + $0x8] sm:$0x1]
        %v6873 = vld [vmem:[#allocation2 + $0xc] sm:$0xe]
        %v6874 = vld [vmem:[#allocation2 + $0x10] sm:$0xf]
        %v6875 = vld [vmem:[#allocation2 + $0x14] sm:$0x1]
        %v6876 = vld [vmem:[#allocation2 + $0x18] sm:$0xe]
        %v6877 = vld [vmem:[#allocation2 + $0x1c] sm:$0xf]
        %v6878 = vld [vmem:[#allocation2 + $0x20] sm:$0x1]
        %v6879 = vld [vmem:[#allocation2 + $0x24] sm:$0xe]
        %v6880 = vld [vmem:[#allocation2 + $0x28] sm:$0xf]
        %v6881 = vld [vmem:[#allocation2 + $0x2c] sm:$0x1]
        %v6882 = vld [vmem:[#allocation2 + $0x30] sm:$0xe]
        %v6883 = vld [vmem:[#allocation2 + $0x34] sm:$0xf]
        %v6884 = vld [vmem:[#allocation2 + $0x38] sm:$0x1]
        %v6885 = vld [vmem:[#allocation2 + $0x3c] sm:$0xe]
        %v6886 = vld [vmem:[#allocation2 + $0x40] sm:$0xf]
        %v6887 = vld [vmem:[#allocation2 + $0x44] sm:$0x1]
        %v6888 = vld [vmem:[#allocation2 + $0x48] sm:$0xe]
        %v6889 = vld [vmem:[#allocation2 + $0x4c] sm:$0xf]
        %v6890 = vld [vmem:[#allocation2 + $0x50] sm:$0x1]
        %v6891 = vld [vmem:[#allocation2 + $0x54] sm:$0xe]
        %v6892 = vld [vmem:[#allocation2 + $0x58] sm:$0xf]
        %v6893 = vld [vmem:[#allocation2 + $0x5c] sm:$0x1]
        %v6894 = vld [vmem:[#allocation2 + $0x60] sm:$0xe]
        %v6895 = vld [vmem:[#allocation2 + $0x64] sm:$0xf]
        %v6896 = vld [vmem:[#allocation2 + $0x68] sm:$0x1]
        %v6897 = vld [vmem:[#allocation2 + $0x6c] sm:$0xe]
        %v6898 = vld [vmem:[#allocation2 + $0x70] sm:$0xf]
        %v6899 = vld [vmem:[#allocation2 + $0x74] sm:$0x1]
        %v6900 = vld [vmem:[#allocation2 + $0x78] sm:$0xe]
        %v6901 = vld [vmem:[#allocation2 + $0x7c] sm:$0xf]
        %v6902 = vld [vmem:[#allocation2 + $0x80] sm:$0x1]
        %v6903 = vld [vmem:[#allocation2 + $0x84] sm:$0xe]
        %v6904 = vld [vmem:[#allocation2 + $0x88] sm:$0xf]
        %v6905 = vld [vmem:[#allocation2 + $0x8c] sm:$0x1]
        %v6906 = vld [vmem:[#allocation2 + $0x90] sm:$0xe]
        %v6907 = vld [vmem:[#allocation2 + $0x94] sm:$0xf]
        %v6908 = vld [vmem:[#allocation2 + $0x98] sm:$0x1]
        %v6909 = vld [vmem:[#allocation2 + $0x9c] sm:$0xe]
        %v6910 = vld [vmem:[#allocation2 + $0xa0] sm:$0xf]
        %v6911 = vld [vmem:[#allocation2 + $0xa4] sm:$0x1]
        %v6912 = vld [vmem:[#allocation2 + $0xa8] sm:$0xe]
        %v6913 = vld [vmem:[#allocation2 + $0xac] sm:$0xf]
        %v6914 = vld [vmem:[#allocation2 + $0xb0] sm:$0x1]
        %v6915 = vld [vmem:[#allocation2 + $0xb4] sm:$0xe]
        %v6916 = vld [vmem:[#allocation2 + $0xb8] sm:$0xf]
        %v6917 = vld [vmem:[#allocation2 + $0xbc] sm:$0x1]
        %v6966 = vrot.slane %v6870, 5
        %v6967 = vrot.slane %v6966, 4
        %v6968 = vrot.slane %v6871, 5
        %v6969 = vsel %vm1627, %v6967, %v6968
        %v6970 = vrot.slane %v6968, 4
        %v6971 = vrot.slane %v6872, 5
        %v6972 = vsel %vm1627, %v6970, %v6971
        %v6973 = vrot.slane %v6873, 5
        %v6974 = vrot.slane %v6973, 4
        %v6975 = vrot.slane %v6874, 5
        %v6976 = vsel %vm1627, %v6974, %v6975
        %v6977 = vrot.slane %v6975, 4
        %v6978 = vrot.slane %v6875, 5
        %v6979 = vsel %vm1627, %v6977, %v6978
        %v6980 = vrot.slane %v6876, 5
        %v6981 = vrot.slane %v6980, 4
        %v6982 = vrot.slane %v6877, 5
        %v6983 = vsel %vm1627, %v6981, %v6982
        %v6984 = vrot.slane %v6982, 4
        %v6985 = vrot.slane %v6878, 5
        %v6986 = vsel %vm1627, %v6984, %v6985
        %v6987 = vrot.slane %v6879, 5
        %v6988 = vrot.slane %v6987, 4
        %v6989 = vrot.slane %v6880, 5
        %v6990 = vsel %vm1627, %v6988, %v6989
        %v6991 = vrot.slane %v6989, 4
        %v6992 = vrot.slane %v6881, 5
        %v6993 = vsel %vm1627, %v6991, %v6992
        %v6994 = vrot.slane %v6882, 5
        %v6995 = vrot.slane %v6994, 4
        %v6996 = vrot.slane %v6883, 5
        %v6997 = vsel %vm1627, %v6995, %v6996
        %v6998 = vrot.slane %v6996, 4
        %v6999 = vrot.slane %v6884, 5
        %v7000 = vsel %vm1627, %v6998, %v6999
        %v7001 = vrot.slane %v6885, 5
        %v7002 = vrot.slane %v7001, 4
        %v7003 = vrot.slane %v6886, 5
        %v7004 = vsel %vm1627, %v7002, %v7003
        %v7005 = vrot.slane %v7003, 4
        %v7006 = vrot.slane %v6887, 5
        %v7007 = vsel %vm1627, %v7005, %v7006
        %v7008 = vrot.slane %v6888, 5
        %v7009 = vrot.slane %v7008, 4
        %v7010 = vrot.slane %v6889, 5
        %v7011 = vsel %vm1627, %v7009, %v7010
        %v7012 = vrot.slane %v7010, 4
        %v7013 = vrot.slane %v6890, 5
        %v7014 = vsel %vm1627, %v7012, %v7013
        %v7015 = vrot.slane %v6891, 5
        %v7016 = vrot.slane %v7015, 4
        %v7017 = vrot.slane %v6892, 5
        %v7018 = vsel %vm1627, %v7016, %v7017
        %v7019 = vrot.slane %v7017, 4
        %v7020 = vrot.slane %v6893, 5
        %v7021 = vsel %vm1627, %v7019, %v7020
        %v7022 = vrot.slane %v6894, 5
        %v7023 = vrot.slane %v7022, 4
        %v7024 = vrot.slane %v6895, 5
        %v7025 = vsel %vm1627, %v7023, %v7024
        %v7026 = vrot.slane %v7024, 4
        %v7027 = vrot.slane %v6896, 5
        %v7028 = vsel %vm1627, %v7026, %v7027
        %v7029 = vrot.slane %v6897, 5
        %v7030 = vrot.slane %v7029, 4
        %v7031 = vrot.slane %v6898, 5
        %v7032 = vsel %vm1627, %v7030, %v7031
        %v7033 = vrot.slane %v7031, 4
        %v7034 = vrot.slane %v6899, 5
        %v7035 = vsel %vm1627, %v7033, %v7034
        %v7036 = vrot.slane %v6900, 5
        %v7037 = vrot.slane %v7036, 4
        %v7038 = vrot.slane %v6901, 5
        %v7039 = vsel %vm1627, %v7037, %v7038
        %v7040 = vrot.slane %v7038, 4
        %v7041 = vrot.slane %v6902, 5
        %v7042 = vsel %vm1627, %v7040, %v7041
        %v7043 = vrot.slane %v6903, 5
        %v7044 = vrot.slane %v7043, 4
        %v7045 = vrot.slane %v6904, 5
        %v7046 = vsel %vm1627, %v7044, %v7045
        %v7047 = vrot.slane %v7045, 4
        %v7048 = vrot.slane %v6905, 5
        %v7049 = vsel %vm1627, %v7047, %v7048
        %v7050 = vrot.slane %v6906, 5
        %v7051 = vrot.slane %v7050, 4
        %v7052 = vrot.slane %v6907, 5
        %v7053 = vsel %vm1627, %v7051, %v7052
        %v7054 = vrot.slane %v7052, 4
        %v7055 = vrot.slane %v6908, 5
        %v7056 = vsel %vm1627, %v7054, %v7055
        %v7057 = vrot.slane %v6909, 5
        %v7058 = vrot.slane %v7057, 4
        %v7059 = vrot.slane %v6910, 5
        %v7060 = vsel %vm1627, %v7058, %v7059
        %v7061 = vrot.slane %v7059, 4
        %v7062 = vrot.slane %v6911, 5
        %v7063 = vsel %vm1627, %v7061, %v7062
        %v7064 = vrot.slane %v6912, 5
        %v7065 = vrot.slane %v7064, 4
        %v7066 = vrot.slane %v6913, 5
        %v7067 = vsel %vm1627, %v7065, %v7066
        %v7068 = vrot.slane %v7066, 4
        %v7069 = vrot.slane %v6914, 5
        %v7070 = vsel %vm1627, %v7068, %v7069
        %v7071 = vrot.slane %v6915, 5
        %v7072 = vrot.slane %v7071, 4
        %v7073 = vrot.slane %v6916, 5
        %v7074 = vsel %vm1627, %v7072, %v7073
        %v7075 = vrot.slane %v7073, 4
        %v7076 = vrot.slane %v6917, 5
        %v7077 = vsel %vm1627, %v7075, %v7076
        %7110 = vst [vmem:[#allocation3 + $0x8] sm:$0xf] %v6969
        %7111 = vst [vmem:[#allocation3 + $0x2c] sm:$0xf] %v6972
        %7112 = vst [vmem:[#allocation3 + $0x50] sm:$0xf] %v6976
        %7113 = vst [vmem:[#allocation3 + $0x74] sm:$0xf] %v6979
        %7114 = vst [vmem:[#allocation3 + $0x98] sm:$0xf] %v6983
        %7115 = vst [vmem:[#allocation3 + $0xbc] sm:$0xf] %v6986
        %7116 = vst [vmem:[#allocation3 + $0xe0] sm:$0xf] %v6990
        %7117 = vst [vmem:[#allocation3 + $0x104] sm:$0xf] %v6993
        %7118 = vst [vmem:[#allocation3 + $0x128] sm:$0xf] %v6997
        %7119 = vst [vmem:[#allocation3 + $0x14c] sm:$0xf] %v7000
        %7120 = vst [vmem:[#allocation3 + $0x170] sm:$0xf] %v7004
        %7121 = vst [vmem:[#allocation3 + $0x194] sm:$0xf] %v7007
        %7122 = vst [vmem:[#allocation3 + $0x1b8] sm:$0xf] %v7011
        %7123 = vst [vmem:[#allocation3 + $0x1dc] sm:$0xf] %v7014
        %7124 = vst [vmem:[#allocation3 + $0x200] sm:$0xf] %v7018
        %7125 = vst [vmem:[#allocation3 + $0x224] sm:$0xf] %v7021
        %7126 = vst [vmem:[#allocation3 + $0x248] sm:$0xf] %v7025
        %7127 = vst [vmem:[#allocation3 + $0x26c] sm:$0xf] %v7028
        %7128 = vst [vmem:[#allocation3 + $0x290] sm:$0xf] %v7032
        %7129 = vst [vmem:[#allocation3 + $0x2b4] sm:$0xf] %v7035
        %7130 = vst [vmem:[#allocation3 + $0x2d8] sm:$0xf] %v7039
        %7131 = vst [vmem:[#allocation3 + $0x2fc] sm:$0xf] %v7042
        %7132 = vst [vmem:[#allocation3 + $0x320] sm:$0xf] %v7046
        %7133 = vst [vmem:[#allocation3 + $0x344] sm:$0xf] %v7049
        %7134 = vst [vmem:[#allocation3 + $0x368] sm:$0xf] %v7053
        %7135 = vst [vmem:[#allocation3 + $0x38c] sm:$0xf] %v7056
        %7136 = vst [vmem:[#allocation3 + $0x3b0] sm:$0xf] %v7060
        %7137 = vst [vmem:[#allocation3 + $0x3d4] sm:$0xf] %v7063
        %7138 = vst [vmem:[#allocation3 + $0x3f8] sm:$0xf] %v7067
        %7139 = vst [vmem:[#allocation3 + $0x41c] sm:$0xf] %v7070
        %7140 = vst [vmem:[#allocation3 + $0x440] sm:$0xf] %v7074
        %7141 = vst [vmem:[#allocation3 + $0x464] sm:$0xf] %v7077
        %v7142 = vld [vmem:[%s851] sm:$0xf]
        %v7143 = vld [vmem:[%s851 + $0x4] sm:$0xf]
        %v7144 = vld [vmem:[%s851 + $0xc] sm:$0xf]
        %v7145 = vld [vmem:[%s851 + $0x10] sm:$0xf]
        %v7146 = vld [vmem:[%s851 + $0x18] sm:$0xf]
        %v7147 = vld [vmem:[%s851 + $0x1c] sm:$0xf]
        %v7148 = vld [vmem:[%s851 + $0x24] sm:$0xf]
        %v7149 = vld [vmem:[%s851 + $0x28] sm:$0xf]
        %v7150 = vld [vmem:[%s851 + $0x30] sm:$0xf]
        %v7151 = vld [vmem:[%s851 + $0x34] sm:$0xf]
        %v7152 = vld [vmem:[%s851 + $0x3c] sm:$0xf]
        %v7153 = vld [vmem:[%s851 + $0x40] sm:$0xf]
        %v7154 = vld [vmem:[%s851 + $0x48] sm:$0xf]
        %v7155 = vld [vmem:[%s851 + $0x4c] sm:$0xf]
        %v7156 = vld [vmem:[%s851 + $0x54] sm:$0xf]
        %v7157 = vld [vmem:[%s851 + $0x58] sm:$0xf]
        %v7158 = vld [vmem:[%s851 + $0x60] sm:$0xf]
        %v7159 = vld [vmem:[%s851 + $0x64] sm:$0xf]
        %v7160 = vld [vmem:[%s851 + $0x6c] sm:$0xf]
        %v7161 = vld [vmem:[%s851 + $0x70] sm:$0xf]
        %v7162 = vld [vmem:[%s851 + $0x78] sm:$0xf]
        %v7163 = vld [vmem:[%s851 + $0x7c] sm:$0xf]
        %v7164 = vld [vmem:[%s851 + $0x84] sm:$0xf]
        %v7165 = vld [vmem:[%s851 + $0x88] sm:$0xf]
        %v7166 = vld [vmem:[%s851 + $0x90] sm:$0xf]
        %v7167 = vld [vmem:[%s851 + $0x94] sm:$0xf]
        %v7168 = vld [vmem:[%s851 + $0x9c] sm:$0xf]
        %v7169 = vld [vmem:[%s851 + $0xa0] sm:$0xf]
        %v7170 = vld [vmem:[%s851 + $0xa8] sm:$0xf]
        %v7171 = vld [vmem:[%s851 + $0xac] sm:$0xf]
        %v7172 = vld [vmem:[%s851 + $0xb4] sm:$0xf]
        %v7173 = vld [vmem:[%s851 + $0xb8] sm:$0xf]
        %7174 = vst [vmem:[#allocation3 + $0xc] sm:$0xf] %v7142
        %7175 = vst [vmem:[#allocation3 + $0x30] sm:$0xf] %v7143
        %7176 = vst [vmem:[#allocation3 + $0x54] sm:$0xf] %v7144
        %7177 = vst [vmem:[#allocation3 + $0x78] sm:$0xf] %v7145
        %7178 = vst [vmem:[#allocation3 + $0x9c] sm:$0xf] %v7146
        %7179 = vst [vmem:[#allocation3 + $0xc0] sm:$0xf] %v7147
        %7180 = vst [vmem:[#allocation3 + $0xe4] sm:$0xf] %v7148
        %7181 = vst [vmem:[#allocation3 + $0x108] sm:$0xf] %v7149
        %7182 = vst [vmem:[#allocation3 + $0x12c] sm:$0xf] %v7150
        %7183 = vst [vmem:[#allocation3 + $0x150] sm:$0xf] %v7151
        %7184 = vst [vmem:[#allocation3 + $0x174] sm:$0xf] %v7152
        %7185 = vst [vmem:[#allocation3 + $0x198] sm:$0xf] %v7153
        %7186 = vst [vmem:[#allocation3 + $0x1bc] sm:$0xf] %v7154
        %7187 = vst [vmem:[#allocation3 + $0x1e0] sm:$0xf] %v7155
        %7188 = vst [vmem:[#allocation3 + $0x204] sm:$0xf] %v7156
        %7189 = vst [vmem:[#allocation3 + $0x228] sm:$0xf] %v7157
        %7190 = vst [vmem:[#allocation3 + $0x24c] sm:$0xf] %v7158
        %7191 = vst [vmem:[#allocation3 + $0x270] sm:$0xf] %v7159
        %7192 = vst [vmem:[#allocation3 + $0x294] sm:$0xf] %v7160
        %7193 = vst [vmem:[#allocation3 + $0x2b8] sm:$0xf] %v7161
        %7194 = vst [vmem:[#allocation3 + $0x2dc] sm:$0xf] %v7162
        %7195 = vst [vmem:[#allocation3 + $0x300] sm:$0xf] %v7163
        %7196 = vst [vmem:[#allocation3 + $0x324] sm:$0xf] %v7164
        %7197 = vst [vmem:[#allocation3 + $0x348] sm:$0xf] %v7165
        %7198 = vst [vmem:[#allocation3 + $0x36c] sm:$0xf] %v7166
        %7199 = vst [vmem:[#allocation3 + $0x390] sm:$0xf] %v7167
        %7200 = vst [vmem:[#allocation3 + $0x3b4] sm:$0xf] %v7168
        %7201 = vst [vmem:[#allocation3 + $0x3d8] sm:$0xf] %v7169
        %7202 = vst [vmem:[#allocation3 + $0x3fc] sm:$0xf] %v7170
        %7203 = vst [vmem:[#allocation3 + $0x420] sm:$0xf] %v7171
        %7204 = vst [vmem:[#allocation3 + $0x444] sm:$0xf] %v7172
        %7205 = vst [vmem:[#allocation3 + $0x468] sm:$0xf] %v7173
        %v7206 = vld [vmem:[%s851] sm:$0xf]
        %v7207 = vld [vmem:[%s851 + $0x4] sm:$0xf]
        %v7208 = vld [vmem:[%s851 + $0x8] sm:$0x1]
        %v7209 = vld [vmem:[%s851 + $0xc] sm:$0xf]
        %v7210 = vld [vmem:[%s851 + $0x10] sm:$0xf]
        %v7211 = vld [vmem:[%s851 + $0x14] sm:$0x1]
        %v7212 = vld [vmem:[%s851 + $0x18] sm:$0xf]
        %v7213 = vld [vmem:[%s851 + $0x1c] sm:$0xf]
        %v7214 = vld [vmem:[%s851 + $0x20] sm:$0x1]
        %v7215 = vld [vmem:[%s851 + $0x24] sm:$0xf]
        %v7216 = vld [vmem:[%s851 + $0x28] sm:$0xf]
        %v7217 = vld [vmem:[%s851 + $0x2c] sm:$0x1]
        %v7218 = vld [vmem:[%s851 + $0x30] sm:$0xf]
        %v7219 = vld [vmem:[%s851 + $0x34] sm:$0xf]
        %v7220 = vld [vmem:[%s851 + $0x38] sm:$0x1]
        %v7221 = vld [vmem:[%s851 + $0x3c] sm:$0xf]
        %v7222 = vld [vmem:[%s851 + $0x40] sm:$0xf]
        %v7223 = vld [vmem:[%s851 + $0x44] sm:$0x1]
        %v7224 = vld [vmem:[%s851 + $0x48] sm:$0xf]
        %v7225 = vld [vmem:[%s851 + $0x4c] sm:$0xf]
        %v7226 = vld [vmem:[%s851 + $0x50] sm:$0x1]
        %v7227 = vld [vmem:[%s851 + $0x54] sm:$0xf]
        %v7228 = vld [vmem:[%s851 + $0x58] sm:$0xf]
        %v7229 = vld [vmem:[%s851 + $0x5c] sm:$0x1]
        %v7230 = vld [vmem:[%s851 + $0x60] sm:$0xf]
        %v7231 = vld [vmem:[%s851 + $0x64] sm:$0xf]
        %v7232 = vld [vmem:[%s851 + $0x68] sm:$0x1]
        %v7233 = vld [vmem:[%s851 + $0x6c] sm:$0xf]
        %v7234 = vld [vmem:[%s851 + $0x70] sm:$0xf]
        %v7235 = vld [vmem:[%s851 + $0x74] sm:$0x1]
        %v7236 = vld [vmem:[%s851 + $0x78] sm:$0xf]
        %v7237 = vld [vmem:[%s851 + $0x7c] sm:$0xf]
        %v7238 = vld [vmem:[%s851 + $0x80] sm:$0x1]
        %v7239 = vld [vmem:[%s851 + $0x84] sm:$0xf]
        %v7240 = vld [vmem:[%s851 + $0x88] sm:$0xf]
        %v7241 = vld [vmem:[%s851 + $0x8c] sm:$0x1]
        %v7242 = vld [vmem:[%s851 + $0x90] sm:$0xf]
        %v7243 = vld [vmem:[%s851 + $0x94] sm:$0xf]
        %v7244 = vld [vmem:[%s851 + $0x98] sm:$0x1]
        %v7245 = vld [vmem:[%s851 + $0x9c] sm:$0xf]
        %v7246 = vld [vmem:[%s851 + $0xa0] sm:$0xf]
        %v7247 = vld [vmem:[%s851 + $0xa4] sm:$0x1]
        %v7248 = vld [vmem:[%s851 + $0xa8] sm:$0xf]
        %v7249 = vld [vmem:[%s851 + $0xac] sm:$0xf]
        %v7250 = vld [vmem:[%s851 + $0xb0] sm:$0x1]
        %v7251 = vld [vmem:[%s851 + $0xb4] sm:$0xf]
        %v7252 = vld [vmem:[%s851 + $0xb8] sm:$0xf]
        %v7253 = vld [vmem:[%s851 + $0xbc] sm:$0x1]
        %v7255 = vshrl.u32 %v7206, 16
        %v7257 = vrot.slane %v7255, 4
        %v7258 = vshll.u32 %v7206, 16
        %v7260 = vrot.slane %v7258, 5
        %v7261 = vor.u32 %v7257, %v7260
        %v7262 = vrot.slane %v7261, 4
        %v7264 = vshll.u32 %v7207, 16
        %v7266 = vrot.slane %v7264, 5
        %v7267 = vsel %vm1080, %v7262, %v7266
        %v7268 = vshrl.u32 %v7207, 16
        %v7270 = vrot.slane %v7268, 4
        %v7271 = vor.u32 %v7270, %v7266
        %v7272 = vrot.slane %v7271, 4
        %v7274 = vshll.u32 %v7208, 16
        %v7276 = vrot.slane %v7274, 5
        %v7277 = vsel %vm1080, %v7272, %v7276
        %v7279 = vshrl.u32 %v7209, 16
        %v7281 = vrot.slane %v7279, 4
        %v7282 = vshll.u32 %v7209, 16
        %v7284 = vrot.slane %v7282, 5
        %v7285 = vor.u32 %v7281, %v7284
        %v7286 = vrot.slane %v7285, 4
        %v7288 = vshll.u32 %v7210, 16
        %v7290 = vrot.slane %v7288, 5
        %v7291 = vsel %vm1080, %v7286, %v7290
        %v7292 = vshrl.u32 %v7210, 16
        %v7294 = vrot.slane %v7292, 4
        %v7295 = vor.u32 %v7294, %v7290
        %v7296 = vrot.slane %v7295, 4
        %v7298 = vshll.u32 %v7211, 16
        %v7300 = vrot.slane %v7298, 5
        %v7301 = vsel %vm1080, %v7296, %v7300
        %v7303 = vshrl.u32 %v7212, 16
        %v7305 = vrot.slane %v7303, 4
        %v7306 = vshll.u32 %v7212, 16
        %v7308 = vrot.slane %v7306, 5
        %v7309 = vor.u32 %v7305, %v7308
        %v7310 = vrot.slane %v7309, 4
        %v7312 = vshll.u32 %v7213, 16
        %v7314 = vrot.slane %v7312, 5
        %v7315 = vsel %vm1080, %v7310, %v7314
        %v7316 = vshrl.u32 %v7213, 16
        %v7318 = vrot.slane %v7316, 4
        %v7319 = vor.u32 %v7318, %v7314
        %v7320 = vrot.slane %v7319, 4
        %v7322 = vshll.u32 %v7214, 16
        %v7324 = vrot.slane %v7322, 5
        %v7325 = vsel %vm1080, %v7320, %v7324
        %v7327 = vshrl.u32 %v7215, 16
        %v7329 = vrot.slane %v7327, 4
        %v7330 = vshll.u32 %v7215, 16
        %v7332 = vrot.slane %v7330, 5
        %v7333 = vor.u32 %v7329, %v7332
        %v7334 = vrot.slane %v7333, 4
        %v7336 = vshll.u32 %v7216, 16
        %v7338 = vrot.slane %v7336, 5
        %v7339 = vsel %vm1080, %v7334, %v7338
        %v7340 = vshrl.u32 %v7216, 16
        %v7342 = vrot.slane %v7340, 4
        %v7343 = vor.u32 %v7342, %v7338
        %v7344 = vrot.slane %v7343, 4
        %v7346 = vshll.u32 %v7217, 16
        %v7348 = vrot.slane %v7346, 5
        %v7349 = vsel %vm1080, %v7344, %v7348
        %v7351 = vshrl.u32 %v7218, 16
        %v7353 = vrot.slane %v7351, 4
        %v7354 = vshll.u32 %v7218, 16
        %v7356 = vrot.slane %v7354, 5
        %v7357 = vor.u32 %v7353, %v7356
        %v7358 = vrot.slane %v7357, 4
        %v7360 = vshll.u32 %v7219, 16
        %v7362 = vrot.slane %v7360, 5
        %v7363 = vsel %vm1080, %v7358, %v7362
        %v7364 = vshrl.u32 %v7219, 16
        %v7366 = vrot.slane %v7364, 4
        %v7367 = vor.u32 %v7366, %v7362
        %v7368 = vrot.slane %v7367, 4
        %v7370 = vshll.u32 %v7220, 16
        %v7372 = vrot.slane %v7370, 5
        %v7373 = vsel %vm1080, %v7368, %v7372
        %v7375 = vshrl.u32 %v7221, 16
        %v7377 = vrot.slane %v7375, 4
        %v7378 = vshll.u32 %v7221, 16
        %v7380 = vrot.slane %v7378, 5
        %v7381 = vor.u32 %v7377, %v7380
        %v7382 = vrot.slane %v7381, 4
        %v7384 = vshll.u32 %v7222, 16
        %v7386 = vrot.slane %v7384, 5
        %v7387 = vsel %vm1080, %v7382, %v7386
        %v7388 = vshrl.u32 %v7222, 16
        %v7390 = vrot.slane %v7388, 4
        %v7391 = vor.u32 %v7390, %v7386
        %v7392 = vrot.slane %v7391, 4
        %v7394 = vshll.u32 %v7223, 16
        %v7396 = vrot.slane %v7394, 5
        %v7397 = vsel %vm1080, %v7392, %v7396
        %v7399 = vshrl.u32 %v7224, 16
        %v7401 = vrot.slane %v7399, 4
        %v7402 = vshll.u32 %v7224, 16
        %v7404 = vrot.slane %v7402, 5
        %v7405 = vor.u32 %v7401, %v7404
        %v7406 = vrot.slane %v7405, 4
        %v7408 = vshll.u32 %v7225, 16
        %v7410 = vrot.slane %v7408, 5
        %v7411 = vsel %vm1080, %v7406, %v7410
        %v7412 = vshrl.u32 %v7225, 16
        %v7414 = vrot.slane %v7412, 4
        %v7415 = vor.u32 %v7414, %v7410
        %v7416 = vrot.slane %v7415, 4
        %v7418 = vshll.u32 %v7226, 16
        %v7420 = vrot.slane %v7418, 5
        %v7421 = vsel %vm1080, %v7416, %v7420
        %v7423 = vshrl.u32 %v7227, 16
        %v7425 = vrot.slane %v7423, 4
        %v7426 = vshll.u32 %v7227, 16
        %v7428 = vrot.slane %v7426, 5
        %v7429 = vor.u32 %v7425, %v7428
        %v7430 = vrot.slane %v7429, 4
        %v7432 = vshll.u32 %v7228, 16
        %v7434 = vrot.slane %v7432, 5
        %v7435 = vsel %vm1080, %v7430, %v7434
        %v7436 = vshrl.u32 %v7228, 16
        %v7438 = vrot.slane %v7436, 4
        %v7439 = vor.u32 %v7438, %v7434
        %v7440 = vrot.slane %v7439, 4
        %v7442 = vshll.u32 %v7229, 16
        %v7444 = vrot.slane %v7442, 5
        %v7445 = vsel %vm1080, %v7440, %v7444
        %v7447 = vshrl.u32 %v7230, 16
        %v7449 = vrot.slane %v7447, 4
        %v7450 = vshll.u32 %v7230, 16
        %v7452 = vrot.slane %v7450, 5
        %v7453 = vor.u32 %v7449, %v7452
        %v7454 = vrot.slane %v7453, 4
        %v7456 = vshll.u32 %v7231, 16
        %v7458 = vrot.slane %v7456, 5
        %v7459 = vsel %vm1080, %v7454, %v7458
        %v7460 = vshrl.u32 %v7231, 16
        %v7462 = vrot.slane %v7460, 4
        %v7463 = vor.u32 %v7462, %v7458
        %v7464 = vrot.slane %v7463, 4
        %v7466 = vshll.u32 %v7232, 16
        %v7468 = vrot.slane %v7466, 5
        %v7469 = vsel %vm1080, %v7464, %v7468
        %v7471 = vshrl.u32 %v7233, 16
        %v7473 = vrot.slane %v7471, 4
        %v7474 = vshll.u32 %v7233, 16
        %v7476 = vrot.slane %v7474, 5
        %v7477 = vor.u32 %v7473, %v7476
        %v7478 = vrot.slane %v7477, 4
        %v7480 = vshll.u32 %v7234, 16
        %v7482 = vrot.slane %v7480, 5
        %v7483 = vsel %vm1080, %v7478, %v7482
        %v7484 = vshrl.u32 %v7234, 16
        %v7486 = vrot.slane %v7484, 4
        %v7487 = vor.u32 %v7486, %v7482
        %v7488 = vrot.slane %v7487, 4
        %v7490 = vshll.u32 %v7235, 16
        %v7492 = vrot.slane %v7490, 5
        %v7493 = vsel %vm1080, %v7488, %v7492
        %v7495 = vshrl.u32 %v7236, 16
        %v7497 = vrot.slane %v7495, 4
        %v7498 = vshll.u32 %v7236, 16
        %v7500 = vrot.slane %v7498, 5
        %v7501 = vor.u32 %v7497, %v7500
        %v7502 = vrot.slane %v7501, 4
        %v7504 = vshll.u32 %v7237, 16
        %v7506 = vrot.slane %v7504, 5
        %v7507 = vsel %vm1080, %v7502, %v7506
        %v7508 = vshrl.u32 %v7237, 16
        %v7510 = vrot.slane %v7508, 4
        %v7511 = vor.u32 %v7510, %v7506
        %v7512 = vrot.slane %v7511, 4
        %v7514 = vshll.u32 %v7238, 16
        %v7516 = vrot.slane %v7514, 5
        %v7517 = vsel %vm1080, %v7512, %v7516
        %v7519 = vshrl.u32 %v7239, 16
        %v7521 = vrot.slane %v7519, 4
        %v7522 = vshll.u32 %v7239, 16
        %v7524 = vrot.slane %v7522, 5
        %v7525 = vor.u32 %v7521, %v7524
        %v7526 = vrot.slane %v7525, 4
        %v7528 = vshll.u32 %v7240, 16
        %v7530 = vrot.slane %v7528, 5
        %v7531 = vsel %vm1080, %v7526, %v7530
        %v7532 = vshrl.u32 %v7240, 16
        %v7534 = vrot.slane %v7532, 4
        %v7535 = vor.u32 %v7534, %v7530
        %v7536 = vrot.slane %v7535, 4
        %v7538 = vshll.u32 %v7241, 16
        %v7540 = vrot.slane %v7538, 5
        %v7541 = vsel %vm1080, %v7536, %v7540
        %v7543 = vshrl.u32 %v7242, 16
        %v7545 = vrot.slane %v7543, 4
        %v7546 = vshll.u32 %v7242, 16
        %v7548 = vrot.slane %v7546, 5
        %v7549 = vor.u32 %v7545, %v7548
        %v7550 = vrot.slane %v7549, 4
        %v7552 = vshll.u32 %v7243, 16
        %v7554 = vrot.slane %v7552, 5
        %v7555 = vsel %vm1080, %v7550, %v7554
        %v7556 = vshrl.u32 %v7243, 16
        %v7558 = vrot.slane %v7556, 4
        %v7559 = vor.u32 %v7558, %v7554
        %v7560 = vrot.slane %v7559, 4
        %v7562 = vshll.u32 %v7244, 16
        %v7564 = vrot.slane %v7562, 5
        %v7565 = vsel %vm1080, %v7560, %v7564
        %v7567 = vshrl.u32 %v7245, 16
        %v7569 = vrot.slane %v7567, 4
        %v7570 = vshll.u32 %v7245, 16
        %v7572 = vrot.slane %v7570, 5
        %v7573 = vor.u32 %v7569, %v7572
        %v7574 = vrot.slane %v7573, 4
        %v7576 = vshll.u32 %v7246, 16
        %v7578 = vrot.slane %v7576, 5
        %v7579 = vsel %vm1080, %v7574, %v7578
        %v7580 = vshrl.u32 %v7246, 16
        %v7582 = vrot.slane %v7580, 4
        %v7583 = vor.u32 %v7582, %v7578
        %v7584 = vrot.slane %v7583, 4
        %v7586 = vshll.u32 %v7247, 16
        %v7588 = vrot.slane %v7586, 5
        %v7589 = vsel %vm1080, %v7584, %v7588
        %v7591 = vshrl.u32 %v7248, 16
        %v7593 = vrot.slane %v7591, 4
        %v7594 = vshll.u32 %v7248, 16
        %v7596 = vrot.slane %v7594, 5
        %v7597 = vor.u32 %v7593, %v7596
        %v7598 = vrot.slane %v7597, 4
        %v7600 = vshll.u32 %v7249, 16
        %v7602 = vrot.slane %v7600, 5
        %v7603 = vsel %vm1080, %v7598, %v7602
        %v7604 = vshrl.u32 %v7249, 16
        %v7606 = vrot.slane %v7604, 4
        %v7607 = vor.u32 %v7606, %v7602
        %v7608 = vrot.slane %v7607, 4
        %v7610 = vshll.u32 %v7250, 16
        %v7612 = vrot.slane %v7610, 5
        %v7613 = vsel %vm1080, %v7608, %v7612
        %v7615 = vshrl.u32 %v7251, 16
        %v7617 = vrot.slane %v7615, 4
        %v7618 = vshll.u32 %v7251, 16
        %v7620 = vrot.slane %v7618, 5
        %v7621 = vor.u32 %v7617, %v7620
        %v7622 = vrot.slane %v7621, 4
        %v7624 = vshll.u32 %v7252, 16
        %v7626 = vrot.slane %v7624, 5
        %v7627 = vsel %vm1080, %v7622, %v7626
        %v7628 = vshrl.u32 %v7252, 16
        %v7630 = vrot.slane %v7628, 4
        %v7631 = vor.u32 %v7630, %v7626
        %v7632 = vrot.slane %v7631, 4
        %v7634 = vshll.u32 %v7253, 16
        %v7636 = vrot.slane %v7634, 5
        %v7637 = vsel %vm1080, %v7632, %v7636
        %7670 = vst [vmem:[#allocation3 + $0x10] sm:$0xf] %v7267
        %7671 = vst [vmem:[#allocation3 + $0x34] sm:$0xf] %v7277
        %7672 = vst [vmem:[#allocation3 + $0x58] sm:$0xf] %v7291
        %7673 = vst [vmem:[#allocation3 + $0x7c] sm:$0xf] %v7301
        %7674 = vst [vmem:[#allocation3 + $0xa0] sm:$0xf] %v7315
        %7675 = vst [vmem:[#allocation3 + $0xc4] sm:$0xf] %v7325
        %7676 = vst [vmem:[#allocation3 + $0xe8] sm:$0xf] %v7339
        %7677 = vst [vmem:[#allocation3 + $0x10c] sm:$0xf] %v7349
        %7678 = vst [vmem:[#allocation3 + $0x130] sm:$0xf] %v7363
        %7679 = vst [vmem:[#allocation3 + $0x154] sm:$0xf] %v7373
        %7680 = vst [vmem:[#allocation3 + $0x178] sm:$0xf] %v7387
        %7681 = vst [vmem:[#allocation3 + $0x19c] sm:$0xf] %v7397
        %7682 = vst [vmem:[#allocation3 + $0x1c0] sm:$0xf] %v7411
        %7683 = vst [vmem:[#allocation3 + $0x1e4] sm:$0xf] %v7421
        %7684 = vst [vmem:[#allocation3 + $0x208] sm:$0xf] %v7435
        %7685 = vst [vmem:[#allocation3 + $0x22c] sm:$0xf] %v7445
        %7686 = vst [vmem:[#allocation3 + $0x250] sm:$0xf] %v7459
        %7687 = vst [vmem:[#allocation3 + $0x274] sm:$0xf] %v7469
        %7688 = vst [vmem:[#allocation3 + $0x298] sm:$0xf] %v7483
        %7689 = vst [vmem:[#allocation3 + $0x2bc] sm:$0xf] %v7493
        %7690 = vst [vmem:[#allocation3 + $0x2e0] sm:$0xf] %v7507
        %7691 = vst [vmem:[#allocation3 + $0x304] sm:$0xf] %v7517
        %7692 = vst [vmem:[#allocation3 + $0x328] sm:$0xf] %v7531
        %7693 = vst [vmem:[#allocation3 + $0x34c] sm:$0xf] %v7541
        %7694 = vst [vmem:[#allocation3 + $0x370] sm:$0xf] %v7555
        %7695 = vst [vmem:[#allocation3 + $0x394] sm:$0xf] %v7565
        %7696 = vst [vmem:[#allocation3 + $0x3b8] sm:$0xf] %v7579
        %7697 = vst [vmem:[#allocation3 + $0x3dc] sm:$0xf] %v7589
        %7698 = vst [vmem:[#allocation3 + $0x400] sm:$0xf] %v7603
        %7699 = vst [vmem:[#allocation3 + $0x424] sm:$0xf] %v7613
        %7700 = vst [vmem:[#allocation3 + $0x448] sm:$0xf] %v7627
        %7701 = vst [vmem:[#allocation3 + $0x46c] sm:$0xf] %v7637
        %v7702 = vld [vmem:[%s851] sm:$0xe]
        %v7703 = vld [vmem:[%s851 + $0x4] sm:$0xf]
        %v7704 = vld [vmem:[%s851 + $0x8] sm:$0x1]
        %v7705 = vld [vmem:[%s851 + $0xc] sm:$0xe]
        %v7706 = vld [vmem:[%s851 + $0x10] sm:$0xf]
        %v7707 = vld [vmem:[%s851 + $0x14] sm:$0x1]
        %v7708 = vld [vmem:[%s851 + $0x18] sm:$0xe]
        %v7709 = vld [vmem:[%s851 + $0x1c] sm:$0xf]
        %v7710 = vld [vmem:[%s851 + $0x20] sm:$0x1]
        %v7711 = vld [vmem:[%s851 + $0x24] sm:$0xe]
        %v7712 = vld [vmem:[%s851 + $0x28] sm:$0xf]
        %v7713 = vld [vmem:[%s851 + $0x2c] sm:$0x1]
        %v7714 = vld [vmem:[%s851 + $0x30] sm:$0xe]
        %v7715 = vld [vmem:[%s851 + $0x34] sm:$0xf]
        %v7716 = vld [vmem:[%s851 + $0x38] sm:$0x1]
        %v7717 = vld [vmem:[%s851 + $0x3c] sm:$0xe]
        %v7718 = vld [vmem:[%s851 + $0x40] sm:$0xf]
        %v7719 = vld [vmem:[%s851 + $0x44] sm:$0x1]
        %v7720 = vld [vmem:[%s851 + $0x48] sm:$0xe]
        %v7721 = vld [vmem:[%s851 + $0x4c] sm:$0xf]
        %v7722 = vld [vmem:[%s851 + $0x50] sm:$0x1]
        %v7723 = vld [vmem:[%s851 + $0x54] sm:$0xe]
        %v7724 = vld [vmem:[%s851 + $0x58] sm:$0xf]
        %v7725 = vld [vmem:[%s851 + $0x5c] sm:$0x1]
        %v7726 = vld [vmem:[%s851 + $0x60] sm:$0xe]
        %v7727 = vld [vmem:[%s851 + $0x64] sm:$0xf]
        %v7728 = vld [vmem:[%s851 + $0x68] sm:$0x1]
        %v7729 = vld [vmem:[%s851 + $0x6c] sm:$0xe]
        %v7730 = vld [vmem:[%s851 + $0x70] sm:$0xf]
        %v7731 = vld [vmem:[%s851 + $0x74] sm:$0x1]
        %v7732 = vld [vmem:[%s851 + $0x78] sm:$0xe]
        %v7733 = vld [vmem:[%s851 + $0x7c] sm:$0xf]
        %v7734 = vld [vmem:[%s851 + $0x80] sm:$0x1]
        %v7735 = vld [vmem:[%s851 + $0x84] sm:$0xe]
        %v7736 = vld [vmem:[%s851 + $0x88] sm:$0xf]
        %v7737 = vld [vmem:[%s851 + $0x8c] sm:$0x1]
        %v7738 = vld [vmem:[%s851 + $0x90] sm:$0xe]
        %v7739 = vld [vmem:[%s851 + $0x94] sm:$0xf]
        %v7740 = vld [vmem:[%s851 + $0x98] sm:$0x1]
        %v7741 = vld [vmem:[%s851 + $0x9c] sm:$0xe]
        %v7742 = vld [vmem:[%s851 + $0xa0] sm:$0xf]
        %v7743 = vld [vmem:[%s851 + $0xa4] sm:$0x1]
        %v7744 = vld [vmem:[%s851 + $0xa8] sm:$0xe]
        %v7745 = vld [vmem:[%s851 + $0xac] sm:$0xf]
        %v7746 = vld [vmem:[%s851 + $0xb0] sm:$0x1]
        %v7747 = vld [vmem:[%s851 + $0xb4] sm:$0xe]
        %v7748 = vld [vmem:[%s851 + $0xb8] sm:$0xf]
        %v7749 = vld [vmem:[%s851 + $0xbc] sm:$0x1]
        %v7798 = vrot.slane %v7702, 5
        %v7799 = vrot.slane %v7798, 4
        %v7800 = vrot.slane %v7703, 5
        %v7801 = vsel %vm1627, %v7799, %v7800
        %v7802 = vrot.slane %v7800, 4
        %v7803 = vrot.slane %v7704, 5
        %v7804 = vsel %vm1627, %v7802, %v7803
        %v7805 = vrot.slane %v7705, 5
        %v7806 = vrot.slane %v7805, 4
        %v7807 = vrot.slane %v7706, 5
        %v7808 = vsel %vm1627, %v7806, %v7807
        %v7809 = vrot.slane %v7807, 4
        %v7810 = vrot.slane %v7707, 5
        %v7811 = vsel %vm1627, %v7809, %v7810
        %v7812 = vrot.slane %v7708, 5
        %v7813 = vrot.slane %v7812, 4
        %v7814 = vrot.slane %v7709, 5
        %v7815 = vsel %vm1627, %v7813, %v7814
        %v7816 = vrot.slane %v7814, 4
        %v7817 = vrot.slane %v7710, 5
        %v7818 = vsel %vm1627, %v7816, %v7817
        %v7819 = vrot.slane %v7711, 5
        %v7820 = vrot.slane %v7819, 4
        %v7821 = vrot.slane %v7712, 5
        %v7822 = vsel %vm1627, %v7820, %v7821
        %v7823 = vrot.slane %v7821, 4
        %v7824 = vrot.slane %v7713, 5
        %v7825 = vsel %vm1627, %v7823, %v7824
        %v7826 = vrot.slane %v7714, 5
        %v7827 = vrot.slane %v7826, 4
        %v7828 = vrot.slane %v7715, 5
        %v7829 = vsel %vm1627, %v7827, %v7828
        %v7830 = vrot.slane %v7828, 4
        %v7831 = vrot.slane %v7716, 5
        %v7832 = vsel %vm1627, %v7830, %v7831
        %v7833 = vrot.slane %v7717, 5
        %v7834 = vrot.slane %v7833, 4
        %v7835 = vrot.slane %v7718, 5
        %v7836 = vsel %vm1627, %v7834, %v7835
        %v7837 = vrot.slane %v7835, 4
        %v7838 = vrot.slane %v7719, 5
        %v7839 = vsel %vm1627, %v7837, %v7838
        %v7840 = vrot.slane %v7720, 5
        %v7841 = vrot.slane %v7840, 4
        %v7842 = vrot.slane %v7721, 5
        %v7843 = vsel %vm1627, %v7841, %v7842
        %v7844 = vrot.slane %v7842, 4
        %v7845 = vrot.slane %v7722, 5
        %v7846 = vsel %vm1627, %v7844, %v7845
        %v7847 = vrot.slane %v7723, 5
        %v7848 = vrot.slane %v7847, 4
        %v7849 = vrot.slane %v7724, 5
        %v7850 = vsel %vm1627, %v7848, %v7849
        %v7851 = vrot.slane %v7849, 4
        %v7852 = vrot.slane %v7725, 5
        %v7853 = vsel %vm1627, %v7851, %v7852
        %v7854 = vrot.slane %v7726, 5
        %v7855 = vrot.slane %v7854, 4
        %v7856 = vrot.slane %v7727, 5
        %v7857 = vsel %vm1627, %v7855, %v7856
        %v7858 = vrot.slane %v7856, 4
        %v7859 = vrot.slane %v7728, 5
        %v7860 = vsel %vm1627, %v7858, %v7859
        %v7861 = vrot.slane %v7729, 5
        %v7862 = vrot.slane %v7861, 4
        %v7863 = vrot.slane %v7730, 5
        %v7864 = vsel %vm1627, %v7862, %v7863
        %v7865 = vrot.slane %v7863, 4
        %v7866 = vrot.slane %v7731, 5
        %v7867 = vsel %vm1627, %v7865, %v7866
        %v7868 = vrot.slane %v7732, 5
        %v7869 = vrot.slane %v7868, 4
        %v7870 = vrot.slane %v7733, 5
        %v7871 = vsel %vm1627, %v7869, %v7870
        %v7872 = vrot.slane %v7870, 4
        %v7873 = vrot.slane %v7734, 5
        %v7874 = vsel %vm1627, %v7872, %v7873
        %v7875 = vrot.slane %v7735, 5
        %v7876 = vrot.slane %v7875, 4
        %v7877 = vrot.slane %v7736, 5
        %v7878 = vsel %vm1627, %v7876, %v7877
        %v7879 = vrot.slane %v7877, 4
        %v7880 = vrot.slane %v7737, 5
        %v7881 = vsel %vm1627, %v7879, %v7880
        %v7882 = vrot.slane %v7738, 5
        %v7883 = vrot.slane %v7882, 4
        %v7884 = vrot.slane %v7739, 5
        %v7885 = vsel %vm1627, %v7883, %v7884
        %v7886 = vrot.slane %v7884, 4
        %v7887 = vrot.slane %v7740, 5
        %v7888 = vsel %vm1627, %v7886, %v7887
        %v7889 = vrot.slane %v7741, 5
        %v7890 = vrot.slane %v7889, 4
        %v7891 = vrot.slane %v7742, 5
        %v7892 = vsel %vm1627, %v7890, %v7891
        %v7893 = vrot.slane %v7891, 4
        %v7894 = vrot.slane %v7743, 5
        %v7895 = vsel %vm1627, %v7893, %v7894
        %v7896 = vrot.slane %v7744, 5
        %v7897 = vrot.slane %v7896, 4
        %v7898 = vrot.slane %v7745, 5
        %v7899 = vsel %vm1627, %v7897, %v7898
        %v7900 = vrot.slane %v7898, 4
        %v7901 = vrot.slane %v7746, 5
        %v7902 = vsel %vm1627, %v7900, %v7901
        %v7903 = vrot.slane %v7747, 5
        %v7904 = vrot.slane %v7903, 4
        %v7905 = vrot.slane %v7748, 5
        %v7906 = vsel %vm1627, %v7904, %v7905
        %v7907 = vrot.slane %v7905, 4
        %v7908 = vrot.slane %v7749, 5
        %v7909 = vsel %vm1627, %v7907, %v7908
        %7942 = vst [vmem:[#allocation3 + $0x14] sm:$0xf] %v7801
        %7943 = vst [vmem:[#allocation3 + $0x38] sm:$0xf] %v7804
        %7944 = vst [vmem:[#allocation3 + $0x5c] sm:$0xf] %v7808
        %7945 = vst [vmem:[#allocation3 + $0x80] sm:$0xf] %v7811
        %7946 = vst [vmem:[#allocation3 + $0xa4] sm:$0xf] %v7815
        %7947 = vst [vmem:[#allocation3 + $0xc8] sm:$0xf] %v7818
        %7948 = vst [vmem:[#allocation3 + $0xec] sm:$0xf] %v7822
        %7949 = vst [vmem:[#allocation3 + $0x110] sm:$0xf] %v7825
        %7950 = vst [vmem:[#allocation3 + $0x134] sm:$0xf] %v7829
        %7951 = vst [vmem:[#allocation3 + $0x158] sm:$0xf] %v7832
        %7952 = vst [vmem:[#allocation3 + $0x17c] sm:$0xf] %v7836
        %7953 = vst [vmem:[#allocation3 + $0x1a0] sm:$0xf] %v7839
        %7954 = vst [vmem:[#allocation3 + $0x1c4] sm:$0xf] %v7843
        %7955 = vst [vmem:[#allocation3 + $0x1e8] sm:$0xf] %v7846
        %7956 = vst [vmem:[#allocation3 + $0x20c] sm:$0xf] %v7850
        %7957 = vst [vmem:[#allocation3 + $0x230] sm:$0xf] %v7853
        %7958 = vst [vmem:[#allocation3 + $0x254] sm:$0xf] %v7857
        %7959 = vst [vmem:[#allocation3 + $0x278] sm:$0xf] %v7860
        %7960 = vst [vmem:[#allocation3 + $0x29c] sm:$0xf] %v7864
        %7961 = vst [vmem:[#allocation3 + $0x2c0] sm:$0xf] %v7867
        %7962 = vst [vmem:[#allocation3 + $0x2e4] sm:$0xf] %v7871
        %7963 = vst [vmem:[#allocation3 + $0x308] sm:$0xf] %v7874
        %7964 = vst [vmem:[#allocation3 + $0x32c] sm:$0xf] %v7878
        %7965 = vst [vmem:[#allocation3 + $0x350] sm:$0xf] %v7881
        %7966 = vst [vmem:[#allocation3 + $0x374] sm:$0xf] %v7885
        %7967 = vst [vmem:[#allocation3 + $0x398] sm:$0xf] %v7888
        %7968 = vst [vmem:[#allocation3 + $0x3bc] sm:$0xf] %v7892
        %7969 = vst [vmem:[#allocation3 + $0x3e0] sm:$0xf] %v7895
        %7970 = vst [vmem:[#allocation3 + $0x404] sm:$0xf] %v7899
        %7971 = vst [vmem:[#allocation3 + $0x428] sm:$0xf] %v7902
        %7972 = vst [vmem:[#allocation3 + $0x44c] sm:$0xf] %v7906
        %7973 = vst [vmem:[#allocation3 + $0x470] sm:$0xf] %v7909
        %v7974 = vld [vmem:[%s2636] sm:$0xf]
        %v7975 = vld [vmem:[%s2636 + $0x4] sm:$0xf]
        %v7976 = vld [vmem:[%s2636 + $0xc] sm:$0xf]
        %v7977 = vld [vmem:[%s2636 + $0x10] sm:$0xf]
        %v7978 = vld [vmem:[%s2636 + $0x18] sm:$0xf]
        %v7979 = vld [vmem:[%s2636 + $0x1c] sm:$0xf]
        %v7980 = vld [vmem:[%s2636 + $0x24] sm:$0xf]
        %v7981 = vld [vmem:[%s2636 + $0x28] sm:$0xf]
        %v7982 = vld [vmem:[%s2636 + $0x30] sm:$0xf]
        %v7983 = vld [vmem:[%s2636 + $0x34] sm:$0xf]
        %v7984 = vld [vmem:[%s2636 + $0x3c] sm:$0xf]
        %v7985 = vld [vmem:[%s2636 + $0x40] sm:$0xf]
        %v7986 = vld [vmem:[%s2636 + $0x48] sm:$0xf]
        %v7987 = vld [vmem:[%s2636 + $0x4c] sm:$0xf]
        %v7988 = vld [vmem:[%s2636 + $0x54] sm:$0xf]
        %v7989 = vld [vmem:[%s2636 + $0x58] sm:$0xf]
        %v7990 = vld [vmem:[%s2636 + $0x60] sm:$0xf]
        %v7991 = vld [vmem:[%s2636 + $0x64] sm:$0xf]
        %v7992 = vld [vmem:[%s2636 + $0x6c] sm:$0xf]
        %v7993 = vld [vmem:[%s2636 + $0x70] sm:$0xf]
        %v7994 = vld [vmem:[%s2636 + $0x78] sm:$0xf]
        %v7995 = vld [vmem:[%s2636 + $0x7c] sm:$0xf]
        %v7996 = vld [vmem:[%s2636 + $0x84] sm:$0xf]
        %v7997 = vld [vmem:[%s2636 + $0x88] sm:$0xf]
        %v7998 = vld [vmem:[%s2636 + $0x90] sm:$0xf]
        %v7999 = vld [vmem:[%s2636 + $0x94] sm:$0xf]
        %v8000 = vld [vmem:[%s2636 + $0x9c] sm:$0xf]
        %v8001 = vld [vmem:[%s2636 + $0xa0] sm:$0xf]
        %v8002 = vld [vmem:[%s2636 + $0xa8] sm:$0xf]
        %v8003 = vld [vmem:[%s2636 + $0xac] sm:$0xf]
        %v8004 = vld [vmem:[%s2636 + $0xb4] sm:$0xf]
        %v8005 = vld [vmem:[%s2636 + $0xb8] sm:$0xf]
        %8006 = vst [vmem:[#allocation3 + $0x18] sm:$0xf] %v7974
        %8007 = vst [vmem:[#allocation3 + $0x3c] sm:$0xf] %v7975
        %8008 = vst [vmem:[#allocation3 + $0x60] sm:$0xf] %v7976
        %8009 = vst [vmem:[#allocation3 + $0x84] sm:$0xf] %v7977
        %8010 = vst [vmem:[#allocation3 + $0xa8] sm:$0xf] %v7978
        %8011 = vst [vmem:[#allocation3 + $0xcc] sm:$0xf] %v7979
        %8012 = vst [vmem:[#allocation3 + $0xf0] sm:$0xf] %v7980
        %8013 = vst [vmem:[#allocation3 + $0x114] sm:$0xf] %v7981
        %8014 = vst [vmem:[#allocation3 + $0x138] sm:$0xf] %v7982
        %8015 = vst [vmem:[#allocation3 + $0x15c] sm:$0xf] %v7983
        %8016 = vst [vmem:[#allocation3 + $0x180] sm:$0xf] %v7984
        %8017 = vst [vmem:[#allocation3 + $0x1a4] sm:$0xf] %v7985
        %8018 = vst [vmem:[#allocation3 + $0x1c8] sm:$0xf] %v7986
        %8019 = vst [vmem:[#allocation3 + $0x1ec] sm:$0xf] %v7987
        %8020 = vst [vmem:[#allocation3 + $0x210] sm:$0xf] %v7988
        %8021 = vst [vmem:[#allocation3 + $0x234] sm:$0xf] %v7989
        %8022 = vst [vmem:[#allocation3 + $0x258] sm:$0xf] %v7990
        %8023 = vst [vmem:[#allocation3 + $0x27c] sm:$0xf] %v7991
        %8024 = vst [vmem:[#allocation3 + $0x2a0] sm:$0xf] %v7992
        %8025 = vst [vmem:[#allocation3 + $0x2c4] sm:$0xf] %v7993
        %8026 = vst [vmem:[#allocation3 + $0x2e8] sm:$0xf] %v7994
        %8027 = vst [vmem:[#allocation3 + $0x30c] sm:$0xf] %v7995
        %8028 = vst [vmem:[#allocation3 + $0x330] sm:$0xf] %v7996
        %8029 = vst [vmem:[#allocation3 + $0x354] sm:$0xf] %v7997
        %8030 = vst [vmem:[#allocation3 + $0x378] sm:$0xf] %v7998
        %8031 = vst [vmem:[#allocation3 + $0x39c] sm:$0xf] %v7999
        %8032 = vst [vmem:[#allocation3 + $0x3c0] sm:$0xf] %v8000
        %8033 = vst [vmem:[#allocation3 + $0x3e4] sm:$0xf] %v8001
        %8034 = vst [vmem:[#allocation3 + $0x408] sm:$0xf] %v8002
        %8035 = vst [vmem:[#allocation3 + $0x42c] sm:$0xf] %v8003
        %8036 = vst [vmem:[#allocation3 + $0x450] sm:$0xf] %v8004
        %8037 = vst [vmem:[#allocation3 + $0x474] sm:$0xf] %v8005
        %v8038 = vld [vmem:[%s2636] sm:$0xf]
        %v8039 = vld [vmem:[%s2636 + $0x4] sm:$0xf]
        %v8040 = vld [vmem:[%s2636 + $0x8] sm:$0x1]
        %v8041 = vld [vmem:[%s2636 + $0xc] sm:$0xf]
        %v8042 = vld [vmem:[%s2636 + $0x10] sm:$0xf]
        %v8043 = vld [vmem:[%s2636 + $0x14] sm:$0x1]
        %v8044 = vld [vmem:[%s2636 + $0x18] sm:$0xf]
        %v8045 = vld [vmem:[%s2636 + $0x1c] sm:$0xf]
        %v8046 = vld [vmem:[%s2636 + $0x20] sm:$0x1]
        %v8047 = vld [vmem:[%s2636 + $0x24] sm:$0xf]
        %v8048 = vld [vmem:[%s2636 + $0x28] sm:$0xf]
        %v8049 = vld [vmem:[%s2636 + $0x2c] sm:$0x1]
        %v8050 = vld [vmem:[%s2636 + $0x30] sm:$0xf]
        %v8051 = vld [vmem:[%s2636 + $0x34] sm:$0xf]
        %v8052 = vld [vmem:[%s2636 + $0x38] sm:$0x1]
        %v8053 = vld [vmem:[%s2636 + $0x3c] sm:$0xf]
        %v8054 = vld [vmem:[%s2636 + $0x40] sm:$0xf]
        %v8055 = vld [vmem:[%s2636 + $0x44] sm:$0x1]
        %v8056 = vld [vmem:[%s2636 + $0x48] sm:$0xf]
        %v8057 = vld [vmem:[%s2636 + $0x4c] sm:$0xf]
        %v8058 = vld [vmem:[%s2636 + $0x50] sm:$0x1]
        %v8059 = vld [vmem:[%s2636 + $0x54] sm:$0xf]
        %v8060 = vld [vmem:[%s2636 + $0x58] sm:$0xf]
        %v8061 = vld [vmem:[%s2636 + $0x5c] sm:$0x1]
        %v8062 = vld [vmem:[%s2636 + $0x60] sm:$0xf]
        %v8063 = vld [vmem:[%s2636 + $0x64] sm:$0xf]
        %v8064 = vld [vmem:[%s2636 + $0x68] sm:$0x1]
        %v8065 = vld [vmem:[%s2636 + $0x6c] sm:$0xf]
        %v8066 = vld [vmem:[%s2636 + $0x70] sm:$0xf]
        %v8067 = vld [vmem:[%s2636 + $0x74] sm:$0x1]
        %v8068 = vld [vmem:[%s2636 + $0x78] sm:$0xf]
        %v8069 = vld [vmem:[%s2636 + $0x7c] sm:$0xf]
        %v8070 = vld [vmem:[%s2636 + $0x80] sm:$0x1]
        %v8071 = vld [vmem:[%s2636 + $0x84] sm:$0xf]
        %v8072 = vld [vmem:[%s2636 + $0x88] sm:$0xf]
        %v8073 = vld [vmem:[%s2636 + $0x8c] sm:$0x1]
        %v8074 = vld [vmem:[%s2636 + $0x90] sm:$0xf]
        %v8075 = vld [vmem:[%s2636 + $0x94] sm:$0xf]
        %v8076 = vld [vmem:[%s2636 + $0x98] sm:$0x1]
        %v8077 = vld [vmem:[%s2636 + $0x9c] sm:$0xf]
        %v8078 = vld [vmem:[%s2636 + $0xa0] sm:$0xf]
        %v8079 = vld [vmem:[%s2636 + $0xa4] sm:$0x1]
        %v8080 = vld [vmem:[%s2636 + $0xa8] sm:$0xf]
        %v8081 = vld [vmem:[%s2636 + $0xac] sm:$0xf]
        %v8082 = vld [vmem:[%s2636 + $0xb0] sm:$0x1]
        %v8083 = vld [vmem:[%s2636 + $0xb4] sm:$0xf]
        %v8084 = vld [vmem:[%s2636 + $0xb8] sm:$0xf]
        %v8085 = vld [vmem:[%s2636 + $0xbc] sm:$0x1]
        %v8087 = vshrl.u32 %v8038, 16
        %v8089 = vrot.slane %v8087, 4
        %v8090 = vshll.u32 %v8038, 16
        %v8092 = vrot.slane %v8090, 5
        %v8093 = vor.u32 %v8089, %v8092
        %v8094 = vrot.slane %v8093, 4
        %v8096 = vshll.u32 %v8039, 16
        %v8098 = vrot.slane %v8096, 5
        %v8099 = vsel %vm1080, %v8094, %v8098
        %v8100 = vshrl.u32 %v8039, 16
        %v8102 = vrot.slane %v8100, 4
        %v8103 = vor.u32 %v8102, %v8098
        %v8104 = vrot.slane %v8103, 4
        %v8106 = vshll.u32 %v8040, 16
        %v8108 = vrot.slane %v8106, 5
        %v8109 = vsel %vm1080, %v8104, %v8108
        %v8111 = vshrl.u32 %v8041, 16
        %v8113 = vrot.slane %v8111, 4
        %v8114 = vshll.u32 %v8041, 16
        %v8116 = vrot.slane %v8114, 5
        %v8117 = vor.u32 %v8113, %v8116
        %v8118 = vrot.slane %v8117, 4
        %v8120 = vshll.u32 %v8042, 16
        %v8122 = vrot.slane %v8120, 5
        %v8123 = vsel %vm1080, %v8118, %v8122
        %v8124 = vshrl.u32 %v8042, 16
        %v8126 = vrot.slane %v8124, 4
        %v8127 = vor.u32 %v8126, %v8122
        %v8128 = vrot.slane %v8127, 4
        %v8130 = vshll.u32 %v8043, 16
        %v8132 = vrot.slane %v8130, 5
        %v8133 = vsel %vm1080, %v8128, %v8132
        %v8135 = vshrl.u32 %v8044, 16
        %v8137 = vrot.slane %v8135, 4
        %v8138 = vshll.u32 %v8044, 16
        %v8140 = vrot.slane %v8138, 5
        %v8141 = vor.u32 %v8137, %v8140
        %v8142 = vrot.slane %v8141, 4
        %v8144 = vshll.u32 %v8045, 16
        %v8146 = vrot.slane %v8144, 5
        %v8147 = vsel %vm1080, %v8142, %v8146
        %v8148 = vshrl.u32 %v8045, 16
        %v8150 = vrot.slane %v8148, 4
        %v8151 = vor.u32 %v8150, %v8146
        %v8152 = vrot.slane %v8151, 4
        %v8154 = vshll.u32 %v8046, 16
        %v8156 = vrot.slane %v8154, 5
        %v8157 = vsel %vm1080, %v8152, %v8156
        %v8159 = vshrl.u32 %v8047, 16
        %v8161 = vrot.slane %v8159, 4
        %v8162 = vshll.u32 %v8047, 16
        %v8164 = vrot.slane %v8162, 5
        %v8165 = vor.u32 %v8161, %v8164
        %v8166 = vrot.slane %v8165, 4
        %v8168 = vshll.u32 %v8048, 16
        %v8170 = vrot.slane %v8168, 5
        %v8171 = vsel %vm1080, %v8166, %v8170
        %v8172 = vshrl.u32 %v8048, 16
        %v8174 = vrot.slane %v8172, 4
        %v8175 = vor.u32 %v8174, %v8170
        %v8176 = vrot.slane %v8175, 4
        %v8178 = vshll.u32 %v8049, 16
        %v8180 = vrot.slane %v8178, 5
        %v8181 = vsel %vm1080, %v8176, %v8180
        %v8183 = vshrl.u32 %v8050, 16
        %v8185 = vrot.slane %v8183, 4
        %v8186 = vshll.u32 %v8050, 16
        %v8188 = vrot.slane %v8186, 5
        %v8189 = vor.u32 %v8185, %v8188
        %v8190 = vrot.slane %v8189, 4
        %v8192 = vshll.u32 %v8051, 16
        %v8194 = vrot.slane %v8192, 5
        %v8195 = vsel %vm1080, %v8190, %v8194
        %v8196 = vshrl.u32 %v8051, 16
        %v8198 = vrot.slane %v8196, 4
        %v8199 = vor.u32 %v8198, %v8194
        %v8200 = vrot.slane %v8199, 4
        %v8202 = vshll.u32 %v8052, 16
        %v8204 = vrot.slane %v8202, 5
        %v8205 = vsel %vm1080, %v8200, %v8204
        %v8207 = vshrl.u32 %v8053, 16
        %v8209 = vrot.slane %v8207, 4
        %v8210 = vshll.u32 %v8053, 16
        %v8212 = vrot.slane %v8210, 5
        %v8213 = vor.u32 %v8209, %v8212
        %v8214 = vrot.slane %v8213, 4
        %v8216 = vshll.u32 %v8054, 16
        %v8218 = vrot.slane %v8216, 5
        %v8219 = vsel %vm1080, %v8214, %v8218
        %v8220 = vshrl.u32 %v8054, 16
        %v8222 = vrot.slane %v8220, 4
        %v8223 = vor.u32 %v8222, %v8218
        %v8224 = vrot.slane %v8223, 4
        %v8226 = vshll.u32 %v8055, 16
        %v8228 = vrot.slane %v8226, 5
        %v8229 = vsel %vm1080, %v8224, %v8228
        %v8231 = vshrl.u32 %v8056, 16
        %v8233 = vrot.slane %v8231, 4
        %v8234 = vshll.u32 %v8056, 16
        %v8236 = vrot.slane %v8234, 5
        %v8237 = vor.u32 %v8233, %v8236
        %v8238 = vrot.slane %v8237, 4
        %v8240 = vshll.u32 %v8057, 16
        %v8242 = vrot.slane %v8240, 5
        %v8243 = vsel %vm1080, %v8238, %v8242
        %v8244 = vshrl.u32 %v8057, 16
        %v8246 = vrot.slane %v8244, 4
        %v8247 = vor.u32 %v8246, %v8242
        %v8248 = vrot.slane %v8247, 4
        %v8250 = vshll.u32 %v8058, 16
        %v8252 = vrot.slane %v8250, 5
        %v8253 = vsel %vm1080, %v8248, %v8252
        %v8255 = vshrl.u32 %v8059, 16
        %v8257 = vrot.slane %v8255, 4
        %v8258 = vshll.u32 %v8059, 16
        %v8260 = vrot.slane %v8258, 5
        %v8261 = vor.u32 %v8257, %v8260
        %v8262 = vrot.slane %v8261, 4
        %v8264 = vshll.u32 %v8060, 16
        %v8266 = vrot.slane %v8264, 5
        %v8267 = vsel %vm1080, %v8262, %v8266
        %v8268 = vshrl.u32 %v8060, 16
        %v8270 = vrot.slane %v8268, 4
        %v8271 = vor.u32 %v8270, %v8266
        %v8272 = vrot.slane %v8271, 4
        %v8274 = vshll.u32 %v8061, 16
        %v8276 = vrot.slane %v8274, 5
        %v8277 = vsel %vm1080, %v8272, %v8276
        %v8279 = vshrl.u32 %v8062, 16
        %v8281 = vrot.slane %v8279, 4
        %v8282 = vshll.u32 %v8062, 16
        %v8284 = vrot.slane %v8282, 5
        %v8285 = vor.u32 %v8281, %v8284
        %v8286 = vrot.slane %v8285, 4
        %v8288 = vshll.u32 %v8063, 16
        %v8290 = vrot.slane %v8288, 5
        %v8291 = vsel %vm1080, %v8286, %v8290
        %v8292 = vshrl.u32 %v8063, 16
        %v8294 = vrot.slane %v8292, 4
        %v8295 = vor.u32 %v8294, %v8290
        %v8296 = vrot.slane %v8295, 4
        %v8298 = vshll.u32 %v8064, 16
        %v8300 = vrot.slane %v8298, 5
        %v8301 = vsel %vm1080, %v8296, %v8300
        %v8303 = vshrl.u32 %v8065, 16
        %v8305 = vrot.slane %v8303, 4
        %v8306 = vshll.u32 %v8065, 16
        %v8308 = vrot.slane %v8306, 5
        %v8309 = vor.u32 %v8305, %v8308
        %v8310 = vrot.slane %v8309, 4
        %v8312 = vshll.u32 %v8066, 16
        %v8314 = vrot.slane %v8312, 5
        %v8315 = vsel %vm1080, %v8310, %v8314
        %v8316 = vshrl.u32 %v8066, 16
        %v8318 = vrot.slane %v8316, 4
        %v8319 = vor.u32 %v8318, %v8314
        %v8320 = vrot.slane %v8319, 4
        %v8322 = vshll.u32 %v8067, 16
        %v8324 = vrot.slane %v8322, 5
        %v8325 = vsel %vm1080, %v8320, %v8324
        %v8327 = vshrl.u32 %v8068, 16
        %v8329 = vrot.slane %v8327, 4
        %v8330 = vshll.u32 %v8068, 16
        %v8332 = vrot.slane %v8330, 5
        %v8333 = vor.u32 %v8329, %v8332
        %v8334 = vrot.slane %v8333, 4
        %v8336 = vshll.u32 %v8069, 16
        %v8338 = vrot.slane %v8336, 5
        %v8339 = vsel %vm1080, %v8334, %v8338
        %v8340 = vshrl.u32 %v8069, 16
        %v8342 = vrot.slane %v8340, 4
        %v8343 = vor.u32 %v8342, %v8338
        %v8344 = vrot.slane %v8343, 4
        %v8346 = vshll.u32 %v8070, 16
        %v8348 = vrot.slane %v8346, 5
        %v8349 = vsel %vm1080, %v8344, %v8348
        %v8351 = vshrl.u32 %v8071, 16
        %v8353 = vrot.slane %v8351, 4
        %v8354 = vshll.u32 %v8071, 16
        %v8356 = vrot.slane %v8354, 5
        %v8357 = vor.u32 %v8353, %v8356
        %v8358 = vrot.slane %v8357, 4
        %v8360 = vshll.u32 %v8072, 16
        %v8362 = vrot.slane %v8360, 5
        %v8363 = vsel %vm1080, %v8358, %v8362
        %v8364 = vshrl.u32 %v8072, 16
        %v8366 = vrot.slane %v8364, 4
        %v8367 = vor.u32 %v8366, %v8362
        %v8368 = vrot.slane %v8367, 4
        %v8370 = vshll.u32 %v8073, 16
        %v8372 = vrot.slane %v8370, 5
        %v8373 = vsel %vm1080, %v8368, %v8372
        %v8375 = vshrl.u32 %v8074, 16
        %v8377 = vrot.slane %v8375, 4
        %v8378 = vshll.u32 %v8074, 16
        %v8380 = vrot.slane %v8378, 5
        %v8381 = vor.u32 %v8377, %v8380
        %v8382 = vrot.slane %v8381, 4
        %v8384 = vshll.u32 %v8075, 16
        %v8386 = vrot.slane %v8384, 5
        %v8387 = vsel %vm1080, %v8382, %v8386
        %v8388 = vshrl.u32 %v8075, 16
        %v8390 = vrot.slane %v8388, 4
        %v8391 = vor.u32 %v8390, %v8386
        %v8392 = vrot.slane %v8391, 4
        %v8394 = vshll.u32 %v8076, 16
        %v8396 = vrot.slane %v8394, 5
        %v8397 = vsel %vm1080, %v8392, %v8396
        %v8399 = vshrl.u32 %v8077, 16
        %v8401 = vrot.slane %v8399, 4
        %v8402 = vshll.u32 %v8077, 16
        %v8404 = vrot.slane %v8402, 5
        %v8405 = vor.u32 %v8401, %v8404
        %v8406 = vrot.slane %v8405, 4
        %v8408 = vshll.u32 %v8078, 16
        %v8410 = vrot.slane %v8408, 5
        %v8411 = vsel %vm1080, %v8406, %v8410
        %v8412 = vshrl.u32 %v8078, 16
        %v8414 = vrot.slane %v8412, 4
        %v8415 = vor.u32 %v8414, %v8410
        %v8416 = vrot.slane %v8415, 4
        %v8418 = vshll.u32 %v8079, 16
        %v8420 = vrot.slane %v8418, 5
        %v8421 = vsel %vm1080, %v8416, %v8420
        %v8423 = vshrl.u32 %v8080, 16
        %v8425 = vrot.slane %v8423, 4
        %v8426 = vshll.u32 %v8080, 16
        %v8428 = vrot.slane %v8426, 5
        %v8429 = vor.u32 %v8425, %v8428
        %v8430 = vrot.slane %v8429, 4
        %v8432 = vshll.u32 %v8081, 16
        %v8434 = vrot.slane %v8432, 5
        %v8435 = vsel %vm1080, %v8430, %v8434
        %v8436 = vshrl.u32 %v8081, 16
        %v8438 = vrot.slane %v8436, 4
        %v8439 = vor.u32 %v8438, %v8434
        %v8440 = vrot.slane %v8439, 4
        %v8442 = vshll.u32 %v8082, 16
        %v8444 = vrot.slane %v8442, 5
        %v8445 = vsel %vm1080, %v8440, %v8444
        %v8447 = vshrl.u32 %v8083, 16
        %v8449 = vrot.slane %v8447, 4
        %v8450 = vshll.u32 %v8083, 16
        %v8452 = vrot.slane %v8450, 5
        %v8453 = vor.u32 %v8449, %v8452
        %v8454 = vrot.slane %v8453, 4
        %v8456 = vshll.u32 %v8084, 16
        %v8458 = vrot.slane %v8456, 5
        %v8459 = vsel %vm1080, %v8454, %v8458
        %v8460 = vshrl.u32 %v8084, 16
        %v8462 = vrot.slane %v8460, 4
        %v8463 = vor.u32 %v8462, %v8458
        %v8464 = vrot.slane %v8463, 4
        %v8466 = vshll.u32 %v8085, 16
        %v8468 = vrot.slane %v8466, 5
        %v8469 = vsel %vm1080, %v8464, %v8468
        %8502 = vst [vmem:[#allocation3 + $0x1c] sm:$0xf] %v8099
        %8503 = vst [vmem:[#allocation3 + $0x40] sm:$0xf] %v8109
        %8504 = vst [vmem:[#allocation3 + $0x64] sm:$0xf] %v8123
        %8505 = vst [vmem:[#allocation3 + $0x88] sm:$0xf] %v8133
        %8506 = vst [vmem:[#allocation3 + $0xac] sm:$0xf] %v8147
        %8507 = vst [vmem:[#allocation3 + $0xd0] sm:$0xf] %v8157
        %8508 = vst [vmem:[#allocation3 + $0xf4] sm:$0xf] %v8171
        %8509 = vst [vmem:[#allocation3 + $0x118] sm:$0xf] %v8181
        %8510 = vst [vmem:[#allocation3 + $0x13c] sm:$0xf] %v8195
        %8511 = vst [vmem:[#allocation3 + $0x160] sm:$0xf] %v8205
        %8512 = vst [vmem:[#allocation3 + $0x184] sm:$0xf] %v8219
        %8513 = vst [vmem:[#allocation3 + $0x1a8] sm:$0xf] %v8229
        %8514 = vst [vmem:[#allocation3 + $0x1cc] sm:$0xf] %v8243
        %8515 = vst [vmem:[#allocation3 + $0x1f0] sm:$0xf] %v8253
        %8516 = vst [vmem:[#allocation3 + $0x214] sm:$0xf] %v8267
        %8517 = vst [vmem:[#allocation3 + $0x238] sm:$0xf] %v8277
        %8518 = vst [vmem:[#allocation3 + $0x25c] sm:$0xf] %v8291
        %8519 = vst [vmem:[#allocation3 + $0x280] sm:$0xf] %v8301
        %8520 = vst [vmem:[#allocation3 + $0x2a4] sm:$0xf] %v8315
        %8521 = vst [vmem:[#allocation3 + $0x2c8] sm:$0xf] %v8325
        %8522 = vst [vmem:[#allocation3 + $0x2ec] sm:$0xf] %v8339
        %8523 = vst [vmem:[#allocation3 + $0x310] sm:$0xf] %v8349
        %8524 = vst [vmem:[#allocation3 + $0x334] sm:$0xf] %v8363
        %8525 = vst [vmem:[#allocation3 + $0x358] sm:$0xf] %v8373
        %8526 = vst [vmem:[#allocation3 + $0x37c] sm:$0xf] %v8387
        %8527 = vst [vmem:[#allocation3 + $0x3a0] sm:$0xf] %v8397
        %8528 = vst [vmem:[#allocation3 + $0x3c4] sm:$0xf] %v8411
        %8529 = vst [vmem:[#allocation3 + $0x3e8] sm:$0xf] %v8421
        %8530 = vst [vmem:[#allocation3 + $0x40c] sm:$0xf] %v8435
        %8531 = vst [vmem:[#allocation3 + $0x430] sm:$0xf] %v8445
        %8532 = vst [vmem:[#allocation3 + $0x454] sm:$0xf] %v8459
        %8533 = vst [vmem:[#allocation3 + $0x478] sm:$0xf] %v8469
        %v8534 = vld [vmem:[%s2636] sm:$0xe]
        %v8535 = vld [vmem:[%s2636 + $0x4] sm:$0xf]
        %v8536 = vld [vmem:[%s2636 + $0x8] sm:$0x1]
        %v8537 = vld [vmem:[%s2636 + $0xc] sm:$0xe]
        %v8538 = vld [vmem:[%s2636 + $0x10] sm:$0xf]
        %v8539 = vld [vmem:[%s2636 + $0x14] sm:$0x1]
        %v8540 = vld [vmem:[%s2636 + $0x18] sm:$0xe]
        %v8541 = vld [vmem:[%s2636 + $0x1c] sm:$0xf]
        %v8542 = vld [vmem:[%s2636 + $0x20] sm:$0x1]
        %v8543 = vld [vmem:[%s2636 + $0x24] sm:$0xe]
        %v8544 = vld [vmem:[%s2636 + $0x28] sm:$0xf]
        %v8545 = vld [vmem:[%s2636 + $0x2c] sm:$0x1]
        %v8546 = vld [vmem:[%s2636 + $0x30] sm:$0xe]
        %v8547 = vld [vmem:[%s2636 + $0x34] sm:$0xf]
        %v8548 = vld [vmem:[%s2636 + $0x38] sm:$0x1]
        %v8549 = vld [vmem:[%s2636 + $0x3c] sm:$0xe]
        %v8550 = vld [vmem:[%s2636 + $0x40] sm:$0xf]
        %v8551 = vld [vmem:[%s2636 + $0x44] sm:$0x1]
        %v8552 = vld [vmem:[%s2636 + $0x48] sm:$0xe]
        %v8553 = vld [vmem:[%s2636 + $0x4c] sm:$0xf]
        %v8554 = vld [vmem:[%s2636 + $0x50] sm:$0x1]
        %v8555 = vld [vmem:[%s2636 + $0x54] sm:$0xe]
        %v8556 = vld [vmem:[%s2636 + $0x58] sm:$0xf]
        %v8557 = vld [vmem:[%s2636 + $0x5c] sm:$0x1]
        %v8558 = vld [vmem:[%s2636 + $0x60] sm:$0xe]
        %v8559 = vld [vmem:[%s2636 + $0x64] sm:$0xf]
        %v8560 = vld [vmem:[%s2636 + $0x68] sm:$0x1]
        %v8561 = vld [vmem:[%s2636 + $0x6c] sm:$0xe]
        %v8562 = vld [vmem:[%s2636 + $0x70] sm:$0xf]
        %v8563 = vld [vmem:[%s2636 + $0x74] sm:$0x1]
        %v8564 = vld [vmem:[%s2636 + $0x78] sm:$0xe]
        %v8565 = vld [vmem:[%s2636 + $0x7c] sm:$0xf]
        %v8566 = vld [vmem:[%s2636 + $0x80] sm:$0x1]
        %v8567 = vld [vmem:[%s2636 + $0x84] sm:$0xe]
        %v8568 = vld [vmem:[%s2636 + $0x88] sm:$0xf]
        %v8569 = vld [vmem:[%s2636 + $0x8c] sm:$0x1]
        %v8570 = vld [vmem:[%s2636 + $0x90] sm:$0xe]
        %v8571 = vld [vmem:[%s2636 + $0x94] sm:$0xf]
        %v8572 = vld [vmem:[%s2636 + $0x98] sm:$0x1]
        %v8573 = vld [vmem:[%s2636 + $0x9c] sm:$0xe]
        %v8574 = vld [vmem:[%s2636 + $0xa0] sm:$0xf]
        %v8575 = vld [vmem:[%s2636 + $0xa4] sm:$0x1]
        %v8576 = vld [vmem:[%s2636 + $0xa8] sm:$0xe]
        %v8577 = vld [vmem:[%s2636 + $0xac] sm:$0xf]
        %v8578 = vld [vmem:[%s2636 + $0xb0] sm:$0x1]
        %v8579 = vld [vmem:[%s2636 + $0xb4] sm:$0xe]
        %v8580 = vld [vmem:[%s2636 + $0xb8] sm:$0xf]
        %v8581 = vld [vmem:[%s2636 + $0xbc] sm:$0x1]
        %v8630 = vrot.slane %v8534, 5
        %v8631 = vrot.slane %v8630, 4
        %v8632 = vrot.slane %v8535, 5
        %v8633 = vsel %vm1627, %v8631, %v8632
        %v8634 = vrot.slane %v8632, 4
        %v8635 = vrot.slane %v8536, 5
        %v8636 = vsel %vm1627, %v8634, %v8635
        %v8637 = vrot.slane %v8537, 5
        %v8638 = vrot.slane %v8637, 4
        %v8639 = vrot.slane %v8538, 5
        %v8640 = vsel %vm1627, %v8638, %v8639
        %v8641 = vrot.slane %v8639, 4
        %v8642 = vrot.slane %v8539, 5
        %v8643 = vsel %vm1627, %v8641, %v8642
        %v8644 = vrot.slane %v8540, 5
        %v8645 = vrot.slane %v8644, 4
        %v8646 = vrot.slane %v8541, 5
        %v8647 = vsel %vm1627, %v8645, %v8646
        %v8648 = vrot.slane %v8646, 4
        %v8649 = vrot.slane %v8542, 5
        %v8650 = vsel %vm1627, %v8648, %v8649
        %v8651 = vrot.slane %v8543, 5
        %v8652 = vrot.slane %v8651, 4
        %v8653 = vrot.slane %v8544, 5
        %v8654 = vsel %vm1627, %v8652, %v8653
        %v8655 = vrot.slane %v8653, 4
        %v8656 = vrot.slane %v8545, 5
        %v8657 = vsel %vm1627, %v8655, %v8656
        %v8658 = vrot.slane %v8546, 5
        %v8659 = vrot.slane %v8658, 4
        %v8660 = vrot.slane %v8547, 5
        %v8661 = vsel %vm1627, %v8659, %v8660
        %v8662 = vrot.slane %v8660, 4
        %v8663 = vrot.slane %v8548, 5
        %v8664 = vsel %vm1627, %v8662, %v8663
        %v8665 = vrot.slane %v8549, 5
        %v8666 = vrot.slane %v8665, 4
        %v8667 = vrot.slane %v8550, 5
        %v8668 = vsel %vm1627, %v8666, %v8667
        %v8669 = vrot.slane %v8667, 4
        %v8670 = vrot.slane %v8551, 5
        %v8671 = vsel %vm1627, %v8669, %v8670
        %v8672 = vrot.slane %v8552, 5
        %v8673 = vrot.slane %v8672, 4
        %v8674 = vrot.slane %v8553, 5
        %v8675 = vsel %vm1627, %v8673, %v8674
        %v8676 = vrot.slane %v8674, 4
        %v8677 = vrot.slane %v8554, 5
        %v8678 = vsel %vm1627, %v8676, %v8677
        %v8679 = vrot.slane %v8555, 5
        %v8680 = vrot.slane %v8679, 4
        %v8681 = vrot.slane %v8556, 5
        %v8682 = vsel %vm1627, %v8680, %v8681
        %v8683 = vrot.slane %v8681, 4
        %v8684 = vrot.slane %v8557, 5
        %v8685 = vsel %vm1627, %v8683, %v8684
        %v8686 = vrot.slane %v8558, 5
        %v8687 = vrot.slane %v8686, 4
        %v8688 = vrot.slane %v8559, 5
        %v8689 = vsel %vm1627, %v8687, %v8688
        %v8690 = vrot.slane %v8688, 4
        %v8691 = vrot.slane %v8560, 5
        %v8692 = vsel %vm1627, %v8690, %v8691
        %v8693 = vrot.slane %v8561, 5
        %v8694 = vrot.slane %v8693, 4
        %v8695 = vrot.slane %v8562, 5
        %v8696 = vsel %vm1627, %v8694, %v8695
        %v8697 = vrot.slane %v8695, 4
        %v8698 = vrot.slane %v8563, 5
        %v8699 = vsel %vm1627, %v8697, %v8698
        %v8700 = vrot.slane %v8564, 5
        %v8701 = vrot.slane %v8700, 4
        %v8702 = vrot.slane %v8565, 5
        %v8703 = vsel %vm1627, %v8701, %v8702
        %v8704 = vrot.slane %v8702, 4
        %v8705 = vrot.slane %v8566, 5
        %v8706 = vsel %vm1627, %v8704, %v8705
        %v8707 = vrot.slane %v8567, 5
        %v8708 = vrot.slane %v8707, 4
        %v8709 = vrot.slane %v8568, 5
        %v8710 = vsel %vm1627, %v8708, %v8709
        %v8711 = vrot.slane %v8709, 4
        %v8712 = vrot.slane %v8569, 5
        %v8713 = vsel %vm1627, %v8711, %v8712
        %v8714 = vrot.slane %v8570, 5
        %v8715 = vrot.slane %v8714, 4
        %v8716 = vrot.slane %v8571, 5
        %v8717 = vsel %vm1627, %v8715, %v8716
        %v8718 = vrot.slane %v8716, 4
        %v8719 = vrot.slane %v8572, 5
        %v8720 = vsel %vm1627, %v8718, %v8719
        %v8721 = vrot.slane %v8573, 5
        %v8722 = vrot.slane %v8721, 4
        %v8723 = vrot.slane %v8574, 5
        %v8724 = vsel %vm1627, %v8722, %v8723
        %v8725 = vrot.slane %v8723, 4
        %v8726 = vrot.slane %v8575, 5
        %v8727 = vsel %vm1627, %v8725, %v8726
        %v8728 = vrot.slane %v8576, 5
        %v8729 = vrot.slane %v8728, 4
        %v8730 = vrot.slane %v8577, 5
        %v8731 = vsel %vm1627, %v8729, %v8730
        %v8732 = vrot.slane %v8730, 4
        %v8733 = vrot.slane %v8578, 5
        %v8734 = vsel %vm1627, %v8732, %v8733
        %v8735 = vrot.slane %v8579, 5
        %v8736 = vrot.slane %v8735, 4
        %v8737 = vrot.slane %v8580, 5
        %v8738 = vsel %vm1627, %v8736, %v8737
        %v8739 = vrot.slane %v8737, 4
        %v8740 = vrot.slane %v8581, 5
        %v8741 = vsel %vm1627, %v8739, %v8740
        %8774 = vst [vmem:[#allocation3 + $0x20] sm:$0xf] %v8633
        %8775 = vst [vmem:[#allocation3 + $0x44] sm:$0xf] %v8636
        %8776 = vst [vmem:[#allocation3 + $0x68] sm:$0xf] %v8640
        %8777 = vst [vmem:[#allocation3 + $0x8c] sm:$0xf] %v8643
        %8778 = vst [vmem:[#allocation3 + $0xb0] sm:$0xf] %v8647
        %8779 = vst [vmem:[#allocation3 + $0xd4] sm:$0xf] %v8650
        %8780 = vst [vmem:[#allocation3 + $0xf8] sm:$0xf] %v8654
        %8781 = vst [vmem:[#allocation3 + $0x11c] sm:$0xf] %v8657
        %8782 = vst [vmem:[#allocation3 + $0x140] sm:$0xf] %v8661
        %8783 = vst [vmem:[#allocation3 + $0x164] sm:$0xf] %v8664
        %8784 = vst [vmem:[#allocation3 + $0x188] sm:$0xf] %v8668
        %8785 = vst [vmem:[#allocation3 + $0x1ac] sm:$0xf] %v8671
        %8786 = vst [vmem:[#allocation3 + $0x1d0] sm:$0xf] %v8675
        %8787 = vst [vmem:[#allocation3 + $0x1f4] sm:$0xf] %v8678
        %8788 = vst [vmem:[#allocation3 + $0x218] sm:$0xf] %v8682
        %8789 = vst [vmem:[#allocation3 + $0x23c] sm:$0xf] %v8685
        %8790 = vst [vmem:[#allocation3 + $0x260] sm:$0xf] %v8689
        %8791 = vst [vmem:[#allocation3 + $0x284] sm:$0xf] %v8692
        %8792 = vst [vmem:[#allocation3 + $0x2a8] sm:$0xf] %v8696
        %8793 = vst [vmem:[#allocation3 + $0x2cc] sm:$0xf] %v8699
        %8794 = vst [vmem:[#allocation3 + $0x2f0] sm:$0xf] %v8703
        %8795 = vst [vmem:[#allocation3 + $0x314] sm:$0xf] %v8706
        %8796 = vst [vmem:[#allocation3 + $0x338] sm:$0xf] %v8710
        %8797 = vst [vmem:[#allocation3 + $0x35c] sm:$0xf] %v8713
        %8798 = vst [vmem:[#allocation3 + $0x380] sm:$0xf] %v8717
        %8799 = vst [vmem:[#allocation3 + $0x3a4] sm:$0xf] %v8720
        %8800 = vst [vmem:[#allocation3 + $0x3c8] sm:$0xf] %v8724
        %8801 = vst [vmem:[#allocation3 + $0x3ec] sm:$0xf] %v8727
        %8802 = vst [vmem:[#allocation3 + $0x410] sm:$0xf] %v8731
        %8803 = vst [vmem:[#allocation3 + $0x434] sm:$0xf] %v8734
        %8804 = vst [vmem:[#allocation3 + $0x458] sm:$0xf] %v8738
        %8805 = vst [vmem:[#allocation3 + $0x47c] sm:$0xf] %v8741
        %v8806 = vld [vmem:[#allocation3] sm:$0xff]
        %v8807 = vld [vmem:[#allocation3 + $0x8] sm:$0xff]
        %v8808 = vld [vmem:[#allocation3 + $0x10] sm:$0xff]
        %v8809 = vld [vmem:[#allocation3 + $0x18] sm:$0xff]
        %v8810 = vld [vmem:[#allocation3 + $0x20] sm:$0xf]
        %v8811 = vld [vmem:[#allocation3 + $0x24] sm:$0xff]
        %v8812 = vld [vmem:[#allocation3 + $0x2c] sm:$0xff]
        %v8813 = vld [vmem:[#allocation3 + $0x34] sm:$0xff]
        %v8814 = vld [vmem:[#allocation3 + $0x3c] sm:$0xff]
        %v8815 = vld [vmem:[#allocation3 + $0x44] sm:$0xf]
        %v8816 = vld [vmem:[#allocation3 + $0x48] sm:$0xff]
        %v8817 = vld [vmem:[#allocation3 + $0x50] sm:$0xff]
        %v8818 = vld [vmem:[#allocation3 + $0x58] sm:$0xff]
        %v8819 = vld [vmem:[#allocation3 + $0x60] sm:$0xff]
        %v8820 = vld [vmem:[#allocation3 + $0x68] sm:$0xf]
        %v8821 = vld [vmem:[#allocation3 + $0x6c] sm:$0xff]
        %v8822 = vld [vmem:[#allocation3 + $0x74] sm:$0xff]
        %v8823 = vld [vmem:[#allocation3 + $0x7c] sm:$0xff]
        %v8824 = vld [vmem:[#allocation3 + $0x84] sm:$0xff]
        %v8825 = vld [vmem:[#allocation3 + $0x8c] sm:$0xf]
        %v8826 = vld [vmem:[#allocation3 + $0x90] sm:$0xff]
        %v8827 = vld [vmem:[#allocation3 + $0x98] sm:$0xff]
        %v8828 = vld [vmem:[#allocation3 + $0xa0] sm:$0xff]
        %v8829 = vld [vmem:[#allocation3 + $0xa8] sm:$0xff]
        %v8830 = vld [vmem:[#allocation3 + $0xb0] sm:$0xf]
        %v8831 = vld [vmem:[#allocation3 + $0xb4] sm:$0xff]
        %v8832 = vld [vmem:[#allocation3 + $0xbc] sm:$0xff]
        %v8833 = vld [vmem:[#allocation3 + $0xc4] sm:$0xff]
        %v8834 = vld [vmem:[#allocation3 + $0xcc] sm:$0xff]
        %v8835 = vld [vmem:[#allocation3 + $0xd4] sm:$0xf]
        %v8836 = vld [vmem:[#allocation3 + $0xd8] sm:$0xff]
        %v8837 = vld [vmem:[#allocation3 + $0xe0] sm:$0xff]
        %v8838 = vld [vmem:[#allocation3 + $0xe8] sm:$0xff]
        %v8839 = vld [vmem:[#allocation3 + $0xf0] sm:$0xff]
        %v8840 = vld [vmem:[#allocation3 + $0xf8] sm:$0xf]
        %v8841 = vld [vmem:[#allocation3 + $0xfc] sm:$0xff]
        %v8842 = vld [vmem:[#allocation3 + $0x104] sm:$0xff]
        %v8843 = vld [vmem:[#allocation3 + $0x10c] sm:$0xff]
        %v8844 = vld [vmem:[#allocation3 + $0x114] sm:$0xff]
        %v8845 = vld [vmem:[#allocation3 + $0x11c] sm:$0xf]
        %v8846 = vld [vmem:[#allocation3 + $0x120] sm:$0xff]
        %v8847 = vld [vmem:[#allocation3 + $0x128] sm:$0xff]
        %v8848 = vld [vmem:[#allocation3 + $0x130] sm:$0xff]
        %v8849 = vld [vmem:[#allocation3 + $0x138] sm:$0xff]
        %v8850 = vld [vmem:[#allocation3 + $0x140] sm:$0xf]
        %v8851 = vld [vmem:[#allocation3 + $0x144] sm:$0xff]
        %v8852 = vld [vmem:[#allocation3 + $0x14c] sm:$0xff]
        %v8853 = vld [vmem:[#allocation3 + $0x154] sm:$0xff]
        %v8854 = vld [vmem:[#allocation3 + $0x15c] sm:$0xff]
        %v8855 = vld [vmem:[#allocation3 + $0x164] sm:$0xf]
        %v8856 = vld [vmem:[#allocation3 + $0x168] sm:$0xff]
        %v8857 = vld [vmem:[#allocation3 + $0x170] sm:$0xff]
        %v8858 = vld [vmem:[#allocation3 + $0x178] sm:$0xff]
        %v8859 = vld [vmem:[#allocation3 + $0x180] sm:$0xff]
        %v8860 = vld [vmem:[#allocation3 + $0x188] sm:$0xf]
        %v8861 = vld [vmem:[#allocation3 + $0x18c] sm:$0xff]
        %v8862 = vld [vmem:[#allocation3 + $0x194] sm:$0xff]
        %v8863 = vld [vmem:[#allocation3 + $0x19c] sm:$0xff]
        %v8864 = vld [vmem:[#allocation3 + $0x1a4] sm:$0xff]
        %v8865 = vld [vmem:[#allocation3 + $0x1ac] sm:$0xf]
        %v8866 = vld [vmem:[#allocation3 + $0x1b0] sm:$0xff]
        %v8867 = vld [vmem:[#allocation3 + $0x1b8] sm:$0xff]
        %v8868 = vld [vmem:[#allocation3 + $0x1c0] sm:$0xff]
        %v8869 = vld [vmem:[#allocation3 + $0x1c8] sm:$0xff]
        %v8870 = vld [vmem:[#allocation3 + $0x1d0] sm:$0xf]
        %v8871 = vld [vmem:[#allocation3 + $0x1d4] sm:$0xff]
        %v8872 = vld [vmem:[#allocation3 + $0x1dc] sm:$0xff]
        %v8873 = vld [vmem:[#allocation3 + $0x1e4] sm:$0xff]
        %v8874 = vld [vmem:[#allocation3 + $0x1ec] sm:$0xff]
        %v8875 = vld [vmem:[#allocation3 + $0x1f4] sm:$0xf]
        %v8876 = vld [vmem:[#allocation3 + $0x1f8] sm:$0xff]
        %v8877 = vld [vmem:[#allocation3 + $0x200] sm:$0xff]
        %v8878 = vld [vmem:[#allocation3 + $0x208] sm:$0xff]
        %v8879 = vld [vmem:[#allocation3 + $0x210] sm:$0xff]
        %v8880 = vld [vmem:[#allocation3 + $0x218] sm:$0xf]
        %v8881 = vld [vmem:[#allocation3 + $0x21c] sm:$0xff]
        %v8882 = vld [vmem:[#allocation3 + $0x224] sm:$0xff]
        %v8883 = vld [vmem:[#allocation3 + $0x22c] sm:$0xff]
        %v8884 = vld [vmem:[#allocation3 + $0x234] sm:$0xff]
        %v8885 = vld [vmem:[#allocation3 + $0x23c] sm:$0xf]
        %v8886 = vld [vmem:[#allocation3 + $0x240] sm:$0xff]
        %v8887 = vld [vmem:[#allocation3 + $0x248] sm:$0xff]
        %v8888 = vld [vmem:[#allocation3 + $0x250] sm:$0xff]
        %v8889 = vld [vmem:[#allocation3 + $0x258] sm:$0xff]
        %v8890 = vld [vmem:[#allocation3 + $0x260] sm:$0xf]
        %v8891 = vld [vmem:[#allocation3 + $0x264] sm:$0xff]
        %v8892 = vld [vmem:[#allocation3 + $0x26c] sm:$0xff]
        %v8893 = vld [vmem:[#allocation3 + $0x274] sm:$0xff]
        %v8894 = vld [vmem:[#allocation3 + $0x27c] sm:$0xff]
        %v8895 = vld [vmem:[#allocation3 + $0x284] sm:$0xf]
        %v8896 = vld [vmem:[#allocation3 + $0x288] sm:$0xff]
        %v8897 = vld [vmem:[#allocation3 + $0x290] sm:$0xff]
        %v8898 = vld [vmem:[#allocation3 + $0x298] sm:$0xff]
        %v8899 = vld [vmem:[#allocation3 + $0x2a0] sm:$0xff]
        %v8900 = vld [vmem:[#allocation3 + $0x2a8] sm:$0xf]
        %v8901 = vld [vmem:[#allocation3 + $0x2ac] sm:$0xff]
        %v8902 = vld [vmem:[#allocation3 + $0x2b4] sm:$0xff]
        %v8903 = vld [vmem:[#allocation3 + $0x2bc] sm:$0xff]
        %v8904 = vld [vmem:[#allocation3 + $0x2c4] sm:$0xff]
        %v8905 = vld [vmem:[#allocation3 + $0x2cc] sm:$0xf]
        %v8906 = vld [vmem:[#allocation3 + $0x2d0] sm:$0xff]
        %v8907 = vld [vmem:[#allocation3 + $0x2d8] sm:$0xff]
        %v8908 = vld [vmem:[#allocation3 + $0x2e0] sm:$0xff]
        %v8909 = vld [vmem:[#allocation3 + $0x2e8] sm:$0xff]
        %v8910 = vld [vmem:[#allocation3 + $0x2f0] sm:$0xf]
        %v8911 = vld [vmem:[#allocation3 + $0x2f4] sm:$0xff]
        %v8912 = vld [vmem:[#allocation3 + $0x2fc] sm:$0xff]
        %v8913 = vld [vmem:[#allocation3 + $0x304] sm:$0xff]
        %v8914 = vld [vmem:[#allocation3 + $0x30c] sm:$0xff]
        %v8915 = vld [vmem:[#allocation3 + $0x314] sm:$0xf]
        %v8916 = vld [vmem:[#allocation3 + $0x318] sm:$0xff]
        %v8917 = vld [vmem:[#allocation3 + $0x320] sm:$0xff]
        %v8918 = vld [vmem:[#allocation3 + $0x328] sm:$0xff]
        %v8919 = vld [vmem:[#allocation3 + $0x330] sm:$0xff]
        %v8920 = vld [vmem:[#allocation3 + $0x338] sm:$0xf]
        %v8921 = vld [vmem:[#allocation3 + $0x33c] sm:$0xff]
        %v8922 = vld [vmem:[#allocation3 + $0x344] sm:$0xff]
        %v8923 = vld [vmem:[#allocation3 + $0x34c] sm:$0xff]
        %v8924 = vld [vmem:[#allocation3 + $0x354] sm:$0xff]
        %v8925 = vld [vmem:[#allocation3 + $0x35c] sm:$0xf]
        %v8926 = vld [vmem:[#allocation3 + $0x360] sm:$0xff]
        %v8927 = vld [vmem:[#allocation3 + $0x368] sm:$0xff]
        %v8928 = vld [vmem:[#allocation3 + $0x370] sm:$0xff]
        %v8929 = vld [vmem:[#allocation3 + $0x378] sm:$0xff]
        %v8930 = vld [vmem:[#allocation3 + $0x380] sm:$0xf]
        %v8931 = vld [vmem:[#allocation3 + $0x384] sm:$0xff]
        %v8932 = vld [vmem:[#allocation3 + $0x38c] sm:$0xff]
        %v8933 = vld [vmem:[#allocation3 + $0x394] sm:$0xff]
        %v8934 = vld [vmem:[#allocation3 + $0x39c] sm:$0xff]
        %v8935 = vld [vmem:[#allocation3 + $0x3a4] sm:$0xf]
        %v8936 = vld [vmem:[#allocation3 + $0x3a8] sm:$0xff]
        %v8937 = vld [vmem:[#allocation3 + $0x3b0] sm:$0xff]
        %v8938 = vld [vmem:[#allocation3 + $0x3b8] sm:$0xff]
        %v8939 = vld [vmem:[#allocation3 + $0x3c0] sm:$0xff]
        %v8940 = vld [vmem:[#allocation3 + $0x3c8] sm:$0xf]
        %v8941 = vld [vmem:[#allocation3 + $0x3cc] sm:$0xff]
        %v8942 = vld [vmem:[#allocation3 + $0x3d4] sm:$0xff]
        %v8943 = vld [vmem:[#allocation3 + $0x3dc] sm:$0xff]
        %v8944 = vld [vmem:[#allocation3 + $0x3e4] sm:$0xff]
        %v8945 = vld [vmem:[#allocation3 + $0x3ec] sm:$0xf]
        %v8946 = vld [vmem:[#allocation3 + $0x3f0] sm:$0xff]
        %v8947 = vld [vmem:[#allocation3 + $0x3f8] sm:$0xff]
        %v8948 = vld [vmem:[#allocation3 + $0x400] sm:$0xff]
        %v8949 = vld [vmem:[#allocation3 + $0x408] sm:$0xff]
        %v8950 = vld [vmem:[#allocation3 + $0x410] sm:$0xf]
        %v8951 = vld [vmem:[#allocation3 + $0x414] sm:$0xff]
        %v8952 = vld [vmem:[#allocation3 + $0x41c] sm:$0xff]
        %v8953 = vld [vmem:[#allocation3 + $0x424] sm:$0xff]
        %v8954 = vld [vmem:[#allocation3 + $0x42c] sm:$0xff]
        %v8955 = vld [vmem:[#allocation3 + $0x434] sm:$0xf]
        %v8956 = vld [vmem:[#allocation3 + $0x438] sm:$0xff]
        %v8957 = vld [vmem:[#allocation3 + $0x440] sm:$0xff]
        %v8958 = vld [vmem:[#allocation3 + $0x448] sm:$0xff]
        %v8959 = vld [vmem:[#allocation3 + $0x450] sm:$0xff]
        %v8960 = vld [vmem:[#allocation3 + $0x458] sm:$0xf]
        %v8961 = vld [vmem:[#allocation3 + $0x45c] sm:$0xff]
        %v8962 = vld [vmem:[#allocation3 + $0x464] sm:$0xff]
        %v8963 = vld [vmem:[#allocation3 + $0x46c] sm:$0xff]
        %v8964 = vld [vmem:[#allocation3 + $0x474] sm:$0xff]
        %v8965 = vld [vmem:[#allocation3 + $0x47c] sm:$0xf]
        %v8966 = vld [vmem:[#allocation9] sm:$0xf]
        %v8967 = vld [vmem:[#allocation9 + $0x4] sm:$0xf]
        %v8968 = vld [vmem:[#allocation9 + $0x8] sm:$0xf]
        %v8969 = vld [vmem:[#allocation9 + $0xc] sm:$0xf]
        %v8970 = vld [vmem:[#allocation9 + $0x10] sm:$0xf]
        %v8971 = vld [vmem:[#allocation9 + $0x14] sm:$0xf]
        %v8972 = vld [vmem:[#allocation9 + $0x18] sm:$0xf]
        %v8973 = vld [vmem:[#allocation9 + $0x1c] sm:$0xf]
        %v8974 = vld [vmem:[#allocation9 + $0x20] sm:$0xf]
        %v8975 = vld [vmem:[#allocation9 + $0x24] sm:$0xf]
        %v8976 = vld [vmem:[#allocation9 + $0x28] sm:$0xf]
        %v8977 = vld [vmem:[#allocation9 + $0x2c] sm:$0xf]
        %v8978 = vld [vmem:[#allocation9 + $0x30] sm:$0xf]
        %v8979 = vld [vmem:[#allocation9 + $0x34] sm:$0xf]
        %v8980 = vld [vmem:[#allocation9 + $0x38] sm:$0xf]
        %v8981 = vld [vmem:[#allocation9 + $0x3c] sm:$0xf]
        %v8982 = vld [vmem:[#allocation9 + $0x40] sm:$0xf]
        %v8983 = vld [vmem:[#allocation9 + $0x44] sm:$0xf]
        %v8984 = vld [vmem:[#allocation9 + $0x48] sm:$0xf]
        %v8985 = vld [vmem:[#allocation9 + $0x4c] sm:$0xf]
        %v8986 = vld [vmem:[#allocation9 + $0x50] sm:$0xf]
        %v8987 = vld [vmem:[#allocation9 + $0x54] sm:$0xf]
        %v8988 = vld [vmem:[#allocation9 + $0x58] sm:$0xf]
        %v8989 = vld [vmem:[#allocation9 + $0x5c] sm:$0xf]
        %v8990 = vld [vmem:[#allocation9 + $0x60] sm:$0xf]
        %v8991 = vld [vmem:[#allocation9 + $0x64] sm:$0xf]
        %v8992 = vld [vmem:[#allocation9 + $0x68] sm:$0xf]
        %v8993 = vld [vmem:[#allocation9 + $0x6c] sm:$0xf]
        %v8994 = vld [vmem:[#allocation9 + $0x70] sm:$0xf]
        %v8995 = vld [vmem:[#allocation9 + $0x74] sm:$0xf]
        %v8996 = vld [vmem:[#allocation9 + $0x78] sm:$0xf]
        %v8997 = vld [vmem:[#allocation9 + $0x7c] sm:$0xf]
        %v8998 = vld [vmem:[#allocation9 + $0x80] sm:$0xf]
        %v8999 = vld [vmem:[#allocation9 + $0x84] sm:$0xf]
        %v9000 = vld [vmem:[#allocation9 + $0x88] sm:$0xf]
        %v9001 = vld [vmem:[#allocation9 + $0x8c] sm:$0xf]
        %v9002 = vld [vmem:[#allocation9 + $0x90] sm:$0xf]
        %v9003 = vld [vmem:[#allocation9 + $0x94] sm:$0xf]
        %v9004 = vld [vmem:[#allocation9 + $0x98] sm:$0xf]
        %v9005 = vld [vmem:[#allocation9 + $0x9c] sm:$0xf]
        %v9006 = vld [vmem:[#allocation9 + $0xa0] sm:$0xf]
        %v9007 = vld [vmem:[#allocation9 + $0xa4] sm:$0xf]
        %v9008 = vld [vmem:[#allocation9 + $0xa8] sm:$0xf]
        %v9009 = vld [vmem:[#allocation9 + $0xac] sm:$0xf]
        %v9010 = vld [vmem:[#allocation9 + $0xb0] sm:$0xf]
        %v9011 = vld [vmem:[#allocation9 + $0xb4] sm:$0xf]
        %v9012 = vld [vmem:[#allocation9 + $0xb8] sm:$0xf]
        %v9013 = vld [vmem:[#allocation9 + $0xbc] sm:$0xf]
        %v9014 = vld [vmem:[#allocation9 + $0xc0] sm:$0xf]
        %v9015 = vld [vmem:[#allocation9 + $0xc4] sm:$0xf]
        %v9016 = vld [vmem:[#allocation9 + $0xc8] sm:$0xf]
        %v9017 = vld [vmem:[#allocation9 + $0xcc] sm:$0xf]
        %v9018 = vld [vmem:[#allocation9 + $0xd0] sm:$0xf]
        %v9019 = vld [vmem:[#allocation9 + $0xd4] sm:$0xf]
        %v9020 = vld [vmem:[#allocation9 + $0xd8] sm:$0xf]
        %v9021 = vld [vmem:[#allocation9 + $0xdc] sm:$0xf]
        %v9022 = vld [vmem:[#allocation9 + $0xe0] sm:$0xf]
        %v9023 = vld [vmem:[#allocation9 + $0xe4] sm:$0xf]
        %v9024 = vld [vmem:[#allocation9 + $0xe8] sm:$0xf]
        %v9025 = vld [vmem:[#allocation9 + $0xec] sm:$0xf]
        %v9026 = vld [vmem:[#allocation9 + $0xf0] sm:$0xf]
        %v9027 = vld [vmem:[#allocation9 + $0xf4] sm:$0xf]
        %v9028 = vld [vmem:[#allocation9 + $0xf8] sm:$0xf]
        %v9029 = vld [vmem:[#allocation9 + $0xfc] sm:$0xf]
        %v9030 = vld [vmem:[#allocation9 + $0x100] sm:$0xf]
        %v9031 = vld [vmem:[#allocation9 + $0x104] sm:$0xf]
        %v9032 = vld [vmem:[#allocation9 + $0x108] sm:$0xf]
        %v9033 = vld [vmem:[#allocation9 + $0x10c] sm:$0xf]
        %v9034 = vld [vmem:[#allocation9 + $0x110] sm:$0xf]
        %v9035 = vld [vmem:[#allocation9 + $0x114] sm:$0xf]
        %v9036 = vld [vmem:[#allocation9 + $0x118] sm:$0xf]
        %v9037 = vld [vmem:[#allocation9 + $0x11c] sm:$0xf]
        %v9038 = vld [vmem:[#allocation9 + $0x120] sm:$0xf]
        %v9039 = vld [vmem:[#allocation9 + $0x124] sm:$0xf]
        %v9040 = vld [vmem:[#allocation9 + $0x128] sm:$0xf]
        %v9041 = vld [vmem:[#allocation9 + $0x12c] sm:$0xf]
        %v9042 = vld [vmem:[#allocation9 + $0x130] sm:$0xf]
        %v9043 = vld [vmem:[#allocation9 + $0x134] sm:$0xf]
        %v9044 = vld [vmem:[#allocation9 + $0x138] sm:$0xf]
        %v9045 = vld [vmem:[#allocation9 + $0x13c] sm:$0xf]
        %v9046 = vld [vmem:[#allocation9 + $0x140] sm:$0xf]
        %v9047 = vld [vmem:[#allocation9 + $0x144] sm:$0xf]
        %v9048 = vld [vmem:[#allocation9 + $0x148] sm:$0xf]
        %v9049 = vld [vmem:[#allocation9 + $0x14c] sm:$0xf]
        %v9050 = vld [vmem:[#allocation9 + $0x150] sm:$0xf]
        %v9051 = vld [vmem:[#allocation9 + $0x154] sm:$0xf]
        %v9052 = vld [vmem:[#allocation9 + $0x158] sm:$0xf]
        %v9053 = vld [vmem:[#allocation9 + $0x15c] sm:$0xf]
        %v9054 = vld [vmem:[#allocation9 + $0x160] sm:$0xf]
        %v9055 = vld [vmem:[#allocation9 + $0x164] sm:$0xf]
        %v9056 = vld [vmem:[#allocation9 + $0x168] sm:$0xf]
        %v9057 = vld [vmem:[#allocation9 + $0x16c] sm:$0xf]
        %v9058 = vld [vmem:[#allocation9 + $0x170] sm:$0xf]
        %v9059 = vld [vmem:[#allocation9 + $0x174] sm:$0xf]
        %v9060 = vld [vmem:[#allocation9 + $0x178] sm:$0xf]
        %v9061 = vld [vmem:[#allocation9 + $0x17c] sm:$0xf]
        %v9062 = vld [vmem:[#allocation9 + $0x180] sm:$0xf]
        %v9063 = vld [vmem:[#allocation9 + $0x184] sm:$0xf]
        %v9064 = vld [vmem:[#allocation9 + $0x188] sm:$0xf]
        %v9065 = vld [vmem:[#allocation9 + $0x18c] sm:$0xf]
        %v9066 = vld [vmem:[#allocation9 + $0x190] sm:$0xf]
        %v9067 = vld [vmem:[#allocation9 + $0x194] sm:$0xf]
        %v9068 = vld [vmem:[#allocation9 + $0x198] sm:$0xf]
        %v9069 = vld [vmem:[#allocation9 + $0x19c] sm:$0xf]
        %v9070 = vld [vmem:[#allocation9 + $0x1a0] sm:$0xf]
        %v9071 = vld [vmem:[#allocation9 + $0x1a4] sm:$0xf]
        %v9072 = vld [vmem:[#allocation9 + $0x1a8] sm:$0xf]
        %v9073 = vld [vmem:[#allocation9 + $0x1ac] sm:$0xf]
        %v9074 = vld [vmem:[#allocation9 + $0x1b0] sm:$0xf]
        %v9075 = vld [vmem:[#allocation9 + $0x1b4] sm:$0xf]
        %v9076 = vld [vmem:[#allocation9 + $0x1b8] sm:$0xf]
        %v9077 = vld [vmem:[#allocation9 + $0x1bc] sm:$0xf]
        %v9078 = vld [vmem:[#allocation9 + $0x1c0] sm:$0xf]
        %v9079 = vld [vmem:[#allocation9 + $0x1c4] sm:$0xf]
        %v9080 = vld [vmem:[#allocation9 + $0x1c8] sm:$0xf]
        %v9081 = vld [vmem:[#allocation9 + $0x1cc] sm:$0xf]
        %v9082 = vld [vmem:[#allocation9 + $0x1d0] sm:$0xf]
        %v9083 = vld [vmem:[#allocation9 + $0x1d4] sm:$0xf]
        %v9084 = vld [vmem:[#allocation9 + $0x1d8] sm:$0xf]
        %v9085 = vld [vmem:[#allocation9 + $0x1dc] sm:$0xf]
        %v9086 = vld [vmem:[#allocation9 + $0x1e0] sm:$0xf]
        %v9087 = vld [vmem:[#allocation9 + $0x1e4] sm:$0xf]
        %v9088 = vld [vmem:[#allocation9 + $0x1e8] sm:$0xf]
        %v9089 = vld [vmem:[#allocation9 + $0x1ec] sm:$0xf]
        %v9090 = vld [vmem:[#allocation9 + $0x1f0] sm:$0xf]
        %v9091 = vld [vmem:[#allocation9 + $0x1f4] sm:$0xf]
        %v9092 = vld [vmem:[#allocation9 + $0x1f8] sm:$0xf]
        %v9093 = vld [vmem:[#allocation9 + $0x1fc] sm:$0xf]
        %v9094 = vld [vmem:[#allocation9 + $0x200] sm:$0xf]
        %v9095 = vld [vmem:[#allocation9 + $0x204] sm:$0xf]
        %v9096 = vld [vmem:[#allocation9 + $0x208] sm:$0xf]
        %v9097 = vld [vmem:[#allocation9 + $0x20c] sm:$0xf]
        %v9098 = vld [vmem:[#allocation9 + $0x210] sm:$0xf]
        %v9099 = vld [vmem:[#allocation9 + $0x214] sm:$0xf]
        %v9100 = vld [vmem:[#allocation9 + $0x218] sm:$0xf]
        %v9101 = vld [vmem:[#allocation9 + $0x21c] sm:$0xf]
        %v9102 = vld [vmem:[#allocation9 + $0x220] sm:$0xf]
        %v9103 = vld [vmem:[#allocation9 + $0x224] sm:$0xf]
        %v9104 = vld [vmem:[#allocation9 + $0x228] sm:$0xf]
        %v9105 = vld [vmem:[#allocation9 + $0x22c] sm:$0xf]
        %v9106 = vld [vmem:[#allocation9 + $0x230] sm:$0xf]
        %v9107 = vld [vmem:[#allocation9 + $0x234] sm:$0xf]
        %v9108 = vld [vmem:[#allocation9 + $0x238] sm:$0xf]
        %v9109 = vld [vmem:[#allocation9 + $0x23c] sm:$0xf]
        %v9270 = vunpack.c.l.b16 %v8806
        %v9271 = vunpack.c.h.b16 %v8806
        %v9272 = vunpack.c.l.b16 %v8807
        %v9273 = vunpack.c.h.b16 %v8807
        %v9274 = vunpack.c.l.b16 %v8808
        %v9275 = vunpack.c.h.b16 %v8808
        %v9276 = vunpack.c.l.b16 %v8809
        %v9277 = vunpack.c.h.b16 %v8809
        %v9278 = vunpack.c.l.b16 %v8810
        %v9279 = vunpack.c.l.b16 %v8811
        %v9280 = vunpack.c.h.b16 %v8811
        %v9281 = vunpack.c.l.b16 %v8812
        %v9282 = vunpack.c.h.b16 %v8812
        %v9283 = vunpack.c.l.b16 %v8813
        %v9284 = vunpack.c.h.b16 %v8813
        %v9285 = vunpack.c.l.b16 %v8814
        %v9286 = vunpack.c.h.b16 %v8814
        %v9287 = vunpack.c.l.b16 %v8815
        %v9288 = vunpack.c.l.b16 %v8816
        %v9289 = vunpack.c.h.b16 %v8816
        %v9290 = vunpack.c.l.b16 %v8817
        %v9291 = vunpack.c.h.b16 %v8817
        %v9292 = vunpack.c.l.b16 %v8818
        %v9293 = vunpack.c.h.b16 %v8818
        %v9294 = vunpack.c.l.b16 %v8819
        %v9295 = vunpack.c.h.b16 %v8819
        %v9296 = vunpack.c.l.b16 %v8820
        %v9297 = vunpack.c.l.b16 %v8821
        %v9298 = vunpack.c.h.b16 %v8821
        %v9299 = vunpack.c.l.b16 %v8822
        %v9300 = vunpack.c.h.b16 %v8822
        %v9301 = vunpack.c.l.b16 %v8823
        %v9302 = vunpack.c.h.b16 %v8823
        %v9303 = vunpack.c.l.b16 %v8824
        %v9304 = vunpack.c.h.b16 %v8824
        %v9305 = vunpack.c.l.b16 %v8825
        %v9306 = vunpack.c.l.b16 %v8826
        %v9307 = vunpack.c.h.b16 %v8826
        %v9308 = vunpack.c.l.b16 %v8827
        %v9309 = vunpack.c.h.b16 %v8827
        %v9310 = vunpack.c.l.b16 %v8828
        %v9311 = vunpack.c.h.b16 %v8828
        %v9312 = vunpack.c.l.b16 %v8829
        %v9313 = vunpack.c.h.b16 %v8829
        %v9314 = vunpack.c.l.b16 %v8830
        %v9315 = vunpack.c.l.b16 %v8831
        %v9316 = vunpack.c.h.b16 %v8831
        %v9317 = vunpack.c.l.b16 %v8832
        %v9318 = vunpack.c.h.b16 %v8832
        %v9319 = vunpack.c.l.b16 %v8833
        %v9320 = vunpack.c.h.b16 %v8833
        %v9321 = vunpack.c.l.b16 %v8834
        %v9322 = vunpack.c.h.b16 %v8834
        %v9323 = vunpack.c.l.b16 %v8835
        %v9324 = vunpack.c.l.b16 %v8836
        %v9325 = vunpack.c.h.b16 %v8836
        %v9326 = vunpack.c.l.b16 %v8837
        %v9327 = vunpack.c.h.b16 %v8837
        %v9328 = vunpack.c.l.b16 %v8838
        %v9329 = vunpack.c.h.b16 %v8838
        %v9330 = vunpack.c.l.b16 %v8839
        %v9331 = vunpack.c.h.b16 %v8839
        %v9332 = vunpack.c.l.b16 %v8840
        %v9333 = vunpack.c.l.b16 %v8841
        %v9334 = vunpack.c.h.b16 %v8841
        %v9335 = vunpack.c.l.b16 %v8842
        %v9336 = vunpack.c.h.b16 %v8842
        %v9337 = vunpack.c.l.b16 %v8843
        %v9338 = vunpack.c.h.b16 %v8843
        %v9339 = vunpack.c.l.b16 %v8844
        %v9340 = vunpack.c.h.b16 %v8844
        %v9341 = vunpack.c.l.b16 %v8845
        %v9342 = vunpack.c.l.b16 %v8846
        %v9343 = vunpack.c.h.b16 %v8846
        %v9344 = vunpack.c.l.b16 %v8847
        %v9345 = vunpack.c.h.b16 %v8847
        %v9346 = vunpack.c.l.b16 %v8848
        %v9347 = vunpack.c.h.b16 %v8848
        %v9348 = vunpack.c.l.b16 %v8849
        %v9349 = vunpack.c.h.b16 %v8849
        %v9350 = vunpack.c.l.b16 %v8850
        %v9351 = vunpack.c.l.b16 %v8851
        %v9352 = vunpack.c.h.b16 %v8851
        %v9353 = vunpack.c.l.b16 %v8852
        %v9354 = vunpack.c.h.b16 %v8852
        %v9355 = vunpack.c.l.b16 %v8853
        %v9356 = vunpack.c.h.b16 %v8853
        %v9357 = vunpack.c.l.b16 %v8854
        %v9358 = vunpack.c.h.b16 %v8854
        %v9359 = vunpack.c.l.b16 %v8855
        %v9360 = vunpack.c.l.b16 %v8856
        %v9361 = vunpack.c.h.b16 %v8856
        %v9362 = vunpack.c.l.b16 %v8857
        %v9363 = vunpack.c.h.b16 %v8857
        %v9364 = vunpack.c.l.b16 %v8858
        %v9365 = vunpack.c.h.b16 %v8858
        %v9366 = vunpack.c.l.b16 %v8859
        %v9367 = vunpack.c.h.b16 %v8859
        %v9368 = vunpack.c.l.b16 %v8860
        %v9369 = vunpack.c.l.b16 %v8861
        %v9370 = vunpack.c.h.b16 %v8861
        %v9371 = vunpack.c.l.b16 %v8862
        %v9372 = vunpack.c.h.b16 %v8862
        %v9373 = vunpack.c.l.b16 %v8863
        %v9374 = vunpack.c.h.b16 %v8863
        %v9375 = vunpack.c.l.b16 %v8864
        %v9376 = vunpack.c.h.b16 %v8864
        %v9377 = vunpack.c.l.b16 %v8865
        %v9378 = vunpack.c.l.b16 %v8866
        %v9379 = vunpack.c.h.b16 %v8866
        %v9380 = vunpack.c.l.b16 %v8867
        %v9381 = vunpack.c.h.b16 %v8867
        %v9382 = vunpack.c.l.b16 %v8868
        %v9383 = vunpack.c.h.b16 %v8868
        %v9384 = vunpack.c.l.b16 %v8869
        %v9385 = vunpack.c.h.b16 %v8869
        %v9386 = vunpack.c.l.b16 %v8870
        %v9387 = vunpack.c.l.b16 %v8871
        %v9388 = vunpack.c.h.b16 %v8871
        %v9389 = vunpack.c.l.b16 %v8872
        %v9390 = vunpack.c.h.b16 %v8872
        %v9391 = vunpack.c.l.b16 %v8873
        %v9392 = vunpack.c.h.b16 %v8873
        %v9393 = vunpack.c.l.b16 %v8874
        %v9394 = vunpack.c.h.b16 %v8874
        %v9395 = vunpack.c.l.b16 %v8875
        %v9396 = vunpack.c.l.b16 %v8876
        %v9397 = vunpack.c.h.b16 %v8876
        %v9398 = vunpack.c.l.b16 %v8877
        %v9399 = vunpack.c.h.b16 %v8877
        %v9400 = vunpack.c.l.b16 %v8878
        %v9401 = vunpack.c.h.b16 %v8878
        %v9402 = vunpack.c.l.b16 %v8879
        %v9403 = vunpack.c.h.b16 %v8879
        %v9404 = vunpack.c.l.b16 %v8880
        %v9405 = vunpack.c.l.b16 %v8881
        %v9406 = vunpack.c.h.b16 %v8881
        %v9407 = vunpack.c.l.b16 %v8882
        %v9408 = vunpack.c.h.b16 %v8882
        %v9409 = vunpack.c.l.b16 %v8883
        %v9410 = vunpack.c.h.b16 %v8883
        %v9411 = vunpack.c.l.b16 %v8884
        %v9412 = vunpack.c.h.b16 %v8884
        %v9413 = vunpack.c.l.b16 %v8885
        %v9414 = vunpack.c.l.b16 %v8886
        %v9415 = vunpack.c.h.b16 %v8886
        %v9416 = vunpack.c.l.b16 %v8887
        %v9417 = vunpack.c.h.b16 %v8887
        %v9418 = vunpack.c.l.b16 %v8888
        %v9419 = vunpack.c.h.b16 %v8888
        %v9420 = vunpack.c.l.b16 %v8889
        %v9421 = vunpack.c.h.b16 %v8889
        %v9422 = vunpack.c.l.b16 %v8890
        %v9423 = vunpack.c.l.b16 %v8891
        %v9424 = vunpack.c.h.b16 %v8891
        %v9425 = vunpack.c.l.b16 %v8892
        %v9426 = vunpack.c.h.b16 %v8892
        %v9427 = vunpack.c.l.b16 %v8893
        %v9428 = vunpack.c.h.b16 %v8893
        %v9429 = vunpack.c.l.b16 %v8894
        %v9430 = vunpack.c.h.b16 %v8894
        %v9431 = vunpack.c.l.b16 %v8895
        %v9432 = vunpack.c.l.b16 %v8896
        %v9433 = vunpack.c.h.b16 %v8896
        %v9434 = vunpack.c.l.b16 %v8897
        %v9435 = vunpack.c.h.b16 %v8897
        %v9436 = vunpack.c.l.b16 %v8898
        %v9437 = vunpack.c.h.b16 %v8898
        %v9438 = vunpack.c.l.b16 %v8899
        %v9439 = vunpack.c.h.b16 %v8899
        %v9440 = vunpack.c.l.b16 %v8900
        %v9441 = vunpack.c.l.b16 %v8901
        %v9442 = vunpack.c.h.b16 %v8901
        %v9443 = vunpack.c.l.b16 %v8902
        %v9444 = vunpack.c.h.b16 %v8902
        %v9445 = vunpack.c.l.b16 %v8903
        %v9446 = vunpack.c.h.b16 %v8903
        %v9447 = vunpack.c.l.b16 %v8904
        %v9448 = vunpack.c.h.b16 %v8904
        %v9449 = vunpack.c.l.b16 %v8905
        %v9450 = vunpack.c.l.b16 %v8906
        %v9451 = vunpack.c.h.b16 %v8906
        %v9452 = vunpack.c.l.b16 %v8907
        %v9453 = vunpack.c.h.b16 %v8907
        %v9454 = vunpack.c.l.b16 %v8908
        %v9455 = vunpack.c.h.b16 %v8908
        %v9456 = vunpack.c.l.b16 %v8909
        %v9457 = vunpack.c.h.b16 %v8909
        %v9458 = vunpack.c.l.b16 %v8910
        %v9459 = vunpack.c.l.b16 %v8911
        %v9460 = vunpack.c.h.b16 %v8911
        %v9461 = vunpack.c.l.b16 %v8912
        %v9462 = vunpack.c.h.b16 %v8912
        %v9463 = vunpack.c.l.b16 %v8913
        %v9464 = vunpack.c.h.b16 %v8913
        %v9465 = vunpack.c.l.b16 %v8914
        %v9466 = vunpack.c.h.b16 %v8914
        %v9467 = vunpack.c.l.b16 %v8915
        %v9468 = vunpack.c.l.b16 %v8916
        %v9469 = vunpack.c.h.b16 %v8916
        %v9470 = vunpack.c.l.b16 %v8917
        %v9471 = vunpack.c.h.b16 %v8917
        %v9472 = vunpack.c.l.b16 %v8918
        %v9473 = vunpack.c.h.b16 %v8918
        %v9474 = vunpack.c.l.b16 %v8919
        %v9475 = vunpack.c.h.b16 %v8919
        %v9476 = vunpack.c.l.b16 %v8920
        %v9477 = vunpack.c.l.b16 %v8921
        %v9478 = vunpack.c.h.b16 %v8921
        %v9479 = vunpack.c.l.b16 %v8922
        %v9480 = vunpack.c.h.b16 %v8922
        %v9481 = vunpack.c.l.b16 %v8923
        %v9482 = vunpack.c.h.b16 %v8923
        %v9483 = vunpack.c.l.b16 %v8924
        %v9484 = vunpack.c.h.b16 %v8924
        %v9485 = vunpack.c.l.b16 %v8925
        %v9486 = vunpack.c.l.b16 %v8926
        %v9487 = vunpack.c.h.b16 %v8926
        %v9488 = vunpack.c.l.b16 %v8927
        %v9489 = vunpack.c.h.b16 %v8927
        %v9490 = vunpack.c.l.b16 %v8928
        %v9491 = vunpack.c.h.b16 %v8928
        %v9492 = vunpack.c.l.b16 %v8929
        %v9493 = vunpack.c.h.b16 %v8929
        %v9494 = vunpack.c.l.b16 %v8930
        %v9495 = vunpack.c.l.b16 %v8931
        %v9496 = vunpack.c.h.b16 %v8931
        %v9497 = vunpack.c.l.b16 %v8932
        %v9498 = vunpack.c.h.b16 %v8932
        %v9499 = vunpack.c.l.b16 %v8933
        %v9500 = vunpack.c.h.b16 %v8933
        %v9501 = vunpack.c.l.b16 %v8934
        %v9502 = vunpack.c.h.b16 %v8934
        %v9503 = vunpack.c.l.b16 %v8935
        %v9504 = vunpack.c.l.b16 %v8936
        %v9505 = vunpack.c.h.b16 %v8936
        %v9506 = vunpack.c.l.b16 %v8937
        %v9507 = vunpack.c.h.b16 %v8937
        %v9508 = vunpack.c.l.b16 %v8938
        %v9509 = vunpack.c.h.b16 %v8938
        %v9510 = vunpack.c.l.b16 %v8939
        %v9511 = vunpack.c.h.b16 %v8939
        %v9512 = vunpack.c.l.b16 %v8940
        %v9513 = vunpack.c.l.b16 %v8941
        %v9514 = vunpack.c.h.b16 %v8941
        %v9515 = vunpack.c.l.b16 %v8942
        %v9516 = vunpack.c.h.b16 %v8942
        %v9517 = vunpack.c.l.b16 %v8943
        %v9518 = vunpack.c.h.b16 %v8943
        %v9519 = vunpack.c.l.b16 %v8944
        %v9520 = vunpack.c.h.b16 %v8944
        %v9521 = vunpack.c.l.b16 %v8945
        %v9522 = vunpack.c.l.b16 %v8946
        %v9523 = vunpack.c.h.b16 %v8946
        %v9524 = vunpack.c.l.b16 %v8947
        %v9525 = vunpack.c.h.b16 %v8947
        %v9526 = vunpack.c.l.b16 %v8948
        %v9527 = vunpack.c.h.b16 %v8948
        %v9528 = vunpack.c.l.b16 %v8949
        %v9529 = vunpack.c.h.b16 %v8949
        %v9530 = vunpack.c.l.b16 %v8950
        %v9531 = vunpack.c.l.b16 %v8951
        %v9532 = vunpack.c.h.b16 %v8951
        %v9533 = vunpack.c.l.b16 %v8952
        %v9534 = vunpack.c.h.b16 %v8952
        %v9535 = vunpack.c.l.b16 %v8953
        %v9536 = vunpack.c.h.b16 %v8953
        %v9537 = vunpack.c.l.b16 %v8954
        %v9538 = vunpack.c.h.b16 %v8954
        %v9539 = vunpack.c.l.b16 %v8955
        %v9540 = vunpack.c.l.b16 %v8956
        %v9541 = vunpack.c.h.b16 %v8956
        %v9542 = vunpack.c.l.b16 %v8957
        %v9543 = vunpack.c.h.b16 %v8957
        %v9544 = vunpack.c.l.b16 %v8958
        %v9545 = vunpack.c.h.b16 %v8958
        %v9546 = vunpack.c.l.b16 %v8959
        %v9547 = vunpack.c.h.b16 %v8959
        %v9548 = vunpack.c.l.b16 %v8960
        %v9549 = vunpack.c.l.b16 %v8961
        %v9550 = vunpack.c.h.b16 %v8961
        %v9551 = vunpack.c.l.b16 %v8962
        %v9552 = vunpack.c.h.b16 %v8962
        %v9553 = vunpack.c.l.b16 %v8963
        %v9554 = vunpack.c.h.b16 %v8963
        %v9555 = vunpack.c.l.b16 %v8964
        %v9556 = vunpack.c.h.b16 %v8964
        %v9557 = vunpack.c.l.b16 %v8965
        %v9558 = vpack.c.b16 %v9279, %v9270
        %v9559 = vpack.c.b16 %v9280, %v9271
        %v9560 = vpack.c.b16 %v9281, %v9272
        %v9561 = vpack.c.b16 %v9282, %v9273
        %v9562 = vpack.c.b16 %v9283, %v9274
        %v9563 = vpack.c.b16 %v9284, %v9275
        %v9564 = vpack.c.b16 %v9285, %v9276
        %v9565 = vpack.c.b16 %v9286, %v9277
        %v9566 = vpack.c.b16 %v9287, %v9278
        %v9567 = vpack.c.b16 %v9297, %v9288
        %v9568 = vpack.c.b16 %v9298, %v9289
        %v9569 = vpack.c.b16 %v9299, %v9290
        %v9570 = vpack.c.b16 %v9300, %v9291
        %v9571 = vpack.c.b16 %v9301, %v9292
        %v9572 = vpack.c.b16 %v9302, %v9293
        %v9573 = vpack.c.b16 %v9303, %v9294
        %v9574 = vpack.c.b16 %v9304, %v9295
        %v9575 = vpack.c.b16 %v9305, %v9296
        %v9576 = vpack.c.b16 %v9315, %v9306
        %v9577 = vpack.c.b16 %v9316, %v9307
        %v9578 = vpack.c.b16 %v9317, %v9308
        %v9579 = vpack.c.b16 %v9318, %v9309
        %v9580 = vpack.c.b16 %v9319, %v9310
        %v9581 = vpack.c.b16 %v9320, %v9311
        %v9582 = vpack.c.b16 %v9321, %v9312
        %v9583 = vpack.c.b16 %v9322, %v9313
        %v9584 = vpack.c.b16 %v9323, %v9314
        %v9585 = vpack.c.b16 %v9333, %v9324
        %v9586 = vpack.c.b16 %v9334, %v9325
        %v9587 = vpack.c.b16 %v9335, %v9326
        %v9588 = vpack.c.b16 %v9336, %v9327
        %v9589 = vpack.c.b16 %v9337, %v9328
        %v9590 = vpack.c.b16 %v9338, %v9329
        %v9591 = vpack.c.b16 %v9339, %v9330
        %v9592 = vpack.c.b16 %v9340, %v9331
        %v9593 = vpack.c.b16 %v9341, %v9332
        %v9594 = vpack.c.b16 %v9351, %v9342
        %v9595 = vpack.c.b16 %v9352, %v9343
        %v9596 = vpack.c.b16 %v9353, %v9344
        %v9597 = vpack.c.b16 %v9354, %v9345
        %v9598 = vpack.c.b16 %v9355, %v9346
        %v9599 = vpack.c.b16 %v9356, %v9347
        %v9600 = vpack.c.b16 %v9357, %v9348
        %v9601 = vpack.c.b16 %v9358, %v9349
        %v9602 = vpack.c.b16 %v9359, %v9350
        %v9603 = vpack.c.b16 %v9369, %v9360
        %v9604 = vpack.c.b16 %v9370, %v9361
        %v9605 = vpack.c.b16 %v9371, %v9362
        %v9606 = vpack.c.b16 %v9372, %v9363
        %v9607 = vpack.c.b16 %v9373, %v9364
        %v9608 = vpack.c.b16 %v9374, %v9365
        %v9609 = vpack.c.b16 %v9375, %v9366
        %v9610 = vpack.c.b16 %v9376, %v9367
        %v9611 = vpack.c.b16 %v9377, %v9368
        %v9612 = vpack.c.b16 %v9387, %v9378
        %v9613 = vpack.c.b16 %v9388, %v9379
        %v9614 = vpack.c.b16 %v9389, %v9380
        %v9615 = vpack.c.b16 %v9390, %v9381
        %v9616 = vpack.c.b16 %v9391, %v9382
        %v9617 = vpack.c.b16 %v9392, %v9383
        %v9618 = vpack.c.b16 %v9393, %v9384
        %v9619 = vpack.c.b16 %v9394, %v9385
        %v9620 = vpack.c.b16 %v9395, %v9386
        %v9621 = vpack.c.b16 %v9405, %v9396
        %v9622 = vpack.c.b16 %v9406, %v9397
        %v9623 = vpack.c.b16 %v9407, %v9398
        %v9624 = vpack.c.b16 %v9408, %v9399
        %v9625 = vpack.c.b16 %v9409, %v9400
        %v9626 = vpack.c.b16 %v9410, %v9401
        %v9627 = vpack.c.b16 %v9411, %v9402
        %v9628 = vpack.c.b16 %v9412, %v9403
        %v9629 = vpack.c.b16 %v9413, %v9404
        %v9630 = vpack.c.b16 %v9423, %v9414
        %v9631 = vpack.c.b16 %v9424, %v9415
        %v9632 = vpack.c.b16 %v9425, %v9416
        %v9633 = vpack.c.b16 %v9426, %v9417
        %v9634 = vpack.c.b16 %v9427, %v9418
        %v9635 = vpack.c.b16 %v9428, %v9419
        %v9636 = vpack.c.b16 %v9429, %v9420
        %v9637 = vpack.c.b16 %v9430, %v9421
        %v9638 = vpack.c.b16 %v9431, %v9422
        %v9639 = vpack.c.b16 %v9441, %v9432
        %v9640 = vpack.c.b16 %v9442, %v9433
        %v9641 = vpack.c.b16 %v9443, %v9434
        %v9642 = vpack.c.b16 %v9444, %v9435
        %v9643 = vpack.c.b16 %v9445, %v9436
        %v9644 = vpack.c.b16 %v9446, %v9437
        %v9645 = vpack.c.b16 %v9447, %v9438
        %v9646 = vpack.c.b16 %v9448, %v9439
        %v9647 = vpack.c.b16 %v9449, %v9440
        %v9648 = vpack.c.b16 %v9459, %v9450
        %v9649 = vpack.c.b16 %v9460, %v9451
        %v9650 = vpack.c.b16 %v9461, %v9452
        %v9651 = vpack.c.b16 %v9462, %v9453
        %v9652 = vpack.c.b16 %v9463, %v9454
        %v9653 = vpack.c.b16 %v9464, %v9455
        %v9654 = vpack.c.b16 %v9465, %v9456
        %v9655 = vpack.c.b16 %v9466, %v9457
        %v9656 = vpack.c.b16 %v9467, %v9458
        %v9657 = vpack.c.b16 %v9477, %v9468
        %v9658 = vpack.c.b16 %v9478, %v9469
        %v9659 = vpack.c.b16 %v9479, %v9470
        %v9660 = vpack.c.b16 %v9480, %v9471
        %v9661 = vpack.c.b16 %v9481, %v9472
        %v9662 = vpack.c.b16 %v9482, %v9473
        %v9663 = vpack.c.b16 %v9483, %v9474
        %v9664 = vpack.c.b16 %v9484, %v9475
        %v9665 = vpack.c.b16 %v9485, %v9476
        %v9666 = vpack.c.b16 %v9495, %v9486
        %v9667 = vpack.c.b16 %v9496, %v9487
        %v9668 = vpack.c.b16 %v9497, %v9488
        %v9669 = vpack.c.b16 %v9498, %v9489
        %v9670 = vpack.c.b16 %v9499, %v9490
        %v9671 = vpack.c.b16 %v9500, %v9491
        %v9672 = vpack.c.b16 %v9501, %v9492
        %v9673 = vpack.c.b16 %v9502, %v9493
        %v9674 = vpack.c.b16 %v9503, %v9494
        %v9675 = vpack.c.b16 %v9513, %v9504
        %v9676 = vpack.c.b16 %v9514, %v9505
        %v9677 = vpack.c.b16 %v9515, %v9506
        %v9678 = vpack.c.b16 %v9516, %v9507
        %v9679 = vpack.c.b16 %v9517, %v9508
        %v9680 = vpack.c.b16 %v9518, %v9509
        %v9681 = vpack.c.b16 %v9519, %v9510
        %v9682 = vpack.c.b16 %v9520, %v9511
        %v9683 = vpack.c.b16 %v9521, %v9512
        %v9684 = vpack.c.b16 %v9531, %v9522
        %v9685 = vpack.c.b16 %v9532, %v9523
        %v9686 = vpack.c.b16 %v9533, %v9524
        %v9687 = vpack.c.b16 %v9534, %v9525
        %v9688 = vpack.c.b16 %v9535, %v9526
        %v9689 = vpack.c.b16 %v9536, %v9527
        %v9690 = vpack.c.b16 %v9537, %v9528
        %v9691 = vpack.c.b16 %v9538, %v9529
        %v9692 = vpack.c.b16 %v9539, %v9530
        %v9693 = vpack.c.b16 %v9549, %v9540
        %v9694 = vpack.c.b16 %v9550, %v9541
        %v9695 = vpack.c.b16 %v9551, %v9542
        %v9696 = vpack.c.b16 %v9552, %v9543
        %v9697 = vpack.c.b16 %v9553, %v9544
        %v9698 = vpack.c.b16 %v9554, %v9545
        %v9699 = vpack.c.b16 %v9555, %v9546
        %v9700 = vpack.c.b16 %v9556, %v9547
        %v9701 = vpack.c.b16 %v9557, %v9548
        %v9990 = vunpack.c.l.b16 %v8966
        %v9991 = vunpack.c.l.b16 %v8967
        %v9992 = vunpack.c.l.b16 %v8968
        %v9993 = vunpack.c.l.b16 %v8969
        %v9994 = vunpack.c.l.b16 %v8970
        %v9995 = vunpack.c.l.b16 %v8971
        %v9996 = vunpack.c.l.b16 %v8972
        %v9997 = vunpack.c.l.b16 %v8973
        %v9998 = vunpack.c.l.b16 %v8974
        %v9999 = vunpack.c.l.b16 %v8975
        %v10000 = vunpack.c.l.b16 %v8976
        %v10001 = vunpack.c.l.b16 %v8977
        %v10002 = vunpack.c.l.b16 %v8978
        %v10003 = vunpack.c.l.b16 %v8979
        %v10004 = vunpack.c.l.b16 %v8980
        %v10005 = vunpack.c.l.b16 %v8981
        %v10006 = vunpack.c.l.b16 %v8982
        %v10007 = vunpack.c.l.b16 %v8983
        %v10008 = vunpack.c.l.b16 %v8984
        %v10009 = vunpack.c.l.b16 %v8985
        %v10010 = vunpack.c.l.b16 %v8986
        %v10011 = vunpack.c.l.b16 %v8987
        %v10012 = vunpack.c.l.b16 %v8988
        %v10013 = vunpack.c.l.b16 %v8989
        %v10014 = vunpack.c.l.b16 %v8990
        %v10015 = vunpack.c.l.b16 %v8991
        %v10016 = vunpack.c.l.b16 %v8992
        %v10017 = vunpack.c.l.b16 %v8993
        %v10018 = vunpack.c.l.b16 %v8994
        %v10019 = vunpack.c.l.b16 %v8995
        %v10020 = vunpack.c.l.b16 %v8996
        %v10021 = vunpack.c.l.b16 %v8997
        %v10022 = vunpack.c.l.b16 %v8998
        %v10023 = vunpack.c.l.b16 %v8999
        %v10024 = vunpack.c.l.b16 %v9000
        %v10025 = vunpack.c.l.b16 %v9001
        %v10026 = vunpack.c.l.b16 %v9002
        %v10027 = vunpack.c.l.b16 %v9003
        %v10028 = vunpack.c.l.b16 %v9004
        %v10029 = vunpack.c.l.b16 %v9005
        %v10030 = vunpack.c.l.b16 %v9006
        %v10031 = vunpack.c.l.b16 %v9007
        %v10032 = vunpack.c.l.b16 %v9008
        %v10033 = vunpack.c.l.b16 %v9009
        %v10034 = vunpack.c.l.b16 %v9010
        %v10035 = vunpack.c.l.b16 %v9011
        %v10036 = vunpack.c.l.b16 %v9012
        %v10037 = vunpack.c.l.b16 %v9013
        %v10038 = vunpack.c.l.b16 %v9014
        %v10039 = vunpack.c.l.b16 %v9015
        %v10040 = vunpack.c.l.b16 %v9016
        %v10041 = vunpack.c.l.b16 %v9017
        %v10042 = vunpack.c.l.b16 %v9018
        %v10043 = vunpack.c.l.b16 %v9019
        %v10044 = vunpack.c.l.b16 %v9020
        %v10045 = vunpack.c.l.b16 %v9021
        %v10046 = vunpack.c.l.b16 %v9022
        %v10047 = vunpack.c.l.b16 %v9023
        %v10048 = vunpack.c.l.b16 %v9024
        %v10049 = vunpack.c.l.b16 %v9025
        %v10050 = vunpack.c.l.b16 %v9026
        %v10051 = vunpack.c.l.b16 %v9027
        %v10052 = vunpack.c.l.b16 %v9028
        %v10053 = vunpack.c.l.b16 %v9029
        %v10054 = vunpack.c.l.b16 %v9030
        %v10055 = vunpack.c.l.b16 %v9031
        %v10056 = vunpack.c.l.b16 %v9032
        %v10057 = vunpack.c.l.b16 %v9033
        %v10058 = vunpack.c.l.b16 %v9034
        %v10059 = vunpack.c.l.b16 %v9035
        %v10060 = vunpack.c.l.b16 %v9036
        %v10061 = vunpack.c.l.b16 %v9037
        %v10062 = vunpack.c.l.b16 %v9038
        %v10063 = vunpack.c.l.b16 %v9039
        %v10064 = vunpack.c.l.b16 %v9040
        %v10065 = vunpack.c.l.b16 %v9041
        %v10066 = vunpack.c.l.b16 %v9042
        %v10067 = vunpack.c.l.b16 %v9043
        %v10068 = vunpack.c.l.b16 %v9044
        %v10069 = vunpack.c.l.b16 %v9045
        %v10070 = vunpack.c.l.b16 %v9046
        %v10071 = vunpack.c.l.b16 %v9047
        %v10072 = vunpack.c.l.b16 %v9048
        %v10073 = vunpack.c.l.b16 %v9049
        %v10074 = vunpack.c.l.b16 %v9050
        %v10075 = vunpack.c.l.b16 %v9051
        %v10076 = vunpack.c.l.b16 %v9052
        %v10077 = vunpack.c.l.b16 %v9053
        %v10078 = vunpack.c.l.b16 %v9054
        %v10079 = vunpack.c.l.b16 %v9055
        %v10080 = vunpack.c.l.b16 %v9056
        %v10081 = vunpack.c.l.b16 %v9057
        %v10082 = vunpack.c.l.b16 %v9058
        %v10083 = vunpack.c.l.b16 %v9059
        %v10084 = vunpack.c.l.b16 %v9060
        %v10085 = vunpack.c.l.b16 %v9061
        %v10086 = vunpack.c.l.b16 %v9062
        %v10087 = vunpack.c.l.b16 %v9063
        %v10088 = vunpack.c.l.b16 %v9064
        %v10089 = vunpack.c.l.b16 %v9065
        %v10090 = vunpack.c.l.b16 %v9066
        %v10091 = vunpack.c.l.b16 %v9067
        %v10092 = vunpack.c.l.b16 %v9068
        %v10093 = vunpack.c.l.b16 %v9069
        %v10094 = vunpack.c.l.b16 %v9070
        %v10095 = vunpack.c.l.b16 %v9071
        %v10096 = vunpack.c.l.b16 %v9072
        %v10097 = vunpack.c.l.b16 %v9073
        %v10098 = vunpack.c.l.b16 %v9074
        %v10099 = vunpack.c.l.b16 %v9075
        %v10100 = vunpack.c.l.b16 %v9076
        %v10101 = vunpack.c.l.b16 %v9077
        %v10102 = vunpack.c.l.b16 %v9078
        %v10103 = vunpack.c.l.b16 %v9079
        %v10104 = vunpack.c.l.b16 %v9080
        %v10105 = vunpack.c.l.b16 %v9081
        %v10106 = vunpack.c.l.b16 %v9082
        %v10107 = vunpack.c.l.b16 %v9083
        %v10108 = vunpack.c.l.b16 %v9084
        %v10109 = vunpack.c.l.b16 %v9085
        %v10110 = vunpack.c.l.b16 %v9086
        %v10111 = vunpack.c.l.b16 %v9087
        %v10112 = vunpack.c.l.b16 %v9088
        %v10113 = vunpack.c.l.b16 %v9089
        %v10114 = vunpack.c.l.b16 %v9090
        %v10115 = vunpack.c.l.b16 %v9091
        %v10116 = vunpack.c.l.b16 %v9092
        %v10117 = vunpack.c.l.b16 %v9093
        %v10118 = vunpack.c.l.b16 %v9094
        %v10119 = vunpack.c.l.b16 %v9095
        %v10120 = vunpack.c.l.b16 %v9096
        %v10121 = vunpack.c.l.b16 %v9097
        %v10122 = vunpack.c.l.b16 %v9098
        %v10123 = vunpack.c.l.b16 %v9099
        %v10124 = vunpack.c.l.b16 %v9100
        %v10125 = vunpack.c.l.b16 %v9101
        %v10126 = vunpack.c.l.b16 %v9102
        %v10127 = vunpack.c.l.b16 %v9103
        %v10128 = vunpack.c.l.b16 %v9104
        %v10129 = vunpack.c.l.b16 %v9105
        %v10130 = vunpack.c.l.b16 %v9106
        %v10131 = vunpack.c.l.b16 %v9107
        %v10132 = vunpack.c.l.b16 %v9108
        %v10133 = vunpack.c.l.b16 %v9109
        %v10134 = vpack.c.b16 %v9991, %v9990
        %v10135 = vpack.c.b16 %v9993, %v9992
        %v10136 = vpack.c.b16 %v9995, %v9994
        %v10137 = vpack.c.b16 %v9997, %v9996
        %v10138 = vpack.c.b16 %v9999, %v9998
        %v10139 = vpack.c.b16 %v10001, %v10000
        %v10140 = vpack.c.b16 %v10003, %v10002
        %v10141 = vpack.c.b16 %v10005, %v10004
        %v10142 = vpack.c.b16 %v10007, %v10006
        %v10143 = vpack.c.b16 %v10009, %v10008
        %v10144 = vpack.c.b16 %v10011, %v10010
        %v10145 = vpack.c.b16 %v10013, %v10012
        %v10146 = vpack.c.b16 %v10015, %v10014
        %v10147 = vpack.c.b16 %v10017, %v10016
        %v10148 = vpack.c.b16 %v10019, %v10018
        %v10149 = vpack.c.b16 %v10021, %v10020
        %v10150 = vpack.c.b16 %v10023, %v10022
        %v10151 = vpack.c.b16 %v10025, %v10024
        %v10152 = vpack.c.b16 %v10027, %v10026
        %v10153 = vpack.c.b16 %v10029, %v10028
        %v10154 = vpack.c.b16 %v10031, %v10030
        %v10155 = vpack.c.b16 %v10033, %v10032
        %v10156 = vpack.c.b16 %v10035, %v10034
        %v10157 = vpack.c.b16 %v10037, %v10036
        %v10158 = vpack.c.b16 %v10039, %v10038
        %v10159 = vpack.c.b16 %v10041, %v10040
        %v10160 = vpack.c.b16 %v10043, %v10042
        %v10161 = vpack.c.b16 %v10045, %v10044
        %v10162 = vpack.c.b16 %v10047, %v10046
        %v10163 = vpack.c.b16 %v10049, %v10048
        %v10164 = vpack.c.b16 %v10051, %v10050
        %v10165 = vpack.c.b16 %v10053, %v10052
        %v10166 = vpack.c.b16 %v10055, %v10054
        %v10167 = vpack.c.b16 %v10057, %v10056
        %v10168 = vpack.c.b16 %v10059, %v10058
        %v10169 = vpack.c.b16 %v10061, %v10060
        %v10170 = vpack.c.b16 %v10063, %v10062
        %v10171 = vpack.c.b16 %v10065, %v10064
        %v10172 = vpack.c.b16 %v10067, %v10066
        %v10173 = vpack.c.b16 %v10069, %v10068
        %v10174 = vpack.c.b16 %v10071, %v10070
        %v10175 = vpack.c.b16 %v10073, %v10072
        %v10176 = vpack.c.b16 %v10075, %v10074
        %v10177 = vpack.c.b16 %v10077, %v10076
        %v10178 = vpack.c.b16 %v10079, %v10078
        %v10179 = vpack.c.b16 %v10081, %v10080
        %v10180 = vpack.c.b16 %v10083, %v10082
        %v10181 = vpack.c.b16 %v10085, %v10084
        %v10182 = vpack.c.b16 %v10087, %v10086
        %v10183 = vpack.c.b16 %v10089, %v10088
        %v10184 = vpack.c.b16 %v10091, %v10090
        %v10185 = vpack.c.b16 %v10093, %v10092
        %v10186 = vpack.c.b16 %v10095, %v10094
        %v10187 = vpack.c.b16 %v10097, %v10096
        %v10188 = vpack.c.b16 %v10099, %v10098
        %v10189 = vpack.c.b16 %v10101, %v10100
        %v10190 = vpack.c.b16 %v10103, %v10102
        %v10191 = vpack.c.b16 %v10105, %v10104
        %v10192 = vpack.c.b16 %v10107, %v10106
        %v10193 = vpack.c.b16 %v10109, %v10108
        %v10194 = vpack.c.b16 %v10111, %v10110
        %v10195 = vpack.c.b16 %v10113, %v10112
        %v10196 = vpack.c.b16 %v10115, %v10114
        %v10197 = vpack.c.b16 %v10117, %v10116
        %v10198 = vpack.c.b16 %v10119, %v10118
        %v10199 = vpack.c.b16 %v10121, %v10120
        %v10200 = vpack.c.b16 %v10123, %v10122
        %v10201 = vpack.c.b16 %v10125, %v10124
        %v10202 = vpack.c.b16 %v10127, %v10126
        %v10203 = vpack.c.b16 %v10129, %v10128
        %v10204 = vpack.c.b16 %v10131, %v10130
        %v10205 = vpack.c.b16 %v10133, %v10132
        %10278 = vmatpush.bf16.msra.mxu0 %v10141
        %10279 = vmatpush.bf16.msra.mxu0 %v10140
        %10280 = vmatpush.bf16.msra.mxu0 %v10139
        %10281 = vmatpush.bf16.msra.mxu0 %v10138
        %10282 = vmatpush.bf16.msra.mxu0 %v10137
        %10283 = vmatpush.bf16.msra.mxu0 %v10136
        %10284 = vmatpush.bf16.msra.mxu0 %v10135
        %10285 = vmatpush.bf16.msra.mxu0 %v10134
        %10286 = vmatmul.bf16.gmra.mxu0 %v9558
        %v10287 = vpop.f32.mrf.mxu0
        %v10288 = vadd.f32 0.0, %v10287
        %v10289 = vpop.f32.mrf.mxu0
        %v10290 = vadd.f32 0.0, %v10289
        %10291 = vmatmul.bf16.gmra.mxu0 %v9567
        %v10292 = vpop.f32.mrf.mxu0
        %v10293 = vadd.f32 0.0, %v10292
        %v10294 = vpop.f32.mrf.mxu0
        %v10295 = vadd.f32 0.0, %v10294
        %10296 = vmatmul.bf16.gmra.mxu0 %v9576
        %v10297 = vpop.f32.mrf.mxu0
        %v10298 = vadd.f32 0.0, %v10297
        %v10299 = vpop.f32.mrf.mxu0
        %v10300 = vadd.f32 0.0, %v10299
        %10301 = vmatmul.bf16.gmra.mxu0 %v9585
        %v10302 = vpop.f32.mrf.mxu0
        %v10303 = vadd.f32 0.0, %v10302
        %v10304 = vpop.f32.mrf.mxu0
        %v10305 = vadd.f32 0.0, %v10304
        %10306 = vmatmul.bf16.gmra.mxu0 %v9594
        %v10307 = vpop.f32.mrf.mxu0
        %v10308 = vadd.f32 0.0, %v10307
        %v10309 = vpop.f32.mrf.mxu0
        %v10310 = vadd.f32 0.0, %v10309
        %10311 = vmatmul.bf16.gmra.mxu0 %v9603
        %v10312 = vpop.f32.mrf.mxu0
        %v10313 = vadd.f32 0.0, %v10312
        %v10314 = vpop.f32.mrf.mxu0
        %v10315 = vadd.f32 0.0, %v10314
        %10316 = vmatmul.bf16.gmra.mxu0 %v9612
        %v10317 = vpop.f32.mrf.mxu0
        %v10318 = vadd.f32 0.0, %v10317
        %v10319 = vpop.f32.mrf.mxu0
        %v10320 = vadd.f32 0.0, %v10319
        %10321 = vmatmul.bf16.gmra.mxu0 %v9621
        %v10322 = vpop.f32.mrf.mxu0
        %v10323 = vadd.f32 0.0, %v10322
        %v10324 = vpop.f32.mrf.mxu0
        %v10325 = vadd.f32 0.0, %v10324
        %10326 = vmatmul.bf16.gmra.mxu0 %v9630
        %v10327 = vpop.f32.mrf.mxu0
        %v10328 = vadd.f32 0.0, %v10327
        %v10329 = vpop.f32.mrf.mxu0
        %v10330 = vadd.f32 0.0, %v10329
        %10331 = vmatmul.bf16.gmra.mxu0 %v9639
        %v10332 = vpop.f32.mrf.mxu0
        %v10333 = vadd.f32 0.0, %v10332
        %v10334 = vpop.f32.mrf.mxu0
        %v10335 = vadd.f32 0.0, %v10334
        %10336 = vmatmul.bf16.gmra.mxu0 %v9648
        %v10337 = vpop.f32.mrf.mxu0
        %v10338 = vadd.f32 0.0, %v10337
        %v10339 = vpop.f32.mrf.mxu0
        %v10340 = vadd.f32 0.0, %v10339
        %10341 = vmatmul.bf16.gmra.mxu0 %v9657
        %v10342 = vpop.f32.mrf.mxu0
        %v10343 = vadd.f32 0.0, %v10342
        %v10344 = vpop.f32.mrf.mxu0
        %v10345 = vadd.f32 0.0, %v10344
        %10346 = vmatmul.bf16.gmra.mxu0 %v9666
        %v10347 = vpop.f32.mrf.mxu0
        %v10348 = vadd.f32 0.0, %v10347
        %v10349 = vpop.f32.mrf.mxu0
        %v10350 = vadd.f32 0.0, %v10349
        %10351 = vmatmul.bf16.gmra.mxu0 %v9675
        %v10352 = vpop.f32.mrf.mxu0
        %v10353 = vadd.f32 0.0, %v10352
        %v10354 = vpop.f32.mrf.mxu0
        %v10355 = vadd.f32 0.0, %v10354
        %10356 = vmatmul.bf16.gmra.mxu0 %v9684
        %v10357 = vpop.f32.mrf.mxu0
        %v10358 = vadd.f32 0.0, %v10357
        %v10359 = vpop.f32.mrf.mxu0
        %v10360 = vadd.f32 0.0, %v10359
        %10361 = vmatmul.bf16.gmra.mxu0 %v9693
        %v10362 = vpop.f32.mrf.mxu0
        %v10363 = vadd.f32 0.0, %v10362
        %v10364 = vpop.f32.mrf.mxu0
        %v10365 = vadd.f32 0.0, %v10364
        %10366 = vdwg.mxu0
        %10367 = vmatpush.bf16.msra.mxu0 %v10149
        %10368 = vmatpush.bf16.msra.mxu0 %v10148
        %10369 = vmatpush.bf16.msra.mxu0 %v10147
        %10370 = vmatpush.bf16.msra.mxu0 %v10146
        %10371 = vmatpush.bf16.msra.mxu0 %v10145
        %10372 = vmatpush.bf16.msra.mxu0 %v10144
        %10373 = vmatpush.bf16.msra.mxu0 %v10143
        %10374 = vmatpush.bf16.msra.mxu0 %v10142
        %10375 = vmatmul.bf16.gmra.mxu0 %v9559
        %v10376 = vpop.f32.mrf.mxu0
        %v10377 = vadd.f32 %v10288, %v10376
        %v10378 = vpop.f32.mrf.mxu0
        %v10379 = vadd.f32 %v10290, %v10378
        %10380 = vmatmul.bf16.gmra.mxu0 %v9568
        %v10381 = vpop.f32.mrf.mxu0
        %v10382 = vadd.f32 %v10293, %v10381
        %v10383 = vpop.f32.mrf.mxu0
        %v10384 = vadd.f32 %v10295, %v10383
        %10385 = vmatmul.bf16.gmra.mxu0 %v9577
        %v10386 = vpop.f32.mrf.mxu0
        %v10387 = vadd.f32 %v10298, %v10386
        %v10388 = vpop.f32.mrf.mxu0
        %v10389 = vadd.f32 %v10300, %v10388
        %10390 = vmatmul.bf16.gmra.mxu0 %v9586
        %v10391 = vpop.f32.mrf.mxu0
        %v10392 = vadd.f32 %v10303, %v10391
        %v10393 = vpop.f32.mrf.mxu0
        %v10394 = vadd.f32 %v10305, %v10393
        %10395 = vmatmul.bf16.gmra.mxu0 %v9595
        %v10396 = vpop.f32.mrf.mxu0
        %v10397 = vadd.f32 %v10308, %v10396
        %v10398 = vpop.f32.mrf.mxu0
        %v10399 = vadd.f32 %v10310, %v10398
        %10400 = vmatmul.bf16.gmra.mxu0 %v9604
        %v10401 = vpop.f32.mrf.mxu0
        %v10402 = vadd.f32 %v10313, %v10401
        %v10403 = vpop.f32.mrf.mxu0
        %v10404 = vadd.f32 %v10315, %v10403
        %10405 = vmatmul.bf16.gmra.mxu0 %v9613
        %v10406 = vpop.f32.mrf.mxu0
        %v10407 = vadd.f32 %v10318, %v10406
        %v10408 = vpop.f32.mrf.mxu0
        %v10409 = vadd.f32 %v10320, %v10408
        %10410 = vmatmul.bf16.gmra.mxu0 %v9622
        %v10411 = vpop.f32.mrf.mxu0
        %v10412 = vadd.f32 %v10323, %v10411
        %v10413 = vpop.f32.mrf.mxu0
        %v10414 = vadd.f32 %v10325, %v10413
        %10415 = vmatmul.bf16.gmra.mxu0 %v9631
        %v10416 = vpop.f32.mrf.mxu0
        %v10417 = vadd.f32 %v10328, %v10416
        %v10418 = vpop.f32.mrf.mxu0
        %v10419 = vadd.f32 %v10330, %v10418
        %10420 = vmatmul.bf16.gmra.mxu0 %v9640
        %v10421 = vpop.f32.mrf.mxu0
        %v10422 = vadd.f32 %v10333, %v10421
        %v10423 = vpop.f32.mrf.mxu0
        %v10424 = vadd.f32 %v10335, %v10423
        %10425 = vmatmul.bf16.gmra.mxu0 %v9649
        %v10426 = vpop.f32.mrf.mxu0
        %v10427 = vadd.f32 %v10338, %v10426
        %v10428 = vpop.f32.mrf.mxu0
        %v10429 = vadd.f32 %v10340, %v10428
        %10430 = vmatmul.bf16.gmra.mxu0 %v9658
        %v10431 = vpop.f32.mrf.mxu0
        %v10432 = vadd.f32 %v10343, %v10431
        %v10433 = vpop.f32.mrf.mxu0
        %v10434 = vadd.f32 %v10345, %v10433
        %10435 = vmatmul.bf16.gmra.mxu0 %v9667
        %v10436 = vpop.f32.mrf.mxu0
        %v10437 = vadd.f32 %v10348, %v10436
        %v10438 = vpop.f32.mrf.mxu0
        %v10439 = vadd.f32 %v10350, %v10438
        %10440 = vmatmul.bf16.gmra.mxu0 %v9676
        %v10441 = vpop.f32.mrf.mxu0
        %v10442 = vadd.f32 %v10353, %v10441
        %v10443 = vpop.f32.mrf.mxu0
        %v10444 = vadd.f32 %v10355, %v10443
        %10445 = vmatmul.bf16.gmra.mxu0 %v9685
        %v10446 = vpop.f32.mrf.mxu0
        %v10447 = vadd.f32 %v10358, %v10446
        %v10448 = vpop.f32.mrf.mxu0
        %v10449 = vadd.f32 %v10360, %v10448
        %10450 = vmatmul.bf16.gmra.mxu0 %v9694
        %v10451 = vpop.f32.mrf.mxu0
        %v10452 = vadd.f32 %v10363, %v10451
        %v10453 = vpop.f32.mrf.mxu0
        %v10454 = vadd.f32 %v10365, %v10453
        %10455 = vdwg.mxu0
        %10456 = vmatpush.bf16.msra.mxu0 %v10157
        %10457 = vmatpush.bf16.msra.mxu0 %v10156
        %10458 = vmatpush.bf16.msra.mxu0 %v10155
        %10459 = vmatpush.bf16.msra.mxu0 %v10154
        %10460 = vmatpush.bf16.msra.mxu0 %v10153
        %10461 = vmatpush.bf16.msra.mxu0 %v10152
        %10462 = vmatpush.bf16.msra.mxu0 %v10151
        %10463 = vmatpush.bf16.msra.mxu0 %v10150
        %10464 = vmatmul.bf16.gmra.mxu0 %v9560
        %v10465 = vpop.f32.mrf.mxu0
        %v10466 = vadd.f32 %v10377, %v10465
        %v10467 = vpop.f32.mrf.mxu0
        %v10468 = vadd.f32 %v10379, %v10467
        %10469 = vmatmul.bf16.gmra.mxu0 %v9569
        %v10470 = vpop.f32.mrf.mxu0
        %v10471 = vadd.f32 %v10382, %v10470
        %v10472 = vpop.f32.mrf.mxu0
        %v10473 = vadd.f32 %v10384, %v10472
        %10474 = vmatmul.bf16.gmra.mxu0 %v9578
        %v10475 = vpop.f32.mrf.mxu0
        %v10476 = vadd.f32 %v10387, %v10475
        %v10477 = vpop.f32.mrf.mxu0
        %v10478 = vadd.f32 %v10389, %v10477
        %10479 = vmatmul.bf16.gmra.mxu0 %v9587
        %v10480 = vpop.f32.mrf.mxu0
        %v10481 = vadd.f32 %v10392, %v10480
        %v10482 = vpop.f32.mrf.mxu0
        %v10483 = vadd.f32 %v10394, %v10482
        %10484 = vmatmul.bf16.gmra.mxu0 %v9596
        %v10485 = vpop.f32.mrf.mxu0
        %v10486 = vadd.f32 %v10397, %v10485
        %v10487 = vpop.f32.mrf.mxu0
        %v10488 = vadd.f32 %v10399, %v10487
        %10489 = vmatmul.bf16.gmra.mxu0 %v9605
        %v10490 = vpop.f32.mrf.mxu0
        %v10491 = vadd.f32 %v10402, %v10490
        %v10492 = vpop.f32.mrf.mxu0
        %v10493 = vadd.f32 %v10404, %v10492
        %10494 = vmatmul.bf16.gmra.mxu0 %v9614
        %v10495 = vpop.f32.mrf.mxu0
        %v10496 = vadd.f32 %v10407, %v10495
        %v10497 = vpop.f32.mrf.mxu0
        %v10498 = vadd.f32 %v10409, %v10497
        %10499 = vmatmul.bf16.gmra.mxu0 %v9623
        %v10500 = vpop.f32.mrf.mxu0
        %v10501 = vadd.f32 %v10412, %v10500
        %v10502 = vpop.f32.mrf.mxu0
        %v10503 = vadd.f32 %v10414, %v10502
        %10504 = vmatmul.bf16.gmra.mxu0 %v9632
        %v10505 = vpop.f32.mrf.mxu0
        %v10506 = vadd.f32 %v10417, %v10505
        %v10507 = vpop.f32.mrf.mxu0
        %v10508 = vadd.f32 %v10419, %v10507
        %10509 = vmatmul.bf16.gmra.mxu0 %v9641
        %v10510 = vpop.f32.mrf.mxu0
        %v10511 = vadd.f32 %v10422, %v10510
        %v10512 = vpop.f32.mrf.mxu0
        %v10513 = vadd.f32 %v10424, %v10512
        %10514 = vmatmul.bf16.gmra.mxu0 %v9650
        %v10515 = vpop.f32.mrf.mxu0
        %v10516 = vadd.f32 %v10427, %v10515
        %v10517 = vpop.f32.mrf.mxu0
        %v10518 = vadd.f32 %v10429, %v10517
        %10519 = vmatmul.bf16.gmra.mxu0 %v9659
        %v10520 = vpop.f32.mrf.mxu0
        %v10521 = vadd.f32 %v10432, %v10520
        %v10522 = vpop.f32.mrf.mxu0
        %v10523 = vadd.f32 %v10434, %v10522
        %10524 = vmatmul.bf16.gmra.mxu0 %v9668
        %v10525 = vpop.f32.mrf.mxu0
        %v10526 = vadd.f32 %v10437, %v10525
        %v10527 = vpop.f32.mrf.mxu0
        %v10528 = vadd.f32 %v10439, %v10527
        %10529 = vmatmul.bf16.gmra.mxu0 %v9677
        %v10530 = vpop.f32.mrf.mxu0
        %v10531 = vadd.f32 %v10442, %v10530
        %v10532 = vpop.f32.mrf.mxu0
        %v10533 = vadd.f32 %v10444, %v10532
        %10534 = vmatmul.bf16.gmra.mxu0 %v9686
        %v10535 = vpop.f32.mrf.mxu0
        %v10536 = vadd.f32 %v10447, %v10535
        %v10537 = vpop.f32.mrf.mxu0
        %v10538 = vadd.f32 %v10449, %v10537
        %10539 = vmatmul.bf16.gmra.mxu0 %v9695
        %v10540 = vpop.f32.mrf.mxu0
        %v10541 = vadd.f32 %v10452, %v10540
        %v10542 = vpop.f32.mrf.mxu0
        %v10543 = vadd.f32 %v10454, %v10542
        %10544 = vdwg.mxu0
        %10545 = vmatpush.bf16.msra.mxu0 %v10165
        %10546 = vmatpush.bf16.msra.mxu0 %v10164
        %10547 = vmatpush.bf16.msra.mxu0 %v10163
        %10548 = vmatpush.bf16.msra.mxu0 %v10162
        %10549 = vmatpush.bf16.msra.mxu0 %v10161
        %10550 = vmatpush.bf16.msra.mxu0 %v10160
        %10551 = vmatpush.bf16.msra.mxu0 %v10159
        %10552 = vmatpush.bf16.msra.mxu0 %v10158
        %10553 = vmatmul.bf16.gmra.mxu0 %v9561
        %v10554 = vpop.f32.mrf.mxu0
        %v10555 = vadd.f32 %v10466, %v10554
        %v10556 = vpop.f32.mrf.mxu0
        %v10557 = vadd.f32 %v10468, %v10556
        %10558 = vmatmul.bf16.gmra.mxu0 %v9570
        %v10559 = vpop.f32.mrf.mxu0
        %v10560 = vadd.f32 %v10471, %v10559
        %v10561 = vpop.f32.mrf.mxu0
        %v10562 = vadd.f32 %v10473, %v10561
        %10563 = vmatmul.bf16.gmra.mxu0 %v9579
        %v10564 = vpop.f32.mrf.mxu0
        %v10565 = vadd.f32 %v10476, %v10564
        %v10566 = vpop.f32.mrf.mxu0
        %v10567 = vadd.f32 %v10478, %v10566
        %10568 = vmatmul.bf16.gmra.mxu0 %v9588
        %v10569 = vpop.f32.mrf.mxu0
        %v10570 = vadd.f32 %v10481, %v10569
        %v10571 = vpop.f32.mrf.mxu0
        %v10572 = vadd.f32 %v10483, %v10571
        %10573 = vmatmul.bf16.gmra.mxu0 %v9597
        %v10574 = vpop.f32.mrf.mxu0
        %v10575 = vadd.f32 %v10486, %v10574
        %v10576 = vpop.f32.mrf.mxu0
        %v10577 = vadd.f32 %v10488, %v10576
        %10578 = vmatmul.bf16.gmra.mxu0 %v9606
        %v10579 = vpop.f32.mrf.mxu0
        %v10580 = vadd.f32 %v10491, %v10579
        %v10581 = vpop.f32.mrf.mxu0
        %v10582 = vadd.f32 %v10493, %v10581
        %10583 = vmatmul.bf16.gmra.mxu0 %v9615
        %v10584 = vpop.f32.mrf.mxu0
        %v10585 = vadd.f32 %v10496, %v10584
        %v10586 = vpop.f32.mrf.mxu0
        %v10587 = vadd.f32 %v10498, %v10586
        %10588 = vmatmul.bf16.gmra.mxu0 %v9624
        %v10589 = vpop.f32.mrf.mxu0
        %v10590 = vadd.f32 %v10501, %v10589
        %v10591 = vpop.f32.mrf.mxu0
        %v10592 = vadd.f32 %v10503, %v10591
        %10593 = vmatmul.bf16.gmra.mxu0 %v9633
        %v10594 = vpop.f32.mrf.mxu0
        %v10595 = vadd.f32 %v10506, %v10594
        %v10596 = vpop.f32.mrf.mxu0
        %v10597 = vadd.f32 %v10508, %v10596
        %10598 = vmatmul.bf16.gmra.mxu0 %v9642
        %v10599 = vpop.f32.mrf.mxu0
        %v10600 = vadd.f32 %v10511, %v10599
        %v10601 = vpop.f32.mrf.mxu0
        %v10602 = vadd.f32 %v10513, %v10601
        %10603 = vmatmul.bf16.gmra.mxu0 %v9651
        %v10604 = vpop.f32.mrf.mxu0
        %v10605 = vadd.f32 %v10516, %v10604
        %v10606 = vpop.f32.mrf.mxu0
        %v10607 = vadd.f32 %v10518, %v10606
        %10608 = vmatmul.bf16.gmra.mxu0 %v9660
        %v10609 = vpop.f32.mrf.mxu0
        %v10610 = vadd.f32 %v10521, %v10609
        %v10611 = vpop.f32.mrf.mxu0
        %v10612 = vadd.f32 %v10523, %v10611
        %10613 = vmatmul.bf16.gmra.mxu0 %v9669
        %v10614 = vpop.f32.mrf.mxu0
        %v10615 = vadd.f32 %v10526, %v10614
        %v10616 = vpop.f32.mrf.mxu0
        %v10617 = vadd.f32 %v10528, %v10616
        %10618 = vmatmul.bf16.gmra.mxu0 %v9678
        %v10619 = vpop.f32.mrf.mxu0
        %v10620 = vadd.f32 %v10531, %v10619
        %v10621 = vpop.f32.mrf.mxu0
        %v10622 = vadd.f32 %v10533, %v10621
        %10623 = vmatmul.bf16.gmra.mxu0 %v9687
        %v10624 = vpop.f32.mrf.mxu0
        %v10625 = vadd.f32 %v10536, %v10624
        %v10626 = vpop.f32.mrf.mxu0
        %v10627 = vadd.f32 %v10538, %v10626
        %10628 = vmatmul.bf16.gmra.mxu0 %v9696
        %v10629 = vpop.f32.mrf.mxu0
        %v10630 = vadd.f32 %v10541, %v10629
        %v10631 = vpop.f32.mrf.mxu0
        %v10632 = vadd.f32 %v10543, %v10631
        %10633 = vdwg.mxu0
        %10634 = vmatpush.bf16.msra.mxu0 %v10173
        %10635 = vmatpush.bf16.msra.mxu0 %v10172
        %10636 = vmatpush.bf16.msra.mxu0 %v10171
        %10637 = vmatpush.bf16.msra.mxu0 %v10170
        %10638 = vmatpush.bf16.msra.mxu0 %v10169
        %10639 = vmatpush.bf16.msra.mxu0 %v10168
        %10640 = vmatpush.bf16.msra.mxu0 %v10167
        %10641 = vmatpush.bf16.msra.mxu0 %v10166
        %10642 = vmatmul.bf16.gmra.mxu0 %v9562
        %v10643 = vpop.f32.mrf.mxu0
        %v10644 = vadd.f32 %v10555, %v10643
        %v10645 = vpop.f32.mrf.mxu0
        %v10646 = vadd.f32 %v10557, %v10645
        %10647 = vmatmul.bf16.gmra.mxu0 %v9571
        %v10648 = vpop.f32.mrf.mxu0
        %v10649 = vadd.f32 %v10560, %v10648
        %v10650 = vpop.f32.mrf.mxu0
        %v10651 = vadd.f32 %v10562, %v10650
        %10652 = vmatmul.bf16.gmra.mxu0 %v9580
        %v10653 = vpop.f32.mrf.mxu0
        %v10654 = vadd.f32 %v10565, %v10653
        %v10655 = vpop.f32.mrf.mxu0
        %v10656 = vadd.f32 %v10567, %v10655
        %10657 = vmatmul.bf16.gmra.mxu0 %v9589
        %v10658 = vpop.f32.mrf.mxu0
        %v10659 = vadd.f32 %v10570, %v10658
        %v10660 = vpop.f32.mrf.mxu0
        %v10661 = vadd.f32 %v10572, %v10660
        %10662 = vmatmul.bf16.gmra.mxu0 %v9598
        %v10663 = vpop.f32.mrf.mxu0
        %v10664 = vadd.f32 %v10575, %v10663
        %v10665 = vpop.f32.mrf.mxu0
        %v10666 = vadd.f32 %v10577, %v10665
        %10667 = vmatmul.bf16.gmra.mxu0 %v9607
        %v10668 = vpop.f32.mrf.mxu0
        %v10669 = vadd.f32 %v10580, %v10668
        %v10670 = vpop.f32.mrf.mxu0
        %v10671 = vadd.f32 %v10582, %v10670
        %10672 = vmatmul.bf16.gmra.mxu0 %v9616
        %v10673 = vpop.f32.mrf.mxu0
        %v10674 = vadd.f32 %v10585, %v10673
        %v10675 = vpop.f32.mrf.mxu0
        %v10676 = vadd.f32 %v10587, %v10675
        %10677 = vmatmul.bf16.gmra.mxu0 %v9625
        %v10678 = vpop.f32.mrf.mxu0
        %v10679 = vadd.f32 %v10590, %v10678
        %v10680 = vpop.f32.mrf.mxu0
        %v10681 = vadd.f32 %v10592, %v10680
        %10682 = vmatmul.bf16.gmra.mxu0 %v9634
        %v10683 = vpop.f32.mrf.mxu0
        %v10684 = vadd.f32 %v10595, %v10683
        %v10685 = vpop.f32.mrf.mxu0
        %v10686 = vadd.f32 %v10597, %v10685
        %10687 = vmatmul.bf16.gmra.mxu0 %v9643
        %v10688 = vpop.f32.mrf.mxu0
        %v10689 = vadd.f32 %v10600, %v10688
        %v10690 = vpop.f32.mrf.mxu0
        %v10691 = vadd.f32 %v10602, %v10690
        %10692 = vmatmul.bf16.gmra.mxu0 %v9652
        %v10693 = vpop.f32.mrf.mxu0
        %v10694 = vadd.f32 %v10605, %v10693
        %v10695 = vpop.f32.mrf.mxu0
        %v10696 = vadd.f32 %v10607, %v10695
        %10697 = vmatmul.bf16.gmra.mxu0 %v9661
        %v10698 = vpop.f32.mrf.mxu0
        %v10699 = vadd.f32 %v10610, %v10698
        %v10700 = vpop.f32.mrf.mxu0
        %v10701 = vadd.f32 %v10612, %v10700
        %10702 = vmatmul.bf16.gmra.mxu0 %v9670
        %v10703 = vpop.f32.mrf.mxu0
        %v10704 = vadd.f32 %v10615, %v10703
        %v10705 = vpop.f32.mrf.mxu0
        %v10706 = vadd.f32 %v10617, %v10705
        %10707 = vmatmul.bf16.gmra.mxu0 %v9679
        %v10708 = vpop.f32.mrf.mxu0
        %v10709 = vadd.f32 %v10620, %v10708
        %v10710 = vpop.f32.mrf.mxu0
        %v10711 = vadd.f32 %v10622, %v10710
        %10712 = vmatmul.bf16.gmra.mxu0 %v9688
        %v10713 = vpop.f32.mrf.mxu0
        %v10714 = vadd.f32 %v10625, %v10713
        %v10715 = vpop.f32.mrf.mxu0
        %v10716 = vadd.f32 %v10627, %v10715
        %10717 = vmatmul.bf16.gmra.mxu0 %v9697
        %v10718 = vpop.f32.mrf.mxu0
        %v10719 = vadd.f32 %v10630, %v10718
        %v10720 = vpop.f32.mrf.mxu0
        %v10721 = vadd.f32 %v10632, %v10720
        %10722 = vdwg.mxu0
        %10723 = vmatpush.bf16.msra.mxu0 %v10181
        %10724 = vmatpush.bf16.msra.mxu0 %v10180
        %10725 = vmatpush.bf16.msra.mxu0 %v10179
        %10726 = vmatpush.bf16.msra.mxu0 %v10178
        %10727 = vmatpush.bf16.msra.mxu0 %v10177
        %10728 = vmatpush.bf16.msra.mxu0 %v10176
        %10729 = vmatpush.bf16.msra.mxu0 %v10175
        %10730 = vmatpush.bf16.msra.mxu0 %v10174
        %10731 = vmatmul.bf16.gmra.mxu0 %v9563
        %v10732 = vpop.f32.mrf.mxu0
        %v10733 = vadd.f32 %v10644, %v10732
        %v10734 = vpop.f32.mrf.mxu0
        %v10735 = vadd.f32 %v10646, %v10734
        %10736 = vmatmul.bf16.gmra.mxu0 %v9572
        %v10737 = vpop.f32.mrf.mxu0
        %v10738 = vadd.f32 %v10649, %v10737
        %v10739 = vpop.f32.mrf.mxu0
        %v10740 = vadd.f32 %v10651, %v10739
        %10741 = vmatmul.bf16.gmra.mxu0 %v9581
        %v10742 = vpop.f32.mrf.mxu0
        %v10743 = vadd.f32 %v10654, %v10742
        %v10744 = vpop.f32.mrf.mxu0
        %v10745 = vadd.f32 %v10656, %v10744
        %10746 = vmatmul.bf16.gmra.mxu0 %v9590
        %v10747 = vpop.f32.mrf.mxu0
        %v10748 = vadd.f32 %v10659, %v10747
        %v10749 = vpop.f32.mrf.mxu0
        %v10750 = vadd.f32 %v10661, %v10749
        %10751 = vmatmul.bf16.gmra.mxu0 %v9599
        %v10752 = vpop.f32.mrf.mxu0
        %v10753 = vadd.f32 %v10664, %v10752
        %v10754 = vpop.f32.mrf.mxu0
        %v10755 = vadd.f32 %v10666, %v10754
        %10756 = vmatmul.bf16.gmra.mxu0 %v9608
        %v10757 = vpop.f32.mrf.mxu0
        %v10758 = vadd.f32 %v10669, %v10757
        %v10759 = vpop.f32.mrf.mxu0
        %v10760 = vadd.f32 %v10671, %v10759
        %10761 = vmatmul.bf16.gmra.mxu0 %v9617
        %v10762 = vpop.f32.mrf.mxu0
        %v10763 = vadd.f32 %v10674, %v10762
        %v10764 = vpop.f32.mrf.mxu0
        %v10765 = vadd.f32 %v10676, %v10764
        %10766 = vmatmul.bf16.gmra.mxu0 %v9626
        %v10767 = vpop.f32.mrf.mxu0
        %v10768 = vadd.f32 %v10679, %v10767
        %v10769 = vpop.f32.mrf.mxu0
        %v10770 = vadd.f32 %v10681, %v10769
        %10771 = vmatmul.bf16.gmra.mxu0 %v9635
        %v10772 = vpop.f32.mrf.mxu0
        %v10773 = vadd.f32 %v10684, %v10772
        %v10774 = vpop.f32.mrf.mxu0
        %v10775 = vadd.f32 %v10686, %v10774
        %10776 = vmatmul.bf16.gmra.mxu0 %v9644
        %v10777 = vpop.f32.mrf.mxu0
        %v10778 = vadd.f32 %v10689, %v10777
        %v10779 = vpop.f32.mrf.mxu0
        %v10780 = vadd.f32 %v10691, %v10779
        %10781 = vmatmul.bf16.gmra.mxu0 %v9653
        %v10782 = vpop.f32.mrf.mxu0
        %v10783 = vadd.f32 %v10694, %v10782
        %v10784 = vpop.f32.mrf.mxu0
        %v10785 = vadd.f32 %v10696, %v10784
        %10786 = vmatmul.bf16.gmra.mxu0 %v9662
        %v10787 = vpop.f32.mrf.mxu0
        %v10788 = vadd.f32 %v10699, %v10787
        %v10789 = vpop.f32.mrf.mxu0
        %v10790 = vadd.f32 %v10701, %v10789
        %10791 = vmatmul.bf16.gmra.mxu0 %v9671
        %v10792 = vpop.f32.mrf.mxu0
        %v10793 = vadd.f32 %v10704, %v10792
        %v10794 = vpop.f32.mrf.mxu0
        %v10795 = vadd.f32 %v10706, %v10794
        %10796 = vmatmul.bf16.gmra.mxu0 %v9680
        %v10797 = vpop.f32.mrf.mxu0
        %v10798 = vadd.f32 %v10709, %v10797
        %v10799 = vpop.f32.mrf.mxu0
        %v10800 = vadd.f32 %v10711, %v10799
        %10801 = vmatmul.bf16.gmra.mxu0 %v9689
        %v10802 = vpop.f32.mrf.mxu0
        %v10803 = vadd.f32 %v10714, %v10802
        %v10804 = vpop.f32.mrf.mxu0
        %v10805 = vadd.f32 %v10716, %v10804
        %10806 = vmatmul.bf16.gmra.mxu0 %v9698
        %v10807 = vpop.f32.mrf.mxu0
        %v10808 = vadd.f32 %v10719, %v10807
        %v10809 = vpop.f32.mrf.mxu0
        %v10810 = vadd.f32 %v10721, %v10809
        %10811 = vdwg.mxu0
        %10812 = vmatpush.bf16.msra.mxu0 %v10189
        %10813 = vmatpush.bf16.msra.mxu0 %v10188
        %10814 = vmatpush.bf16.msra.mxu0 %v10187
        %10815 = vmatpush.bf16.msra.mxu0 %v10186
        %10816 = vmatpush.bf16.msra.mxu0 %v10185
        %10817 = vmatpush.bf16.msra.mxu0 %v10184
        %10818 = vmatpush.bf16.msra.mxu0 %v10183
        %10819 = vmatpush.bf16.msra.mxu0 %v10182
        %10820 = vmatmul.bf16.gmra.mxu0 %v9564
        %v10821 = vpop.f32.mrf.mxu0
        %v10822 = vadd.f32 %v10733, %v10821
        %v10823 = vpop.f32.mrf.mxu0
        %v10824 = vadd.f32 %v10735, %v10823
        %10825 = vmatmul.bf16.gmra.mxu0 %v9573
        %v10826 = vpop.f32.mrf.mxu0
        %v10827 = vadd.f32 %v10738, %v10826
        %v10828 = vpop.f32.mrf.mxu0
        %v10829 = vadd.f32 %v10740, %v10828
        %10830 = vmatmul.bf16.gmra.mxu0 %v9582
        %v10831 = vpop.f32.mrf.mxu0
        %v10832 = vadd.f32 %v10743, %v10831
        %v10833 = vpop.f32.mrf.mxu0
        %v10834 = vadd.f32 %v10745, %v10833
        %10835 = vmatmul.bf16.gmra.mxu0 %v9591
        %v10836 = vpop.f32.mrf.mxu0
        %v10837 = vadd.f32 %v10748, %v10836
        %v10838 = vpop.f32.mrf.mxu0
        %v10839 = vadd.f32 %v10750, %v10838
        %10840 = vmatmul.bf16.gmra.mxu0 %v9600
        %v10841 = vpop.f32.mrf.mxu0
        %v10842 = vadd.f32 %v10753, %v10841
        %v10843 = vpop.f32.mrf.mxu0
        %v10844 = vadd.f32 %v10755, %v10843
        %10845 = vmatmul.bf16.gmra.mxu0 %v9609
        %v10846 = vpop.f32.mrf.mxu0
        %v10847 = vadd.f32 %v10758, %v10846
        %v10848 = vpop.f32.mrf.mxu0
        %v10849 = vadd.f32 %v10760, %v10848
        %10850 = vmatmul.bf16.gmra.mxu0 %v9618
        %v10851 = vpop.f32.mrf.mxu0
        %v10852 = vadd.f32 %v10763, %v10851
        %v10853 = vpop.f32.mrf.mxu0
        %v10854 = vadd.f32 %v10765, %v10853
        %10855 = vmatmul.bf16.gmra.mxu0 %v9627
        %v10856 = vpop.f32.mrf.mxu0
        %v10857 = vadd.f32 %v10768, %v10856
        %v10858 = vpop.f32.mrf.mxu0
        %v10859 = vadd.f32 %v10770, %v10858
        %10860 = vmatmul.bf16.gmra.mxu0 %v9636
        %v10861 = vpop.f32.mrf.mxu0
        %v10862 = vadd.f32 %v10773, %v10861
        %v10863 = vpop.f32.mrf.mxu0
        %v10864 = vadd.f32 %v10775, %v10863
        %10865 = vmatmul.bf16.gmra.mxu0 %v9645
        %v10866 = vpop.f32.mrf.mxu0
        %v10867 = vadd.f32 %v10778, %v10866
        %v10868 = vpop.f32.mrf.mxu0
        %v10869 = vadd.f32 %v10780, %v10868
        %10870 = vmatmul.bf16.gmra.mxu0 %v9654
        %v10871 = vpop.f32.mrf.mxu0
        %v10872 = vadd.f32 %v10783, %v10871
        %v10873 = vpop.f32.mrf.mxu0
        %v10874 = vadd.f32 %v10785, %v10873
        %10875 = vmatmul.bf16.gmra.mxu0 %v9663
        %v10876 = vpop.f32.mrf.mxu0
        %v10877 = vadd.f32 %v10788, %v10876
        %v10878 = vpop.f32.mrf.mxu0
        %v10879 = vadd.f32 %v10790, %v10878
        %10880 = vmatmul.bf16.gmra.mxu0 %v9672
        %v10881 = vpop.f32.mrf.mxu0
        %v10882 = vadd.f32 %v10793, %v10881
        %v10883 = vpop.f32.mrf.mxu0
        %v10884 = vadd.f32 %v10795, %v10883
        %10885 = vmatmul.bf16.gmra.mxu0 %v9681
        %v10886 = vpop.f32.mrf.mxu0
        %v10887 = vadd.f32 %v10798, %v10886
        %v10888 = vpop.f32.mrf.mxu0
        %v10889 = vadd.f32 %v10800, %v10888
        %10890 = vmatmul.bf16.gmra.mxu0 %v9690
        %v10891 = vpop.f32.mrf.mxu0
        %v10892 = vadd.f32 %v10803, %v10891
        %v10893 = vpop.f32.mrf.mxu0
        %v10894 = vadd.f32 %v10805, %v10893
        %10895 = vmatmul.bf16.gmra.mxu0 %v9699
        %v10896 = vpop.f32.mrf.mxu0
        %v10897 = vadd.f32 %v10808, %v10896
        %v10898 = vpop.f32.mrf.mxu0
        %v10899 = vadd.f32 %v10810, %v10898
        %10900 = vdwg.mxu0
        %10901 = vmatpush.bf16.msra.mxu0 %v10197
        %10902 = vmatpush.bf16.msra.mxu0 %v10196
        %10903 = vmatpush.bf16.msra.mxu0 %v10195
        %10904 = vmatpush.bf16.msra.mxu0 %v10194
        %10905 = vmatpush.bf16.msra.mxu0 %v10193
        %10906 = vmatpush.bf16.msra.mxu0 %v10192
        %10907 = vmatpush.bf16.msra.mxu0 %v10191
        %10908 = vmatpush.bf16.msra.mxu0 %v10190
        %10909 = vmatmul.bf16.gmra.mxu0 %v9565
        %v10910 = vpop.f32.mrf.mxu0
        %v10911 = vadd.f32 %v10822, %v10910
        %v10912 = vpop.f32.mrf.mxu0
        %v10913 = vadd.f32 %v10824, %v10912
        %10914 = vmatmul.bf16.gmra.mxu0 %v9574
        %v10915 = vpop.f32.mrf.mxu0
        %v10916 = vadd.f32 %v10827, %v10915
        %v10917 = vpop.f32.mrf.mxu0
        %v10918 = vadd.f32 %v10829, %v10917
        %10919 = vmatmul.bf16.gmra.mxu0 %v9583
        %v10920 = vpop.f32.mrf.mxu0
        %v10921 = vadd.f32 %v10832, %v10920
        %v10922 = vpop.f32.mrf.mxu0
        %v10923 = vadd.f32 %v10834, %v10922
        %10924 = vmatmul.bf16.gmra.mxu0 %v9592
        %v10925 = vpop.f32.mrf.mxu0
        %v10926 = vadd.f32 %v10837, %v10925
        %v10927 = vpop.f32.mrf.mxu0
        %v10928 = vadd.f32 %v10839, %v10927
        %10929 = vmatmul.bf16.gmra.mxu0 %v9601
        %v10930 = vpop.f32.mrf.mxu0
        %v10931 = vadd.f32 %v10842, %v10930
        %v10932 = vpop.f32.mrf.mxu0
        %v10933 = vadd.f32 %v10844, %v10932
        %10934 = vmatmul.bf16.gmra.mxu0 %v9610
        %v10935 = vpop.f32.mrf.mxu0
        %v10936 = vadd.f32 %v10847, %v10935
        %v10937 = vpop.f32.mrf.mxu0
        %v10938 = vadd.f32 %v10849, %v10937
        %10939 = vmatmul.bf16.gmra.mxu0 %v9619
        %v10940 = vpop.f32.mrf.mxu0
        %v10941 = vadd.f32 %v10852, %v10940
        %v10942 = vpop.f32.mrf.mxu0
        %v10943 = vadd.f32 %v10854, %v10942
        %10944 = vmatmul.bf16.gmra.mxu0 %v9628
        %v10945 = vpop.f32.mrf.mxu0
        %v10946 = vadd.f32 %v10857, %v10945
        %v10947 = vpop.f32.mrf.mxu0
        %v10948 = vadd.f32 %v10859, %v10947
        %10949 = vmatmul.bf16.gmra.mxu0 %v9637
        %v10950 = vpop.f32.mrf.mxu0
        %v10951 = vadd.f32 %v10862, %v10950
        %v10952 = vpop.f32.mrf.mxu0
        %v10953 = vadd.f32 %v10864, %v10952
        %10954 = vmatmul.bf16.gmra.mxu0 %v9646
        %v10955 = vpop.f32.mrf.mxu0
        %v10956 = vadd.f32 %v10867, %v10955
        %v10957 = vpop.f32.mrf.mxu0
        %v10958 = vadd.f32 %v10869, %v10957
        %10959 = vmatmul.bf16.gmra.mxu0 %v9655
        %v10960 = vpop.f32.mrf.mxu0
        %v10961 = vadd.f32 %v10872, %v10960
        %v10962 = vpop.f32.mrf.mxu0
        %v10963 = vadd.f32 %v10874, %v10962
        %10964 = vmatmul.bf16.gmra.mxu0 %v9664
        %v10965 = vpop.f32.mrf.mxu0
        %v10966 = vadd.f32 %v10877, %v10965
        %v10967 = vpop.f32.mrf.mxu0
        %v10968 = vadd.f32 %v10879, %v10967
        %10969 = vmatmul.bf16.gmra.mxu0 %v9673
        %v10970 = vpop.f32.mrf.mxu0
        %v10971 = vadd.f32 %v10882, %v10970
        %v10972 = vpop.f32.mrf.mxu0
        %v10973 = vadd.f32 %v10884, %v10972
        %10974 = vmatmul.bf16.gmra.mxu0 %v9682
        %v10975 = vpop.f32.mrf.mxu0
        %v10976 = vadd.f32 %v10887, %v10975
        %v10977 = vpop.f32.mrf.mxu0
        %v10978 = vadd.f32 %v10889, %v10977
        %10979 = vmatmul.bf16.gmra.mxu0 %v9691
        %v10980 = vpop.f32.mrf.mxu0
        %v10981 = vadd.f32 %v10892, %v10980
        %v10982 = vpop.f32.mrf.mxu0
        %v10983 = vadd.f32 %v10894, %v10982
        %10984 = vmatmul.bf16.gmra.mxu0 %v9700
        %v10985 = vpop.f32.mrf.mxu0
        %v10986 = vadd.f32 %v10897, %v10985
        %v10987 = vpop.f32.mrf.mxu0
        %v10988 = vadd.f32 %v10899, %v10987
        %10989 = vdwg.mxu0
        %10990 = vmatpush.bf16.msra.mxu0 %v10205
        %10991 = vmatpush.bf16.msra.mxu0 %v10204
        %10992 = vmatpush.bf16.msra.mxu0 %v10203
        %10993 = vmatpush.bf16.msra.mxu0 %v10202
        %10994 = vmatpush.bf16.msra.mxu0 %v10201
        %10995 = vmatpush.bf16.msra.mxu0 %v10200
        %10996 = vmatpush.bf16.msra.mxu0 %v10199
        %10997 = vmatpush.bf16.msra.mxu0 %v10198
        %10998 = vmatmul.bf16.gmra.mxu0 %v9566
        %v10999 = vpop.f32.mrf.mxu0
        %v11000 = vadd.f32 %v10911, %v10999
        %v11001 = vpop.f32.mrf.mxu0
        %v11002 = vadd.f32 %v10913, %v11001
        %11003 = vmatmul.bf16.gmra.mxu0 %v9575
        %v11004 = vpop.f32.mrf.mxu0
        %v11005 = vadd.f32 %v10916, %v11004
        %v11006 = vpop.f32.mrf.mxu0
        %v11007 = vadd.f32 %v10918, %v11006
        %11008 = vmatmul.bf16.gmra.mxu0 %v9584
        %v11009 = vpop.f32.mrf.mxu0
        %v11010 = vadd.f32 %v10921, %v11009
        %v11011 = vpop.f32.mrf.mxu0
        %v11012 = vadd.f32 %v10923, %v11011
        %11013 = vmatmul.bf16.gmra.mxu0 %v9593
        %v11014 = vpop.f32.mrf.mxu0
        %v11015 = vadd.f32 %v10926, %v11014
        %v11016 = vpop.f32.mrf.mxu0
        %v11017 = vadd.f32 %v10928, %v11016
        %11018 = vmatmul.bf16.gmra.mxu0 %v9602
        %v11019 = vpop.f32.mrf.mxu0
        %v11020 = vadd.f32 %v10931, %v11019
        %v11021 = vpop.f32.mrf.mxu0
        %v11022 = vadd.f32 %v10933, %v11021
        %11023 = vmatmul.bf16.gmra.mxu0 %v9611
        %v11024 = vpop.f32.mrf.mxu0
        %v11025 = vadd.f32 %v10936, %v11024
        %v11026 = vpop.f32.mrf.mxu0
        %v11027 = vadd.f32 %v10938, %v11026
        %11028 = vmatmul.bf16.gmra.mxu0 %v9620
        %v11029 = vpop.f32.mrf.mxu0
        %v11030 = vadd.f32 %v10941, %v11029
        %v11031 = vpop.f32.mrf.mxu0
        %v11032 = vadd.f32 %v10943, %v11031
        %11033 = vmatmul.bf16.gmra.mxu0 %v9629
        %v11034 = vpop.f32.mrf.mxu0
        %v11035 = vadd.f32 %v10946, %v11034
        %v11036 = vpop.f32.mrf.mxu0
        %v11037 = vadd.f32 %v10948, %v11036
        %11038 = vmatmul.bf16.gmra.mxu0 %v9638
        %v11039 = vpop.f32.mrf.mxu0
        %v11040 = vadd.f32 %v10951, %v11039
        %v11041 = vpop.f32.mrf.mxu0
        %v11042 = vadd.f32 %v10953, %v11041
        %11043 = vmatmul.bf16.gmra.mxu0 %v9647
        %v11044 = vpop.f32.mrf.mxu0
        %v11045 = vadd.f32 %v10956, %v11044
        %v11046 = vpop.f32.mrf.mxu0
        %v11047 = vadd.f32 %v10958, %v11046
        %11048 = vmatmul.bf16.gmra.mxu0 %v9656
        %v11049 = vpop.f32.mrf.mxu0
        %v11050 = vadd.f32 %v10961, %v11049
        %v11051 = vpop.f32.mrf.mxu0
        %v11052 = vadd.f32 %v10963, %v11051
        %11053 = vmatmul.bf16.gmra.mxu0 %v9665
        %v11054 = vpop.f32.mrf.mxu0
        %v11055 = vadd.f32 %v10966, %v11054
        %v11056 = vpop.f32.mrf.mxu0
        %v11057 = vadd.f32 %v10968, %v11056
        %11058 = vmatmul.bf16.gmra.mxu0 %v9674
        %v11059 = vpop.f32.mrf.mxu0
        %v11060 = vadd.f32 %v10971, %v11059
        %v11061 = vpop.f32.mrf.mxu0
        %v11062 = vadd.f32 %v10973, %v11061
        %11063 = vmatmul.bf16.gmra.mxu0 %v9683
        %v11064 = vpop.f32.mrf.mxu0
        %v11065 = vadd.f32 %v10976, %v11064
        %v11066 = vpop.f32.mrf.mxu0
        %v11067 = vadd.f32 %v10978, %v11066
        %11068 = vmatmul.bf16.gmra.mxu0 %v9692
        %v11069 = vpop.f32.mrf.mxu0
        %v11070 = vadd.f32 %v10981, %v11069
        %v11071 = vpop.f32.mrf.mxu0
        %v11072 = vadd.f32 %v10983, %v11071
        %11073 = vmatmul.bf16.gmra.mxu0 %v9701
        %v11074 = vpop.f32.mrf.mxu0
        %v11075 = vadd.f32 %v10986, %v11074
        %v11076 = vpop.f32.mrf.mxu0
        %v11077 = vadd.f32 %v10988, %v11076
        %11078 = vdwg.mxu0
        %v11079 = vld [vmem:[%s5] sm:$0x1]
        %v11081 = vperm.slane %v11079, 0
        %v11083 = vmul.f32 %v11000, %v11081
        %v11084 = vmul.f32 %v11002, %v11081
        %v11085 = vmul.f32 %v11005, %v11081
        %v11086 = vmul.f32 %v11007, %v11081
        %v11087 = vmul.f32 %v11010, %v11081
        %v11088 = vmul.f32 %v11012, %v11081
        %v11089 = vmul.f32 %v11015, %v11081
        %v11090 = vmul.f32 %v11017, %v11081
        %v11091 = vmul.f32 %v11020, %v11081
        %v11092 = vmul.f32 %v11022, %v11081
        %v11093 = vmul.f32 %v11025, %v11081
        %v11094 = vmul.f32 %v11027, %v11081
        %v11095 = vmul.f32 %v11030, %v11081
        %v11096 = vmul.f32 %v11032, %v11081
        %v11097 = vmul.f32 %v11035, %v11081
        %v11098 = vmul.f32 %v11037, %v11081
        %v11099 = vmul.f32 %v11040, %v11081
        %v11100 = vmul.f32 %v11042, %v11081
        %v11101 = vmul.f32 %v11045, %v11081
        %v11102 = vmul.f32 %v11047, %v11081
        %v11103 = vmul.f32 %v11050, %v11081
        %v11104 = vmul.f32 %v11052, %v11081
        %v11105 = vmul.f32 %v11055, %v11081
        %v11106 = vmul.f32 %v11057, %v11081
        %v11107 = vmul.f32 %v11060, %v11081
        %v11108 = vmul.f32 %v11062, %v11081
        %v11109 = vmul.f32 %v11065, %v11081
        %v11110 = vmul.f32 %v11067, %v11081
        %v11111 = vmul.f32 %v11070, %v11081
        %v11112 = vmul.f32 %v11072, %v11081
        %v11113 = vmul.f32 %v11075, %v11081
        %v11114 = vmul.f32 %v11077, %v11081
        %v11115 = vld [vmem:[%s6] sm:$0x1]
        %v11117 = vperm.slane %v11115, 0
        %v11119 = vadd.f32 %v11083, %v11117
        %v11120 = vadd.f32 %v11084, %v11117
        %v11121 = vadd.f32 %v11085, %v11117
        %v11122 = vadd.f32 %v11086, %v11117
        %v11123 = vadd.f32 %v11087, %v11117
        %v11124 = vadd.f32 %v11088, %v11117
        %v11125 = vadd.f32 %v11089, %v11117
        %v11126 = vadd.f32 %v11090, %v11117
        %v11127 = vadd.f32 %v11091, %v11117
        %v11128 = vadd.f32 %v11092, %v11117
        %v11129 = vadd.f32 %v11093, %v11117
        %v11130 = vadd.f32 %v11094, %v11117
        %v11131 = vadd.f32 %v11095, %v11117
        %v11132 = vadd.f32 %v11096, %v11117
        %v11133 = vadd.f32 %v11097, %v11117
        %v11134 = vadd.f32 %v11098, %v11117
        %v11135 = vadd.f32 %v11099, %v11117
        %v11136 = vadd.f32 %v11100, %v11117
        %v11137 = vadd.f32 %v11101, %v11117
        %v11138 = vadd.f32 %v11102, %v11117
        %v11139 = vadd.f32 %v11103, %v11117
        %v11140 = vadd.f32 %v11104, %v11117
        %v11141 = vadd.f32 %v11105, %v11117
        %v11142 = vadd.f32 %v11106, %v11117
        %v11143 = vadd.f32 %v11107, %v11117
        %v11144 = vadd.f32 %v11108, %v11117
        %v11145 = vadd.f32 %v11109, %v11117
        %v11146 = vadd.f32 %v11110, %v11117
        %v11147 = vadd.f32 %v11111, %v11117
        %v11148 = vadd.f32 %v11112, %v11117
        %v11149 = vadd.f32 %v11113, %v11117
        %v11150 = vadd.f32 %v11114, %v11117
        %v11151 = vmax.f32 %v11119, 0.0
        %v11152 = vmax.f32 %v11120, 0.0
        %v11153 = vmax.f32 %v11121, 0.0
        %v11154 = vmax.f32 %v11122, 0.0
        %v11155 = vmax.f32 %v11123, 0.0
        %v11156 = vmax.f32 %v11124, 0.0
        %v11157 = vmax.f32 %v11125, 0.0
        %v11158 = vmax.f32 %v11126, 0.0
        %v11159 = vmax.f32 %v11127, 0.0
        %v11160 = vmax.f32 %v11128, 0.0
        %v11161 = vmax.f32 %v11129, 0.0
        %v11162 = vmax.f32 %v11130, 0.0
        %v11163 = vmax.f32 %v11131, 0.0
        %v11164 = vmax.f32 %v11132, 0.0
        %v11165 = vmax.f32 %v11133, 0.0
        %v11166 = vmax.f32 %v11134, 0.0
        %v11167 = vmax.f32 %v11135, 0.0
        %v11168 = vmax.f32 %v11136, 0.0
        %v11169 = vmax.f32 %v11137, 0.0
        %v11170 = vmax.f32 %v11138, 0.0
        %v11171 = vmax.f32 %v11139, 0.0
        %v11172 = vmax.f32 %v11140, 0.0
        %v11173 = vmax.f32 %v11141, 0.0
        %v11174 = vmax.f32 %v11142, 0.0
        %v11175 = vmax.f32 %v11143, 0.0
        %v11176 = vmax.f32 %v11144, 0.0
        %v11177 = vmax.f32 %v11145, 0.0
        %v11178 = vmax.f32 %v11146, 0.0
        %v11179 = vmax.f32 %v11147, 0.0
        %v11180 = vmax.f32 %v11148, 0.0
        %v11181 = vmax.f32 %v11149, 0.0
        %v11182 = vmax.f32 %v11150, 0.0
        %v11183 = vmax.f32 %v11151, %v11153
        %v11184 = vmax.f32 %v11152, %v11154
        %v11185 = vmax.f32 %v11155, %v11157
        %v11186 = vmax.f32 %v11156, %v11158
        %v11187 = vmax.f32 %v11159, %v11161
        %v11188 = vmax.f32 %v11160, %v11162
        %v11189 = vmax.f32 %v11163, %v11165
        %v11190 = vmax.f32 %v11164, %v11166
        %v11191 = vmax.f32 %v11167, %v11169
        %v11192 = vmax.f32 %v11168, %v11170
        %v11193 = vmax.f32 %v11171, %v11173
        %v11194 = vmax.f32 %v11172, %v11174
        %v11195 = vmax.f32 %v11175, %v11177
        %v11196 = vmax.f32 %v11176, %v11178
        %v11197 = vmax.f32 %v11179, %v11181
        %v11198 = vmax.f32 %v11180, %v11182
        %v11199 = vrot.slane %v11183, 1
        %v11200 = vrot.slane %v11184, 1
        %v11201 = vrot.slane %v11185, 1
        %v11202 = vrot.slane %v11186, 1
        %v11203 = vrot.slane %v11187, 1
        %v11204 = vrot.slane %v11188, 1
        %v11205 = vrot.slane %v11189, 1
        %v11206 = vrot.slane %v11190, 1
        %v11207 = vrot.slane %v11191, 1
        %v11208 = vrot.slane %v11192, 1
        %v11209 = vrot.slane %v11193, 1
        %v11210 = vrot.slane %v11194, 1
        %v11211 = vrot.slane %v11195, 1
        %v11212 = vrot.slane %v11196, 1
        %v11213 = vrot.slane %v11197, 1
        %v11214 = vrot.slane %v11198, 1
        %v11215 = vlaneseq
        %v11216 = vshrl.u32 %v11215, 7
        %vm11217 = vcmp.lt.s32.totalorder %v11216, 7
        %v11218 = vsel %vm11217, %v11213, %v11214
        %v11219 = vsel %vm11217, %v11212, %v11213
        %v11220 = vsel %vm11217, %v11211, %v11212
        %v11221 = vsel %vm11217, %v11210, %v11211
        %v11222 = vsel %vm11217, %v11209, %v11210
        %v11223 = vsel %vm11217, %v11208, %v11209
        %v11224 = vsel %vm11217, %v11207, %v11208
        %v11225 = vsel %vm11217, %v11206, %v11207
        %v11226 = vsel %vm11217, %v11205, %v11206
        %v11227 = vsel %vm11217, %v11204, %v11205
        %v11228 = vsel %vm11217, %v11203, %v11204
        %v11229 = vsel %vm11217, %v11202, %v11203
        %v11230 = vsel %vm11217, %v11201, %v11202
        %v11231 = vsel %vm11217, %v11200, %v11201
        %v11232 = vsel %vm11217, %v11199, %v11200
        %v11233 = vsel %vm11217, %v11214, %v11199
        %v11234 = vmax.f32 %v11183, %v11232
        %v11235 = vmax.f32 %v11184, %v11231
        %v11236 = vmax.f32 %v11185, %v11230
        %v11237 = vmax.f32 %v11186, %v11229
        %v11238 = vmax.f32 %v11187, %v11228
        %v11239 = vmax.f32 %v11188, %v11227
        %v11240 = vmax.f32 %v11189, %v11226
        %v11241 = vmax.f32 %v11190, %v11225
        %v11242 = vmax.f32 %v11191, %v11224
        %v11243 = vmax.f32 %v11192, %v11223
        %v11244 = vmax.f32 %v11193, %v11222
        %v11245 = vmax.f32 %v11194, %v11221
        %v11246 = vmax.f32 %v11195, %v11220
        %v11247 = vmax.f32 %v11196, %v11219
        %v11248 = vmax.f32 %v11197, %v11218
        %v11249 = vmax.f32 %v11198, %v11233
        %v11250 = vld [vmem:[#allocation10] sm:$0xff]
        %v11251 = vld [vmem:[#allocation10 + $0x8] sm:$0xff]
        %v11252 = vld [vmem:[#allocation10 + $0x10] sm:$0xff]
        %v11253 = vld [vmem:[#allocation10 + $0x18] sm:$0xff]
        %v11254 = vld [vmem:[#allocation10 + $0x20] sm:$0xff]
        %v11255 = vld [vmem:[#allocation10 + $0x28] sm:$0xff]
        %v11256 = vld [vmem:[#allocation10 + $0x30] sm:$0xff]
        %v11257 = vld [vmem:[#allocation10 + $0x38] sm:$0xff]
        %11258 = vmatpush.msra.mxu0 %v11249
        %11259 = vmatpush.msra.mxu0 %v11248
        %11260 = vmatpush.msra.mxu0 %v11247
        %11261 = vmatpush.msra.mxu0 %v11246
        %11262 = vmatpush.msra.mxu0 %v11245
        %11263 = vmatpush.msra.mxu0 %v11244
        %11264 = vmatpush.msra.mxu0 %v11243
        %11265 = vmatpush.msra.mxu0 %v11242
        %11266 = vmatpush.msra.mxu0 %v11241
        %11267 = vmatpush.msra.mxu0 %v11240
        %11268 = vmatpush.msra.mxu0 %v11239
        %11269 = vmatpush.msra.mxu0 %v11238
        %11270 = vmatpush.msra.mxu0 %v11237
        %11271 = vmatpush.msra.mxu0 %v11236
        %11272 = vmatpush.msra.mxu0 %v11235
        %11273 = vmatpush.msra.mxu0 %v11234
        %11274 = vmatmul.f32.gmra.mxu0 %v11250
        %v11275 = vpop.f32.mrf.mxu0
        %v11276 = vadd.f32 0.0, %v11275
        %11277 = vmatmul.f32.gmra.mxu0 %v11251
        %v11278 = vpop.f32.mrf.mxu0
        %v11279 = vadd.f32 0.0, %v11278
        %11280 = vmatmul.f32.gmra.mxu0 %v11252
        %v11281 = vpop.f32.mrf.mxu0
        %v11282 = vadd.f32 0.0, %v11281
        %11283 = vmatmul.f32.gmra.mxu0 %v11253
        %v11284 = vpop.f32.mrf.mxu0
        %v11285 = vadd.f32 0.0, %v11284
        %11286 = vmatmul.f32.gmra.mxu0 %v11254
        %v11287 = vpop.f32.mrf.mxu0
        %v11288 = vadd.f32 0.0, %v11287
        %11289 = vmatmul.f32.gmra.mxu0 %v11255
        %v11290 = vpop.f32.mrf.mxu0
        %v11291 = vadd.f32 0.0, %v11290
        %11292 = vmatmul.f32.gmra.mxu0 %v11256
        %v11293 = vpop.f32.mrf.mxu0
        %v11294 = vadd.f32 0.0, %v11293
        %11295 = vmatmul.f32.gmra.mxu0 %v11257
        %v11296 = vpop.f32.mrf.mxu0
        %v11297 = vadd.f32 0.0, %v11296
        %11298 = vdwg.mxu0
        %11299 = vst [vmem:[%s375] sm:$0xff] %v11276
        %11300 = vst [vmem:[%s375 + $0x8] sm:$0xff] %v11279
        %11301 = vst [vmem:[%s375 + $0x10] sm:$0xff] %v11282
        %11302 = vst [vmem:[%s375 + $0x18] sm:$0xff] %v11285
        %11303 = vst [vmem:[%s375 + $0x20] sm:$0xff] %v11288
        %11304 = vst [vmem:[%s375 + $0x28] sm:$0xff] %v11291
        %11305 = vst [vmem:[%s375 + $0x30] sm:$0xff] %v11294
        %11306 = vst [vmem:[%s375 + $0x38] sm:$0xff] %v11297
        %s11307 = sand.u32 %s208, 1
        %s11308 = scalar_lea.sflag [#allocation6], %s11307
        %s11309 = sand.u32 %s208, 1
        %s11310 = smul.addr %s11309, 64
        %s11311 = scalar_lea.vmem [#allocation12], %s11310
        // Predicated region
        $region69: #{tpu_custom_call.1} parent=51 // pred_check
          %p11312 = pneg %p218
        $region70: #{tpu_custom_call.1} parent=51 // pred_check_branch
          %11314 = sbr.rel (%p11312) target = $region72
        $region71: #{tpu_custom_call.1} parent=51 // pred_region
          %11316 = vsyncadd %s11308, 0
          %s11317 = smul.addr %s27, 8
          %s11318 = smul.addr %s11317, 8
          %s11319 = scalar_lea.hbm %s8, %s11318
          %s11320 = sshll.u32 %s11311, 4
          %s11321 = int_to_ptr.vmem [resolvable:$true] %s11320
          %s11322 = sshll.u32 %s11319, 4
          %s11323 = int_to_ptr.hbm [resolvable:$true] %s11322
          %11328 = dma.vmem_to_hbm [thread:$0]  %s11321, 1024, %s11323, %s11308, 128, 128, 8
        $region72: #{tpu_custom_call.1} parent=51 // pred_fallthru
          _
      $region52: #{tpu_custom_call.1} parent=5 // pred_fallthru
        _
      %p11329 = scmp.le.s32.totalorder 2, %s22
      // Predicated region
      $region73: #{tpu_custom_call.1} parent=5 // pred_check
        %p11330 = pneg %p11329
      $region74: #{tpu_custom_call.1} parent=5 // pred_check_branch
        %11332 = sbr.rel (%p11330) target = $region76
      $region75: #{tpu_custom_call.1} parent=5 // pred_region
        %s11333 = ssub.s32 %s22, 2
        // Predicated region
        $region77: #{tpu_custom_call.1} parent=75 // pred_check
          %p11334 = pneg %p224
        $region78: #{tpu_custom_call.1} parent=75 // pred_check_branch
          %11336 = sbr.rel (%p11334) target = $region80
        $region79: #{tpu_custom_call.1} parent=75 // pred_region
          %s11337 = sand.u32 %s209, 1
          %s11338 = scalar_lea.sflag [#allocation6], %s11337
          %s11339 = sand.u32 %s209, 1
          %s11340 = smul.addr %s11339, 64
          %s11341 = scalar_lea.vmem [#allocation12], %s11340
          %11343 = dma.done %s11338, 1024
        $region80: #{tpu_custom_call.1} parent=75 // pred_fallthru
          _
      $region76: #{tpu_custom_call.1} parent=5 // pred_fallthru
        _
    $region6: #{tpu_custom_call.1} parent=1 // loop_footer
      %s26 = sadd.s32 1, %s22
    $region7: #{tpu_custom_call.1} parent=1 // loop_footer_branch
      %21 = sbr.rel target = $region3
    $region8: #{tpu_custom_call.1} parent=1 // loop_exit
      _
    %11344 = vsyncpa [#allocation5], 1
    %s11345 = scalar_lea.sflag [#allocation5], 1
    %11346 = vsyncpa %s11345, 1
    %11347 = vsyncpa [#allocation8], 1
    %11348 = vsyncpa [#allocation11], 1
    %11349 = vsyncpa [#allocation6], 1
    %s11350 = scalar_lea.sflag [#allocation6], 1
    %11351 = vsyncpa %s11350, 1

</llo_original>
